<compile_context>
chip_gen: v5e
topology: v5e:2x2
jax: 0.10.0
libtpu: 0.0.40
codegen_flags: <defaults>
</compile_context>

<pallas_src>
import math

import jax
import jax.numpy as jnp
from jax.experimental import pallas as pl
from jax.experimental.pallas import tpu as pltpu

# ---- static module configuration (small synthetic sizes) ----
IN_CHANNELS = 32                     # C
N_HEAD = 4
D_K = 4
HK = N_HEAD * D_K                    # 16 (q or k feature width)
D_HEAD = IN_CHANNELS // N_HEAD       # 8  (value dim per head)
NUM_GROUPS = 4
GN_EPS = 1e-5

_LANE = 128


def _ltae_block_kernel(x_ref, g1_ref, b1_ref, wqk_ref, wm_ref, bm_ref, o_ref):
    """Full transformer block for a tile of pixel-sequences.

    Layout: pixels on the lane (last) axis; everything elementwise / softmax /
    GroupNorm is lane-dense and the output store is an unmasked vst.
      x_ref/o_ref : (T, C, TILE_N)
      g1/b1       : (C, 1)            GroupNorm1 affine (broadcast over lanes)
      wqk_ref     : (2*T*HK, T*C)     block-diagonal fused Q|K weight
                      rows [0, T*HK): q, ordered (t, head*d_k+d)
                      rows [T*HK, ..): k, ordered (head*d_k+d, t)
      wm_ref      : (T*C, T*C)        block-diagonal MLP weight (gamma2 folded in)
      bm_ref      : (T*C, 1)          MLP bias (beta2 folded in), per-t replicated
    """
    x = x_ref[...].astype(jnp.float32)                      # (T, C, N)
    t_len, c_len, n = x.shape
    gsz = c_len // NUM_GROUPS

    def gnorm(z):
        # (T, C, N) -> (T*G, gsz, N) is layout-free (gsz == 8 == f32 sublane tile);
        # the group reduce is a sublane reduce (XLU), no MXU involved.
        zg = z.reshape(t_len * NUM_GROUPS, gsz, n)
        mean = jnp.mean(zg, axis=1, keepdims=True)
        zc = zg - mean
        var = jnp.mean(zc * zc, axis=1, keepdims=True)
        return (zc * jax.lax.rsqrt(var + GN_EPS)).reshape(t_len, c_len, n)

    # ---- pre-norm 1 + fused Q/K projection (single 2-D MXU matmul) ----
    xn = gnorm(x) * g1_ref[...] + b1_ref[...]               # (T, C, N)
    qk_flat = jnp.dot(wqk_ref[...], xn.reshape(t_len * c_len, n),
                      preferred_element_type=jnp.float32)   # (2*T*HK, N)
    q = qk_flat[:t_len * HK].reshape(t_len, HK, n)          # (T, HK, N): t leading
    k = qk_flat[t_len * HK:].reshape(HK, t_len, n)          # (HK, S, N): s on sublanes

    inv_temp = 1.0 / math.sqrt(D_K)
    head_outs = []
    for h in range(N_HEAD):
        # scores[t, s, n] = sum_d q[t, h, d, n] * k[s, h, d, n]   (lane-dense VPU)
        scores = None
        for d in range(D_K):
            j = h * D_K + d
            qv = q[:, j:j + 1, :]                           # (T, 1, N)
            kv = k[j][None, :, :]                           # (1, S, N)  free slice
            term = qv * kv                                  # (T, S, N)
            scores = term if scores is None else scores + term
        scores = scores * inv_temp
        scores = scores - jnp.max(scores, axis=1, keepdims=True)
        e = jnp.exp(scores)
        denom = jnp.sum(e, axis=1, keepdims=True)           # (T, 1, N)
        r = pl.reciprocal(denom, approx=True)               # EUP slot
        r = r * (2.0 - denom * r)                           # one Newton step -> ~fp32 exact
        attn = e * r                                        # (T, S, N)

        vh = xn[:, h * D_HEAD:(h + 1) * D_HEAD, :]          # (S, D_HEAD, N), 8-sublane aligned
        o_h = None
        for s in range(t_len):
            term = attn[:, s:s + 1, :] * vh[s][None, :, :]  # (T, D_HEAD, N)
            o_h = term if o_h is None else o_h + term
        head_outs.append(o_h)

    sa = jnp.concatenate(head_outs, axis=1)                 # (T, C, N), tile-aligned concat
    out1 = x + sa                                           # residual 1

    # ---- pre-norm 2 (affine folded into weights) + Linear + ReLU ----
    yn = gnorm(out1)                                        # un-affined normalized value
    ff_flat = jnp.dot(wm_ref[...], yn.reshape(t_len * c_len, n),
                      preferred_element_type=jnp.float32) + bm_ref[...]
    ff = jnp.maximum(ff_flat, 0.0).reshape(t_len, c_len, n)

    o_ref[...] = (out1 + ff).astype(o_ref.dtype)


def _select_tiling():
    """(tile cap, vmem limit) per generation; conservative default for unknown parts."""
    cap, vmem = 512, 32 * 1024 * 1024          # safe on v7x (64 MiB VMEM, 2 TCs)
    try:
        kind = jax.devices()[0].device_kind.lower()
        if ("v5" in kind) or ("v6" in kind):   # 128 MiB VMEM, single TC -> go big
            cap, vmem = 1024, 64 * 1024 * 1024
    except Exception:
        pass
    return cap, vmem


def _pick_tile_n(n_tot, batch, cap):
    """Largest 128-multiple tile (<= cap) dividing n_tot; prefer >= 2 total grid steps."""
    divs = [t for t in range(_LANE, min(n_tot, cap) + 1, _LANE) if n_tot % t == 0]
    if not divs:
        return _LANE
    if batch == 1:
        multi = [t for t in divs if n_tot // t >= 2]
        if multi:
            return max(multi)
    return max(divs)


def ltae_transformer_forward(x, params, *, tile_n=None):
    """x: (B, T, C, H, W) float32  ->  (B, T, C, H, W) float32."""
    wq, wk, g1, b1, g2, b2, wm, bm = params                 # PyTorch parameter layouts
    B, T, C, H, W = x.shape
    assert C == IN_CHANNELS and C % NUM_GROUPS == 0 and C % N_HEAD == 0
    HW = H * W

    # Native layout, no transposes: just a free trailing merge (+ lane pad if needed).
    xr = x.reshape(B, T, C, HW)
    n_pad = (-HW) % _LANE
    if n_pad:
        xr = jnp.pad(xr, ((0, 0), (0, 0), (0, 0), (0, n_pad)))
    n_tot = HW + n_pad

    cap, vmem_limit = _select_tiling()
    if tile_n is None:
        tile_n = _pick_tile_n(n_tot, B, cap)
    assert n_tot % tile_n == 0 and tile_n % _LANE == 0
    grid = (B, n_tot // tile_n)

    # ---- tiny host-side parameter prep ----
    f32 = jnp.float32
    eye_t = jnp.eye(T, dtype=f32)
    wqf, wkf = wq.astype(f32), wk.astype(f32)
    # Block-diagonal fused Q|K weight. Row ordering chosen so the kernel's reshapes of
    # the matmul result are layout-free:
    #   q rows: (t, j)  -> q viewed as (T, HK, N)     (query time leading)
    #   k rows: (j, t)  -> k viewed as (HK, T, N)     (key time on sublanes)
    wq_blk = jnp.einsum('st,jc->sjtc', eye_t, wqf).reshape(T * HK, T * C)
    wk_blk = jnp.einsum('st,jc->jstc', eye_t, wkf).reshape(HK * T, T * C)
    wqk_big = jnp.concatenate([wq_blk, wk_blk], axis=0)     # (2*T*HK, T*C)

    # Fold GroupNorm2 affine into the MLP Linear: Wm' = Wm * g2_cols, bm' = bm + Wm @ b2.
    wmf = wm.astype(f32)
    wm_fold = wmf * g2.astype(f32)[None, :]
    bm_fold = bm.astype(f32) + wmf @ b2.astype(f32)
    wm_big = jnp.einsum('st,jc->sjtc', eye_t, wm_fold).reshape(T * C, T * C)
    bm_big = jnp.tile(bm_fold, T).reshape(T * C, 1)

    g1c = g1.reshape(C, 1).astype(f32)
    b1c = b1.reshape(C, 1).astype(f32)

    out = pl.pallas_call(
        _ltae_block_kernel,
        out_shape=jax.ShapeDtypeStruct((B, T, C, n_tot), x.dtype),
        grid_spec=pltpu.PrefetchScalarGridSpec(
            num_scalar_prefetch=0,
            grid=grid,
            in_specs=[
                pl.BlockSpec((None, T, C, tile_n), lambda b, i: (b, 0, 0, i)),  # x block
                pl.BlockSpec((C, 1), lambda b, i: (0, 0)),                      # gamma1
                pl.BlockSpec((C, 1), lambda b, i: (0, 0)),                      # beta1
                pl.BlockSpec((2 * T * HK, T * C), lambda b, i: (0, 0)),         # block-diag Wq|Wk
                pl.BlockSpec((T * C, T * C), lambda b, i: (0, 0)),              # block-diag Wm
                pl.BlockSpec((T * C, 1), lambda b, i: (0, 0)),                  # MLP bias
            ],
            out_specs=pl.BlockSpec((None, T, C, tile_n), lambda b, i: (b, 0, 0, i)),
        ),
        compiler_params=pltpu.CompilerParams(
            dimension_semantics=("parallel", "parallel"),
            vmem_limit_bytes=vmem_limit),
    )(xr, g1c, b1c, wqk_big, wm_big, bm_big)

    out = out[..., :HW]
    return out.reshape(B, T, C, H, W)


def ref_forward(x, params):
    """Pure-JAX reference of the same forward pass (correctness check)."""
    wq, wk, g1, b1, g2, b2, wm, bm = params
    B, T, C, H, W = x.shape
    N = B * H * W
    o = jnp.transpose(x, (0, 3, 4, 1, 2)).reshape(N, T, C).astype(jnp.float32)

    def gn(z, gamma, beta):
        zg = z.reshape(N, T, NUM_GROUPS, C // NUM_GROUPS)
        m = zg.mean(-1, keepdims=True)
        v = ((zg - m) ** 2).mean(-1, keepdims=True)
        zn = ((zg - m) / jnp.sqrt(v + GN_EPS)).reshape(N, T, C)
        return zn * gamma.reshape(C) + beta.reshape(C)

    xn = gn(o, g1, b1)
    q = jnp.einsum('ntc,jc->ntj', xn, wq).reshape(N, T, N_HEAD, D_K)
    k = jnp.einsum('ntc,jc->ntj', xn, wk).reshape(N, T, N_HEAD, D_K)
    heads = []
    for h in range(N_HEAD):
        s = jnp.einsum('ntd,nsd->nts', q[:, :, h], k[:, :, h]) / math.sqrt(D_K)
        a = jax.nn.softmax(s, axis=-1)
        heads.append(jnp.einsum('nts,nsd->ntd', a,
                                xn[:, :, h * D_HEAD:(h + 1) * D_HEAD]))
    sa = jnp.concatenate(heads, -1)
    o1 = o + sa
    yn = gn(o1, g2, b2)
    ff = jnp.maximum(jnp.einsum('ntc,jc->ntj', yn, wm) + bm.reshape(C), 0.0)
    out = o1 + ff
    return jnp.transpose(out.reshape(B, H, W, T, C), (0, 3, 4, 1, 2))


def init_params(key):
    """Deterministic synthetic parameters in PyTorch (out, in) layouts."""
    C = IN_CHANNELS
    k = jax.random.split(key, 8)
    std_qk = (2.0 / D_K) ** 0.5
    wq = std_qk * jax.random.normal(k[0], (HK, C), jnp.float32)   # fc_q.weight
    wk = std_qk * jax.random.normal(k[1], (HK, C), jnp.float32)   # fc_k.weight
    g1 = 1.0 + 0.1 * jax.random.normal(k[2], (C,), jnp.float32)
    b1 = 0.1 * jax.random.normal(k[3], (C,), jnp.float32)
    g2 = 1.0 + 0.1 * jax.random.normal(k[4], (C,), jnp.float32)
    b2 = 0.1 * jax.random.normal(k[5], (C,), jnp.float32)
    wm = 0.2 * jax.random.normal(k[6], (C, C), jnp.float32)       # mlp Linear weight (out, in)
    bm = 0.1 * jax.random.normal(k[7], (C,), jnp.float32)
    return (wq, wk, g1, b1, g2, b2, wm, bm)


if __name__ == "__main__":
    # TODO(synk): positional encoder branch skipped (batch_positions=None), pad_mask=None,
    #             dropout layers are identity (inference mode) — matches eval() forward.
    key = jax.random.PRNGKey(0)
    kx, kp = jax.random.split(key)
    B, T, C, H, W = 2, 8, IN_CHANNELS, 16, 16          # x: (B, T, C, H, W); 512 pixel seqs
    x = jax.random.normal(kx, (B, T, C, H, W), jnp.float32)
    params = init_params(kp)

    out = jax.block_until_ready(ltae_transformer_forward(x, params))
    ref = jax.block_until_ready(ref_forward(x, params))

    assert out.shape == (B, T, C, H, W)
    max_err = float(jnp.max(jnp.abs(out - ref)))
    assert max_err < 1e-3, f"max abs err {max_err}"
    print("KERNEL_OK")
</pallas_src>

<mosaic_0001>
module attributes {stable_mosaic.version = 11 : i64} {
  func.func @_ltae_block_kernel(%arg0: i32, %arg1: i32, %arg2: memref<1x8x32x256xf32, #tpu.memory_space<vmem>>, %arg3: memref<32x1xf32, #tpu.memory_space<vmem>>, %arg4: memref<32x1xf32, #tpu.memory_space<vmem>>, %arg5: memref<256x256xf32, #tpu.memory_space<vmem>>, %arg6: memref<256x256xf32, #tpu.memory_space<vmem>>, %arg7: memref<256x1xf32, #tpu.memory_space<vmem>>, %arg8: memref<1x8x32x256xf32, #tpu.memory_space<vmem>>) attributes {dimension_semantics = [#tpu.dimension_semantics<parallel>, #tpu.dimension_semantics<parallel>], iteration_bounds = array<i64: 2, 1>, scalar_prefetch = 0 : i64, scratch_operands = 0 : i64, tpu.core_type = #tpu.core_type<tc>, window_params = [{transform_indices = @transform_0, window_bounds = array<i64: 1, 8, 32, 256>}, {pipeline_mode = #tpu.pipeline_mode<synchronous>, transform_indices = @transform_1, window_bounds = array<i64: 32, 1>}, {pipeline_mode = #tpu.pipeline_mode<synchronous>, transform_indices = @transform_2, window_bounds = array<i64: 32, 1>}, {pipeline_mode = #tpu.pipeline_mode<synchronous>, transform_indices = @transform_3, window_bounds = array<i64: 256, 256>}, {pipeline_mode = #tpu.pipeline_mode<synchronous>, transform_indices = @transform_4, window_bounds = array<i64: 256, 256>}, {pipeline_mode = #tpu.pipeline_mode<synchronous>, transform_indices = @transform_5, window_bounds = array<i64: 256, 1>}, {transform_indices = @transform_6, window_bounds = array<i64: 1, 8, 32, 256>}]} {
    %c0 = arith.constant 0 : index
    %c0_0 = arith.constant 0 : index
    %c0_1 = arith.constant 0 : index
    %c0_2 = arith.constant 0 : index
    %0 = vector.load %arg2[%c0, %c0_0, %c0_1, %c0_2] : memref<1x8x32x256xf32, #tpu.memory_space<vmem>>, vector<1x8x32x256xf32>
    %1 = vector.shape_cast %0 : vector<1x8x32x256xf32> to vector<8x32x256xf32>
    %2 = vector.shape_cast %1 : vector<8x32x256xf32> to vector<32x8x256xf32>
    %cst = arith.constant dense<0.000000e+00> : vector<32x256xf32>
    %3 = vector.multi_reduction <add>, %2, %cst [1] : vector<32x8x256xf32> to vector<32x256xf32>
    %4 = vector.shape_cast %3 : vector<32x256xf32> to vector<32x1x256xf32>
    %cst_3 = arith.constant 8.000000e+00 : f32
    %5 = vector.broadcast %cst_3 : f32 to vector<32x1x256xf32>
    %6 = arith.divf %4, %5 : vector<32x1x256xf32>
    %7 = vector.broadcast %6 : vector<32x1x256xf32> to vector<32x8x256xf32>
    %8 = arith.subf %2, %7 : vector<32x8x256xf32>
    %9 = arith.mulf %8, %8 : vector<32x8x256xf32>
    %cst_4 = arith.constant dense<0.000000e+00> : vector<32x256xf32>
    %10 = vector.multi_reduction <add>, %9, %cst_4 [1] : vector<32x8x256xf32> to vector<32x256xf32>
    %11 = vector.shape_cast %10 : vector<32x256xf32> to vector<32x1x256xf32>
    %cst_5 = arith.constant 8.000000e+00 : f32
    %12 = vector.broadcast %cst_5 : f32 to vector<32x1x256xf32>
    %13 = arith.divf %11, %12 : vector<32x1x256xf32>
    %cst_6 = arith.constant 9.99999974E-6 : f32
    %14 = vector.broadcast %cst_6 : f32 to vector<32x1x256xf32>
    %15 = arith.addf %13, %14 : vector<32x1x256xf32>
    %16 = math.rsqrt %15 : vector<32x1x256xf32>
    %17 = vector.broadcast %16 : vector<32x1x256xf32> to vector<32x8x256xf32>
    %18 = arith.mulf %8, %17 : vector<32x8x256xf32>
    %19 = vector.shape_cast %18 : vector<32x8x256xf32> to vector<8x32x256xf32>
    %c0_7 = arith.constant 0 : index
    %c0_8 = arith.constant 0 : index
    %20 = vector.load %arg3[%c0_7, %c0_8] : memref<32x1xf32, #tpu.memory_space<vmem>>, vector<32x1xf32>
    %21 = vector.shape_cast %20 : vector<32x1xf32> to vector<1x32x1xf32>
    %22 = vector.broadcast %21 : vector<1x32x1xf32> to vector<8x32x256xf32>
    %23 = arith.mulf %19, %22 : vector<8x32x256xf32>
    %c0_9 = arith.constant 0 : index
    %c0_10 = arith.constant 0 : index
    %24 = vector.load %arg4[%c0_9, %c0_10] : memref<32x1xf32, #tpu.memory_space<vmem>>, vector<32x1xf32>
    %25 = vector.shape_cast %24 : vector<32x1xf32> to vector<1x32x1xf32>
    %26 = vector.broadcast %25 : vector<1x32x1xf32> to vector<8x32x256xf32>
    %27 = arith.addf %23, %26 : vector<8x32x256xf32>
    %c0_11 = arith.constant 0 : index
    %c0_12 = arith.constant 0 : index
    %28 = vector.load %arg5[%c0_11, %c0_12] : memref<256x256xf32, #tpu.memory_space<vmem>>, vector<256x256xf32>
    %29 = vector.shape_cast %27 : vector<8x32x256xf32> to vector<256x256xf32>
    %cst_13 = arith.constant dense<0.000000e+00> : vector<256x256xf32>
    %30 = tpu.matmul %28, %29, %cst_13 {dimension_numbers = #tpu.dot_dimension_numbers<[1], [0], [0], [1], [0, 0, 1, 1], [], []>} : vector<256x256xf32>, vector<256x256xf32>, vector<256x256xf32> -> vector<256x256xf32>
    %31 = vector.extract_strided_slice %30 {offsets = [0, 0], sizes = [128, 256], strides = [1, 1]} : vector<256x256xf32> to vector<128x256xf32>
    %32 = vector.shape_cast %31 : vector<128x256xf32> to vector<8x16x256xf32>
    %33 = vector.extract_strided_slice %30 {offsets = [128, 0], sizes = [128, 256], strides = [1, 1]} : vector<256x256xf32> to vector<128x256xf32>
    %34 = vector.shape_cast %33 : vector<128x256xf32> to vector<16x8x256xf32>
    %35 = vector.extract_strided_slice %32 {offsets = [0, 0, 0], sizes = [8, 1, 256], strides = [1, 1, 1]} : vector<8x16x256xf32> to vector<8x1x256xf32>
    %36 = vector.extract_strided_slice %34 {offsets = [0, 0, 0], sizes = [1, 8, 256], strides = [1, 1, 1]} : vector<16x8x256xf32> to vector<1x8x256xf32>
    %37 = vector.shape_cast %36 : vector<1x8x256xf32> to vector<8x256xf32>
    %38 = vector.shape_cast %37 : vector<8x256xf32> to vector<1x8x256xf32>
    %39 = vector.broadcast %35 : vector<8x1x256xf32> to vector<8x8x256xf32>
    %40 = vector.broadcast %38 : vector<1x8x256xf32> to vector<8x8x256xf32>
    %41 = arith.mulf %39, %40 : vector<8x8x256xf32>
    %42 = vector.extract_strided_slice %32 {offsets = [0, 1, 0], sizes = [8, 1, 256], strides = [1, 1, 1]} : vector<8x16x256xf32> to vector<8x1x256xf32>
    %43 = vector.extract_strided_slice %34 {offsets = [1, 0, 0], sizes = [1, 8, 256], strides = [1, 1, 1]} : vector<16x8x256xf32> to vector<1x8x256xf32>
    %44 = vector.shape_cast %43 : vector<1x8x256xf32> to vector<8x256xf32>
    %45 = vector.shape_cast %44 : vector<8x256xf32> to vector<1x8x256xf32>
    %46 = vector.broadcast %42 : vector<8x1x256xf32> to vector<8x8x256xf32>
    %47 = vector.broadcast %45 : vector<1x8x256xf32> to vector<8x8x256xf32>
    %48 = arith.mulf %46, %47 : vector<8x8x256xf32>
    %49 = arith.addf %41, %48 : vector<8x8x256xf32>
    %50 = vector.extract_strided_slice %32 {offsets = [0, 2, 0], sizes = [8, 1, 256], strides = [1, 1, 1]} : vector<8x16x256xf32> to vector<8x1x256xf32>
    %51 = vector.extract_strided_slice %34 {offsets = [2, 0, 0], sizes = [1, 8, 256], strides = [1, 1, 1]} : vector<16x8x256xf32> to vector<1x8x256xf32>
    %52 = vector.shape_cast %51 : vector<1x8x256xf32> to vector<8x256xf32>
    %53 = vector.shape_cast %52 : vector<8x256xf32> to vector<1x8x256xf32>
    %54 = vector.broadcast %50 : vector<8x1x256xf32> to vector<8x8x256xf32>
    %55 = vector.broadcast %53 : vector<1x8x256xf32> to vector<8x8x256xf32>
    %56 = arith.mulf %54, %55 : vector<8x8x256xf32>
    %57 = arith.addf %49, %56 : vector<8x8x256xf32>
    %58 = vector.extract_strided_slice %32 {offsets = [0, 3, 0], sizes = [8, 1, 256], strides = [1, 1, 1]} : vector<8x16x256xf32> to vector<8x1x256xf32>
    %59 = vector.extract_strided_slice %34 {offsets = [3, 0, 0], sizes = [1, 8, 256], strides = [1, 1, 1]} : vector<16x8x256xf32> to vector<1x8x256xf32>
    %60 = vector.shape_cast %59 : vector<1x8x256xf32> to vector<8x256xf32>
    %61 = vector.shape_cast %60 : vector<8x256xf32> to vector<1x8x256xf32>
    %62 = vector.broadcast %58 : vector<8x1x256xf32> to vector<8x8x256xf32>
    %63 = vector.broadcast %61 : vector<1x8x256xf32> to vector<8x8x256xf32>
    %64 = arith.mulf %62, %63 : vector<8x8x256xf32>
    %65 = arith.addf %57, %64 : vector<8x8x256xf32>
    %cst_14 = arith.constant 5.000000e-01 : f32
    %66 = vector.broadcast %cst_14 : f32 to vector<8x8x256xf32>
    %67 = arith.mulf %65, %66 : vector<8x8x256xf32>
    %cst_15 = arith.constant dense<0xFF800000> : vector<8x256xf32>
    %68 = vector.multi_reduction <maximumf>, %67, %cst_15 [1] : vector<8x8x256xf32> to vector<8x256xf32>
    %69 = vector.shape_cast %68 : vector<8x256xf32> to vector<8x1x256xf32>
    %70 = vector.broadcast %69 : vector<8x1x256xf32> to vector<8x8x256xf32>
    %71 = arith.subf %67, %70 : vector<8x8x256xf32>
    %72 = math.exp %71 : vector<8x8x256xf32>
    %cst_16 = arith.constant dense<0.000000e+00> : vector<8x256xf32>
    %73 = vector.multi_reduction <add>, %72, %cst_16 [1] : vector<8x8x256xf32> to vector<8x256xf32>
    %74 = vector.shape_cast %73 : vector<8x256xf32> to vector<8x1x256xf32>
    %75 = tpu.reciprocal %74 {approx = true} : vector<8x1x256xf32> -> vector<8x1x256xf32>
    %76 = arith.mulf %74, %75 : vector<8x1x256xf32>
    %cst_17 = arith.constant 2.000000e+00 : f32
    %77 = vector.broadcast %cst_17 : f32 to vector<8x1x256xf32>
    %78 = arith.subf %77, %76 : vector<8x1x256xf32>
    %79 = arith.mulf %75, %78 : vector<8x1x256xf32>
    %80 = vector.broadcast %79 : vector<8x1x256xf32> to vector<8x8x256xf32>
    %81 = arith.mulf %72, %80 : vector<8x8x256xf32>
    %82 = vector.extract_strided_slice %27 {offsets = [0, 0, 0], sizes = [8, 8, 256], strides = [1, 1, 1]} : vector<8x32x256xf32> to vector<8x8x256xf32>
    %83 = vector.extract_strided_slice %81 {offsets = [0, 0, 0], sizes = [8, 1, 256], strides = [1, 1, 1]} : vector<8x8x256xf32> to vector<8x1x256xf32>
    %84 = vector.extract_strided_slice %82 {offsets = [0, 0, 0], sizes = [1, 8, 256], strides = [1, 1, 1]} : vector<8x8x256xf32> to vector<1x8x256xf32>
    %85 = vector.shape_cast %84 : vector<1x8x256xf32> to vector<8x256xf32>
    %86 = vector.shape_cast %85 : vector<8x256xf32> to vector<1x8x256xf32>
    %87 = vector.broadcast %83 : vector<8x1x256xf32> to vector<8x8x256xf32>
    %88 = vector.broadcast %86 : vector<1x8x256xf32> to vector<8x8x256xf32>
    %89 = arith.mulf %87, %88 : vector<8x8x256xf32>
    %90 = vector.extract_strided_slice %81 {offsets = [0, 1, 0], sizes = [8, 1, 256], strides = [1, 1, 1]} : vector<8x8x256xf32> to vector<8x1x256xf32>
    %91 = vector.extract_strided_slice %82 {offsets = [1, 0, 0], sizes = [1, 8, 256], strides = [1, 1, 1]} : vector<8x8x256xf32> to vector<1x8x256xf32>
    %92 = vector.shape_cast %91 : vector<1x8x256xf32> to vector<8x256xf32>
    %93 = vector.shape_cast %92 : vector<8x256xf32> to vector<1x8x256xf32>
    %94 = vector.broadcast %90 : vector<8x1x256xf32> to vector<8x8x256xf32>
    %95 = vector.broadcast %93 : vector<1x8x256xf32> to vector<8x8x256xf32>
    %96 = arith.mulf %94, %95 : vector<8x8x256xf32>
    %97 = arith.addf %89, %96 : vector<8x8x256xf32>
    %98 = vector.extract_strided_slice %81 {offsets = [0, 2, 0], sizes = [8, 1, 256], strides = [1, 1, 1]} : vector<8x8x256xf32> to vector<8x1x256xf32>
    %99 = vector.extract_strided_slice %82 {offsets = [2, 0, 0], sizes = [1, 8, 256], strides = [1, 1, 1]} : vector<8x8x256xf32> to vector<1x8x256xf32>
    %100 = vector.shape_cast %99 : vector<1x8x256xf32> to vector<8x256xf32>
    %101 = vector.shape_cast %100 : vector<8x256xf32> to vector<1x8x256xf32>
    %102 = vector.broadcast %98 : vector<8x1x256xf32> to vector<8x8x256xf32>
    %103 = vector.broadcast %101 : vector<1x8x256xf32> to vector<8x8x256xf32>
    %104 = arith.mulf %102, %103 : vector<8x8x256xf32>
    %105 = arith.addf %97, %104 : vector<8x8x256xf32>
    %106 = vector.extract_strided_slice %81 {offsets = [0, 3, 0], sizes = [8, 1, 256], strides = [1, 1, 1]} : vector<8x8x256xf32> to vector<8x1x256xf32>
    %107 = vector.extract_strided_slice %82 {offsets = [3, 0, 0], sizes = [1, 8, 256], strides = [1, 1, 1]} : vector<8x8x256xf32> to vector<1x8x256xf32>
    %108 = vector.shape_cast %107 : vector<1x8x256xf32> to vector<8x256xf32>
    %109 = vector.shape_cast %108 : vector<8x256xf32> to vector<1x8x256xf32>
    %110 = vector.broadcast %106 : vector<8x1x256xf32> to vector<8x8x256xf32>
    %111 = vector.broadcast %109 : vector<1x8x256xf32> to vector<8x8x256xf32>
    %112 = arith.mulf %110, %111 : vector<8x8x256xf32>
    %113 = arith.addf %105, %112 : vector<8x8x256xf32>
    %114 = vector.extract_strided_slice %81 {offsets = [0, 4, 0], sizes = [8, 1, 256], strides = [1, 1, 1]} : vector<8x8x256xf32> to vector<8x1x256xf32>
    %115 = vector.extract_strided_slice %82 {offsets = [4, 0, 0], sizes = [1, 8, 256], strides = [1, 1, 1]} : vector<8x8x256xf32> to vector<1x8x256xf32>
    %116 = vector.shape_cast %115 : vector<1x8x256xf32> to vector<8x256xf32>
    %117 = vector.shape_cast %116 : vector<8x256xf32> to vector<1x8x256xf32>
    %118 = vector.broadcast %114 : vector<8x1x256xf32> to vector<8x8x256xf32>
    %119 = vector.broadcast %117 : vector<1x8x256xf32> to vector<8x8x256xf32>
    %120 = arith.mulf %118, %119 : vector<8x8x256xf32>
    %121 = arith.addf %113, %120 : vector<8x8x256xf32>
    %122 = vector.extract_strided_slice %81 {offsets = [0, 5, 0], sizes = [8, 1, 256], strides = [1, 1, 1]} : vector<8x8x256xf32> to vector<8x1x256xf32>
    %123 = vector.extract_strided_slice %82 {offsets = [5, 0, 0], sizes = [1, 8, 256], strides = [1, 1, 1]} : vector<8x8x256xf32> to vector<1x8x256xf32>
    %124 = vector.shape_cast %123 : vector<1x8x256xf32> to vector<8x256xf32>
    %125 = vector.shape_cast %124 : vector<8x256xf32> to vector<1x8x256xf32>
    %126 = vector.broadcast %122 : vector<8x1x256xf32> to vector<8x8x256xf32>
    %127 = vector.broadcast %125 : vector<1x8x256xf32> to vector<8x8x256xf32>
    %128 = arith.mulf %126, %127 : vector<8x8x256xf32>
    %129 = arith.addf %121, %128 : vector<8x8x256xf32>
    %130 = vector.extract_strided_slice %81 {offsets = [0, 6, 0], sizes = [8, 1, 256], strides = [1, 1, 1]} : vector<8x8x256xf32> to vector<8x1x256xf32>
    %131 = vector.extract_strided_slice %82 {offsets = [6, 0, 0], sizes = [1, 8, 256], strides = [1, 1, 1]} : vector<8x8x256xf32> to vector<1x8x256xf32>
    %132 = vector.shape_cast %131 : vector<1x8x256xf32> to vector<8x256xf32>
    %133 = vector.shape_cast %132 : vector<8x256xf32> to vector<1x8x256xf32>
    %134 = vector.broadcast %130 : vector<8x1x256xf32> to vector<8x8x256xf32>
    %135 = vector.broadcast %133 : vector<1x8x256xf32> to vector<8x8x256xf32>
    %136 = arith.mulf %134, %135 : vector<8x8x256xf32>
    %137 = arith.addf %129, %136 : vector<8x8x256xf32>
    %138 = vector.extract_strided_slice %81 {offsets = [0, 7, 0], sizes = [8, 1, 256], strides = [1, 1, 1]} : vector<8x8x256xf32> to vector<8x1x256xf32>
    %139 = vector.extract_strided_slice %82 {offsets = [7, 0, 0], sizes = [1, 8, 256], strides = [1, 1, 1]} : vector<8x8x256xf32> to vector<1x8x256xf32>
    %140 = vector.shape_cast %139 : vector<1x8x256xf32> to vector<8x256xf32>
    %141 = vector.shape_cast %140 : vector<8x256xf32> to vector<1x8x256xf32>
    %142 = vector.broadcast %138 : vector<8x1x256xf32> to vector<8x8x256xf32>
    %143 = vector.broadcast %141 : vector<1x8x256xf32> to vector<8x8x256xf32>
    %144 = arith.mulf %142, %143 : vector<8x8x256xf32>
    %145 = arith.addf %137, %144 : vector<8x8x256xf32>
    %146 = vector.extract_strided_slice %32 {offsets = [0, 4, 0], sizes = [8, 1, 256], strides = [1, 1, 1]} : vector<8x16x256xf32> to vector<8x1x256xf32>
    %147 = vector.extract_strided_slice %34 {offsets = [4, 0, 0], sizes = [1, 8, 256], strides = [1, 1, 1]} : vector<16x8x256xf32> to vector<1x8x256xf32>
    %148 = vector.shape_cast %147 : vector<1x8x256xf32> to vector<8x256xf32>
    %149 = vector.shape_cast %148 : vector<8x256xf32> to vector<1x8x256xf32>
    %150 = vector.broadcast %146 : vector<8x1x256xf32> to vector<8x8x256xf32>
    %151 = vector.broadcast %149 : vector<1x8x256xf32> to vector<8x8x256xf32>
    %152 = arith.mulf %150, %151 : vector<8x8x256xf32>
    %153 = vector.extract_strided_slice %32 {offsets = [0, 5, 0], sizes = [8, 1, 256], strides = [1, 1, 1]} : vector<8x16x256xf32> to vector<8x1x256xf32>
    %154 = vector.extract_strided_slice %34 {offsets = [5, 0, 0], sizes = [1, 8, 256], strides = [1, 1, 1]} : vector<16x8x256xf32> to vector<1x8x256xf32>
    %155 = vector.shape_cast %154 : vector<1x8x256xf32> to vector<8x256xf32>
    %156 = vector.shape_cast %155 : vector<8x256xf32> to vector<1x8x256xf32>
    %157 = vector.broadcast %153 : vector<8x1x256xf32> to vector<8x8x256xf32>
    %158 = vector.broadcast %156 : vector<1x8x256xf32> to vector<8x8x256xf32>
    %159 = arith.mulf %157, %158 : vector<8x8x256xf32>
    %160 = arith.addf %152, %159 : vector<8x8x256xf32>
    %161 = vector.extract_strided_slice %32 {offsets = [0, 6, 0], sizes = [8, 1, 256], strides = [1, 1, 1]} : vector<8x16x256xf32> to vector<8x1x256xf32>
    %162 = vector.extract_strided_slice %34 {offsets = [6, 0, 0], sizes = [1, 8, 256], strides = [1, 1, 1]} : vector<16x8x256xf32> to vector<1x8x256xf32>
    %163 = vector.shape_cast %162 : vector<1x8x256xf32> to vector<8x256xf32>
    %164 = vector.shape_cast %163 : vector<8x256xf32> to vector<1x8x256xf32>
    %165 = vector.broadcast %161 : vector<8x1x256xf32> to vector<8x8x256xf32>
    %166 = vector.broadcast %164 : vector<1x8x256xf32> to vector<8x8x256xf32>
    %167 = arith.mulf %165, %166 : vector<8x8x256xf32>
    %168 = arith.addf %160, %167 : vector<8x8x256xf32>
    %169 = vector.extract_strided_slice %32 {offsets = [0, 7, 0], sizes = [8, 1, 256], strides = [1, 1, 1]} : vector<8x16x256xf32> to vector<8x1x256xf32>
    %170 = vector.extract_strided_slice %34 {offsets = [7, 0, 0], sizes = [1, 8, 256], strides = [1, 1, 1]} : vector<16x8x256xf32> to vector<1x8x256xf32>
    %171 = vector.shape_cast %170 : vector<1x8x256xf32> to vector<8x256xf32>
    %172 = vector.shape_cast %171 : vector<8x256xf32> to vector<1x8x256xf32>
    %173 = vector.broadcast %169 : vector<8x1x256xf32> to vector<8x8x256xf32>
    %174 = vector.broadcast %172 : vector<1x8x256xf32> to vector<8x8x256xf32>
    %175 = arith.mulf %173, %174 : vector<8x8x256xf32>
    %176 = arith.addf %168, %175 : vector<8x8x256xf32>
    %cst_18 = arith.constant 5.000000e-01 : f32
    %177 = vector.broadcast %cst_18 : f32 to vector<8x8x256xf32>
    %178 = arith.mulf %176, %177 : vector<8x8x256xf32>
    %cst_19 = arith.constant dense<0xFF800000> : vector<8x256xf32>
    %179 = vector.multi_reduction <maximumf>, %178, %cst_19 [1] : vector<8x8x256xf32> to vector<8x256xf32>
    %180 = vector.shape_cast %179 : vector<8x256xf32> to vector<8x1x256xf32>
    %181 = vector.broadcast %180 : vector<8x1x256xf32> to vector<8x8x256xf32>
    %182 = arith.subf %178, %181 : vector<8x8x256xf32>
    %183 = math.exp %182 : vector<8x8x256xf32>
    %cst_20 = arith.constant dense<0.000000e+00> : vector<8x256xf32>
    %184 = vector.multi_reduction <add>, %183, %cst_20 [1] : vector<8x8x256xf32> to vector<8x256xf32>
    %185 = vector.shape_cast %184 : vector<8x256xf32> to vector<8x1x256xf32>
    %186 = tpu.reciprocal %185 {approx = true} : vector<8x1x256xf32> -> vector<8x1x256xf32>
    %187 = arith.mulf %185, %186 : vector<8x1x256xf32>
    %cst_21 = arith.constant 2.000000e+00 : f32
    %188 = vector.broadcast %cst_21 : f32 to vector<8x1x256xf32>
    %189 = arith.subf %188, %187 : vector<8x1x256xf32>
    %190 = arith.mulf %186, %189 : vector<8x1x256xf32>
    %191 = vector.broadcast %190 : vector<8x1x256xf32> to vector<8x8x256xf32>
    %192 = arith.mulf %183, %191 : vector<8x8x256xf32>
    %193 = vector.extract_strided_slice %27 {offsets = [0, 8, 0], sizes = [8, 8, 256], strides = [1, 1, 1]} : vector<8x32x256xf32> to vector<8x8x256xf32>
    %194 = vector.extract_strided_slice %192 {offsets = [0, 0, 0], sizes = [8, 1, 256], strides = [1, 1, 1]} : vector<8x8x256xf32> to vector<8x1x256xf32>
    %195 = vector.extract_strided_slice %193 {offsets = [0, 0, 0], sizes = [1, 8, 256], strides = [1, 1, 1]} : vector<8x8x256xf32> to vector<1x8x256xf32>
    %196 = vector.shape_cast %195 : vector<1x8x256xf32> to vector<8x256xf32>
    %197 = vector.shape_cast %196 : vector<8x256xf32> to vector<1x8x256xf32>
    %198 = vector.broadcast %194 : vector<8x1x256xf32> to vector<8x8x256xf32>
    %199 = vector.broadcast %197 : vector<1x8x256xf32> to vector<8x8x256xf32>
    %200 = arith.mulf %198, %199 : vector<8x8x256xf32>
    %201 = vector.extract_strided_slice %192 {offsets = [0, 1, 0], sizes = [8, 1, 256], strides = [1, 1, 1]} : vector<8x8x256xf32> to vector<8x1x256xf32>
    %202 = vector.extract_strided_slice %193 {offsets = [1, 0, 0], sizes = [1, 8, 256], strides = [1, 1, 1]} : vector<8x8x256xf32> to vector<1x8x256xf32>
    %203 = vector.shape_cast %202 : vector<1x8x256xf32> to vector<8x256xf32>
    %204 = vector.shape_cast %203 : vector<8x256xf32> to vector<1x8x256xf32>
    %205 = vector.broadcast %201 : vector<8x1x256xf32> to vector<8x8x256xf32>
    %206 = vector.broadcast %204 : vector<1x8x256xf32> to vector<8x8x256xf32>
    %207 = arith.mulf %205, %206 : vector<8x8x256xf32>
    %208 = arith.addf %200, %207 : vector<8x8x256xf32>
    %209 = vector.extract_strided_slice %192 {offsets = [0, 2, 0], sizes = [8, 1, 256], strides = [1, 1, 1]} : vector<8x8x256xf32> to vector<8x1x256xf32>
    %210 = vector.extract_strided_slice %193 {offsets = [2, 0, 0], sizes = [1, 8, 256], strides = [1, 1, 1]} : vector<8x8x256xf32> to vector<1x8x256xf32>
    %211 = vector.shape_cast %210 : vector<1x8x256xf32> to vector<8x256xf32>
    %212 = vector.shape_cast %211 : vector<8x256xf32> to vector<1x8x256xf32>
    %213 = vector.broadcast %209 : vector<8x1x256xf32> to vector<8x8x256xf32>
    %214 = vector.broadcast %212 : vector<1x8x256xf32> to vector<8x8x256xf32>
    %215 = arith.mulf %213, %214 : vector<8x8x256xf32>
    %216 = arith.addf %208, %215 : vector<8x8x256xf32>
    %217 = vector.extract_strided_slice %192 {offsets = [0, 3, 0], sizes = [8, 1, 256], strides = [1, 1, 1]} : vector<8x8x256xf32> to vector<8x1x256xf32>
    %218 = vector.extract_strided_slice %193 {offsets = [3, 0, 0], sizes = [1, 8, 256], strides = [1, 1, 1]} : vector<8x8x256xf32> to vector<1x8x256xf32>
    %219 = vector.shape_cast %218 : vector<1x8x256xf32> to vector<8x256xf32>
    %220 = vector.shape_cast %219 : vector<8x256xf32> to vector<1x8x256xf32>
    %221 = vector.broadcast %217 : vector<8x1x256xf32> to vector<8x8x256xf32>
    %222 = vector.broadcast %220 : vector<1x8x256xf32> to vector<8x8x256xf32>
    %223 = arith.mulf %221, %222 : vector<8x8x256xf32>
    %224 = arith.addf %216, %223 : vector<8x8x256xf32>
    %225 = vector.extract_strided_slice %192 {offsets = [0, 4, 0], sizes = [8, 1, 256], strides = [1, 1, 1]} : vector<8x8x256xf32> to vector<8x1x256xf32>
    %226 = vector.extract_strided_slice %193 {offsets = [4, 0, 0], sizes = [1, 8, 256], strides = [1, 1, 1]} : vector<8x8x256xf32> to vector<1x8x256xf32>
    %227 = vector.shape_cast %226 : vector<1x8x256xf32> to vector<8x256xf32>
    %228 = vector.shape_cast %227 : vector<8x256xf32> to vector<1x8x256xf32>
    %229 = vector.broadcast %225 : vector<8x1x256xf32> to vector<8x8x256xf32>
    %230 = vector.broadcast %228 : vector<1x8x256xf32> to vector<8x8x256xf32>
    %231 = arith.mulf %229, %230 : vector<8x8x256xf32>
    %232 = arith.addf %224, %231 : vector<8x8x256xf32>
    %233 = vector.extract_strided_slice %192 {offsets = [0, 5, 0], sizes = [8, 1, 256], strides = [1, 1, 1]} : vector<8x8x256xf32> to vector<8x1x256xf32>
    %234 = vector.extract_strided_slice %193 {offsets = [5, 0, 0], sizes = [1, 8, 256], strides = [1, 1, 1]} : vector<8x8x256xf32> to vector<1x8x256xf32>
    %235 = vector.shape_cast %234 : vector<1x8x256xf32> to vector<8x256xf32>
    %236 = vector.shape_cast %235 : vector<8x256xf32> to vector<1x8x256xf32>
    %237 = vector.broadcast %233 : vector<8x1x256xf32> to vector<8x8x256xf32>
    %238 = vector.broadcast %236 : vector<1x8x256xf32> to vector<8x8x256xf32>
    %239 = arith.mulf %237, %238 : vector<8x8x256xf32>
    %240 = arith.addf %232, %239 : vector<8x8x256xf32>
    %241 = vector.extract_strided_slice %192 {offsets = [0, 6, 0], sizes = [8, 1, 256], strides = [1, 1, 1]} : vector<8x8x256xf32> to vector<8x1x256xf32>
    %242 = vector.extract_strided_slice %193 {offsets = [6, 0, 0], sizes = [1, 8, 256], strides = [1, 1, 1]} : vector<8x8x256xf32> to vector<1x8x256xf32>
    %243 = vector.shape_cast %242 : vector<1x8x256xf32> to vector<8x256xf32>
    %244 = vector.shape_cast %243 : vector<8x256xf32> to vector<1x8x256xf32>
    %245 = vector.broadcast %241 : vector<8x1x256xf32> to vector<8x8x256xf32>
    %246 = vector.broadcast %244 : vector<1x8x256xf32> to vector<8x8x256xf32>
    %247 = arith.mulf %245, %246 : vector<8x8x256xf32>
    %248 = arith.addf %240, %247 : vector<8x8x256xf32>
    %249 = vector.extract_strided_slice %192 {offsets = [0, 7, 0], sizes = [8, 1, 256], strides = [1, 1, 1]} : vector<8x8x256xf32> to vector<8x1x256xf32>
    %250 = vector.extract_strided_slice %193 {offsets = [7, 0, 0], sizes = [1, 8, 256], strides = [1, 1, 1]} : vector<8x8x256xf32> to vector<1x8x256xf32>
    %251 = vector.shape_cast %250 : vector<1x8x256xf32> to vector<8x256xf32>
    %252 = vector.shape_cast %251 : vector<8x256xf32> to vector<1x8x256xf32>
    %253 = vector.broadcast %249 : vector<8x1x256xf32> to vector<8x8x256xf32>
    %254 = vector.broadcast %252 : vector<1x8x256xf32> to vector<8x8x256xf32>
    %255 = arith.mulf %253, %254 : vector<8x8x256xf32>
    %256 = arith.addf %248, %255 : vector<8x8x256xf32>
    %257 = vector.extract_strided_slice %32 {offsets = [0, 8, 0], sizes = [8, 1, 256], strides = [1, 1, 1]} : vector<8x16x256xf32> to vector<8x1x256xf32>
    %258 = vector.extract_strided_slice %34 {offsets = [8, 0, 0], sizes = [1, 8, 256], strides = [1, 1, 1]} : vector<16x8x256xf32> to vector<1x8x256xf32>
    %259 = vector.shape_cast %258 : vector<1x8x256xf32> to vector<8x256xf32>
    %260 = vector.shape_cast %259 : vector<8x256xf32> to vector<1x8x256xf32>
    %261 = vector.broadcast %257 : vector<8x1x256xf32> to vector<8x8x256xf32>
    %262 = vector.broadcast %260 : vector<1x8x256xf32> to vector<8x8x256xf32>
    %263 = arith.mulf %261, %262 : vector<8x8x256xf32>
    %264 = vector.extract_strided_slice %32 {offsets = [0, 9, 0], sizes = [8, 1, 256], strides = [1, 1, 1]} : vector<8x16x256xf32> to vector<8x1x256xf32>
    %265 = vector.extract_strided_slice %34 {offsets = [9, 0, 0], sizes = [1, 8, 256], strides = [1, 1, 1]} : vector<16x8x256xf32> to vector<1x8x256xf32>
    %266 = vector.shape_cast %265 : vector<1x8x256xf32> to vector<8x256xf32>
    %267 = vector.shape_cast %266 : vector<8x256xf32> to vector<1x8x256xf32>
    %268 = vector.broadcast %264 : vector<8x1x256xf32> to vector<8x8x256xf32>
    %269 = vector.broadcast %267 : vector<1x8x256xf32> to vector<8x8x256xf32>
    %270 = arith.mulf %268, %269 : vector<8x8x256xf32>
    %271 = arith.addf %263, %270 : vector<8x8x256xf32>
    %272 = vector.extract_strided_slice %32 {offsets = [0, 10, 0], sizes = [8, 1, 256], strides = [1, 1, 1]} : vector<8x16x256xf32> to vector<8x1x256xf32>
    %273 = vector.extract_strided_slice %34 {offsets = [10, 0, 0], sizes = [1, 8, 256], strides = [1, 1, 1]} : vector<16x8x256xf32> to vector<1x8x256xf32>
    %274 = vector.shape_cast %273 : vector<1x8x256xf32> to vector<8x256xf32>
    %275 = vector.shape_cast %274 : vector<8x256xf32> to vector<1x8x256xf32>
    %276 = vector.broadcast %272 : vector<8x1x256xf32> to vector<8x8x256xf32>
    %277 = vector.broadcast %275 : vector<1x8x256xf32> to vector<8x8x256xf32>
    %278 = arith.mulf %276, %277 : vector<8x8x256xf32>
    %279 = arith.addf %271, %278 : vector<8x8x256xf32>
    %280 = vector.extract_strided_slice %32 {offsets = [0, 11, 0], sizes = [8, 1, 256], strides = [1, 1, 1]} : vector<8x16x256xf32> to vector<8x1x256xf32>
    %281 = vector.extract_strided_slice %34 {offsets = [11, 0, 0], sizes = [1, 8, 256], strides = [1, 1, 1]} : vector<16x8x256xf32> to vector<1x8x256xf32>
    %282 = vector.shape_cast %281 : vector<1x8x256xf32> to vector<8x256xf32>
    %283 = vector.shape_cast %282 : vector<8x256xf32> to vector<1x8x256xf32>
    %284 = vector.broadcast %280 : vector<8x1x256xf32> to vector<8x8x256xf32>
    %285 = vector.broadcast %283 : vector<1x8x256xf32> to vector<8x8x256xf32>
    %286 = arith.mulf %284, %285 : vector<8x8x256xf32>
    %287 = arith.addf %279, %286 : vector<8x8x256xf32>
    %cst_22 = arith.constant 5.000000e-01 : f32
    %288 = vector.broadcast %cst_22 : f32 to vector<8x8x256xf32>
    %289 = arith.mulf %287, %288 : vector<8x8x256xf32>
    %cst_23 = arith.constant dense<0xFF800000> : vector<8x256xf32>
    %290 = vector.multi_reduction <maximumf>, %289, %cst_23 [1] : vector<8x8x256xf32> to vector<8x256xf32>
    %291 = vector.shape_cast %290 : vector<8x256xf32> to vector<8x1x256xf32>
    %292 = vector.broadcast %291 : vector<8x1x256xf32> to vector<8x8x256xf32>
    %293 = arith.subf %289, %292 : vector<8x8x256xf32>
    %294 = math.exp %293 : vector<8x8x256xf32>
    %cst_24 = arith.constant dense<0.000000e+00> : vector<8x256xf32>
    %295 = vector.multi_reduction <add>, %294, %cst_24 [1] : vector<8x8x256xf32> to vector<8x256xf32>
    %296 = vector.shape_cast %295 : vector<8x256xf32> to vector<8x1x256xf32>
    %297 = tpu.reciprocal %296 {approx = true} : vector<8x1x256xf32> -> vector<8x1x256xf32>
    %298 = arith.mulf %296, %297 : vector<8x1x256xf32>
    %cst_25 = arith.constant 2.000000e+00 : f32
    %299 = vector.broadcast %cst_25 : f32 to vector<8x1x256xf32>
    %300 = arith.subf %299, %298 : vector<8x1x256xf32>
    %301 = arith.mulf %297, %300 : vector<8x1x256xf32>
    %302 = vector.broadcast %301 : vector<8x1x256xf32> to vector<8x8x256xf32>
    %303 = arith.mulf %294, %302 : vector<8x8x256xf32>
    %304 = vector.extract_strided_slice %27 {offsets = [0, 16, 0], sizes = [8, 8, 256], strides = [1, 1, 1]} : vector<8x32x256xf32> to vector<8x8x256xf32>
    %305 = vector.extract_strided_slice %303 {offsets = [0, 0, 0], sizes = [8, 1, 256], strides = [1, 1, 1]} : vector<8x8x256xf32> to vector<8x1x256xf32>
    %306 = vector.extract_strided_slice %304 {offsets = [0, 0, 0], sizes = [1, 8, 256], strides = [1, 1, 1]} : vector<8x8x256xf32> to vector<1x8x256xf32>
    %307 = vector.shape_cast %306 : vector<1x8x256xf32> to vector<8x256xf32>
    %308 = vector.shape_cast %307 : vector<8x256xf32> to vector<1x8x256xf32>
    %309 = vector.broadcast %305 : vector<8x1x256xf32> to vector<8x8x256xf32>
    %310 = vector.broadcast %308 : vector<1x8x256xf32> to vector<8x8x256xf32>
    %311 = arith.mulf %309, %310 : vector<8x8x256xf32>
    %312 = vector.extract_strided_slice %303 {offsets = [0, 1, 0], sizes = [8, 1, 256], strides = [1, 1, 1]} : vector<8x8x256xf32> to vector<8x1x256xf32>
    %313 = vector.extract_strided_slice %304 {offsets = [1, 0, 0], sizes = [1, 8, 256], strides = [1, 1, 1]} : vector<8x8x256xf32> to vector<1x8x256xf32>
    %314 = vector.shape_cast %313 : vector<1x8x256xf32> to vector<8x256xf32>
    %315 = vector.shape_cast %314 : vector<8x256xf32> to vector<1x8x256xf32>
    %316 = vector.broadcast %312 : vector<8x1x256xf32> to vector<8x8x256xf32>
    %317 = vector.broadcast %315 : vector<1x8x256xf32> to vector<8x8x256xf32>
    %318 = arith.mulf %316, %317 : vector<8x8x256xf32>
    %319 = arith.addf %311, %318 : vector<8x8x256xf32>
    %320 = vector.extract_strided_slice %303 {offsets = [0, 2, 0], sizes = [8, 1, 256], strides = [1, 1, 1]} : vector<8x8x256xf32> to vector<8x1x256xf32>
    %321 = vector.extract_strided_slice %304 {offsets = [2, 0, 0], sizes = [1, 8, 256], strides = [1, 1, 1]} : vector<8x8x256xf32> to vector<1x8x256xf32>
    %322 = vector.shape_cast %321 : vector<1x8x256xf32> to vector<8x256xf32>
    %323 = vector.shape_cast %322 : vector<8x256xf32> to vector<1x8x256xf32>
    %324 = vector.broadcast %320 : vector<8x1x256xf32> to vector<8x8x256xf32>
    %325 = vector.broadcast %323 : vector<1x8x256xf32> to vector<8x8x256xf32>
    %326 = arith.mulf %324, %325 : vector<8x8x256xf32>
    %327 = arith.addf %319, %326 : vector<8x8x256xf32>
    %328 = vector.extract_strided_slice %303 {offsets = [0, 3, 0], sizes = [8, 1, 256], strides = [1, 1, 1]} : vector<8x8x256xf32> to vector<8x1x256xf32>
    %329 = vector.extract_strided_slice %304 {offsets = [3, 0, 0], sizes = [1, 8, 256], strides = [1, 1, 1]} : vector<8x8x256xf32> to vector<1x8x256xf32>
    %330 = vector.shape_cast %329 : vector<1x8x256xf32> to vector<8x256xf32>
    %331 = vector.shape_cast %330 : vector<8x256xf32> to vector<1x8x256xf32>
    %332 = vector.broadcast %328 : vector<8x1x256xf32> to vector<8x8x256xf32>
    %333 = vector.broadcast %331 : vector<1x8x256xf32> to vector<8x8x256xf32>
    %334 = arith.mulf %332, %333 : vector<8x8x256xf32>
    %335 = arith.addf %327, %334 : vector<8x8x256xf32>
    %336 = vector.extract_strided_slice %303 {offsets = [0, 4, 0], sizes = [8, 1, 256], strides = [1, 1, 1]} : vector<8x8x256xf32> to vector<8x1x256xf32>
    %337 = vector.extract_strided_slice %304 {offsets = [4, 0, 0], sizes = [1, 8, 256], strides = [1, 1, 1]} : vector<8x8x256xf32> to vector<1x8x256xf32>
    %338 = vector.shape_cast %337 : vector<1x8x256xf32> to vector<8x256xf32>
    %339 = vector.shape_cast %338 : vector<8x256xf32> to vector<1x8x256xf32>
    %340 = vector.broadcast %336 : vector<8x1x256xf32> to vector<8x8x256xf32>
    %341 = vector.broadcast %339 : vector<1x8x256xf32> to vector<8x8x256xf32>
    %342 = arith.mulf %340, %341 : vector<8x8x256xf32>
    %343 = arith.addf %335, %342 : vector<8x8x256xf32>
    %344 = vector.extract_strided_slice %303 {offsets = [0, 5, 0], sizes = [8, 1, 256], strides = [1, 1, 1]} : vector<8x8x256xf32> to vector<8x1x256xf32>
    %345 = vector.extract_strided_slice %304 {offsets = [5, 0, 0], sizes = [1, 8, 256], strides = [1, 1, 1]} : vector<8x8x256xf32> to vector<1x8x256xf32>
    %346 = vector.shape_cast %345 : vector<1x8x256xf32> to vector<8x256xf32>
    %347 = vector.shape_cast %346 : vector<8x256xf32> to vector<1x8x256xf32>
    %348 = vector.broadcast %344 : vector<8x1x256xf32> to vector<8x8x256xf32>
    %349 = vector.broadcast %347 : vector<1x8x256xf32> to vector<8x8x256xf32>
    %350 = arith.mulf %348, %349 : vector<8x8x256xf32>
    %351 = arith.addf %343, %350 : vector<8x8x256xf32>
    %352 = vector.extract_strided_slice %303 {offsets = [0, 6, 0], sizes = [8, 1, 256], strides = [1, 1, 1]} : vector<8x8x256xf32> to vector<8x1x256xf32>
    %353 = vector.extract_strided_slice %304 {offsets = [6, 0, 0], sizes = [1, 8, 256], strides = [1, 1, 1]} : vector<8x8x256xf32> to vector<1x8x256xf32>
    %354 = vector.shape_cast %353 : vector<1x8x256xf32> to vector<8x256xf32>
    %355 = vector.shape_cast %354 : vector<8x256xf32> to vector<1x8x256xf32>
    %356 = vector.broadcast %352 : vector<8x1x256xf32> to vector<8x8x256xf32>
    %357 = vector.broadcast %355 : vector<1x8x256xf32> to vector<8x8x256xf32>
    %358 = arith.mulf %356, %357 : vector<8x8x256xf32>
    %359 = arith.addf %351, %358 : vector<8x8x256xf32>
    %360 = vector.extract_strided_slice %303 {offsets = [0, 7, 0], sizes = [8, 1, 256], strides = [1, 1, 1]} : vector<8x8x256xf32> to vector<8x1x256xf32>
    %361 = vector.extract_strided_slice %304 {offsets = [7, 0, 0], sizes = [1, 8, 256], strides = [1, 1, 1]} : vector<8x8x256xf32> to vector<1x8x256xf32>
    %362 = vector.shape_cast %361 : vector<1x8x256xf32> to vector<8x256xf32>
    %363 = vector.shape_cast %362 : vector<8x256xf32> to vector<1x8x256xf32>
    %364 = vector.broadcast %360 : vector<8x1x256xf32> to vector<8x8x256xf32>
    %365 = vector.broadcast %363 : vector<1x8x256xf32> to vector<8x8x256xf32>
    %366 = arith.mulf %364, %365 : vector<8x8x256xf32>
    %367 = arith.addf %359, %366 : vector<8x8x256xf32>
    %368 = vector.extract_strided_slice %32 {offsets = [0, 12, 0], sizes = [8, 1, 256], strides = [1, 1, 1]} : vector<8x16x256xf32> to vector<8x1x256xf32>
    %369 = vector.extract_strided_slice %34 {offsets = [12, 0, 0], sizes = [1, 8, 256], strides = [1, 1, 1]} : vector<16x8x256xf32> to vector<1x8x256xf32>
    %370 = vector.shape_cast %369 : vector<1x8x256xf32> to vector<8x256xf32>
    %371 = vector.shape_cast %370 : vector<8x256xf32> to vector<1x8x256xf32>
    %372 = vector.broadcast %368 : vector<8x1x256xf32> to vector<8x8x256xf32>
    %373 = vector.broadcast %371 : vector<1x8x256xf32> to vector<8x8x256xf32>
    %374 = arith.mulf %372, %373 : vector<8x8x256xf32>
    %375 = vector.extract_strided_slice %32 {offsets = [0, 13, 0], sizes = [8, 1, 256], strides = [1, 1, 1]} : vector<8x16x256xf32> to vector<8x1x256xf32>
    %376 = vector.extract_strided_slice %34 {offsets = [13, 0, 0], sizes = [1, 8, 256], strides = [1, 1, 1]} : vector<16x8x256xf32> to vector<1x8x256xf32>
    %377 = vector.shape_cast %376 : vector<1x8x256xf32> to vector<8x256xf32>
    %378 = vector.shape_cast %377 : vector<8x256xf32> to vector<1x8x256xf32>
    %379 = vector.broadcast %375 : vector<8x1x256xf32> to vector<8x8x256xf32>
    %380 = vector.broadcast %378 : vector<1x8x256xf32> to vector<8x8x256xf32>
    %381 = arith.mulf %379, %380 : vector<8x8x256xf32>
    %382 = arith.addf %374, %381 : vector<8x8x256xf32>
    %383 = vector.extract_strided_slice %32 {offsets = [0, 14, 0], sizes = [8, 1, 256], strides = [1, 1, 1]} : vector<8x16x256xf32> to vector<8x1x256xf32>
    %384 = vector.extract_strided_slice %34 {offsets = [14, 0, 0], sizes = [1, 8, 256], strides = [1, 1, 1]} : vector<16x8x256xf32> to vector<1x8x256xf32>
    %385 = vector.shape_cast %384 : vector<1x8x256xf32> to vector<8x256xf32>
    %386 = vector.shape_cast %385 : vector<8x256xf32> to vector<1x8x256xf32>
    %387 = vector.broadcast %383 : vector<8x1x256xf32> to vector<8x8x256xf32>
    %388 = vector.broadcast %386 : vector<1x8x256xf32> to vector<8x8x256xf32>
    %389 = arith.mulf %387, %388 : vector<8x8x256xf32>
    %390 = arith.addf %382, %389 : vector<8x8x256xf32>
    %391 = vector.extract_strided_slice %32 {offsets = [0, 15, 0], sizes = [8, 1, 256], strides = [1, 1, 1]} : vector<8x16x256xf32> to vector<8x1x256xf32>
    %392 = vector.extract_strided_slice %34 {offsets = [15, 0, 0], sizes = [1, 8, 256], strides = [1, 1, 1]} : vector<16x8x256xf32> to vector<1x8x256xf32>
    %393 = vector.shape_cast %392 : vector<1x8x256xf32> to vector<8x256xf32>
    %394 = vector.shape_cast %393 : vector<8x256xf32> to vector<1x8x256xf32>
    %395 = vector.broadcast %391 : vector<8x1x256xf32> to vector<8x8x256xf32>
    %396 = vector.broadcast %394 : vector<1x8x256xf32> to vector<8x8x256xf32>
    %397 = arith.mulf %395, %396 : vector<8x8x256xf32>
    %398 = arith.addf %390, %397 : vector<8x8x256xf32>
    %cst_26 = arith.constant 5.000000e-01 : f32
    %399 = vector.broadcast %cst_26 : f32 to vector<8x8x256xf32>
    %400 = arith.mulf %398, %399 : vector<8x8x256xf32>
    %cst_27 = arith.constant dense<0xFF800000> : vector<8x256xf32>
    %401 = vector.multi_reduction <maximumf>, %400, %cst_27 [1] : vector<8x8x256xf32> to vector<8x256xf32>
    %402 = vector.shape_cast %401 : vector<8x256xf32> to vector<8x1x256xf32>
    %403 = vector.broadcast %402 : vector<8x1x256xf32> to vector<8x8x256xf32>
    %404 = arith.subf %400, %403 : vector<8x8x256xf32>
    %405 = math.exp %404 : vector<8x8x256xf32>
    %cst_28 = arith.constant dense<0.000000e+00> : vector<8x256xf32>
    %406 = vector.multi_reduction <add>, %405, %cst_28 [1] : vector<8x8x256xf32> to vector<8x256xf32>
    %407 = vector.shape_cast %406 : vector<8x256xf32> to vector<8x1x256xf32>
    %408 = tpu.reciprocal %407 {approx = true} : vector<8x1x256xf32> -> vector<8x1x256xf32>
    %409 = arith.mulf %407, %408 : vector<8x1x256xf32>
    %cst_29 = arith.constant 2.000000e+00 : f32
    %410 = vector.broadcast %cst_29 : f32 to vector<8x1x256xf32>
    %411 = arith.subf %410, %409 : vector<8x1x256xf32>
    %412 = arith.mulf %408, %411 : vector<8x1x256xf32>
    %413 = vector.broadcast %412 : vector<8x1x256xf32> to vector<8x8x256xf32>
    %414 = arith.mulf %405, %413 : vector<8x8x256xf32>
    %415 = vector.extract_strided_slice %27 {offsets = [0, 24, 0], sizes = [8, 8, 256], strides = [1, 1, 1]} : vector<8x32x256xf32> to vector<8x8x256xf32>
    %416 = vector.extract_strided_slice %414 {offsets = [0, 0, 0], sizes = [8, 1, 256], strides = [1, 1, 1]} : vector<8x8x256xf32> to vector<8x1x256xf32>
    %417 = vector.extract_strided_slice %415 {offsets = [0, 0, 0], sizes = [1, 8, 256], strides = [1, 1, 1]} : vector<8x8x256xf32> to vector<1x8x256xf32>
    %418 = vector.shape_cast %417 : vector<1x8x256xf32> to vector<8x256xf32>
    %419 = vector.shape_cast %418 : vector<8x256xf32> to vector<1x8x256xf32>
    %420 = vector.broadcast %416 : vector<8x1x256xf32> to vector<8x8x256xf32>
    %421 = vector.broadcast %419 : vector<1x8x256xf32> to vector<8x8x256xf32>
    %422 = arith.mulf %420, %421 : vector<8x8x256xf32>
    %423 = vector.extract_strided_slice %414 {offsets = [0, 1, 0], sizes = [8, 1, 256], strides = [1, 1, 1]} : vector<8x8x256xf32> to vector<8x1x256xf32>
    %424 = vector.extract_strided_slice %415 {offsets = [1, 0, 0], sizes = [1, 8, 256], strides = [1, 1, 1]} : vector<8x8x256xf32> to vector<1x8x256xf32>
    %425 = vector.shape_cast %424 : vector<1x8x256xf32> to vector<8x256xf32>
    %426 = vector.shape_cast %425 : vector<8x256xf32> to vector<1x8x256xf32>
    %427 = vector.broadcast %423 : vector<8x1x256xf32> to vector<8x8x256xf32>
    %428 = vector.broadcast %426 : vector<1x8x256xf32> to vector<8x8x256xf32>
    %429 = arith.mulf %427, %428 : vector<8x8x256xf32>
    %430 = arith.addf %422, %429 : vector<8x8x256xf32>
    %431 = vector.extract_strided_slice %414 {offsets = [0, 2, 0], sizes = [8, 1, 256], strides = [1, 1, 1]} : vector<8x8x256xf32> to vector<8x1x256xf32>
    %432 = vector.extract_strided_slice %415 {offsets = [2, 0, 0], sizes = [1, 8, 256], strides = [1, 1, 1]} : vector<8x8x256xf32> to vector<1x8x256xf32>
    %433 = vector.shape_cast %432 : vector<1x8x256xf32> to vector<8x256xf32>
    %434 = vector.shape_cast %433 : vector<8x256xf32> to vector<1x8x256xf32>
    %435 = vector.broadcast %431 : vector<8x1x256xf32> to vector<8x8x256xf32>
    %436 = vector.broadcast %434 : vector<1x8x256xf32> to vector<8x8x256xf32>
    %437 = arith.mulf %435, %436 : vector<8x8x256xf32>
    %438 = arith.addf %430, %437 : vector<8x8x256xf32>
    %439 = vector.extract_strided_slice %414 {offsets = [0, 3, 0], sizes = [8, 1, 256], strides = [1, 1, 1]} : vector<8x8x256xf32> to vector<8x1x256xf32>
    %440 = vector.extract_strided_slice %415 {offsets = [3, 0, 0], sizes = [1, 8, 256], strides = [1, 1, 1]} : vector<8x8x256xf32> to vector<1x8x256xf32>
    %441 = vector.shape_cast %440 : vector<1x8x256xf32> to vector<8x256xf32>
    %442 = vector.shape_cast %441 : vector<8x256xf32> to vector<1x8x256xf32>
    %443 = vector.broadcast %439 : vector<8x1x256xf32> to vector<8x8x256xf32>
    %444 = vector.broadcast %442 : vector<1x8x256xf32> to vector<8x8x256xf32>
    %445 = arith.mulf %443, %444 : vector<8x8x256xf32>
    %446 = arith.addf %438, %445 : vector<8x8x256xf32>
    %447 = vector.extract_strided_slice %414 {offsets = [0, 4, 0], sizes = [8, 1, 256], strides = [1, 1, 1]} : vector<8x8x256xf32> to vector<8x1x256xf32>
    %448 = vector.extract_strided_slice %415 {offsets = [4, 0, 0], sizes = [1, 8, 256], strides = [1, 1, 1]} : vector<8x8x256xf32> to vector<1x8x256xf32>
    %449 = vector.shape_cast %448 : vector<1x8x256xf32> to vector<8x256xf32>
    %450 = vector.shape_cast %449 : vector<8x256xf32> to vector<1x8x256xf32>
    %451 = vector.broadcast %447 : vector<8x1x256xf32> to vector<8x8x256xf32>
    %452 = vector.broadcast %450 : vector<1x8x256xf32> to vector<8x8x256xf32>
    %453 = arith.mulf %451, %452 : vector<8x8x256xf32>
    %454 = arith.addf %446, %453 : vector<8x8x256xf32>
    %455 = vector.extract_strided_slice %414 {offsets = [0, 5, 0], sizes = [8, 1, 256], strides = [1, 1, 1]} : vector<8x8x256xf32> to vector<8x1x256xf32>
    %456 = vector.extract_strided_slice %415 {offsets = [5, 0, 0], sizes = [1, 8, 256], strides = [1, 1, 1]} : vector<8x8x256xf32> to vector<1x8x256xf32>
    %457 = vector.shape_cast %456 : vector<1x8x256xf32> to vector<8x256xf32>
    %458 = vector.shape_cast %457 : vector<8x256xf32> to vector<1x8x256xf32>
    %459 = vector.broadcast %455 : vector<8x1x256xf32> to vector<8x8x256xf32>
    %460 = vector.broadcast %458 : vector<1x8x256xf32> to vector<8x8x256xf32>
    %461 = arith.mulf %459, %460 : vector<8x8x256xf32>
    %462 = arith.addf %454, %461 : vector<8x8x256xf32>
    %463 = vector.extract_strided_slice %414 {offsets = [0, 6, 0], sizes = [8, 1, 256], strides = [1, 1, 1]} : vector<8x8x256xf32> to vector<8x1x256xf32>
    %464 = vector.extract_strided_slice %415 {offsets = [6, 0, 0], sizes = [1, 8, 256], strides = [1, 1, 1]} : vector<8x8x256xf32> to vector<1x8x256xf32>
    %465 = vector.shape_cast %464 : vector<1x8x256xf32> to vector<8x256xf32>
    %466 = vector.shape_cast %465 : vector<8x256xf32> to vector<1x8x256xf32>
    %467 = vector.broadcast %463 : vector<8x1x256xf32> to vector<8x8x256xf32>
    %468 = vector.broadcast %466 : vector<1x8x256xf32> to vector<8x8x256xf32>
    %469 = arith.mulf %467, %468 : vector<8x8x256xf32>
    %470 = arith.addf %462, %469 : vector<8x8x256xf32>
    %471 = vector.extract_strided_slice %414 {offsets = [0, 7, 0], sizes = [8, 1, 256], strides = [1, 1, 1]} : vector<8x8x256xf32> to vector<8x1x256xf32>
    %472 = vector.extract_strided_slice %415 {offsets = [7, 0, 0], sizes = [1, 8, 256], strides = [1, 1, 1]} : vector<8x8x256xf32> to vector<1x8x256xf32>
    %473 = vector.shape_cast %472 : vector<1x8x256xf32> to vector<8x256xf32>
    %474 = vector.shape_cast %473 : vector<8x256xf32> to vector<1x8x256xf32>
    %475 = vector.broadcast %471 : vector<8x1x256xf32> to vector<8x8x256xf32>
    %476 = vector.broadcast %474 : vector<1x8x256xf32> to vector<8x8x256xf32>
    %477 = arith.mulf %475, %476 : vector<8x8x256xf32>
    %478 = arith.addf %470, %477 : vector<8x8x256xf32>
    %479 = tpu.concatenate %145, %256, %367, %478 in 1 : vector<8x8x256xf32>, vector<8x8x256xf32>, vector<8x8x256xf32>, vector<8x8x256xf32> -> vector<8x32x256xf32>
    %480 = arith.addf %1, %479 : vector<8x32x256xf32>
    %481 = vector.shape_cast %480 : vector<8x32x256xf32> to vector<32x8x256xf32>
    %cst_30 = arith.constant dense<0.000000e+00> : vector<32x256xf32>
    %482 = vector.multi_reduction <add>, %481, %cst_30 [1] : vector<32x8x256xf32> to vector<32x256xf32>
    %483 = vector.shape_cast %482 : vector<32x256xf32> to vector<32x1x256xf32>
    %cst_31 = arith.constant 8.000000e+00 : f32
    %484 = vector.broadcast %cst_31 : f32 to vector<32x1x256xf32>
    %485 = arith.divf %483, %484 : vector<32x1x256xf32>
    %486 = vector.broadcast %485 : vector<32x1x256xf32> to vector<32x8x256xf32>
    %487 = arith.subf %481, %486 : vector<32x8x256xf32>
    %488 = arith.mulf %487, %487 : vector<32x8x256xf32>
    %cst_32 = arith.constant dense<0.000000e+00> : vector<32x256xf32>
    %489 = vector.multi_reduction <add>, %488, %cst_32 [1] : vector<32x8x256xf32> to vector<32x256xf32>
    %490 = vector.shape_cast %489 : vector<32x256xf32> to vector<32x1x256xf32>
    %cst_33 = arith.constant 8.000000e+00 : f32
    %491 = vector.broadcast %cst_33 : f32 to vector<32x1x256xf32>
    %492 = arith.divf %490, %491 : vector<32x1x256xf32>
    %cst_34 = arith.constant 9.99999974E-6 : f32
    %493 = vector.broadcast %cst_34 : f32 to vector<32x1x256xf32>
    %494 = arith.addf %492, %493 : vector<32x1x256xf32>
    %495 = math.rsqrt %494 : vector<32x1x256xf32>
    %496 = vector.broadcast %495 : vector<32x1x256xf32> to vector<32x8x256xf32>
    %497 = arith.mulf %487, %496 : vector<32x8x256xf32>
    %498 = vector.shape_cast %497 : vector<32x8x256xf32> to vector<8x32x256xf32>
    %c0_35 = arith.constant 0 : index
    %c0_36 = arith.constant 0 : index
    %499 = vector.load %arg6[%c0_35, %c0_36] : memref<256x256xf32, #tpu.memory_space<vmem>>, vector<256x256xf32>
    %500 = vector.shape_cast %498 : vector<8x32x256xf32> to vector<256x256xf32>
    %cst_37 = arith.constant dense<0.000000e+00> : vector<256x256xf32>
    %501 = tpu.matmul %499, %500, %cst_37 {dimension_numbers = #tpu.dot_dimension_numbers<[1], [0], [0], [1], [0, 0, 1, 1], [], []>} : vector<256x256xf32>, vector<256x256xf32>, vector<256x256xf32> -> vector<256x256xf32>
    %c0_38 = arith.constant 0 : index
    %c0_39 = arith.constant 0 : index
    %502 = vector.load %arg7[%c0_38, %c0_39] : memref<256x1xf32, #tpu.memory_space<vmem>>, vector<256x1xf32>
    %503 = vector.broadcast %502 : vector<256x1xf32> to vector<256x256xf32>
    %504 = arith.addf %501, %503 : vector<256x256xf32>
    %cst_40 = arith.constant 0.000000e+00 : f32
    %505 = vector.broadcast %cst_40 : f32 to vector<256x256xf32>
    %506 = arith.maximumf %504, %505 : vector<256x256xf32>
    %507 = vector.shape_cast %506 : vector<256x256xf32> to vector<8x32x256xf32>
    %508 = arith.addf %480, %507 : vector<8x32x256xf32>
    %c0_41 = arith.constant 0 : index
    %c0_42 = arith.constant 0 : index
    %c0_43 = arith.constant 0 : index
    %c0_44 = arith.constant 0 : index
    %509 = vector.load %arg8[%c0_41, %c0_42, %c0_43, %c0_44] : memref<1x8x32x256xf32, #tpu.memory_space<vmem>>, vector<1x8x32x256xf32>
    %510 = vector.shape_cast %509 : vector<1x8x32x256xf32> to vector<8x32x256xf32>
    %511 = vector.shape_cast %508 : vector<8x32x256xf32> to vector<1x8x32x256xf32>
    tpu.vector_store %arg8[%c0_41, %c0_42, %c0_43, %c0_44], %511 {strides = array<i32>} : memref<1x8x32x256xf32, #tpu.memory_space<vmem>>, vector<1x8x32x256xf32>,
    return
  }
  func.func @transform_0(%arg0: i32, %arg1: i32) -> (i32, i32, i32, i32) {
    %c0_i32 = arith.constant 0 : i32
    %c0_i32_0 = arith.constant 0 : i32
    %c0_i32_1 = arith.constant 0 : i32
    return %arg0, %c0_i32, %c0_i32_0, %arg1 : i32, i32, i32, i32
  }
  func.func @transform_1(%arg0: i32, %arg1: i32) -> (i32, i32) {
    %c0_i32 = arith.constant 0 : i32
    %c0_i32_0 = arith.constant 0 : i32
    %c0_i32_1 = arith.constant 0 : i32
    return %c0_i32, %c0_i32_0 : i32, i32
  }
  func.func @transform_2(%arg0: i32, %arg1: i32) -> (i32, i32) {
    %c0_i32 = arith.constant 0 : i32
    %c0_i32_0 = arith.constant 0 : i32
    %c0_i32_1 = arith.constant 0 : i32
    return %c0_i32, %c0_i32_0 : i32, i32
  }
  func.func @transform_3(%arg0: i32, %arg1: i32) -> (i32, i32) {
    %c0_i32 = arith.constant 0 : i32
    %c0_i32_0 = arith.constant 0 : i32
    %c0_i32_1 = arith.constant 0 : i32
    return %c0_i32, %c0_i32_0 : i32, i32
  }
  func.func @transform_4(%arg0: i32, %arg1: i32) -> (i32, i32) {
    %c0_i32 = arith.constant 0 : i32
    %c0_i32_0 = arith.constant 0 : i32
    %c0_i32_1 = arith.constant 0 : i32
    return %c0_i32, %c0_i32_0 : i32, i32
  }
  func.func @transform_5(%arg0: i32, %arg1: i32) -> (i32, i32) {
    %c0_i32 = arith.constant 0 : i32
    %c0_i32_0 = arith.constant 0 : i32
    %c0_i32_1 = arith.constant 0 : i32
    return %c0_i32, %c0_i32_0 : i32, i32
  }
  func.func @transform_6(%arg0: i32, %arg1: i32) -> (i32, i32, i32, i32) {
    %c0_i32 = arith.constant 0 : i32
    %c0_i32_0 = arith.constant 0 : i32
    %c0_i32_1 = arith.constant 0 : i32
    return %arg0, %c0_i32, %c0_i32_0, %arg1 : i32, i32, i32, i32
  }
}

</mosaic_0001>

<llo_original>
// kernel: tpu_custom_call.1
$region0: #{tpu_custom_call.1}
  #allocation0 [shape = 'u32[]', space=smem, size = 0x4, offset = 0x4, fixed_abs, tag = 'smem constant byte address 0x4 - core index']
  #allocation1 [shape = 'u32[72,128]{1,0:T(1,128)}', space=vmem, size = 0x9000, scoped, tag = 'internal scratch']
  %s0 = inlined_call_operand.hbm [shape: f32[2,8,32,256], index: 0, kind: input, shape index: {}]
  %s1 = inlined_call_operand.vmem [shape: f32[32,1], index: 1, kind: input, shape index: {}]
  %s2 = inlined_call_operand.vmem [shape: f32[32,1], index: 2, kind: input, shape index: {}]
  %s3 = inlined_call_operand.hbm [shape: f32[256,256], index: 3, kind: input, shape index: {}]
  %s4 = inlined_call_operand.hbm [shape: f32[256,256], index: 4, kind: input, shape index: {}]
  %s5 = inlined_call_operand.vmem [shape: f32[256,1], index: 5, kind: input, shape index: {}]
  %s6 = inlined_call_operand.hbm [shape: f32[2,8,32,256], index: 6, kind: output, shape index: {}]
  %s7 = sld [smem:[#allocation0]]
  $region69: #{tpu_custom_call.1} parent=0
    _
  %s9 = ssub.s32 1, %s7
  %s10 = scalar_select 0, %s9, %s7
  $region1: #{tpu_custom_call.1} parent=0
    #allocation2 [shape = 'u8[524288]{0}', space=vmem, size = 0x80000, scoped, tag = 'input window, operand 0']
    #allocation3 [shape = 's32[2]{0}', space=sflag, size = 0x8, scoped, tag = 'scoped memory for tpu_custom_call.1']
    #allocation4 [shape = 's32[2]{0}', space=sflag, size = 0x8, scoped, tag = 'scoped memory for tpu_custom_call.1']
    #allocation5 [shape = 'u8[262144]{0}', space=vmem, size = 0x40000, scoped, tag = 'input window, operand 3, single buffered']
    #allocation6 [shape = 's32[1]{0}', space=sflag, size = 0x4, scoped, tag = 'scoped memory for tpu_custom_call.1']
    #allocation7 [shape = 'u8[262144]{0}', space=vmem, size = 0x40000, scoped, tag = 'input window, operand 4, single buffered']
    #allocation8 [shape = 'u8[524288]{0}', space=vmem, size = 0x80000, scoped, tag = 'output window, operand 0']
    %11 = vsyncpa [#allocation3], 0
    %s12 = scalar_lea.sflag [#allocation3], 1
    %13 = vsyncpa %s12, 0
    %14 = vsyncpa [#allocation6], 0
    %15 = vsyncpa [#allocation4], 0
    %s16 = scalar_lea.sflag [#allocation4], 1
    %17 = vsyncpa %s16, 0
    loop: start=0, step=1, limit=4
    $region2: #{tpu_custom_call.1} parent=1 // loop_pre_header
      _
    $region3: #{tpu_custom_call.1} parent=1 // loop_header
      %s19 = sphi 0, %s23
      %p20 = scmp.ge.s32.totalorder %s19, 4
      %s26 = sphi 0, %s38
      %s27 = sphi 0, %s34
      %s28 = sphi 0, %s26
      %s29 = sphi 0, %s27
      %s30 = sphi 0, %s28
      %s31 = sphi 0, %s29
      %s43 = sphi 0, %s45
      %s46 = sphi 0, %s43
      %s47 = sphi 0, %s46
      %s63 = sphi 0, %s47
      %s67 = sphi 0, %s67
      %s69 = sphi 0, %s67
      %s70 = sphi 0, %s69
      %s84 = sphi 0, %s70
      %s88 = sphi 0, %s88
      %s90 = sphi 0, %s88
      %s91 = sphi 0, %s90
      %s105 = sphi 0, %s91
      %s109 = sphi 0, %s109
      %s111 = sphi 0, %s109
      %s112 = sphi 0, %s111
      %s126 = sphi 0, %s112
      %s130 = sphi 0, %s130
      %s132 = sphi 0, %s130
      %s133 = sphi 0, %s132
      %s147 = sphi 0, %s133
      %s151 = sphi 0, %s151
      %s153 = sphi 0, %s151
      %s154 = sphi 0, %s153
      %s168 = sphi 0, %s154
      %s176 = sphi 0, %s178
      %s179 = sphi 0, %s176
      %s180 = sphi 0, %s179
      %s196 = sphi 0, %s180
    $region4: #{tpu_custom_call.1} parent=1 // loop_header_branch
      %22 = sbr.rel (%p20) target = $region8
    $region5: #{tpu_custom_call.1} parent=1 // loop_body
      %s24 = ssub.s32 %s19, 1
      %s25 = ssub.s32 %s19, 2
      %s32 = sadd.s32 1, %s27
      %p33 = scmp.ge.s32.totalorder %s32, 1
      %s34 = scalar_select %p33, 0, %s32
      %s35 = sadd.s32 1, %s26
      %s36 = scalar_select %p33, %s35, %s26
      %p37 = scmp.ge.s32.totalorder %s36, 2
      %s38 = scalar_select %p37, 0, %s36
      %s39 = ssub.s32 %s26, %s38
      %s40 = ssub.s32 %s27, %s34
      %s41 = sor.u32 %s39, %s40
      %p42 = scmp.eq.s32.totalorder %s41, 0
      %s44 = sadd.s32 %s43, 1
      %s45 = scalar_select %p42, %s43, %s44
      %p48 = pneg %p42
      %p49 = scmp.eq.s32.totalorder %s19, 1
      %p50 = por %p48, %p49
      %p51 = scmp.ne.s32.totalorder %s43, %s46
      %p52 = scmp.eq.s32.totalorder %s19, 0
      %p53 = por %p51, %p52
      %p54 = scmp.ne.s32.totalorder %s43, %s46
      %p55 = scmp.eq.s32.totalorder %s24, 1
      %p56 = por %p54, %p55
      %p57 = scmp.ne.s32.totalorder %s46, %s47
      %p58 = scmp.eq.s32.totalorder %s24, 0
      %p59 = por %p57, %p58
      %p60 = scmp.ne.s32.totalorder %s46, %s47
      %p61 = scmp.eq.s32.totalorder %s25, 1
      %p62 = por %p60, %p61
      %p64 = scmp.ne.s32.totalorder %s47, %s63
      %p65 = scmp.eq.s32.totalorder %s25, 0
      %p66 = por %p64, %p65
      %s68 = sadd.s32 %s67, 1
      %p71 = scmp.eq.s32.totalorder %s19, 1
      %p72 = scmp.ne.s32.totalorder %s67, %s69
      %p73 = scmp.eq.s32.totalorder %s19, 0
      %p74 = por %p72, %p73
      %p75 = scmp.ne.s32.totalorder %s67, %s69
      %p76 = scmp.eq.s32.totalorder %s24, 1
      %p77 = por %p75, %p76
      %p78 = scmp.ne.s32.totalorder %s69, %s70
      %p79 = scmp.eq.s32.totalorder %s24, 0
      %p80 = por %p78, %p79
      %p81 = scmp.ne.s32.totalorder %s69, %s70
      %p82 = scmp.eq.s32.totalorder %s25, 1
      %p83 = por %p81, %p82
      %p85 = scmp.ne.s32.totalorder %s70, %s84
      %p86 = scmp.eq.s32.totalorder %s25, 0
      %p87 = por %p85, %p86
      %s89 = sadd.s32 %s88, 1
      %p92 = scmp.eq.s32.totalorder %s19, 1
      %p93 = scmp.ne.s32.totalorder %s88, %s90
      %p94 = scmp.eq.s32.totalorder %s19, 0
      %p95 = por %p93, %p94
      %p96 = scmp.ne.s32.totalorder %s88, %s90
      %p97 = scmp.eq.s32.totalorder %s24, 1
      %p98 = por %p96, %p97
      %p99 = scmp.ne.s32.totalorder %s90, %s91
      %p100 = scmp.eq.s32.totalorder %s24, 0
      %p101 = por %p99, %p100
      %p102 = scmp.ne.s32.totalorder %s90, %s91
      %p103 = scmp.eq.s32.totalorder %s25, 1
      %p104 = por %p102, %p103
      %p106 = scmp.ne.s32.totalorder %s91, %s105
      %p107 = scmp.eq.s32.totalorder %s25, 0
      %p108 = por %p106, %p107
      %s110 = sadd.s32 %s109, 1
      %p113 = scmp.eq.s32.totalorder %s19, 1
      %p114 = scmp.ne.s32.totalorder %s109, %s111
      %p115 = scmp.eq.s32.totalorder %s19, 0
      %p116 = por %p114, %p115
      %p117 = scmp.ne.s32.totalorder %s109, %s111
      %p118 = scmp.eq.s32.totalorder %s24, 1
      %p119 = por %p117, %p118
      %p120 = scmp.ne.s32.totalorder %s111, %s112
      %p121 = scmp.eq.s32.totalorder %s24, 0
      %p122 = por %p120, %p121
      %p123 = scmp.ne.s32.totalorder %s111, %s112
      %p124 = scmp.eq.s32.totalorder %s25, 1
      %p125 = por %p123, %p124
      %p127 = scmp.ne.s32.totalorder %s112, %s126
      %p128 = scmp.eq.s32.totalorder %s25, 0
      %p129 = por %p127, %p128
      %s131 = sadd.s32 %s130, 1
      %p134 = scmp.eq.s32.totalorder %s19, 1
      %p135 = scmp.ne.s32.totalorder %s130, %s132
      %p136 = scmp.eq.s32.totalorder %s19, 0
      %p137 = por %p135, %p136
      %p138 = scmp.ne.s32.totalorder %s130, %s132
      %p139 = scmp.eq.s32.totalorder %s24, 1
      %p140 = por %p138, %p139
      %p141 = scmp.ne.s32.totalorder %s132, %s133
      %p142 = scmp.eq.s32.totalorder %s24, 0
      %p143 = por %p141, %p142
      %p144 = scmp.ne.s32.totalorder %s132, %s133
      %p145 = scmp.eq.s32.totalorder %s25, 1
      %p146 = por %p144, %p145
      %p148 = scmp.ne.s32.totalorder %s133, %s147
      %p149 = scmp.eq.s32.totalorder %s25, 0
      %p150 = por %p148, %p149
      %s152 = sadd.s32 %s151, 1
      %p155 = scmp.eq.s32.totalorder %s19, 1
      %p156 = scmp.ne.s32.totalorder %s151, %s153
      %p157 = scmp.eq.s32.totalorder %s19, 0
      %p158 = por %p156, %p157
      %p159 = scmp.ne.s32.totalorder %s151, %s153
      %p160 = scmp.eq.s32.totalorder %s24, 1
      %p161 = por %p159, %p160
      %p162 = scmp.ne.s32.totalorder %s153, %s154
      %p163 = scmp.eq.s32.totalorder %s24, 0
      %p164 = por %p162, %p163
      %p165 = scmp.ne.s32.totalorder %s153, %s154
      %p166 = scmp.eq.s32.totalorder %s25, 1
      %p167 = por %p165, %p166
      %p169 = scmp.ne.s32.totalorder %s154, %s168
      %p170 = scmp.eq.s32.totalorder %s25, 0
      %p171 = por %p169, %p170
      %s172 = ssub.s32 %s26, %s38
      %s173 = ssub.s32 %s27, %s34
      %s174 = sor.u32 %s172, %s173
      %p175 = scmp.eq.s32.totalorder %s174, 0
      %s177 = sadd.s32 %s176, 1
      %s178 = scalar_select %p175, %s176, %s177
      %p181 = pneg %p175
      %p182 = scmp.eq.s32.totalorder %s19, 1
      %p183 = por %p181, %p182
      %p184 = scmp.ne.s32.totalorder %s176, %s179
      %p185 = scmp.eq.s32.totalorder %s19, 0
      %p186 = por %p184, %p185
      %p187 = scmp.ne.s32.totalorder %s176, %s179
      %p188 = scmp.eq.s32.totalorder %s24, 1
      %p189 = por %p187, %p188
      %p190 = scmp.ne.s32.totalorder %s179, %s180
      %p191 = scmp.eq.s32.totalorder %s24, 0
      %p192 = por %p190, %p191
      %p193 = scmp.ne.s32.totalorder %s179, %s180
      %p194 = scmp.eq.s32.totalorder %s25, 1
      %p195 = por %p193, %p194
      %p197 = scmp.ne.s32.totalorder %s180, %s196
      %p198 = scmp.eq.s32.totalorder %s25, 0
      %p199 = por %p197, %p198
      %p200 = scmp.le.s32.totalorder 1, %s19
      %p201 = scmp.lt.s32.totalorder %s19, 3
      %p202 = pnand %p200, %p201
      %p203 = pneg %p202
      // Predicated region
      $region9: #{tpu_custom_call.1} parent=5 // pred_check
        _
      $region10: #{tpu_custom_call.1} parent=5 // pred_check_branch
        %205 = sbr.rel (%p202) target = $region12
      $region11: #{tpu_custom_call.1} parent=5 // pred_region
        %s206 = ssub.s32 %s19, 1
        // Predicated region
        $region13: #{tpu_custom_call.1} parent=11 // pred_check
          %p207 = pneg %p80
        $region14: #{tpu_custom_call.1} parent=11 // pred_check_branch
          %209 = sbr.rel (%p207) target = $region16
        $region15: #{tpu_custom_call.1} parent=11 // pred_region
          _
        $region16: #{tpu_custom_call.1} parent=11 // pred_fallthru
          _
        // Predicated region
        $region17: #{tpu_custom_call.1} parent=11 // pred_check
          %p210 = pneg %p101
        $region18: #{tpu_custom_call.1} parent=11 // pred_check_branch
          %212 = sbr.rel (%p210) target = $region20
        $region19: #{tpu_custom_call.1} parent=11 // pred_region
          _
        $region20: #{tpu_custom_call.1} parent=11 // pred_fallthru
          _
        // Predicated region
        $region21: #{tpu_custom_call.1} parent=11 // pred_check
          %p213 = pneg %p122
        $region22: #{tpu_custom_call.1} parent=11 // pred_check_branch
          %215 = sbr.rel (%p213) target = $region24
        $region23: #{tpu_custom_call.1} parent=11 // pred_region
          %217 = vsyncadd [#allocation6], 0
          %s218 = sshll.u32 %s3, 4
          %s219 = int_to_ptr.hbm [resolvable:$true] %s218
          %s220 = sshll.u32 [#allocation5], 4
          %s221 = int_to_ptr.vmem [resolvable:$true] %s220
          %226 = dma.hbm_to_vmem [thread:$0]  %s219, 8192, %s221, [#allocation6], 256, 256, 16
        $region24: #{tpu_custom_call.1} parent=11 // pred_fallthru
          _
        // Predicated region
        $region25: #{tpu_custom_call.1} parent=11 // pred_check
          %p227 = pneg %p143
        $region26: #{tpu_custom_call.1} parent=11 // pred_check_branch
          %229 = sbr.rel (%p227) target = $region28
        $region27: #{tpu_custom_call.1} parent=11 // pred_region
          %231 = vsyncadd [#allocation6], 0
          %s232 = sshll.u32 %s4, 4
          %s233 = int_to_ptr.hbm [resolvable:$true] %s232
          %s234 = sshll.u32 [#allocation7], 4
          %s235 = int_to_ptr.vmem [resolvable:$true] %s234
          %240 = dma.hbm_to_vmem [thread:$0]  %s233, 8192, %s235, [#allocation6], 256, 256, 16
        $region28: #{tpu_custom_call.1} parent=11 // pred_fallthru
          _
        // Predicated region
        $region29: #{tpu_custom_call.1} parent=11 // pred_check
          %p241 = pneg %p164
        $region30: #{tpu_custom_call.1} parent=11 // pred_check_branch
          %243 = sbr.rel (%p241) target = $region32
        $region31: #{tpu_custom_call.1} parent=11 // pred_region
          _
        $region32: #{tpu_custom_call.1} parent=11 // pred_fallthru
          _
      $region12: #{tpu_custom_call.1} parent=5 // pred_fallthru
        _
      %p244 = scmp.lt.s32.totalorder %s19, 2
      // Predicated region
      $region33: #{tpu_custom_call.1} parent=5 // pred_check
        %p245 = pneg %p244
      $region34: #{tpu_custom_call.1} parent=5 // pred_check_branch
        %247 = sbr.rel (%p245) target = $region36
      $region35: #{tpu_custom_call.1} parent=5 // pred_region
        // Predicated region
        $region37: #{tpu_custom_call.1} parent=35 // pred_check
          %p248 = pneg %p53
        $region38: #{tpu_custom_call.1} parent=35 // pred_check_branch
          %250 = sbr.rel (%p248) target = $region40
        $region39: #{tpu_custom_call.1} parent=35 // pred_region
          %s251 = sand.u32 %s43, 1
          %s252 = scalar_lea.sflag [#allocation3], %s251
          %s253 = sand.u32 %s43, 1
          %s254 = smul.addr %s253, 512
          %s255 = scalar_lea.vmem [#allocation2], %s254
          %s256 = smul.u32 2, %s27
          %258 = vsyncadd %s252, 0
          %s259 = smul.addr %s26, 64
          %s260 = sadd.s32 %s256, %s259
          %s261 = smul.addr %s260, 8
          %s262 = scalar_lea.hbm %s0, %s261
          %s263 = sshll.u32 %s262, 4
          %s264 = int_to_ptr.hbm [resolvable:$true] %s263
          %s265 = sshll.u32 %s255, 4
          %s266 = int_to_ptr.vmem [resolvable:$true] %s265
          %271 = dma.hbm_to_vmem [thread:$0]  %s264, 8192, %s266, %s252, 256, 256, 16
        $region40: #{tpu_custom_call.1} parent=35 // pred_fallthru
          _
      $region36: #{tpu_custom_call.1} parent=5 // pred_fallthru
        _
      %p272 = scmp.le.s32.totalorder 1, %s19
      %p273 = scmp.lt.s32.totalorder %s19, 3
      %p274 = pnand %p272, %p273
      %p275 = pneg %p274
      // Predicated region
      $region41: #{tpu_custom_call.1} parent=5 // pred_check
        _
      $region42: #{tpu_custom_call.1} parent=5 // pred_check_branch
        %277 = sbr.rel (%p274) target = $region44
      $region43: #{tpu_custom_call.1} parent=5 // pred_region
        %s278 = ssub.s32 %s19, 1
        %s279 = sand.u32 %s46, 1
        %s280 = scalar_lea.sflag [#allocation3], %s279
        %s281 = sand.u32 %s46, 1
        %s282 = smul.addr %s281, 512
        %s283 = scalar_lea.vmem [#allocation2], %s282
        // Predicated region
        $region45: #{tpu_custom_call.1} parent=43 // pred_check
          %p284 = pneg %p59
        $region46: #{tpu_custom_call.1} parent=43 // pred_check_branch
          %286 = sbr.rel (%p284) target = $region48
        $region47: #{tpu_custom_call.1} parent=43 // pred_region
          %288 = dma.done %s280, 8192
        $region48: #{tpu_custom_call.1} parent=43 // pred_fallthru
          _
        // Predicated region
        $region49: #{tpu_custom_call.1} parent=43 // pred_check
          %p289 = pneg %p122
        $region50: #{tpu_custom_call.1} parent=43 // pred_check_branch
          %291 = sbr.rel (%p289) target = $region52
        $region51: #{tpu_custom_call.1} parent=43 // pred_region
          %293 = dma.done [#allocation6], 8192
        $region52: #{tpu_custom_call.1} parent=43 // pred_fallthru
          _
        // Predicated region
        $region53: #{tpu_custom_call.1} parent=43 // pred_check
          %p294 = pneg %p143
        $region54: #{tpu_custom_call.1} parent=43 // pred_check_branch
          %296 = sbr.rel (%p294) target = $region56
        $region55: #{tpu_custom_call.1} parent=43 // pred_region
          %298 = dma.done [#allocation6], 8192
        $region56: #{tpu_custom_call.1} parent=43 // pred_fallthru
          _
        %s299 = sand.u32 %s46, 1
        %s300 = scalar_lea.sflag [#allocation3], %s299
        %s301 = sand.u32 %s46, 1
        %s302 = smul.addr %s301, 512
        %s303 = scalar_lea.vmem [#allocation2], %s302
        %p304 = pneg %p59
        %p305 = pneg %p56
        %p306 = pneg %p80
        %p307 = pneg %p77
        %p308 = pneg %p101
        %p309 = pneg %p98
        %p310 = pneg %p122
        %p311 = pneg %p119
        %p312 = pneg %p143
        %p313 = pneg %p140
        %p314 = pneg %p164
        %p315 = pneg %p161
        %p316 = pneg %p192
        %p317 = pneg %p189
        %s318 = sand.u32 %s179, 1
        %s319 = scalar_lea.sflag [#allocation4], %s318
        %s320 = sand.u32 %s179, 1
        %s321 = smul.addr %s320, 512
        %s322 = scalar_lea.vmem [#allocation8], %s321
        %s323 = smul.u32 2, %s29
        %s324 = smul.u32 2, %s29
        %v325 = vld [vmem:[%s283] sm:$0xff]
        %v326 = vld [vmem:[%s283 + $0x8] sm:$0xff]
        %v327 = vld [vmem:[%s283 + $0x10] sm:$0xff]
        %v328 = vld [vmem:[%s283 + $0x18] sm:$0xff]
        %v329 = vld [vmem:[%s283 + $0x20] sm:$0xff]
        %v330 = vld [vmem:[%s283 + $0x28] sm:$0xff]
        %v331 = vld [vmem:[%s283 + $0x30] sm:$0xff]
        %v332 = vld [vmem:[%s283 + $0x38] sm:$0xff]
        %v333 = vld [vmem:[%s283 + $0x40] sm:$0xff]
        %v334 = vld [vmem:[%s283 + $0x48] sm:$0xff]
        %v335 = vld [vmem:[%s283 + $0x50] sm:$0xff]
        %v336 = vld [vmem:[%s283 + $0x58] sm:$0xff]
        %v337 = vld [vmem:[%s283 + $0x60] sm:$0xff]
        %v338 = vld [vmem:[%s283 + $0x68] sm:$0xff]
        %v339 = vld [vmem:[%s283 + $0x70] sm:$0xff]
        %v340 = vld [vmem:[%s283 + $0x78] sm:$0xff]
        %v341 = vld [vmem:[%s283 + $0x80] sm:$0xff]
        %v342 = vld [vmem:[%s283 + $0x88] sm:$0xff]
        %v343 = vld [vmem:[%s283 + $0x90] sm:$0xff]
        %v344 = vld [vmem:[%s283 + $0x98] sm:$0xff]
        %v345 = vld [vmem:[%s283 + $0xa0] sm:$0xff]
        %v346 = vld [vmem:[%s283 + $0xa8] sm:$0xff]
        %v347 = vld [vmem:[%s283 + $0xb0] sm:$0xff]
        %v348 = vld [vmem:[%s283 + $0xb8] sm:$0xff]
        %v349 = vld [vmem:[%s283 + $0xc0] sm:$0xff]
        %v350 = vld [vmem:[%s283 + $0xc8] sm:$0xff]
        %v351 = vld [vmem:[%s283 + $0xd0] sm:$0xff]
        %v352 = vld [vmem:[%s283 + $0xd8] sm:$0xff]
        %v353 = vld [vmem:[%s283 + $0xe0] sm:$0xff]
        %v354 = vld [vmem:[%s283 + $0xe8] sm:$0xff]
        %v355 = vld [vmem:[%s283 + $0xf0] sm:$0xff]
        %v356 = vld [vmem:[%s283 + $0xf8] sm:$0xff]
        %v357 = vld [vmem:[%s283 + $0x100] sm:$0xff]
        %v358 = vld [vmem:[%s283 + $0x108] sm:$0xff]
        %v359 = vld [vmem:[%s283 + $0x110] sm:$0xff]
        %v360 = vld [vmem:[%s283 + $0x118] sm:$0xff]
        %v361 = vld [vmem:[%s283 + $0x120] sm:$0xff]
        %v362 = vld [vmem:[%s283 + $0x128] sm:$0xff]
        %v363 = vld [vmem:[%s283 + $0x130] sm:$0xff]
        %v364 = vld [vmem:[%s283 + $0x138] sm:$0xff]
        %v365 = vld [vmem:[%s283 + $0x140] sm:$0xff]
        %v366 = vld [vmem:[%s283 + $0x148] sm:$0xff]
        %v367 = vld [vmem:[%s283 + $0x150] sm:$0xff]
        %v368 = vld [vmem:[%s283 + $0x158] sm:$0xff]
        %v369 = vld [vmem:[%s283 + $0x160] sm:$0xff]
        %v370 = vld [vmem:[%s283 + $0x168] sm:$0xff]
        %v371 = vld [vmem:[%s283 + $0x170] sm:$0xff]
        %v372 = vld [vmem:[%s283 + $0x178] sm:$0xff]
        %v373 = vld [vmem:[%s283 + $0x180] sm:$0xff]
        %v374 = vld [vmem:[%s283 + $0x188] sm:$0xff]
        %v375 = vld [vmem:[%s283 + $0x190] sm:$0xff]
        %v376 = vld [vmem:[%s283 + $0x198] sm:$0xff]
        %v377 = vld [vmem:[%s283 + $0x1a0] sm:$0xff]
        %v378 = vld [vmem:[%s283 + $0x1a8] sm:$0xff]
        %v379 = vld [vmem:[%s283 + $0x1b0] sm:$0xff]
        %v380 = vld [vmem:[%s283 + $0x1b8] sm:$0xff]
        %v381 = vld [vmem:[%s283 + $0x1c0] sm:$0xff]
        %v382 = vld [vmem:[%s283 + $0x1c8] sm:$0xff]
        %v383 = vld [vmem:[%s283 + $0x1d0] sm:$0xff]
        %v384 = vld [vmem:[%s283 + $0x1d8] sm:$0xff]
        %v385 = vld [vmem:[%s283 + $0x1e0] sm:$0xff]
        %v386 = vld [vmem:[%s283 + $0x1e8] sm:$0xff]
        %v387 = vld [vmem:[%s283 + $0x1f0] sm:$0xff]
        %v388 = vld [vmem:[%s283 + $0x1f8] sm:$0xff]
        %v389 = vrot.slane %v325, 4
        %v390 = vadd.f32 %v325, %v389
        %v391 = vrot.slane %v390, 2
        %v392 = vadd.f32 %v390, %v391
        %v393 = vrot.slane %v392, 1
        %v394 = vadd.f32 %v392, %v393
        %v395 = vrot.slane %v326, 4
        %v396 = vadd.f32 %v326, %v395
        %v397 = vrot.slane %v396, 2
        %v398 = vadd.f32 %v396, %v397
        %v399 = vrot.slane %v398, 1
        %v400 = vadd.f32 %v398, %v399
        %v401 = vrot.slane %v327, 4
        %v402 = vadd.f32 %v327, %v401
        %v403 = vrot.slane %v402, 2
        %v404 = vadd.f32 %v402, %v403
        %v405 = vrot.slane %v404, 1
        %v406 = vadd.f32 %v404, %v405
        %v407 = vrot.slane %v328, 4
        %v408 = vadd.f32 %v328, %v407
        %v409 = vrot.slane %v408, 2
        %v410 = vadd.f32 %v408, %v409
        %v411 = vrot.slane %v410, 1
        %v412 = vadd.f32 %v410, %v411
        %v413 = vrot.slane %v329, 4
        %v414 = vadd.f32 %v329, %v413
        %v415 = vrot.slane %v414, 2
        %v416 = vadd.f32 %v414, %v415
        %v417 = vrot.slane %v416, 1
        %v418 = vadd.f32 %v416, %v417
        %v419 = vrot.slane %v330, 4
        %v420 = vadd.f32 %v330, %v419
        %v421 = vrot.slane %v420, 2
        %v422 = vadd.f32 %v420, %v421
        %v423 = vrot.slane %v422, 1
        %v424 = vadd.f32 %v422, %v423
        %v425 = vrot.slane %v331, 4
        %v426 = vadd.f32 %v331, %v425
        %v427 = vrot.slane %v426, 2
        %v428 = vadd.f32 %v426, %v427
        %v429 = vrot.slane %v428, 1
        %v430 = vadd.f32 %v428, %v429
        %v431 = vrot.slane %v332, 4
        %v432 = vadd.f32 %v332, %v431
        %v433 = vrot.slane %v432, 2
        %v434 = vadd.f32 %v432, %v433
        %v435 = vrot.slane %v434, 1
        %v436 = vadd.f32 %v434, %v435
        %v437 = vrot.slane %v333, 4
        %v438 = vadd.f32 %v333, %v437
        %v439 = vrot.slane %v438, 2
        %v440 = vadd.f32 %v438, %v439
        %v441 = vrot.slane %v440, 1
        %v442 = vadd.f32 %v440, %v441
        %v443 = vrot.slane %v334, 4
        %v444 = vadd.f32 %v334, %v443
        %v445 = vrot.slane %v444, 2
        %v446 = vadd.f32 %v444, %v445
        %v447 = vrot.slane %v446, 1
        %v448 = vadd.f32 %v446, %v447
        %v449 = vrot.slane %v335, 4
        %v450 = vadd.f32 %v335, %v449
        %v451 = vrot.slane %v450, 2
        %v452 = vadd.f32 %v450, %v451
        %v453 = vrot.slane %v452, 1
        %v454 = vadd.f32 %v452, %v453
        %v455 = vrot.slane %v336, 4
        %v456 = vadd.f32 %v336, %v455
        %v457 = vrot.slane %v456, 2
        %v458 = vadd.f32 %v456, %v457
        %v459 = vrot.slane %v458, 1
        %v460 = vadd.f32 %v458, %v459
        %v461 = vrot.slane %v337, 4
        %v462 = vadd.f32 %v337, %v461
        %v463 = vrot.slane %v462, 2
        %v464 = vadd.f32 %v462, %v463
        %v465 = vrot.slane %v464, 1
        %v466 = vadd.f32 %v464, %v465
        %v467 = vrot.slane %v338, 4
        %v468 = vadd.f32 %v338, %v467
        %v469 = vrot.slane %v468, 2
        %v470 = vadd.f32 %v468, %v469
        %v471 = vrot.slane %v470, 1
        %v472 = vadd.f32 %v470, %v471
        %v473 = vrot.slane %v339, 4
        %v474 = vadd.f32 %v339, %v473
        %v475 = vrot.slane %v474, 2
        %v476 = vadd.f32 %v474, %v475
        %v477 = vrot.slane %v476, 1
        %v478 = vadd.f32 %v476, %v477
        %v479 = vrot.slane %v340, 4
        %v480 = vadd.f32 %v340, %v479
        %v481 = vrot.slane %v480, 2
        %v482 = vadd.f32 %v480, %v481
        %v483 = vrot.slane %v482, 1
        %v484 = vadd.f32 %v482, %v483
        %v485 = vrot.slane %v341, 4
        %v486 = vadd.f32 %v341, %v485
        %v487 = vrot.slane %v486, 2
        %v488 = vadd.f32 %v486, %v487
        %v489 = vrot.slane %v488, 1
        %v490 = vadd.f32 %v488, %v489
        %v491 = vrot.slane %v342, 4
        %v492 = vadd.f32 %v342, %v491
        %v493 = vrot.slane %v492, 2
        %v494 = vadd.f32 %v492, %v493
        %v495 = vrot.slane %v494, 1
        %v496 = vadd.f32 %v494, %v495
        %v497 = vrot.slane %v343, 4
        %v498 = vadd.f32 %v343, %v497
        %v499 = vrot.slane %v498, 2
        %v500 = vadd.f32 %v498, %v499
        %v501 = vrot.slane %v500, 1
        %v502 = vadd.f32 %v500, %v501
        %v503 = vrot.slane %v344, 4
        %v504 = vadd.f32 %v344, %v503
        %v505 = vrot.slane %v504, 2
        %v506 = vadd.f32 %v504, %v505
        %v507 = vrot.slane %v506, 1
        %v508 = vadd.f32 %v506, %v507
        %v509 = vrot.slane %v345, 4
        %v510 = vadd.f32 %v345, %v509
        %v511 = vrot.slane %v510, 2
        %v512 = vadd.f32 %v510, %v511
        %v513 = vrot.slane %v512, 1
        %v514 = vadd.f32 %v512, %v513
        %v515 = vrot.slane %v346, 4
        %v516 = vadd.f32 %v346, %v515
        %v517 = vrot.slane %v516, 2
        %v518 = vadd.f32 %v516, %v517
        %v519 = vrot.slane %v518, 1
        %v520 = vadd.f32 %v518, %v519
        %v521 = vrot.slane %v347, 4
        %v522 = vadd.f32 %v347, %v521
        %v523 = vrot.slane %v522, 2
        %v524 = vadd.f32 %v522, %v523
        %v525 = vrot.slane %v524, 1
        %v526 = vadd.f32 %v524, %v525
        %v527 = vrot.slane %v348, 4
        %v528 = vadd.f32 %v348, %v527
        %v529 = vrot.slane %v528, 2
        %v530 = vadd.f32 %v528, %v529
        %v531 = vrot.slane %v530, 1
        %v532 = vadd.f32 %v530, %v531
        %v533 = vrot.slane %v349, 4
        %v534 = vadd.f32 %v349, %v533
        %v535 = vrot.slane %v534, 2
        %v536 = vadd.f32 %v534, %v535
        %v537 = vrot.slane %v536, 1
        %v538 = vadd.f32 %v536, %v537
        %v539 = vrot.slane %v350, 4
        %v540 = vadd.f32 %v350, %v539
        %v541 = vrot.slane %v540, 2
        %v542 = vadd.f32 %v540, %v541
        %v543 = vrot.slane %v542, 1
        %v544 = vadd.f32 %v542, %v543
        %v545 = vrot.slane %v351, 4
        %v546 = vadd.f32 %v351, %v545
        %v547 = vrot.slane %v546, 2
        %v548 = vadd.f32 %v546, %v547
        %v549 = vrot.slane %v548, 1
        %v550 = vadd.f32 %v548, %v549
        %v551 = vrot.slane %v352, 4
        %v552 = vadd.f32 %v352, %v551
        %v553 = vrot.slane %v552, 2
        %v554 = vadd.f32 %v552, %v553
        %v555 = vrot.slane %v554, 1
        %v556 = vadd.f32 %v554, %v555
        %v557 = vrot.slane %v353, 4
        %v558 = vadd.f32 %v353, %v557
        %v559 = vrot.slane %v558, 2
        %v560 = vadd.f32 %v558, %v559
        %v561 = vrot.slane %v560, 1
        %v562 = vadd.f32 %v560, %v561
        %v563 = vrot.slane %v354, 4
        %v564 = vadd.f32 %v354, %v563
        %v565 = vrot.slane %v564, 2
        %v566 = vadd.f32 %v564, %v565
        %v567 = vrot.slane %v566, 1
        %v568 = vadd.f32 %v566, %v567
        %v569 = vrot.slane %v355, 4
        %v570 = vadd.f32 %v355, %v569
        %v571 = vrot.slane %v570, 2
        %v572 = vadd.f32 %v570, %v571
        %v573 = vrot.slane %v572, 1
        %v574 = vadd.f32 %v572, %v573
        %v575 = vrot.slane %v356, 4
        %v576 = vadd.f32 %v356, %v575
        %v577 = vrot.slane %v576, 2
        %v578 = vadd.f32 %v576, %v577
        %v579 = vrot.slane %v578, 1
        %v580 = vadd.f32 %v578, %v579
        %v581 = vrot.slane %v357, 4
        %v582 = vadd.f32 %v357, %v581
        %v583 = vrot.slane %v582, 2
        %v584 = vadd.f32 %v582, %v583
        %v585 = vrot.slane %v584, 1
        %v586 = vadd.f32 %v584, %v585
        %v587 = vrot.slane %v358, 4
        %v588 = vadd.f32 %v358, %v587
        %v589 = vrot.slane %v588, 2
        %v590 = vadd.f32 %v588, %v589
        %v591 = vrot.slane %v590, 1
        %v592 = vadd.f32 %v590, %v591
        %v593 = vrot.slane %v359, 4
        %v594 = vadd.f32 %v359, %v593
        %v595 = vrot.slane %v594, 2
        %v596 = vadd.f32 %v594, %v595
        %v597 = vrot.slane %v596, 1
        %v598 = vadd.f32 %v596, %v597
        %v599 = vrot.slane %v360, 4
        %v600 = vadd.f32 %v360, %v599
        %v601 = vrot.slane %v600, 2
        %v602 = vadd.f32 %v600, %v601
        %v603 = vrot.slane %v602, 1
        %v604 = vadd.f32 %v602, %v603
        %v605 = vrot.slane %v361, 4
        %v606 = vadd.f32 %v361, %v605
        %v607 = vrot.slane %v606, 2
        %v608 = vadd.f32 %v606, %v607
        %v609 = vrot.slane %v608, 1
        %v610 = vadd.f32 %v608, %v609
        %v611 = vrot.slane %v362, 4
        %v612 = vadd.f32 %v362, %v611
        %v613 = vrot.slane %v612, 2
        %v614 = vadd.f32 %v612, %v613
        %v615 = vrot.slane %v614, 1
        %v616 = vadd.f32 %v614, %v615
        %v617 = vrot.slane %v363, 4
        %v618 = vadd.f32 %v363, %v617
        %v619 = vrot.slane %v618, 2
        %v620 = vadd.f32 %v618, %v619
        %v621 = vrot.slane %v620, 1
        %v622 = vadd.f32 %v620, %v621
        %v623 = vrot.slane %v364, 4
        %v624 = vadd.f32 %v364, %v623
        %v625 = vrot.slane %v624, 2
        %v626 = vadd.f32 %v624, %v625
        %v627 = vrot.slane %v626, 1
        %v628 = vadd.f32 %v626, %v627
        %v629 = vrot.slane %v365, 4
        %v630 = vadd.f32 %v365, %v629
        %v631 = vrot.slane %v630, 2
        %v632 = vadd.f32 %v630, %v631
        %v633 = vrot.slane %v632, 1
        %v634 = vadd.f32 %v632, %v633
        %v635 = vrot.slane %v366, 4
        %v636 = vadd.f32 %v366, %v635
        %v637 = vrot.slane %v636, 2
        %v638 = vadd.f32 %v636, %v637
        %v639 = vrot.slane %v638, 1
        %v640 = vadd.f32 %v638, %v639
        %v641 = vrot.slane %v367, 4
        %v642 = vadd.f32 %v367, %v641
        %v643 = vrot.slane %v642, 2
        %v644 = vadd.f32 %v642, %v643
        %v645 = vrot.slane %v644, 1
        %v646 = vadd.f32 %v644, %v645
        %v647 = vrot.slane %v368, 4
        %v648 = vadd.f32 %v368, %v647
        %v649 = vrot.slane %v648, 2
        %v650 = vadd.f32 %v648, %v649
        %v651 = vrot.slane %v650, 1
        %v652 = vadd.f32 %v650, %v651
        %v653 = vrot.slane %v369, 4
        %v654 = vadd.f32 %v369, %v653
        %v655 = vrot.slane %v654, 2
        %v656 = vadd.f32 %v654, %v655
        %v657 = vrot.slane %v656, 1
        %v658 = vadd.f32 %v656, %v657
        %v659 = vrot.slane %v370, 4
        %v660 = vadd.f32 %v370, %v659
        %v661 = vrot.slane %v660, 2
        %v662 = vadd.f32 %v660, %v661
        %v663 = vrot.slane %v662, 1
        %v664 = vadd.f32 %v662, %v663
        %v665 = vrot.slane %v371, 4
        %v666 = vadd.f32 %v371, %v665
        %v667 = vrot.slane %v666, 2
        %v668 = vadd.f32 %v666, %v667
        %v669 = vrot.slane %v668, 1
        %v670 = vadd.f32 %v668, %v669
        %v671 = vrot.slane %v372, 4
        %v672 = vadd.f32 %v372, %v671
        %v673 = vrot.slane %v672, 2
        %v674 = vadd.f32 %v672, %v673
        %v675 = vrot.slane %v674, 1
        %v676 = vadd.f32 %v674, %v675
        %v677 = vrot.slane %v373, 4
        %v678 = vadd.f32 %v373, %v677
        %v679 = vrot.slane %v678, 2
        %v680 = vadd.f32 %v678, %v679
        %v681 = vrot.slane %v680, 1
        %v682 = vadd.f32 %v680, %v681
        %v683 = vrot.slane %v374, 4
        %v684 = vadd.f32 %v374, %v683
        %v685 = vrot.slane %v684, 2
        %v686 = vadd.f32 %v684, %v685
        %v687 = vrot.slane %v686, 1
        %v688 = vadd.f32 %v686, %v687
        %v689 = vrot.slane %v375, 4
        %v690 = vadd.f32 %v375, %v689
        %v691 = vrot.slane %v690, 2
        %v692 = vadd.f32 %v690, %v691
        %v693 = vrot.slane %v692, 1
        %v694 = vadd.f32 %v692, %v693
        %v695 = vrot.slane %v376, 4
        %v696 = vadd.f32 %v376, %v695
        %v697 = vrot.slane %v696, 2
        %v698 = vadd.f32 %v696, %v697
        %v699 = vrot.slane %v698, 1
        %v700 = vadd.f32 %v698, %v699
        %v701 = vrot.slane %v377, 4
        %v702 = vadd.f32 %v377, %v701
        %v703 = vrot.slane %v702, 2
        %v704 = vadd.f32 %v702, %v703
        %v705 = vrot.slane %v704, 1
        %v706 = vadd.f32 %v704, %v705
        %v707 = vrot.slane %v378, 4
        %v708 = vadd.f32 %v378, %v707
        %v709 = vrot.slane %v708, 2
        %v710 = vadd.f32 %v708, %v709
        %v711 = vrot.slane %v710, 1
        %v712 = vadd.f32 %v710, %v711
        %v713 = vrot.slane %v379, 4
        %v714 = vadd.f32 %v379, %v713
        %v715 = vrot.slane %v714, 2
        %v716 = vadd.f32 %v714, %v715
        %v717 = vrot.slane %v716, 1
        %v718 = vadd.f32 %v716, %v717
        %v719 = vrot.slane %v380, 4
        %v720 = vadd.f32 %v380, %v719
        %v721 = vrot.slane %v720, 2
        %v722 = vadd.f32 %v720, %v721
        %v723 = vrot.slane %v722, 1
        %v724 = vadd.f32 %v722, %v723
        %v725 = vrot.slane %v381, 4
        %v726 = vadd.f32 %v381, %v725
        %v727 = vrot.slane %v726, 2
        %v728 = vadd.f32 %v726, %v727
        %v729 = vrot.slane %v728, 1
        %v730 = vadd.f32 %v728, %v729
        %v731 = vrot.slane %v382, 4
        %v732 = vadd.f32 %v382, %v731
        %v733 = vrot.slane %v732, 2
        %v734 = vadd.f32 %v732, %v733
        %v735 = vrot.slane %v734, 1
        %v736 = vadd.f32 %v734, %v735
        %v737 = vrot.slane %v383, 4
        %v738 = vadd.f32 %v383, %v737
        %v739 = vrot.slane %v738, 2
        %v740 = vadd.f32 %v738, %v739
        %v741 = vrot.slane %v740, 1
        %v742 = vadd.f32 %v740, %v741
        %v743 = vrot.slane %v384, 4
        %v744 = vadd.f32 %v384, %v743
        %v745 = vrot.slane %v744, 2
        %v746 = vadd.f32 %v744, %v745
        %v747 = vrot.slane %v746, 1
        %v748 = vadd.f32 %v746, %v747
        %v749 = vrot.slane %v385, 4
        %v750 = vadd.f32 %v385, %v749
        %v751 = vrot.slane %v750, 2
        %v752 = vadd.f32 %v750, %v751
        %v753 = vrot.slane %v752, 1
        %v754 = vadd.f32 %v752, %v753
        %v755 = vrot.slane %v386, 4
        %v756 = vadd.f32 %v386, %v755
        %v757 = vrot.slane %v756, 2
        %v758 = vadd.f32 %v756, %v757
        %v759 = vrot.slane %v758, 1
        %v760 = vadd.f32 %v758, %v759
        %v761 = vrot.slane %v387, 4
        %v762 = vadd.f32 %v387, %v761
        %v763 = vrot.slane %v762, 2
        %v764 = vadd.f32 %v762, %v763
        %v765 = vrot.slane %v764, 1
        %v766 = vadd.f32 %v764, %v765
        %v767 = vrot.slane %v388, 4
        %v768 = vadd.f32 %v388, %v767
        %v769 = vrot.slane %v768, 2
        %v770 = vadd.f32 %v768, %v769
        %v771 = vrot.slane %v770, 1
        %v772 = vadd.f32 %v770, %v771
        %v773 = vrcp.pop 8.0
        %v774 = vmul.f32 8.0, %v773
        %v775 = vsub.f32 1.0, %v774
        %v776 = vmul.f32 %v773, %v775
        %v777 = vadd.f32 %v773, %v776
        %vm778 = vweird.f32 %v773
        %v779 = vsel %vm778, %v773, %v777
        %v780 = vmul.f32 %v394, %v779
        %v781 = vmul.f32 %v400, %v779
        %v782 = vmul.f32 %v406, %v779
        %v783 = vmul.f32 %v412, %v779
        %v784 = vmul.f32 %v418, %v779
        %v785 = vmul.f32 %v424, %v779
        %v786 = vmul.f32 %v430, %v779
        %v787 = vmul.f32 %v436, %v779
        %v788 = vmul.f32 %v442, %v779
        %v789 = vmul.f32 %v448, %v779
        %v790 = vmul.f32 %v454, %v779
        %v791 = vmul.f32 %v460, %v779
        %v792 = vmul.f32 %v466, %v779
        %v793 = vmul.f32 %v472, %v779
        %v794 = vmul.f32 %v478, %v779
        %v795 = vmul.f32 %v484, %v779
        %v796 = vmul.f32 %v490, %v779
        %v797 = vmul.f32 %v496, %v779
        %v798 = vmul.f32 %v502, %v779
        %v799 = vmul.f32 %v508, %v779
        %v800 = vmul.f32 %v514, %v779
        %v801 = vmul.f32 %v520, %v779
        %v802 = vmul.f32 %v526, %v779
        %v803 = vmul.f32 %v532, %v779
        %v804 = vmul.f32 %v538, %v779
        %v805 = vmul.f32 %v544, %v779
        %v806 = vmul.f32 %v550, %v779
        %v807 = vmul.f32 %v556, %v779
        %v808 = vmul.f32 %v562, %v779
        %v809 = vmul.f32 %v568, %v779
        %v810 = vmul.f32 %v574, %v779
        %v811 = vmul.f32 %v580, %v779
        %v812 = vmul.f32 %v586, %v779
        %v813 = vmul.f32 %v592, %v779
        %v814 = vmul.f32 %v598, %v779
        %v815 = vmul.f32 %v604, %v779
        %v816 = vmul.f32 %v610, %v779
        %v817 = vmul.f32 %v616, %v779
        %v818 = vmul.f32 %v622, %v779
        %v819 = vmul.f32 %v628, %v779
        %v820 = vmul.f32 %v634, %v779
        %v821 = vmul.f32 %v640, %v779
        %v822 = vmul.f32 %v646, %v779
        %v823 = vmul.f32 %v652, %v779
        %v824 = vmul.f32 %v658, %v779
        %v825 = vmul.f32 %v664, %v779
        %v826 = vmul.f32 %v670, %v779
        %v827 = vmul.f32 %v676, %v779
        %v828 = vmul.f32 %v682, %v779
        %v829 = vmul.f32 %v688, %v779
        %v830 = vmul.f32 %v694, %v779
        %v831 = vmul.f32 %v700, %v779
        %v832 = vmul.f32 %v706, %v779
        %v833 = vmul.f32 %v712, %v779
        %v834 = vmul.f32 %v718, %v779
        %v835 = vmul.f32 %v724, %v779
        %v836 = vmul.f32 %v730, %v779
        %v837 = vmul.f32 %v736, %v779
        %v838 = vmul.f32 %v742, %v779
        %v839 = vmul.f32 %v748, %v779
        %v840 = vmul.f32 %v754, %v779
        %v841 = vmul.f32 %v760, %v779
        %v842 = vmul.f32 %v766, %v779
        %v843 = vmul.f32 %v772, %v779
        %v844 = vsub.f32 %v325, %v780
        %v845 = vsub.f32 %v326, %v781
        %v846 = vsub.f32 %v327, %v782
        %v847 = vsub.f32 %v328, %v783
        %v848 = vsub.f32 %v329, %v784
        %v849 = vsub.f32 %v330, %v785
        %v850 = vsub.f32 %v331, %v786
        %v851 = vsub.f32 %v332, %v787
        %v852 = vsub.f32 %v333, %v788
        %v853 = vsub.f32 %v334, %v789
        %v854 = vsub.f32 %v335, %v790
        %v855 = vsub.f32 %v336, %v791
        %v856 = vsub.f32 %v337, %v792
        %v857 = vsub.f32 %v338, %v793
        %v858 = vsub.f32 %v339, %v794
        %v859 = vsub.f32 %v340, %v795
        %v860 = vsub.f32 %v341, %v796
        %v861 = vsub.f32 %v342, %v797
        %v862 = vsub.f32 %v343, %v798
        %v863 = vsub.f32 %v344, %v799
        %v864 = vsub.f32 %v345, %v800
        %v865 = vsub.f32 %v346, %v801
        %v866 = vsub.f32 %v347, %v802
        %v867 = vsub.f32 %v348, %v803
        %v868 = vsub.f32 %v349, %v804
        %v869 = vsub.f32 %v350, %v805
        %v870 = vsub.f32 %v351, %v806
        %v871 = vsub.f32 %v352, %v807
        %v872 = vsub.f32 %v353, %v808
        %v873 = vsub.f32 %v354, %v809
        %v874 = vsub.f32 %v355, %v810
        %v875 = vsub.f32 %v356, %v811
        %v876 = vsub.f32 %v357, %v812
        %v877 = vsub.f32 %v358, %v813
        %v878 = vsub.f32 %v359, %v814
        %v879 = vsub.f32 %v360, %v815
        %v880 = vsub.f32 %v361, %v816
        %v881 = vsub.f32 %v362, %v817
        %v882 = vsub.f32 %v363, %v818
        %v883 = vsub.f32 %v364, %v819
        %v884 = vsub.f32 %v365, %v820
        %v885 = vsub.f32 %v366, %v821
        %v886 = vsub.f32 %v367, %v822
        %v887 = vsub.f32 %v368, %v823
        %v888 = vsub.f32 %v369, %v824
        %v889 = vsub.f32 %v370, %v825
        %v890 = vsub.f32 %v371, %v826
        %v891 = vsub.f32 %v372, %v827
        %v892 = vsub.f32 %v373, %v828
        %v893 = vsub.f32 %v374, %v829
        %v894 = vsub.f32 %v375, %v830
        %v895 = vsub.f32 %v376, %v831
        %v896 = vsub.f32 %v377, %v832
        %v897 = vsub.f32 %v378, %v833
        %v898 = vsub.f32 %v379, %v834
        %v899 = vsub.f32 %v380, %v835
        %v900 = vsub.f32 %v381, %v836
        %v901 = vsub.f32 %v382, %v837
        %v902 = vsub.f32 %v383, %v838
        %v903 = vsub.f32 %v384, %v839
        %v904 = vsub.f32 %v385, %v840
        %v905 = vsub.f32 %v386, %v841
        %v906 = vsub.f32 %v387, %v842
        %v907 = vsub.f32 %v388, %v843
        %v908 = vmul.f32 %v844, %v844
        %v909 = vmul.f32 %v845, %v845
        %v910 = vmul.f32 %v846, %v846
        %v911 = vmul.f32 %v847, %v847
        %v912 = vmul.f32 %v848, %v848
        %v913 = vmul.f32 %v849, %v849
        %v914 = vmul.f32 %v850, %v850
        %v915 = vmul.f32 %v851, %v851
        %v916 = vmul.f32 %v852, %v852
        %v917 = vmul.f32 %v853, %v853
        %v918 = vmul.f32 %v854, %v854
        %v919 = vmul.f32 %v855, %v855
        %v920 = vmul.f32 %v856, %v856
        %v921 = vmul.f32 %v857, %v857
        %v922 = vmul.f32 %v858, %v858
        %v923 = vmul.f32 %v859, %v859
        %v924 = vmul.f32 %v860, %v860
        %v925 = vmul.f32 %v861, %v861
        %v926 = vmul.f32 %v862, %v862
        %v927 = vmul.f32 %v863, %v863
        %v928 = vmul.f32 %v864, %v864
        %v929 = vmul.f32 %v865, %v865
        %v930 = vmul.f32 %v866, %v866
        %v931 = vmul.f32 %v867, %v867
        %v932 = vmul.f32 %v868, %v868
        %v933 = vmul.f32 %v869, %v869
        %v934 = vmul.f32 %v870, %v870
        %v935 = vmul.f32 %v871, %v871
        %v936 = vmul.f32 %v872, %v872
        %v937 = vmul.f32 %v873, %v873
        %v938 = vmul.f32 %v874, %v874
        %v939 = vmul.f32 %v875, %v875
        %v940 = vmul.f32 %v876, %v876
        %v941 = vmul.f32 %v877, %v877
        %v942 = vmul.f32 %v878, %v878
        %v943 = vmul.f32 %v879, %v879
        %v944 = vmul.f32 %v880, %v880
        %v945 = vmul.f32 %v881, %v881
        %v946 = vmul.f32 %v882, %v882
        %v947 = vmul.f32 %v883, %v883
        %v948 = vmul.f32 %v884, %v884
        %v949 = vmul.f32 %v885, %v885
        %v950 = vmul.f32 %v886, %v886
        %v951 = vmul.f32 %v887, %v887
        %v952 = vmul.f32 %v888, %v888
        %v953 = vmul.f32 %v889, %v889
        %v954 = vmul.f32 %v890, %v890
        %v955 = vmul.f32 %v891, %v891
        %v956 = vmul.f32 %v892, %v892
        %v957 = vmul.f32 %v893, %v893
        %v958 = vmul.f32 %v894, %v894
        %v959 = vmul.f32 %v895, %v895
        %v960 = vmul.f32 %v896, %v896
        %v961 = vmul.f32 %v897, %v897
        %v962 = vmul.f32 %v898, %v898
        %v963 = vmul.f32 %v899, %v899
        %v964 = vmul.f32 %v900, %v900
        %v965 = vmul.f32 %v901, %v901
        %v966 = vmul.f32 %v902, %v902
        %v967 = vmul.f32 %v903, %v903
        %v968 = vmul.f32 %v904, %v904
        %v969 = vmul.f32 %v905, %v905
        %v970 = vmul.f32 %v906, %v906
        %v971 = vmul.f32 %v907, %v907
        %v972 = vrot.slane %v908, 4
        %v973 = vadd.f32 %v908, %v972
        %v974 = vrot.slane %v973, 2
        %v975 = vadd.f32 %v973, %v974
        %v976 = vrot.slane %v975, 1
        %v977 = vadd.f32 %v975, %v976
        %v978 = vrot.slane %v909, 4
        %v979 = vadd.f32 %v909, %v978
        %v980 = vrot.slane %v979, 2
        %v981 = vadd.f32 %v979, %v980
        %v982 = vrot.slane %v981, 1
        %v983 = vadd.f32 %v981, %v982
        %v984 = vrot.slane %v910, 4
        %v985 = vadd.f32 %v910, %v984
        %v986 = vrot.slane %v985, 2
        %v987 = vadd.f32 %v985, %v986
        %v988 = vrot.slane %v987, 1
        %v989 = vadd.f32 %v987, %v988
        %v990 = vrot.slane %v911, 4
        %v991 = vadd.f32 %v911, %v990
        %v992 = vrot.slane %v991, 2
        %v993 = vadd.f32 %v991, %v992
        %v994 = vrot.slane %v993, 1
        %v995 = vadd.f32 %v993, %v994
        %v996 = vrot.slane %v912, 4
        %v997 = vadd.f32 %v912, %v996
        %v998 = vrot.slane %v997, 2
        %v999 = vadd.f32 %v997, %v998
        %v1000 = vrot.slane %v999, 1
        %v1001 = vadd.f32 %v999, %v1000
        %v1002 = vrot.slane %v913, 4
        %v1003 = vadd.f32 %v913, %v1002
        %v1004 = vrot.slane %v1003, 2
        %v1005 = vadd.f32 %v1003, %v1004
        %v1006 = vrot.slane %v1005, 1
        %v1007 = vadd.f32 %v1005, %v1006
        %v1008 = vrot.slane %v914, 4
        %v1009 = vadd.f32 %v914, %v1008
        %v1010 = vrot.slane %v1009, 2
        %v1011 = vadd.f32 %v1009, %v1010
        %v1012 = vrot.slane %v1011, 1
        %v1013 = vadd.f32 %v1011, %v1012
        %v1014 = vrot.slane %v915, 4
        %v1015 = vadd.f32 %v915, %v1014
        %v1016 = vrot.slane %v1015, 2
        %v1017 = vadd.f32 %v1015, %v1016
        %v1018 = vrot.slane %v1017, 1
        %v1019 = vadd.f32 %v1017, %v1018
        %v1020 = vrot.slane %v916, 4
        %v1021 = vadd.f32 %v916, %v1020
        %v1022 = vrot.slane %v1021, 2
        %v1023 = vadd.f32 %v1021, %v1022
        %v1024 = vrot.slane %v1023, 1
        %v1025 = vadd.f32 %v1023, %v1024
        %v1026 = vrot.slane %v917, 4
        %v1027 = vadd.f32 %v917, %v1026
        %v1028 = vrot.slane %v1027, 2
        %v1029 = vadd.f32 %v1027, %v1028
        %v1030 = vrot.slane %v1029, 1
        %v1031 = vadd.f32 %v1029, %v1030
        %v1032 = vrot.slane %v918, 4
        %v1033 = vadd.f32 %v918, %v1032
        %v1034 = vrot.slane %v1033, 2
        %v1035 = vadd.f32 %v1033, %v1034
        %v1036 = vrot.slane %v1035, 1
        %v1037 = vadd.f32 %v1035, %v1036
        %v1038 = vrot.slane %v919, 4
        %v1039 = vadd.f32 %v919, %v1038
        %v1040 = vrot.slane %v1039, 2
        %v1041 = vadd.f32 %v1039, %v1040
        %v1042 = vrot.slane %v1041, 1
        %v1043 = vadd.f32 %v1041, %v1042
        %v1044 = vrot.slane %v920, 4
        %v1045 = vadd.f32 %v920, %v1044
        %v1046 = vrot.slane %v1045, 2
        %v1047 = vadd.f32 %v1045, %v1046
        %v1048 = vrot.slane %v1047, 1
        %v1049 = vadd.f32 %v1047, %v1048
        %v1050 = vrot.slane %v921, 4
        %v1051 = vadd.f32 %v921, %v1050
        %v1052 = vrot.slane %v1051, 2
        %v1053 = vadd.f32 %v1051, %v1052
        %v1054 = vrot.slane %v1053, 1
        %v1055 = vadd.f32 %v1053, %v1054
        %v1056 = vrot.slane %v922, 4
        %v1057 = vadd.f32 %v922, %v1056
        %v1058 = vrot.slane %v1057, 2
        %v1059 = vadd.f32 %v1057, %v1058
        %v1060 = vrot.slane %v1059, 1
        %v1061 = vadd.f32 %v1059, %v1060
        %v1062 = vrot.slane %v923, 4
        %v1063 = vadd.f32 %v923, %v1062
        %v1064 = vrot.slane %v1063, 2
        %v1065 = vadd.f32 %v1063, %v1064
        %v1066 = vrot.slane %v1065, 1
        %v1067 = vadd.f32 %v1065, %v1066
        %v1068 = vrot.slane %v924, 4
        %v1069 = vadd.f32 %v924, %v1068
        %v1070 = vrot.slane %v1069, 2
        %v1071 = vadd.f32 %v1069, %v1070
        %v1072 = vrot.slane %v1071, 1
        %v1073 = vadd.f32 %v1071, %v1072
        %v1074 = vrot.slane %v925, 4
        %v1075 = vadd.f32 %v925, %v1074
        %v1076 = vrot.slane %v1075, 2
        %v1077 = vadd.f32 %v1075, %v1076
        %v1078 = vrot.slane %v1077, 1
        %v1079 = vadd.f32 %v1077, %v1078
        %v1080 = vrot.slane %v926, 4
        %v1081 = vadd.f32 %v926, %v1080
        %v1082 = vrot.slane %v1081, 2
        %v1083 = vadd.f32 %v1081, %v1082
        %v1084 = vrot.slane %v1083, 1
        %v1085 = vadd.f32 %v1083, %v1084
        %v1086 = vrot.slane %v927, 4
        %v1087 = vadd.f32 %v927, %v1086
        %v1088 = vrot.slane %v1087, 2
        %v1089 = vadd.f32 %v1087, %v1088
        %v1090 = vrot.slane %v1089, 1
        %v1091 = vadd.f32 %v1089, %v1090
        %v1092 = vrot.slane %v928, 4
        %v1093 = vadd.f32 %v928, %v1092
        %v1094 = vrot.slane %v1093, 2
        %v1095 = vadd.f32 %v1093, %v1094
        %v1096 = vrot.slane %v1095, 1
        %v1097 = vadd.f32 %v1095, %v1096
        %v1098 = vrot.slane %v929, 4
        %v1099 = vadd.f32 %v929, %v1098
        %v1100 = vrot.slane %v1099, 2
        %v1101 = vadd.f32 %v1099, %v1100
        %v1102 = vrot.slane %v1101, 1
        %v1103 = vadd.f32 %v1101, %v1102
        %v1104 = vrot.slane %v930, 4
        %v1105 = vadd.f32 %v930, %v1104
        %v1106 = vrot.slane %v1105, 2
        %v1107 = vadd.f32 %v1105, %v1106
        %v1108 = vrot.slane %v1107, 1
        %v1109 = vadd.f32 %v1107, %v1108
        %v1110 = vrot.slane %v931, 4
        %v1111 = vadd.f32 %v931, %v1110
        %v1112 = vrot.slane %v1111, 2
        %v1113 = vadd.f32 %v1111, %v1112
        %v1114 = vrot.slane %v1113, 1
        %v1115 = vadd.f32 %v1113, %v1114
        %v1116 = vrot.slane %v932, 4
        %v1117 = vadd.f32 %v932, %v1116
        %v1118 = vrot.slane %v1117, 2
        %v1119 = vadd.f32 %v1117, %v1118
        %v1120 = vrot.slane %v1119, 1
        %v1121 = vadd.f32 %v1119, %v1120
        %v1122 = vrot.slane %v933, 4
        %v1123 = vadd.f32 %v933, %v1122
        %v1124 = vrot.slane %v1123, 2
        %v1125 = vadd.f32 %v1123, %v1124
        %v1126 = vrot.slane %v1125, 1
        %v1127 = vadd.f32 %v1125, %v1126
        %v1128 = vrot.slane %v934, 4
        %v1129 = vadd.f32 %v934, %v1128
        %v1130 = vrot.slane %v1129, 2
        %v1131 = vadd.f32 %v1129, %v1130
        %v1132 = vrot.slane %v1131, 1
        %v1133 = vadd.f32 %v1131, %v1132
        %v1134 = vrot.slane %v935, 4
        %v1135 = vadd.f32 %v935, %v1134
        %v1136 = vrot.slane %v1135, 2
        %v1137 = vadd.f32 %v1135, %v1136
        %v1138 = vrot.slane %v1137, 1
        %v1139 = vadd.f32 %v1137, %v1138
        %v1140 = vrot.slane %v936, 4
        %v1141 = vadd.f32 %v936, %v1140
        %v1142 = vrot.slane %v1141, 2
        %v1143 = vadd.f32 %v1141, %v1142
        %v1144 = vrot.slane %v1143, 1
        %v1145 = vadd.f32 %v1143, %v1144
        %v1146 = vrot.slane %v937, 4
        %v1147 = vadd.f32 %v937, %v1146
        %v1148 = vrot.slane %v1147, 2
        %v1149 = vadd.f32 %v1147, %v1148
        %v1150 = vrot.slane %v1149, 1
        %v1151 = vadd.f32 %v1149, %v1150
        %v1152 = vrot.slane %v938, 4
        %v1153 = vadd.f32 %v938, %v1152
        %v1154 = vrot.slane %v1153, 2
        %v1155 = vadd.f32 %v1153, %v1154
        %v1156 = vrot.slane %v1155, 1
        %v1157 = vadd.f32 %v1155, %v1156
        %v1158 = vrot.slane %v939, 4
        %v1159 = vadd.f32 %v939, %v1158
        %v1160 = vrot.slane %v1159, 2
        %v1161 = vadd.f32 %v1159, %v1160
        %v1162 = vrot.slane %v1161, 1
        %v1163 = vadd.f32 %v1161, %v1162
        %v1164 = vrot.slane %v940, 4
        %v1165 = vadd.f32 %v940, %v1164
        %v1166 = vrot.slane %v1165, 2
        %v1167 = vadd.f32 %v1165, %v1166
        %v1168 = vrot.slane %v1167, 1
        %v1169 = vadd.f32 %v1167, %v1168
        %v1170 = vrot.slane %v941, 4
        %v1171 = vadd.f32 %v941, %v1170
        %v1172 = vrot.slane %v1171, 2
        %v1173 = vadd.f32 %v1171, %v1172
        %v1174 = vrot.slane %v1173, 1
        %v1175 = vadd.f32 %v1173, %v1174
        %v1176 = vrot.slane %v942, 4
        %v1177 = vadd.f32 %v942, %v1176
        %v1178 = vrot.slane %v1177, 2
        %v1179 = vadd.f32 %v1177, %v1178
        %v1180 = vrot.slane %v1179, 1
        %v1181 = vadd.f32 %v1179, %v1180
        %v1182 = vrot.slane %v943, 4
        %v1183 = vadd.f32 %v943, %v1182
        %v1184 = vrot.slane %v1183, 2
        %v1185 = vadd.f32 %v1183, %v1184
        %v1186 = vrot.slane %v1185, 1
        %v1187 = vadd.f32 %v1185, %v1186
        %v1188 = vrot.slane %v944, 4
        %v1189 = vadd.f32 %v944, %v1188
        %v1190 = vrot.slane %v1189, 2
        %v1191 = vadd.f32 %v1189, %v1190
        %v1192 = vrot.slane %v1191, 1
        %v1193 = vadd.f32 %v1191, %v1192
        %v1194 = vrot.slane %v945, 4
        %v1195 = vadd.f32 %v945, %v1194
        %v1196 = vrot.slane %v1195, 2
        %v1197 = vadd.f32 %v1195, %v1196
        %v1198 = vrot.slane %v1197, 1
        %v1199 = vadd.f32 %v1197, %v1198
        %v1200 = vrot.slane %v946, 4
        %v1201 = vadd.f32 %v946, %v1200
        %v1202 = vrot.slane %v1201, 2
        %v1203 = vadd.f32 %v1201, %v1202
        %v1204 = vrot.slane %v1203, 1
        %v1205 = vadd.f32 %v1203, %v1204
        %v1206 = vrot.slane %v947, 4
        %v1207 = vadd.f32 %v947, %v1206
        %v1208 = vrot.slane %v1207, 2
        %v1209 = vadd.f32 %v1207, %v1208
        %v1210 = vrot.slane %v1209, 1
        %v1211 = vadd.f32 %v1209, %v1210
        %v1212 = vrot.slane %v948, 4
        %v1213 = vadd.f32 %v948, %v1212
        %v1214 = vrot.slane %v1213, 2
        %v1215 = vadd.f32 %v1213, %v1214
        %v1216 = vrot.slane %v1215, 1
        %v1217 = vadd.f32 %v1215, %v1216
        %v1218 = vrot.slane %v949, 4
        %v1219 = vadd.f32 %v949, %v1218
        %v1220 = vrot.slane %v1219, 2
        %v1221 = vadd.f32 %v1219, %v1220
        %v1222 = vrot.slane %v1221, 1
        %v1223 = vadd.f32 %v1221, %v1222
        %v1224 = vrot.slane %v950, 4
        %v1225 = vadd.f32 %v950, %v1224
        %v1226 = vrot.slane %v1225, 2
        %v1227 = vadd.f32 %v1225, %v1226
        %v1228 = vrot.slane %v1227, 1
        %v1229 = vadd.f32 %v1227, %v1228
        %v1230 = vrot.slane %v951, 4
        %v1231 = vadd.f32 %v951, %v1230
        %v1232 = vrot.slane %v1231, 2
        %v1233 = vadd.f32 %v1231, %v1232
        %v1234 = vrot.slane %v1233, 1
        %v1235 = vadd.f32 %v1233, %v1234
        %v1236 = vrot.slane %v952, 4
        %v1237 = vadd.f32 %v952, %v1236
        %v1238 = vrot.slane %v1237, 2
        %v1239 = vadd.f32 %v1237, %v1238
        %v1240 = vrot.slane %v1239, 1
        %v1241 = vadd.f32 %v1239, %v1240
        %v1242 = vrot.slane %v953, 4
        %v1243 = vadd.f32 %v953, %v1242
        %v1244 = vrot.slane %v1243, 2
        %v1245 = vadd.f32 %v1243, %v1244
        %v1246 = vrot.slane %v1245, 1
        %v1247 = vadd.f32 %v1245, %v1246
        %v1248 = vrot.slane %v954, 4
        %v1249 = vadd.f32 %v954, %v1248
        %v1250 = vrot.slane %v1249, 2
        %v1251 = vadd.f32 %v1249, %v1250
        %v1252 = vrot.slane %v1251, 1
        %v1253 = vadd.f32 %v1251, %v1252
        %v1254 = vrot.slane %v955, 4
        %v1255 = vadd.f32 %v955, %v1254
        %v1256 = vrot.slane %v1255, 2
        %v1257 = vadd.f32 %v1255, %v1256
        %v1258 = vrot.slane %v1257, 1
        %v1259 = vadd.f32 %v1257, %v1258
        %v1260 = vrot.slane %v956, 4
        %v1261 = vadd.f32 %v956, %v1260
        %v1262 = vrot.slane %v1261, 2
        %v1263 = vadd.f32 %v1261, %v1262
        %v1264 = vrot.slane %v1263, 1
        %v1265 = vadd.f32 %v1263, %v1264
        %v1266 = vrot.slane %v957, 4
        %v1267 = vadd.f32 %v957, %v1266
        %v1268 = vrot.slane %v1267, 2
        %v1269 = vadd.f32 %v1267, %v1268
        %v1270 = vrot.slane %v1269, 1
        %v1271 = vadd.f32 %v1269, %v1270
        %v1272 = vrot.slane %v958, 4
        %v1273 = vadd.f32 %v958, %v1272
        %v1274 = vrot.slane %v1273, 2
        %v1275 = vadd.f32 %v1273, %v1274
        %v1276 = vrot.slane %v1275, 1
        %v1277 = vadd.f32 %v1275, %v1276
        %v1278 = vrot.slane %v959, 4
        %v1279 = vadd.f32 %v959, %v1278
        %v1280 = vrot.slane %v1279, 2
        %v1281 = vadd.f32 %v1279, %v1280
        %v1282 = vrot.slane %v1281, 1
        %v1283 = vadd.f32 %v1281, %v1282
        %v1284 = vrot.slane %v960, 4
        %v1285 = vadd.f32 %v960, %v1284
        %v1286 = vrot.slane %v1285, 2
        %v1287 = vadd.f32 %v1285, %v1286
        %v1288 = vrot.slane %v1287, 1
        %v1289 = vadd.f32 %v1287, %v1288
        %v1290 = vrot.slane %v961, 4
        %v1291 = vadd.f32 %v961, %v1290
        %v1292 = vrot.slane %v1291, 2
        %v1293 = vadd.f32 %v1291, %v1292
        %v1294 = vrot.slane %v1293, 1
        %v1295 = vadd.f32 %v1293, %v1294
        %v1296 = vrot.slane %v962, 4
        %v1297 = vadd.f32 %v962, %v1296
        %v1298 = vrot.slane %v1297, 2
        %v1299 = vadd.f32 %v1297, %v1298
        %v1300 = vrot.slane %v1299, 1
        %v1301 = vadd.f32 %v1299, %v1300
        %v1302 = vrot.slane %v963, 4
        %v1303 = vadd.f32 %v963, %v1302
        %v1304 = vrot.slane %v1303, 2
        %v1305 = vadd.f32 %v1303, %v1304
        %v1306 = vrot.slane %v1305, 1
        %v1307 = vadd.f32 %v1305, %v1306
        %v1308 = vrot.slane %v964, 4
        %v1309 = vadd.f32 %v964, %v1308
        %v1310 = vrot.slane %v1309, 2
        %v1311 = vadd.f32 %v1309, %v1310
        %v1312 = vrot.slane %v1311, 1
        %v1313 = vadd.f32 %v1311, %v1312
        %v1314 = vrot.slane %v965, 4
        %v1315 = vadd.f32 %v965, %v1314
        %v1316 = vrot.slane %v1315, 2
        %v1317 = vadd.f32 %v1315, %v1316
        %v1318 = vrot.slane %v1317, 1
        %v1319 = vadd.f32 %v1317, %v1318
        %v1320 = vrot.slane %v966, 4
        %v1321 = vadd.f32 %v966, %v1320
        %v1322 = vrot.slane %v1321, 2
        %v1323 = vadd.f32 %v1321, %v1322
        %v1324 = vrot.slane %v1323, 1
        %v1325 = vadd.f32 %v1323, %v1324
        %v1326 = vrot.slane %v967, 4
        %v1327 = vadd.f32 %v967, %v1326
        %v1328 = vrot.slane %v1327, 2
        %v1329 = vadd.f32 %v1327, %v1328
        %v1330 = vrot.slane %v1329, 1
        %v1331 = vadd.f32 %v1329, %v1330
        %v1332 = vrot.slane %v968, 4
        %v1333 = vadd.f32 %v968, %v1332
        %v1334 = vrot.slane %v1333, 2
        %v1335 = vadd.f32 %v1333, %v1334
        %v1336 = vrot.slane %v1335, 1
        %v1337 = vadd.f32 %v1335, %v1336
        %v1338 = vrot.slane %v969, 4
        %v1339 = vadd.f32 %v969, %v1338
        %v1340 = vrot.slane %v1339, 2
        %v1341 = vadd.f32 %v1339, %v1340
        %v1342 = vrot.slane %v1341, 1
        %v1343 = vadd.f32 %v1341, %v1342
        %v1344 = vrot.slane %v970, 4
        %v1345 = vadd.f32 %v970, %v1344
        %v1346 = vrot.slane %v1345, 2
        %v1347 = vadd.f32 %v1345, %v1346
        %v1348 = vrot.slane %v1347, 1
        %v1349 = vadd.f32 %v1347, %v1348
        %v1350 = vrot.slane %v971, 4
        %v1351 = vadd.f32 %v971, %v1350
        %v1352 = vrot.slane %v1351, 2
        %v1353 = vadd.f32 %v1351, %v1352
        %v1354 = vrot.slane %v1353, 1
        %v1355 = vadd.f32 %v1353, %v1354
        %v1356 = vmul.f32 %v977, %v779
        %v1357 = vmul.f32 %v983, %v779
        %v1358 = vmul.f32 %v989, %v779
        %v1359 = vmul.f32 %v995, %v779
        %v1360 = vmul.f32 %v1001, %v779
        %v1361 = vmul.f32 %v1007, %v779
        %v1362 = vmul.f32 %v1013, %v779
        %v1363 = vmul.f32 %v1019, %v779
        %v1364 = vmul.f32 %v1025, %v779
        %v1365 = vmul.f32 %v1031, %v779
        %v1366 = vmul.f32 %v1037, %v779
        %v1367 = vmul.f32 %v1043, %v779
        %v1368 = vmul.f32 %v1049, %v779
        %v1369 = vmul.f32 %v1055, %v779
        %v1370 = vmul.f32 %v1061, %v779
        %v1371 = vmul.f32 %v1067, %v779
        %v1372 = vmul.f32 %v1073, %v779
        %v1373 = vmul.f32 %v1079, %v779
        %v1374 = vmul.f32 %v1085, %v779
        %v1375 = vmul.f32 %v1091, %v779
        %v1376 = vmul.f32 %v1097, %v779
        %v1377 = vmul.f32 %v1103, %v779
        %v1378 = vmul.f32 %v1109, %v779
        %v1379 = vmul.f32 %v1115, %v779
        %v1380 = vmul.f32 %v1121, %v779
        %v1381 = vmul.f32 %v1127, %v779
        %v1382 = vmul.f32 %v1133, %v779
        %v1383 = vmul.f32 %v1139, %v779
        %v1384 = vmul.f32 %v1145, %v779
        %v1385 = vmul.f32 %v1151, %v779
        %v1386 = vmul.f32 %v1157, %v779
        %v1387 = vmul.f32 %v1163, %v779
        %v1388 = vmul.f32 %v1169, %v779
        %v1389 = vmul.f32 %v1175, %v779
        %v1390 = vmul.f32 %v1181, %v779
        %v1391 = vmul.f32 %v1187, %v779
        %v1392 = vmul.f32 %v1193, %v779
        %v1393 = vmul.f32 %v1199, %v779
        %v1394 = vmul.f32 %v1205, %v779
        %v1395 = vmul.f32 %v1211, %v779
        %v1396 = vmul.f32 %v1217, %v779
        %v1397 = vmul.f32 %v1223, %v779
        %v1398 = vmul.f32 %v1229, %v779
        %v1399 = vmul.f32 %v1235, %v779
        %v1400 = vmul.f32 %v1241, %v779
        %v1401 = vmul.f32 %v1247, %v779
        %v1402 = vmul.f32 %v1253, %v779
        %v1403 = vmul.f32 %v1259, %v779
        %v1404 = vmul.f32 %v1265, %v779
        %v1405 = vmul.f32 %v1271, %v779
        %v1406 = vmul.f32 %v1277, %v779
        %v1407 = vmul.f32 %v1283, %v779
        %v1408 = vmul.f32 %v1289, %v779
        %v1409 = vmul.f32 %v1295, %v779
        %v1410 = vmul.f32 %v1301, %v779
        %v1411 = vmul.f32 %v1307, %v779
        %v1412 = vmul.f32 %v1313, %v779
        %v1413 = vmul.f32 %v1319, %v779
        %v1414 = vmul.f32 %v1325, %v779
        %v1415 = vmul.f32 %v1331, %v779
        %v1416 = vmul.f32 %v1337, %v779
        %v1417 = vmul.f32 %v1343, %v779
        %v1418 = vmul.f32 %v1349, %v779
        %v1419 = vmul.f32 %v1355, %v779
        %v1420 = vadd.f32 %v1356, 1e-05
        %v1421 = vadd.f32 %v1357, 1e-05
        %v1422 = vadd.f32 %v1358, 1e-05
        %v1423 = vadd.f32 %v1359, 1e-05
        %v1424 = vadd.f32 %v1360, 1e-05
        %v1425 = vadd.f32 %v1361, 1e-05
        %v1426 = vadd.f32 %v1362, 1e-05
        %v1427 = vadd.f32 %v1363, 1e-05
        %v1428 = vadd.f32 %v1364, 1e-05
        %v1429 = vadd.f32 %v1365, 1e-05
        %v1430 = vadd.f32 %v1366, 1e-05
        %v1431 = vadd.f32 %v1367, 1e-05
        %v1432 = vadd.f32 %v1368, 1e-05
        %v1433 = vadd.f32 %v1369, 1e-05
        %v1434 = vadd.f32 %v1370, 1e-05
        %v1435 = vadd.f32 %v1371, 1e-05
        %v1436 = vadd.f32 %v1372, 1e-05
        %v1437 = vadd.f32 %v1373, 1e-05
        %v1438 = vadd.f32 %v1374, 1e-05
        %v1439 = vadd.f32 %v1375, 1e-05
        %v1440 = vadd.f32 %v1376, 1e-05
        %v1441 = vadd.f32 %v1377, 1e-05
        %v1442 = vadd.f32 %v1378, 1e-05
        %v1443 = vadd.f32 %v1379, 1e-05
        %v1444 = vadd.f32 %v1380, 1e-05
        %v1445 = vadd.f32 %v1381, 1e-05
        %v1446 = vadd.f32 %v1382, 1e-05
        %v1447 = vadd.f32 %v1383, 1e-05
        %v1448 = vadd.f32 %v1384, 1e-05
        %v1449 = vadd.f32 %v1385, 1e-05
        %v1450 = vadd.f32 %v1386, 1e-05
        %v1451 = vadd.f32 %v1387, 1e-05
        %v1452 = vadd.f32 %v1388, 1e-05
        %v1453 = vadd.f32 %v1389, 1e-05
        %v1454 = vadd.f32 %v1390, 1e-05
        %v1455 = vadd.f32 %v1391, 1e-05
        %v1456 = vadd.f32 %v1392, 1e-05
        %v1457 = vadd.f32 %v1393, 1e-05
        %v1458 = vadd.f32 %v1394, 1e-05
        %v1459 = vadd.f32 %v1395, 1e-05
        %v1460 = vadd.f32 %v1396, 1e-05
        %v1461 = vadd.f32 %v1397, 1e-05
        %v1462 = vadd.f32 %v1398, 1e-05
        %v1463 = vadd.f32 %v1399, 1e-05
        %v1464 = vadd.f32 %v1400, 1e-05
        %v1465 = vadd.f32 %v1401, 1e-05
        %v1466 = vadd.f32 %v1402, 1e-05
        %v1467 = vadd.f32 %v1403, 1e-05
        %v1468 = vadd.f32 %v1404, 1e-05
        %v1469 = vadd.f32 %v1405, 1e-05
        %v1470 = vadd.f32 %v1406, 1e-05
        %v1471 = vadd.f32 %v1407, 1e-05
        %v1472 = vadd.f32 %v1408, 1e-05
        %v1473 = vadd.f32 %v1409, 1e-05
        %v1474 = vadd.f32 %v1410, 1e-05
        %v1475 = vadd.f32 %v1411, 1e-05
        %v1476 = vadd.f32 %v1412, 1e-05
        %v1477 = vadd.f32 %v1413, 1e-05
        %v1478 = vadd.f32 %v1414, 1e-05
        %v1479 = vadd.f32 %v1415, 1e-05
        %v1480 = vadd.f32 %v1416, 1e-05
        %v1481 = vadd.f32 %v1417, 1e-05
        %v1482 = vadd.f32 %v1418, 1e-05
        %v1483 = vadd.f32 %v1419, 1e-05
        %v1484 = vrsqrt.pop %v1420
        %v1485 = vmul.f32 %v1484, %v1420
        %v1486 = vmul.f32 %v1485, %v1484
        %v1487 = vmul.f32 0.5, %v1486
        %v1488 = vsub.f32 1.5, %v1487
        %v1489 = vmul.f32 %v1484, %v1488
        %vm1490 = vweird.f32 %v1420
        %vm1491 = vweird.f32 %v1484
        %vm1492 = vmor %vm1490, %vm1491
        %v1493 = vsel %vm1492, %v1484, %v1489
        %v1494 = vrsqrt.pop %v1421
        %v1495 = vmul.f32 %v1494, %v1421
        %v1496 = vmul.f32 %v1495, %v1494
        %v1497 = vmul.f32 0.5, %v1496
        %v1498 = vsub.f32 1.5, %v1497
        %v1499 = vmul.f32 %v1494, %v1498
        %vm1500 = vweird.f32 %v1421
        %vm1501 = vweird.f32 %v1494
        %vm1502 = vmor %vm1500, %vm1501
        %v1503 = vsel %vm1502, %v1494, %v1499
        %v1504 = vrsqrt.pop %v1422
        %v1505 = vmul.f32 %v1504, %v1422
        %v1506 = vmul.f32 %v1505, %v1504
        %v1507 = vmul.f32 0.5, %v1506
        %v1508 = vsub.f32 1.5, %v1507
        %v1509 = vmul.f32 %v1504, %v1508
        %vm1510 = vweird.f32 %v1422
        %vm1511 = vweird.f32 %v1504
        %vm1512 = vmor %vm1510, %vm1511
        %v1513 = vsel %vm1512, %v1504, %v1509
        %v1514 = vrsqrt.pop %v1423
        %v1515 = vmul.f32 %v1514, %v1423
        %v1516 = vmul.f32 %v1515, %v1514
        %v1517 = vmul.f32 0.5, %v1516
        %v1518 = vsub.f32 1.5, %v1517
        %v1519 = vmul.f32 %v1514, %v1518
        %vm1520 = vweird.f32 %v1423
        %vm1521 = vweird.f32 %v1514
        %vm1522 = vmor %vm1520, %vm1521
        %v1523 = vsel %vm1522, %v1514, %v1519
        %v1524 = vrsqrt.pop %v1424
        %v1525 = vmul.f32 %v1524, %v1424
        %v1526 = vmul.f32 %v1525, %v1524
        %v1527 = vmul.f32 0.5, %v1526
        %v1528 = vsub.f32 1.5, %v1527
        %v1529 = vmul.f32 %v1524, %v1528
        %vm1530 = vweird.f32 %v1424
        %vm1531 = vweird.f32 %v1524
        %vm1532 = vmor %vm1530, %vm1531
        %v1533 = vsel %vm1532, %v1524, %v1529
        %v1534 = vrsqrt.pop %v1425
        %v1535 = vmul.f32 %v1534, %v1425
        %v1536 = vmul.f32 %v1535, %v1534
        %v1537 = vmul.f32 0.5, %v1536
        %v1538 = vsub.f32 1.5, %v1537
        %v1539 = vmul.f32 %v1534, %v1538
        %vm1540 = vweird.f32 %v1425
        %vm1541 = vweird.f32 %v1534
        %vm1542 = vmor %vm1540, %vm1541
        %v1543 = vsel %vm1542, %v1534, %v1539
        %v1544 = vrsqrt.pop %v1426
        %v1545 = vmul.f32 %v1544, %v1426
        %v1546 = vmul.f32 %v1545, %v1544
        %v1547 = vmul.f32 0.5, %v1546
        %v1548 = vsub.f32 1.5, %v1547
        %v1549 = vmul.f32 %v1544, %v1548
        %vm1550 = vweird.f32 %v1426
        %vm1551 = vweird.f32 %v1544
        %vm1552 = vmor %vm1550, %vm1551
        %v1553 = vsel %vm1552, %v1544, %v1549
        %v1554 = vrsqrt.pop %v1427
        %v1555 = vmul.f32 %v1554, %v1427
        %v1556 = vmul.f32 %v1555, %v1554
        %v1557 = vmul.f32 0.5, %v1556
        %v1558 = vsub.f32 1.5, %v1557
        %v1559 = vmul.f32 %v1554, %v1558
        %vm1560 = vweird.f32 %v1427
        %vm1561 = vweird.f32 %v1554
        %vm1562 = vmor %vm1560, %vm1561
        %v1563 = vsel %vm1562, %v1554, %v1559
        %v1564 = vrsqrt.pop %v1428
        %v1565 = vmul.f32 %v1564, %v1428
        %v1566 = vmul.f32 %v1565, %v1564
        %v1567 = vmul.f32 0.5, %v1566
        %v1568 = vsub.f32 1.5, %v1567
        %v1569 = vmul.f32 %v1564, %v1568
        %vm1570 = vweird.f32 %v1428
        %vm1571 = vweird.f32 %v1564
        %vm1572 = vmor %vm1570, %vm1571
        %v1573 = vsel %vm1572, %v1564, %v1569
        %v1574 = vrsqrt.pop %v1429
        %v1575 = vmul.f32 %v1574, %v1429
        %v1576 = vmul.f32 %v1575, %v1574
        %v1577 = vmul.f32 0.5, %v1576
        %v1578 = vsub.f32 1.5, %v1577
        %v1579 = vmul.f32 %v1574, %v1578
        %vm1580 = vweird.f32 %v1429
        %vm1581 = vweird.f32 %v1574
        %vm1582 = vmor %vm1580, %vm1581
        %v1583 = vsel %vm1582, %v1574, %v1579
        %v1584 = vrsqrt.pop %v1430
        %v1585 = vmul.f32 %v1584, %v1430
        %v1586 = vmul.f32 %v1585, %v1584
        %v1587 = vmul.f32 0.5, %v1586
        %v1588 = vsub.f32 1.5, %v1587
        %v1589 = vmul.f32 %v1584, %v1588
        %vm1590 = vweird.f32 %v1430
        %vm1591 = vweird.f32 %v1584
        %vm1592 = vmor %vm1590, %vm1591
        %v1593 = vsel %vm1592, %v1584, %v1589
        %v1594 = vrsqrt.pop %v1431
        %v1595 = vmul.f32 %v1594, %v1431
        %v1596 = vmul.f32 %v1595, %v1594
        %v1597 = vmul.f32 0.5, %v1596
        %v1598 = vsub.f32 1.5, %v1597
        %v1599 = vmul.f32 %v1594, %v1598
        %vm1600 = vweird.f32 %v1431
        %vm1601 = vweird.f32 %v1594
        %vm1602 = vmor %vm1600, %vm1601
        %v1603 = vsel %vm1602, %v1594, %v1599
        %v1604 = vrsqrt.pop %v1432
        %v1605 = vmul.f32 %v1604, %v1432
        %v1606 = vmul.f32 %v1605, %v1604
        %v1607 = vmul.f32 0.5, %v1606
        %v1608 = vsub.f32 1.5, %v1607
        %v1609 = vmul.f32 %v1604, %v1608
        %vm1610 = vweird.f32 %v1432
        %vm1611 = vweird.f32 %v1604
        %vm1612 = vmor %vm1610, %vm1611
        %v1613 = vsel %vm1612, %v1604, %v1609
        %v1614 = vrsqrt.pop %v1433
        %v1615 = vmul.f32 %v1614, %v1433
        %v1616 = vmul.f32 %v1615, %v1614
        %v1617 = vmul.f32 0.5, %v1616
        %v1618 = vsub.f32 1.5, %v1617
        %v1619 = vmul.f32 %v1614, %v1618
        %vm1620 = vweird.f32 %v1433
        %vm1621 = vweird.f32 %v1614
        %vm1622 = vmor %vm1620, %vm1621
        %v1623 = vsel %vm1622, %v1614, %v1619
        %v1624 = vrsqrt.pop %v1434
        %v1625 = vmul.f32 %v1624, %v1434
        %v1626 = vmul.f32 %v1625, %v1624
        %v1627 = vmul.f32 0.5, %v1626
        %v1628 = vsub.f32 1.5, %v1627
        %v1629 = vmul.f32 %v1624, %v1628
        %vm1630 = vweird.f32 %v1434
        %vm1631 = vweird.f32 %v1624
        %vm1632 = vmor %vm1630, %vm1631
        %v1633 = vsel %vm1632, %v1624, %v1629
        %v1634 = vrsqrt.pop %v1435
        %v1635 = vmul.f32 %v1634, %v1435
        %v1636 = vmul.f32 %v1635, %v1634
        %v1637 = vmul.f32 0.5, %v1636
        %v1638 = vsub.f32 1.5, %v1637
        %v1639 = vmul.f32 %v1634, %v1638
        %vm1640 = vweird.f32 %v1435
        %vm1641 = vweird.f32 %v1634
        %vm1642 = vmor %vm1640, %vm1641
        %v1643 = vsel %vm1642, %v1634, %v1639
        %v1644 = vrsqrt.pop %v1436
        %v1645 = vmul.f32 %v1644, %v1436
        %v1646 = vmul.f32 %v1645, %v1644
        %v1647 = vmul.f32 0.5, %v1646
        %v1648 = vsub.f32 1.5, %v1647
        %v1649 = vmul.f32 %v1644, %v1648
        %vm1650 = vweird.f32 %v1436
        %vm1651 = vweird.f32 %v1644
        %vm1652 = vmor %vm1650, %vm1651
        %v1653 = vsel %vm1652, %v1644, %v1649
        %v1654 = vrsqrt.pop %v1437
        %v1655 = vmul.f32 %v1654, %v1437
        %v1656 = vmul.f32 %v1655, %v1654
        %v1657 = vmul.f32 0.5, %v1656
        %v1658 = vsub.f32 1.5, %v1657
        %v1659 = vmul.f32 %v1654, %v1658
        %vm1660 = vweird.f32 %v1437
        %vm1661 = vweird.f32 %v1654
        %vm1662 = vmor %vm1660, %vm1661
        %v1663 = vsel %vm1662, %v1654, %v1659
        %v1664 = vrsqrt.pop %v1438
        %v1665 = vmul.f32 %v1664, %v1438
        %v1666 = vmul.f32 %v1665, %v1664
        %v1667 = vmul.f32 0.5, %v1666
        %v1668 = vsub.f32 1.5, %v1667
        %v1669 = vmul.f32 %v1664, %v1668
        %vm1670 = vweird.f32 %v1438
        %vm1671 = vweird.f32 %v1664
        %vm1672 = vmor %vm1670, %vm1671
        %v1673 = vsel %vm1672, %v1664, %v1669
        %v1674 = vrsqrt.pop %v1439
        %v1675 = vmul.f32 %v1674, %v1439
        %v1676 = vmul.f32 %v1675, %v1674
        %v1677 = vmul.f32 0.5, %v1676
        %v1678 = vsub.f32 1.5, %v1677
        %v1679 = vmul.f32 %v1674, %v1678
        %vm1680 = vweird.f32 %v1439
        %vm1681 = vweird.f32 %v1674
        %vm1682 = vmor %vm1680, %vm1681
        %v1683 = vsel %vm1682, %v1674, %v1679
        %v1684 = vrsqrt.pop %v1440
        %v1685 = vmul.f32 %v1684, %v1440
        %v1686 = vmul.f32 %v1685, %v1684
        %v1687 = vmul.f32 0.5, %v1686
        %v1688 = vsub.f32 1.5, %v1687
        %v1689 = vmul.f32 %v1684, %v1688
        %vm1690 = vweird.f32 %v1440
        %vm1691 = vweird.f32 %v1684
        %vm1692 = vmor %vm1690, %vm1691
        %v1693 = vsel %vm1692, %v1684, %v1689
        %v1694 = vrsqrt.pop %v1441
        %v1695 = vmul.f32 %v1694, %v1441
        %v1696 = vmul.f32 %v1695, %v1694
        %v1697 = vmul.f32 0.5, %v1696
        %v1698 = vsub.f32 1.5, %v1697
        %v1699 = vmul.f32 %v1694, %v1698
        %vm1700 = vweird.f32 %v1441
        %vm1701 = vweird.f32 %v1694
        %vm1702 = vmor %vm1700, %vm1701
        %v1703 = vsel %vm1702, %v1694, %v1699
        %v1704 = vrsqrt.pop %v1442
        %v1705 = vmul.f32 %v1704, %v1442
        %v1706 = vmul.f32 %v1705, %v1704
        %v1707 = vmul.f32 0.5, %v1706
        %v1708 = vsub.f32 1.5, %v1707
        %v1709 = vmul.f32 %v1704, %v1708
        %vm1710 = vweird.f32 %v1442
        %vm1711 = vweird.f32 %v1704
        %vm1712 = vmor %vm1710, %vm1711
        %v1713 = vsel %vm1712, %v1704, %v1709
        %v1714 = vrsqrt.pop %v1443
        %v1715 = vmul.f32 %v1714, %v1443
        %v1716 = vmul.f32 %v1715, %v1714
        %v1717 = vmul.f32 0.5, %v1716
        %v1718 = vsub.f32 1.5, %v1717
        %v1719 = vmul.f32 %v1714, %v1718
        %vm1720 = vweird.f32 %v1443
        %vm1721 = vweird.f32 %v1714
        %vm1722 = vmor %vm1720, %vm1721
        %v1723 = vsel %vm1722, %v1714, %v1719
        %v1724 = vrsqrt.pop %v1444
        %v1725 = vmul.f32 %v1724, %v1444
        %v1726 = vmul.f32 %v1725, %v1724
        %v1727 = vmul.f32 0.5, %v1726
        %v1728 = vsub.f32 1.5, %v1727
        %v1729 = vmul.f32 %v1724, %v1728
        %vm1730 = vweird.f32 %v1444
        %vm1731 = vweird.f32 %v1724
        %vm1732 = vmor %vm1730, %vm1731
        %v1733 = vsel %vm1732, %v1724, %v1729
        %v1734 = vrsqrt.pop %v1445
        %v1735 = vmul.f32 %v1734, %v1445
        %v1736 = vmul.f32 %v1735, %v1734
        %v1737 = vmul.f32 0.5, %v1736
        %v1738 = vsub.f32 1.5, %v1737
        %v1739 = vmul.f32 %v1734, %v1738
        %vm1740 = vweird.f32 %v1445
        %vm1741 = vweird.f32 %v1734
        %vm1742 = vmor %vm1740, %vm1741
        %v1743 = vsel %vm1742, %v1734, %v1739
        %v1744 = vrsqrt.pop %v1446
        %v1745 = vmul.f32 %v1744, %v1446
        %v1746 = vmul.f32 %v1745, %v1744
        %v1747 = vmul.f32 0.5, %v1746
        %v1748 = vsub.f32 1.5, %v1747
        %v1749 = vmul.f32 %v1744, %v1748
        %vm1750 = vweird.f32 %v1446
        %vm1751 = vweird.f32 %v1744
        %vm1752 = vmor %vm1750, %vm1751
        %v1753 = vsel %vm1752, %v1744, %v1749
        %v1754 = vrsqrt.pop %v1447
        %v1755 = vmul.f32 %v1754, %v1447
        %v1756 = vmul.f32 %v1755, %v1754
        %v1757 = vmul.f32 0.5, %v1756
        %v1758 = vsub.f32 1.5, %v1757
        %v1759 = vmul.f32 %v1754, %v1758
        %vm1760 = vweird.f32 %v1447
        %vm1761 = vweird.f32 %v1754
        %vm1762 = vmor %vm1760, %vm1761
        %v1763 = vsel %vm1762, %v1754, %v1759
        %v1764 = vrsqrt.pop %v1448
        %v1765 = vmul.f32 %v1764, %v1448
        %v1766 = vmul.f32 %v1765, %v1764
        %v1767 = vmul.f32 0.5, %v1766
        %v1768 = vsub.f32 1.5, %v1767
        %v1769 = vmul.f32 %v1764, %v1768
        %vm1770 = vweird.f32 %v1448
        %vm1771 = vweird.f32 %v1764
        %vm1772 = vmor %vm1770, %vm1771
        %v1773 = vsel %vm1772, %v1764, %v1769
        %v1774 = vrsqrt.pop %v1449
        %v1775 = vmul.f32 %v1774, %v1449
        %v1776 = vmul.f32 %v1775, %v1774
        %v1777 = vmul.f32 0.5, %v1776
        %v1778 = vsub.f32 1.5, %v1777
        %v1779 = vmul.f32 %v1774, %v1778
        %vm1780 = vweird.f32 %v1449
        %vm1781 = vweird.f32 %v1774
        %vm1782 = vmor %vm1780, %vm1781
        %v1783 = vsel %vm1782, %v1774, %v1779
        %v1784 = vrsqrt.pop %v1450
        %v1785 = vmul.f32 %v1784, %v1450
        %v1786 = vmul.f32 %v1785, %v1784
        %v1787 = vmul.f32 0.5, %v1786
        %v1788 = vsub.f32 1.5, %v1787
        %v1789 = vmul.f32 %v1784, %v1788
        %vm1790 = vweird.f32 %v1450
        %vm1791 = vweird.f32 %v1784
        %vm1792 = vmor %vm1790, %vm1791
        %v1793 = vsel %vm1792, %v1784, %v1789
        %v1794 = vrsqrt.pop %v1451
        %v1795 = vmul.f32 %v1794, %v1451
        %v1796 = vmul.f32 %v1795, %v1794
        %v1797 = vmul.f32 0.5, %v1796
        %v1798 = vsub.f32 1.5, %v1797
        %v1799 = vmul.f32 %v1794, %v1798
        %vm1800 = vweird.f32 %v1451
        %vm1801 = vweird.f32 %v1794
        %vm1802 = vmor %vm1800, %vm1801
        %v1803 = vsel %vm1802, %v1794, %v1799
        %v1804 = vrsqrt.pop %v1452
        %v1805 = vmul.f32 %v1804, %v1452
        %v1806 = vmul.f32 %v1805, %v1804
        %v1807 = vmul.f32 0.5, %v1806
        %v1808 = vsub.f32 1.5, %v1807
        %v1809 = vmul.f32 %v1804, %v1808
        %vm1810 = vweird.f32 %v1452
        %vm1811 = vweird.f32 %v1804
        %vm1812 = vmor %vm1810, %vm1811
        %v1813 = vsel %vm1812, %v1804, %v1809
        %v1814 = vrsqrt.pop %v1453
        %v1815 = vmul.f32 %v1814, %v1453
        %v1816 = vmul.f32 %v1815, %v1814
        %v1817 = vmul.f32 0.5, %v1816
        %v1818 = vsub.f32 1.5, %v1817
        %v1819 = vmul.f32 %v1814, %v1818
        %vm1820 = vweird.f32 %v1453
        %vm1821 = vweird.f32 %v1814
        %vm1822 = vmor %vm1820, %vm1821
        %v1823 = vsel %vm1822, %v1814, %v1819
        %v1824 = vrsqrt.pop %v1454
        %v1825 = vmul.f32 %v1824, %v1454
        %v1826 = vmul.f32 %v1825, %v1824
        %v1827 = vmul.f32 0.5, %v1826
        %v1828 = vsub.f32 1.5, %v1827
        %v1829 = vmul.f32 %v1824, %v1828
        %vm1830 = vweird.f32 %v1454
        %vm1831 = vweird.f32 %v1824
        %vm1832 = vmor %vm1830, %vm1831
        %v1833 = vsel %vm1832, %v1824, %v1829
        %v1834 = vrsqrt.pop %v1455
        %v1835 = vmul.f32 %v1834, %v1455
        %v1836 = vmul.f32 %v1835, %v1834
        %v1837 = vmul.f32 0.5, %v1836
        %v1838 = vsub.f32 1.5, %v1837
        %v1839 = vmul.f32 %v1834, %v1838
        %vm1840 = vweird.f32 %v1455
        %vm1841 = vweird.f32 %v1834
        %vm1842 = vmor %vm1840, %vm1841
        %v1843 = vsel %vm1842, %v1834, %v1839
        %v1844 = vrsqrt.pop %v1456
        %v1845 = vmul.f32 %v1844, %v1456
        %v1846 = vmul.f32 %v1845, %v1844
        %v1847 = vmul.f32 0.5, %v1846
        %v1848 = vsub.f32 1.5, %v1847
        %v1849 = vmul.f32 %v1844, %v1848
        %vm1850 = vweird.f32 %v1456
        %vm1851 = vweird.f32 %v1844
        %vm1852 = vmor %vm1850, %vm1851
        %v1853 = vsel %vm1852, %v1844, %v1849
        %v1854 = vrsqrt.pop %v1457
        %v1855 = vmul.f32 %v1854, %v1457
        %v1856 = vmul.f32 %v1855, %v1854
        %v1857 = vmul.f32 0.5, %v1856
        %v1858 = vsub.f32 1.5, %v1857
        %v1859 = vmul.f32 %v1854, %v1858
        %vm1860 = vweird.f32 %v1457
        %vm1861 = vweird.f32 %v1854
        %vm1862 = vmor %vm1860, %vm1861
        %v1863 = vsel %vm1862, %v1854, %v1859
        %v1864 = vrsqrt.pop %v1458
        %v1865 = vmul.f32 %v1864, %v1458
        %v1866 = vmul.f32 %v1865, %v1864
        %v1867 = vmul.f32 0.5, %v1866
        %v1868 = vsub.f32 1.5, %v1867
        %v1869 = vmul.f32 %v1864, %v1868
        %vm1870 = vweird.f32 %v1458
        %vm1871 = vweird.f32 %v1864
        %vm1872 = vmor %vm1870, %vm1871
        %v1873 = vsel %vm1872, %v1864, %v1869
        %v1874 = vrsqrt.pop %v1459
        %v1875 = vmul.f32 %v1874, %v1459
        %v1876 = vmul.f32 %v1875, %v1874
        %v1877 = vmul.f32 0.5, %v1876
        %v1878 = vsub.f32 1.5, %v1877
        %v1879 = vmul.f32 %v1874, %v1878
        %vm1880 = vweird.f32 %v1459
        %vm1881 = vweird.f32 %v1874
        %vm1882 = vmor %vm1880, %vm1881
        %v1883 = vsel %vm1882, %v1874, %v1879
        %v1884 = vrsqrt.pop %v1460
        %v1885 = vmul.f32 %v1884, %v1460
        %v1886 = vmul.f32 %v1885, %v1884
        %v1887 = vmul.f32 0.5, %v1886
        %v1888 = vsub.f32 1.5, %v1887
        %v1889 = vmul.f32 %v1884, %v1888
        %vm1890 = vweird.f32 %v1460
        %vm1891 = vweird.f32 %v1884
        %vm1892 = vmor %vm1890, %vm1891
        %v1893 = vsel %vm1892, %v1884, %v1889
        %v1894 = vrsqrt.pop %v1461
        %v1895 = vmul.f32 %v1894, %v1461
        %v1896 = vmul.f32 %v1895, %v1894
        %v1897 = vmul.f32 0.5, %v1896
        %v1898 = vsub.f32 1.5, %v1897
        %v1899 = vmul.f32 %v1894, %v1898
        %vm1900 = vweird.f32 %v1461
        %vm1901 = vweird.f32 %v1894
        %vm1902 = vmor %vm1900, %vm1901
        %v1903 = vsel %vm1902, %v1894, %v1899
        %v1904 = vrsqrt.pop %v1462
        %v1905 = vmul.f32 %v1904, %v1462
        %v1906 = vmul.f32 %v1905, %v1904
        %v1907 = vmul.f32 0.5, %v1906
        %v1908 = vsub.f32 1.5, %v1907
        %v1909 = vmul.f32 %v1904, %v1908
        %vm1910 = vweird.f32 %v1462
        %vm1911 = vweird.f32 %v1904
        %vm1912 = vmor %vm1910, %vm1911
        %v1913 = vsel %vm1912, %v1904, %v1909
        %v1914 = vrsqrt.pop %v1463
        %v1915 = vmul.f32 %v1914, %v1463
        %v1916 = vmul.f32 %v1915, %v1914
        %v1917 = vmul.f32 0.5, %v1916
        %v1918 = vsub.f32 1.5, %v1917
        %v1919 = vmul.f32 %v1914, %v1918
        %vm1920 = vweird.f32 %v1463
        %vm1921 = vweird.f32 %v1914
        %vm1922 = vmor %vm1920, %vm1921
        %v1923 = vsel %vm1922, %v1914, %v1919
        %v1924 = vrsqrt.pop %v1464
        %v1925 = vmul.f32 %v1924, %v1464
        %v1926 = vmul.f32 %v1925, %v1924
        %v1927 = vmul.f32 0.5, %v1926
        %v1928 = vsub.f32 1.5, %v1927
        %v1929 = vmul.f32 %v1924, %v1928
        %vm1930 = vweird.f32 %v1464
        %vm1931 = vweird.f32 %v1924
        %vm1932 = vmor %vm1930, %vm1931
        %v1933 = vsel %vm1932, %v1924, %v1929
        %v1934 = vrsqrt.pop %v1465
        %v1935 = vmul.f32 %v1934, %v1465
        %v1936 = vmul.f32 %v1935, %v1934
        %v1937 = vmul.f32 0.5, %v1936
        %v1938 = vsub.f32 1.5, %v1937
        %v1939 = vmul.f32 %v1934, %v1938
        %vm1940 = vweird.f32 %v1465
        %vm1941 = vweird.f32 %v1934
        %vm1942 = vmor %vm1940, %vm1941
        %v1943 = vsel %vm1942, %v1934, %v1939
        %v1944 = vrsqrt.pop %v1466
        %v1945 = vmul.f32 %v1944, %v1466
        %v1946 = vmul.f32 %v1945, %v1944
        %v1947 = vmul.f32 0.5, %v1946
        %v1948 = vsub.f32 1.5, %v1947
        %v1949 = vmul.f32 %v1944, %v1948
        %vm1950 = vweird.f32 %v1466
        %vm1951 = vweird.f32 %v1944
        %vm1952 = vmor %vm1950, %vm1951
        %v1953 = vsel %vm1952, %v1944, %v1949
        %v1954 = vrsqrt.pop %v1467
        %v1955 = vmul.f32 %v1954, %v1467
        %v1956 = vmul.f32 %v1955, %v1954
        %v1957 = vmul.f32 0.5, %v1956
        %v1958 = vsub.f32 1.5, %v1957
        %v1959 = vmul.f32 %v1954, %v1958
        %vm1960 = vweird.f32 %v1467
        %vm1961 = vweird.f32 %v1954
        %vm1962 = vmor %vm1960, %vm1961
        %v1963 = vsel %vm1962, %v1954, %v1959
        %v1964 = vrsqrt.pop %v1468
        %v1965 = vmul.f32 %v1964, %v1468
        %v1966 = vmul.f32 %v1965, %v1964
        %v1967 = vmul.f32 0.5, %v1966
        %v1968 = vsub.f32 1.5, %v1967
        %v1969 = vmul.f32 %v1964, %v1968
        %vm1970 = vweird.f32 %v1468
        %vm1971 = vweird.f32 %v1964
        %vm1972 = vmor %vm1970, %vm1971
        %v1973 = vsel %vm1972, %v1964, %v1969
        %v1974 = vrsqrt.pop %v1469
        %v1975 = vmul.f32 %v1974, %v1469
        %v1976 = vmul.f32 %v1975, %v1974
        %v1977 = vmul.f32 0.5, %v1976
        %v1978 = vsub.f32 1.5, %v1977
        %v1979 = vmul.f32 %v1974, %v1978
        %vm1980 = vweird.f32 %v1469
        %vm1981 = vweird.f32 %v1974
        %vm1982 = vmor %vm1980, %vm1981
        %v1983 = vsel %vm1982, %v1974, %v1979
        %v1984 = vrsqrt.pop %v1470
        %v1985 = vmul.f32 %v1984, %v1470
        %v1986 = vmul.f32 %v1985, %v1984
        %v1987 = vmul.f32 0.5, %v1986
        %v1988 = vsub.f32 1.5, %v1987
        %v1989 = vmul.f32 %v1984, %v1988
        %vm1990 = vweird.f32 %v1470
        %vm1991 = vweird.f32 %v1984
        %vm1992 = vmor %vm1990, %vm1991
        %v1993 = vsel %vm1992, %v1984, %v1989
        %v1994 = vrsqrt.pop %v1471
        %v1995 = vmul.f32 %v1994, %v1471
        %v1996 = vmul.f32 %v1995, %v1994
        %v1997 = vmul.f32 0.5, %v1996
        %v1998 = vsub.f32 1.5, %v1997
        %v1999 = vmul.f32 %v1994, %v1998
        %vm2000 = vweird.f32 %v1471
        %vm2001 = vweird.f32 %v1994
        %vm2002 = vmor %vm2000, %vm2001
        %v2003 = vsel %vm2002, %v1994, %v1999
        %v2004 = vrsqrt.pop %v1472
        %v2005 = vmul.f32 %v2004, %v1472
        %v2006 = vmul.f32 %v2005, %v2004
        %v2007 = vmul.f32 0.5, %v2006
        %v2008 = vsub.f32 1.5, %v2007
        %v2009 = vmul.f32 %v2004, %v2008
        %vm2010 = vweird.f32 %v1472
        %vm2011 = vweird.f32 %v2004
        %vm2012 = vmor %vm2010, %vm2011
        %v2013 = vsel %vm2012, %v2004, %v2009
        %v2014 = vrsqrt.pop %v1473
        %v2015 = vmul.f32 %v2014, %v1473
        %v2016 = vmul.f32 %v2015, %v2014
        %v2017 = vmul.f32 0.5, %v2016
        %v2018 = vsub.f32 1.5, %v2017
        %v2019 = vmul.f32 %v2014, %v2018
        %vm2020 = vweird.f32 %v1473
        %vm2021 = vweird.f32 %v2014
        %vm2022 = vmor %vm2020, %vm2021
        %v2023 = vsel %vm2022, %v2014, %v2019
        %v2024 = vrsqrt.pop %v1474
        %v2025 = vmul.f32 %v2024, %v1474
        %v2026 = vmul.f32 %v2025, %v2024
        %v2027 = vmul.f32 0.5, %v2026
        %v2028 = vsub.f32 1.5, %v2027
        %v2029 = vmul.f32 %v2024, %v2028
        %vm2030 = vweird.f32 %v1474
        %vm2031 = vweird.f32 %v2024
        %vm2032 = vmor %vm2030, %vm2031
        %v2033 = vsel %vm2032, %v2024, %v2029
        %v2034 = vrsqrt.pop %v1475
        %v2035 = vmul.f32 %v2034, %v1475
        %v2036 = vmul.f32 %v2035, %v2034
        %v2037 = vmul.f32 0.5, %v2036
        %v2038 = vsub.f32 1.5, %v2037
        %v2039 = vmul.f32 %v2034, %v2038
        %vm2040 = vweird.f32 %v1475
        %vm2041 = vweird.f32 %v2034
        %vm2042 = vmor %vm2040, %vm2041
        %v2043 = vsel %vm2042, %v2034, %v2039
        %v2044 = vrsqrt.pop %v1476
        %v2045 = vmul.f32 %v2044, %v1476
        %v2046 = vmul.f32 %v2045, %v2044
        %v2047 = vmul.f32 0.5, %v2046
        %v2048 = vsub.f32 1.5, %v2047
        %v2049 = vmul.f32 %v2044, %v2048
        %vm2050 = vweird.f32 %v1476
        %vm2051 = vweird.f32 %v2044
        %vm2052 = vmor %vm2050, %vm2051
        %v2053 = vsel %vm2052, %v2044, %v2049
        %v2054 = vrsqrt.pop %v1477
        %v2055 = vmul.f32 %v2054, %v1477
        %v2056 = vmul.f32 %v2055, %v2054
        %v2057 = vmul.f32 0.5, %v2056
        %v2058 = vsub.f32 1.5, %v2057
        %v2059 = vmul.f32 %v2054, %v2058
        %vm2060 = vweird.f32 %v1477
        %vm2061 = vweird.f32 %v2054
        %vm2062 = vmor %vm2060, %vm2061
        %v2063 = vsel %vm2062, %v2054, %v2059
        %v2064 = vrsqrt.pop %v1478
        %v2065 = vmul.f32 %v2064, %v1478
        %v2066 = vmul.f32 %v2065, %v2064
        %v2067 = vmul.f32 0.5, %v2066
        %v2068 = vsub.f32 1.5, %v2067
        %v2069 = vmul.f32 %v2064, %v2068
        %vm2070 = vweird.f32 %v1478
        %vm2071 = vweird.f32 %v2064
        %vm2072 = vmor %vm2070, %vm2071
        %v2073 = vsel %vm2072, %v2064, %v2069
        %v2074 = vrsqrt.pop %v1479
        %v2075 = vmul.f32 %v2074, %v1479
        %v2076 = vmul.f32 %v2075, %v2074
        %v2077 = vmul.f32 0.5, %v2076
        %v2078 = vsub.f32 1.5, %v2077
        %v2079 = vmul.f32 %v2074, %v2078
        %vm2080 = vweird.f32 %v1479
        %vm2081 = vweird.f32 %v2074
        %vm2082 = vmor %vm2080, %vm2081
        %v2083 = vsel %vm2082, %v2074, %v2079
        %v2084 = vrsqrt.pop %v1480
        %v2085 = vmul.f32 %v2084, %v1480
        %v2086 = vmul.f32 %v2085, %v2084
        %v2087 = vmul.f32 0.5, %v2086
        %v2088 = vsub.f32 1.5, %v2087
        %v2089 = vmul.f32 %v2084, %v2088
        %vm2090 = vweird.f32 %v1480
        %vm2091 = vweird.f32 %v2084
        %vm2092 = vmor %vm2090, %vm2091
        %v2093 = vsel %vm2092, %v2084, %v2089
        %v2094 = vrsqrt.pop %v1481
        %v2095 = vmul.f32 %v2094, %v1481
        %v2096 = vmul.f32 %v2095, %v2094
        %v2097 = vmul.f32 0.5, %v2096
        %v2098 = vsub.f32 1.5, %v2097
        %v2099 = vmul.f32 %v2094, %v2098
        %vm2100 = vweird.f32 %v1481
        %vm2101 = vweird.f32 %v2094
        %vm2102 = vmor %vm2100, %vm2101
        %v2103 = vsel %vm2102, %v2094, %v2099
        %v2104 = vrsqrt.pop %v1482
        %v2105 = vmul.f32 %v2104, %v1482
        %v2106 = vmul.f32 %v2105, %v2104
        %v2107 = vmul.f32 0.5, %v2106
        %v2108 = vsub.f32 1.5, %v2107
        %v2109 = vmul.f32 %v2104, %v2108
        %vm2110 = vweird.f32 %v1482
        %vm2111 = vweird.f32 %v2104
        %vm2112 = vmor %vm2110, %vm2111
        %v2113 = vsel %vm2112, %v2104, %v2109
        %v2114 = vrsqrt.pop %v1483
        %v2115 = vmul.f32 %v2114, %v1483
        %v2116 = vmul.f32 %v2115, %v2114
        %v2117 = vmul.f32 0.5, %v2116
        %v2118 = vsub.f32 1.5, %v2117
        %v2119 = vmul.f32 %v2114, %v2118
        %vm2120 = vweird.f32 %v1483
        %vm2121 = vweird.f32 %v2114
        %vm2122 = vmor %vm2120, %vm2121
        %v2123 = vsel %vm2122, %v2114, %v2119
        %v2124 = vmul.f32 %v844, %v1493
        %v2125 = vmul.f32 %v845, %v1503
        %v2126 = vmul.f32 %v846, %v1513
        %v2127 = vmul.f32 %v847, %v1523
        %v2128 = vmul.f32 %v848, %v1533
        %v2129 = vmul.f32 %v849, %v1543
        %v2130 = vmul.f32 %v850, %v1553
        %v2131 = vmul.f32 %v851, %v1563
        %v2132 = vmul.f32 %v852, %v1573
        %v2133 = vmul.f32 %v853, %v1583
        %v2134 = vmul.f32 %v854, %v1593
        %v2135 = vmul.f32 %v855, %v1603
        %v2136 = vmul.f32 %v856, %v1613
        %v2137 = vmul.f32 %v857, %v1623
        %v2138 = vmul.f32 %v858, %v1633
        %v2139 = vmul.f32 %v859, %v1643
        %v2140 = vmul.f32 %v860, %v1653
        %v2141 = vmul.f32 %v861, %v1663
        %v2142 = vmul.f32 %v862, %v1673
        %v2143 = vmul.f32 %v863, %v1683
        %v2144 = vmul.f32 %v864, %v1693
        %v2145 = vmul.f32 %v865, %v1703
        %v2146 = vmul.f32 %v866, %v1713
        %v2147 = vmul.f32 %v867, %v1723
        %v2148 = vmul.f32 %v868, %v1733
        %v2149 = vmul.f32 %v869, %v1743
        %v2150 = vmul.f32 %v870, %v1753
        %v2151 = vmul.f32 %v871, %v1763
        %v2152 = vmul.f32 %v872, %v1773
        %v2153 = vmul.f32 %v873, %v1783
        %v2154 = vmul.f32 %v874, %v1793
        %v2155 = vmul.f32 %v875, %v1803
        %v2156 = vmul.f32 %v876, %v1813
        %v2157 = vmul.f32 %v877, %v1823
        %v2158 = vmul.f32 %v878, %v1833
        %v2159 = vmul.f32 %v879, %v1843
        %v2160 = vmul.f32 %v880, %v1853
        %v2161 = vmul.f32 %v881, %v1863
        %v2162 = vmul.f32 %v882, %v1873
        %v2163 = vmul.f32 %v883, %v1883
        %v2164 = vmul.f32 %v884, %v1893
        %v2165 = vmul.f32 %v885, %v1903
        %v2166 = vmul.f32 %v886, %v1913
        %v2167 = vmul.f32 %v887, %v1923
        %v2168 = vmul.f32 %v888, %v1933
        %v2169 = vmul.f32 %v889, %v1943
        %v2170 = vmul.f32 %v890, %v1953
        %v2171 = vmul.f32 %v891, %v1963
        %v2172 = vmul.f32 %v892, %v1973
        %v2173 = vmul.f32 %v893, %v1983
        %v2174 = vmul.f32 %v894, %v1993
        %v2175 = vmul.f32 %v895, %v2003
        %v2176 = vmul.f32 %v896, %v2013
        %v2177 = vmul.f32 %v897, %v2023
        %v2178 = vmul.f32 %v898, %v2033
        %v2179 = vmul.f32 %v899, %v2043
        %v2180 = vmul.f32 %v900, %v2053
        %v2181 = vmul.f32 %v901, %v2063
        %v2182 = vmul.f32 %v902, %v2073
        %v2183 = vmul.f32 %v903, %v2083
        %v2184 = vmul.f32 %v904, %v2093
        %v2185 = vmul.f32 %v905, %v2103
        %v2186 = vmul.f32 %v906, %v2113
        %v2187 = vmul.f32 %v907, %v2123
        %v2188 = vld [vmem:[%s1] sm:$0xff]
        %v2189 = vld [vmem:[%s1 + $0x8] sm:$0xff]
        %v2190 = vld [vmem:[%s1 + $0x10] sm:$0xff]
        %v2191 = vld [vmem:[%s1 + $0x18] sm:$0xff]
        %2193 = vset.pattern.permute.xlu0 0
        %2194 = vperm.xlu0 %2193, %v2188
        %v2195 = vpop.permute.xlu0 %2194
        %2198 = vset.pattern.permute.xlu0 0
        %2199 = vperm.xlu0 %2198, %v2189
        %v2200 = vpop.permute.xlu0 %2199
        %2203 = vset.pattern.permute.xlu0 0
        %2204 = vperm.xlu0 %2203, %v2190
        %v2205 = vpop.permute.xlu0 %2204
        %2208 = vset.pattern.permute.xlu0 0
        %2209 = vperm.xlu0 %2208, %v2191
        %v2210 = vpop.permute.xlu0 %2209
        %v2212 = vmul.f32 %v2124, %v2195
        %v2213 = vmul.f32 %v2125, %v2195
        %v2214 = vmul.f32 %v2126, %v2200
        %v2215 = vmul.f32 %v2127, %v2200
        %v2216 = vmul.f32 %v2128, %v2205
        %v2217 = vmul.f32 %v2129, %v2205
        %v2218 = vmul.f32 %v2130, %v2210
        %v2219 = vmul.f32 %v2131, %v2210
        %v2220 = vmul.f32 %v2132, %v2195
        %v2221 = vmul.f32 %v2133, %v2195
        %v2222 = vmul.f32 %v2134, %v2200
        %v2223 = vmul.f32 %v2135, %v2200
        %v2224 = vmul.f32 %v2136, %v2205
        %v2225 = vmul.f32 %v2137, %v2205
        %v2226 = vmul.f32 %v2138, %v2210
        %v2227 = vmul.f32 %v2139, %v2210
        %v2228 = vmul.f32 %v2140, %v2195
        %v2229 = vmul.f32 %v2141, %v2195
        %v2230 = vmul.f32 %v2142, %v2200
        %v2231 = vmul.f32 %v2143, %v2200
        %v2232 = vmul.f32 %v2144, %v2205
        %v2233 = vmul.f32 %v2145, %v2205
        %v2234 = vmul.f32 %v2146, %v2210
        %v2235 = vmul.f32 %v2147, %v2210
        %v2236 = vmul.f32 %v2148, %v2195
        %v2237 = vmul.f32 %v2149, %v2195
        %v2238 = vmul.f32 %v2150, %v2200
        %v2239 = vmul.f32 %v2151, %v2200
        %v2240 = vmul.f32 %v2152, %v2205
        %v2241 = vmul.f32 %v2153, %v2205
        %v2242 = vmul.f32 %v2154, %v2210
        %v2243 = vmul.f32 %v2155, %v2210
        %v2244 = vmul.f32 %v2156, %v2195
        %v2245 = vmul.f32 %v2157, %v2195
        %v2246 = vmul.f32 %v2158, %v2200
        %v2247 = vmul.f32 %v2159, %v2200
        %v2248 = vmul.f32 %v2160, %v2205
        %v2249 = vmul.f32 %v2161, %v2205
        %v2250 = vmul.f32 %v2162, %v2210
        %v2251 = vmul.f32 %v2163, %v2210
        %v2252 = vmul.f32 %v2164, %v2195
        %v2253 = vmul.f32 %v2165, %v2195
        %v2254 = vmul.f32 %v2166, %v2200
        %v2255 = vmul.f32 %v2167, %v2200
        %v2256 = vmul.f32 %v2168, %v2205
        %v2257 = vmul.f32 %v2169, %v2205
        %v2258 = vmul.f32 %v2170, %v2210
        %v2259 = vmul.f32 %v2171, %v2210
        %v2260 = vmul.f32 %v2172, %v2195
        %v2261 = vmul.f32 %v2173, %v2195
        %v2262 = vmul.f32 %v2174, %v2200
        %v2263 = vmul.f32 %v2175, %v2200
        %v2264 = vmul.f32 %v2176, %v2205
        %v2265 = vmul.f32 %v2177, %v2205
        %v2266 = vmul.f32 %v2178, %v2210
        %v2267 = vmul.f32 %v2179, %v2210
        %v2268 = vmul.f32 %v2180, %v2195
        %v2269 = vmul.f32 %v2181, %v2195
        %v2270 = vmul.f32 %v2182, %v2200
        %v2271 = vmul.f32 %v2183, %v2200
        %v2272 = vmul.f32 %v2184, %v2205
        %v2273 = vmul.f32 %v2185, %v2205
        %v2274 = vmul.f32 %v2186, %v2210
        %v2275 = vmul.f32 %v2187, %v2210
        %v2276 = vld [vmem:[%s2] sm:$0xff]
        %v2277 = vld [vmem:[%s2 + $0x8] sm:$0xff]
        %v2278 = vld [vmem:[%s2 + $0x10] sm:$0xff]
        %v2279 = vld [vmem:[%s2 + $0x18] sm:$0xff]
        %2281 = vset.pattern.permute.xlu0 0
        %2282 = vperm.xlu0 %2281, %v2276
        %v2283 = vpop.permute.xlu0 %2282
        %2286 = vset.pattern.permute.xlu0 0
        %2287 = vperm.xlu0 %2286, %v2277
        %v2288 = vpop.permute.xlu0 %2287
        %2291 = vset.pattern.permute.xlu0 0
        %2292 = vperm.xlu0 %2291, %v2278
        %v2293 = vpop.permute.xlu0 %2292
        %2296 = vset.pattern.permute.xlu0 0
        %2297 = vperm.xlu0 %2296, %v2279
        %v2298 = vpop.permute.xlu0 %2297
        %v2300 = vadd.f32 %v2212, %v2283
        %v2301 = vadd.f32 %v2213, %v2283
        %v2302 = vadd.f32 %v2214, %v2288
        %v2303 = vadd.f32 %v2215, %v2288
        %v2304 = vadd.f32 %v2216, %v2293
        %v2305 = vadd.f32 %v2217, %v2293
        %v2306 = vadd.f32 %v2218, %v2298
        %v2307 = vadd.f32 %v2219, %v2298
        %v2308 = vadd.f32 %v2220, %v2283
        %v2309 = vadd.f32 %v2221, %v2283
        %v2310 = vadd.f32 %v2222, %v2288
        %v2311 = vadd.f32 %v2223, %v2288
        %v2312 = vadd.f32 %v2224, %v2293
        %v2313 = vadd.f32 %v2225, %v2293
        %v2314 = vadd.f32 %v2226, %v2298
        %v2315 = vadd.f32 %v2227, %v2298
        %v2316 = vadd.f32 %v2228, %v2283
        %v2317 = vadd.f32 %v2229, %v2283
        %v2318 = vadd.f32 %v2230, %v2288
        %v2319 = vadd.f32 %v2231, %v2288
        %v2320 = vadd.f32 %v2232, %v2293
        %v2321 = vadd.f32 %v2233, %v2293
        %v2322 = vadd.f32 %v2234, %v2298
        %v2323 = vadd.f32 %v2235, %v2298
        %v2324 = vadd.f32 %v2236, %v2283
        %v2325 = vadd.f32 %v2237, %v2283
        %v2326 = vadd.f32 %v2238, %v2288
        %v2327 = vadd.f32 %v2239, %v2288
        %v2328 = vadd.f32 %v2240, %v2293
        %v2329 = vadd.f32 %v2241, %v2293
        %v2330 = vadd.f32 %v2242, %v2298
        %v2331 = vadd.f32 %v2243, %v2298
        %v2332 = vadd.f32 %v2244, %v2283
        %v2333 = vadd.f32 %v2245, %v2283
        %v2334 = vadd.f32 %v2246, %v2288
        %v2335 = vadd.f32 %v2247, %v2288
        %v2336 = vadd.f32 %v2248, %v2293
        %v2337 = vadd.f32 %v2249, %v2293
        %v2338 = vadd.f32 %v2250, %v2298
        %v2339 = vadd.f32 %v2251, %v2298
        %v2340 = vadd.f32 %v2252, %v2283
        %v2341 = vadd.f32 %v2253, %v2283
        %v2342 = vadd.f32 %v2254, %v2288
        %v2343 = vadd.f32 %v2255, %v2288
        %v2344 = vadd.f32 %v2256, %v2293
        %v2345 = vadd.f32 %v2257, %v2293
        %v2346 = vadd.f32 %v2258, %v2298
        %v2347 = vadd.f32 %v2259, %v2298
        %v2348 = vadd.f32 %v2260, %v2283
        %v2349 = vadd.f32 %v2261, %v2283
        %v2350 = vadd.f32 %v2262, %v2288
        %v2351 = vadd.f32 %v2263, %v2288
        %v2352 = vadd.f32 %v2264, %v2293
        %v2353 = vadd.f32 %v2265, %v2293
        %v2354 = vadd.f32 %v2266, %v2298
        %v2355 = vadd.f32 %v2267, %v2298
        %v2356 = vadd.f32 %v2268, %v2283
        %v2357 = vadd.f32 %v2269, %v2283
        %v2358 = vadd.f32 %v2270, %v2288
        %v2359 = vadd.f32 %v2271, %v2288
        %v2360 = vadd.f32 %v2272, %v2293
        %v2361 = vadd.f32 %v2273, %v2293
        %v2362 = vadd.f32 %v2274, %v2298
        %v2363 = vadd.f32 %v2275, %v2298
        %v2364 = vld [vmem:[#allocation5] sm:$0xff]
        %v2365 = vld [vmem:[#allocation5 + $0x8] sm:$0xff]
        %v2366 = vld [vmem:[#allocation5 + $0x10] sm:$0xff]
        %v2367 = vld [vmem:[#allocation5 + $0x18] sm:$0xff]
        %v2368 = vld [vmem:[#allocation5 + $0x20] sm:$0xff]
        %v2369 = vld [vmem:[#allocation5 + $0x28] sm:$0xff]
        %v2370 = vld [vmem:[#allocation5 + $0x30] sm:$0xff]
        %v2371 = vld [vmem:[#allocation5 + $0x38] sm:$0xff]
        %v2372 = vld [vmem:[#allocation5 + $0x40] sm:$0xff]
        %v2373 = vld [vmem:[#allocation5 + $0x48] sm:$0xff]
        %v2374 = vld [vmem:[#allocation5 + $0x50] sm:$0xff]
        %v2375 = vld [vmem:[#allocation5 + $0x58] sm:$0xff]
        %v2376 = vld [vmem:[#allocation5 + $0x60] sm:$0xff]
        %v2377 = vld [vmem:[#allocation5 + $0x68] sm:$0xff]
        %v2378 = vld [vmem:[#allocation5 + $0x70] sm:$0xff]
        %v2379 = vld [vmem:[#allocation5 + $0x78] sm:$0xff]
        %v2380 = vld [vmem:[#allocation5 + $0x80] sm:$0xff]
        %v2381 = vld [vmem:[#allocation5 + $0x88] sm:$0xff]
        %v2382 = vld [vmem:[#allocation5 + $0x90] sm:$0xff]
        %v2383 = vld [vmem:[#allocation5 + $0x98] sm:$0xff]
        %v2384 = vld [vmem:[#allocation5 + $0xa0] sm:$0xff]
        %v2385 = vld [vmem:[#allocation5 + $0xa8] sm:$0xff]
        %v2386 = vld [vmem:[#allocation5 + $0xb0] sm:$0xff]
        %v2387 = vld [vmem:[#allocation5 + $0xb8] sm:$0xff]
        %v2388 = vld [vmem:[#allocation5 + $0xc0] sm:$0xff]
        %v2389 = vld [vmem:[#allocation5 + $0xc8] sm:$0xff]
        %v2390 = vld [vmem:[#allocation5 + $0xd0] sm:$0xff]
        %v2391 = vld [vmem:[#allocation5 + $0xd8] sm:$0xff]
        %v2392 = vld [vmem:[#allocation5 + $0xe0] sm:$0xff]
        %v2393 = vld [vmem:[#allocation5 + $0xe8] sm:$0xff]
        %v2394 = vld [vmem:[#allocation5 + $0xf0] sm:$0xff]
        %v2395 = vld [vmem:[#allocation5 + $0xf8] sm:$0xff]
        %v2396 = vld [vmem:[#allocation5 + $0x100] sm:$0xff]
        %v2397 = vld [vmem:[#allocation5 + $0x108] sm:$0xff]
        %v2398 = vld [vmem:[#allocation5 + $0x110] sm:$0xff]
        %v2399 = vld [vmem:[#allocation5 + $0x118] sm:$0xff]
        %v2400 = vld [vmem:[#allocation5 + $0x120] sm:$0xff]
        %v2401 = vld [vmem:[#allocation5 + $0x128] sm:$0xff]
        %v2402 = vld [vmem:[#allocation5 + $0x130] sm:$0xff]
        %v2403 = vld [vmem:[#allocation5 + $0x138] sm:$0xff]
        %v2404 = vld [vmem:[#allocation5 + $0x140] sm:$0xff]
        %v2405 = vld [vmem:[#allocation5 + $0x148] sm:$0xff]
        %v2406 = vld [vmem:[#allocation5 + $0x150] sm:$0xff]
        %v2407 = vld [vmem:[#allocation5 + $0x158] sm:$0xff]
        %v2408 = vld [vmem:[#allocation5 + $0x160] sm:$0xff]
        %v2409 = vld [vmem:[#allocation5 + $0x168] sm:$0xff]
        %v2410 = vld [vmem:[#allocation5 + $0x170] sm:$0xff]
        %v2411 = vld [vmem:[#allocation5 + $0x178] sm:$0xff]
        %v2412 = vld [vmem:[#allocation5 + $0x180] sm:$0xff]
        %v2413 = vld [vmem:[#allocation5 + $0x188] sm:$0xff]
        %v2414 = vld [vmem:[#allocation5 + $0x190] sm:$0xff]
        %v2415 = vld [vmem:[#allocation5 + $0x198] sm:$0xff]
        %v2416 = vld [vmem:[#allocation5 + $0x1a0] sm:$0xff]
        %v2417 = vld [vmem:[#allocation5 + $0x1a8] sm:$0xff]
        %v2418 = vld [vmem:[#allocation5 + $0x1b0] sm:$0xff]
        %v2419 = vld [vmem:[#allocation5 + $0x1b8] sm:$0xff]
        %v2420 = vld [vmem:[#allocation5 + $0x1c0] sm:$0xff]
        %v2421 = vld [vmem:[#allocation5 + $0x1c8] sm:$0xff]
        %v2422 = vld [vmem:[#allocation5 + $0x1d0] sm:$0xff]
        %v2423 = vld [vmem:[#allocation5 + $0x1d8] sm:$0xff]
        %v2424 = vld [vmem:[#allocation5 + $0x1e0] sm:$0xff]
        %v2425 = vld [vmem:[#allocation5 + $0x1e8] sm:$0xff]
        %v2426 = vld [vmem:[#allocation5 + $0x1f0] sm:$0xff]
        %v2427 = vld [vmem:[#allocation5 + $0x1f8] sm:$0xff]
        %2428 = vmatpush.msra.mxu0 %v2330
        %2429 = vmatpush.msra.mxu0 %v2328
        %2430 = vmatpush.msra.mxu0 %v2326
        %2431 = vmatpush.msra.mxu0 %v2324
        %2432 = vmatpush.msra.mxu0 %v2322
        %2433 = vmatpush.msra.mxu0 %v2320
        %2434 = vmatpush.msra.mxu0 %v2318
        %2435 = vmatpush.msra.mxu0 %v2316
        %2436 = vmatpush.msra.mxu0 %v2314
        %2437 = vmatpush.msra.mxu0 %v2312
        %2438 = vmatpush.msra.mxu0 %v2310
        %2439 = vmatpush.msra.mxu0 %v2308
        %2440 = vmatpush.msra.mxu0 %v2306
        %2441 = vmatpush.msra.mxu0 %v2304
        %2442 = vmatpush.msra.mxu0 %v2302
        %2443 = vmatpush.msra.mxu0 %v2300
        %2444 = vmatmul.f32.gmra.mxu0 %v2364
        %v2445 = vpop.f32.mrf.mxu0
        %v2446 = vadd.f32 0.0, %v2445
        %2447 = vmatmul.f32.gmra.mxu0 %v2366
        %v2448 = vpop.f32.mrf.mxu0
        %v2449 = vadd.f32 0.0, %v2448
        %2450 = vmatmul.f32.gmra.mxu0 %v2368
        %v2451 = vpop.f32.mrf.mxu0
        %v2452 = vadd.f32 0.0, %v2451
        %2453 = vmatmul.f32.gmra.mxu0 %v2370
        %v2454 = vpop.f32.mrf.mxu0
        %v2455 = vadd.f32 0.0, %v2454
        %2456 = vmatmul.f32.gmra.mxu0 %v2372
        %v2457 = vpop.f32.mrf.mxu0
        %v2458 = vadd.f32 0.0, %v2457
        %2459 = vmatmul.f32.gmra.mxu0 %v2374
        %v2460 = vpop.f32.mrf.mxu0
        %v2461 = vadd.f32 0.0, %v2460
        %2462 = vmatmul.f32.gmra.mxu0 %v2376
        %v2463 = vpop.f32.mrf.mxu0
        %v2464 = vadd.f32 0.0, %v2463
        %2465 = vmatmul.f32.gmra.mxu0 %v2378
        %v2466 = vpop.f32.mrf.mxu0
        %v2467 = vadd.f32 0.0, %v2466
        %2468 = vmatmul.f32.gmra.mxu0 %v2380
        %v2469 = vpop.f32.mrf.mxu0
        %v2470 = vadd.f32 0.0, %v2469
        %2471 = vmatmul.f32.gmra.mxu0 %v2382
        %v2472 = vpop.f32.mrf.mxu0
        %v2473 = vadd.f32 0.0, %v2472
        %2474 = vmatmul.f32.gmra.mxu0 %v2384
        %v2475 = vpop.f32.mrf.mxu0
        %v2476 = vadd.f32 0.0, %v2475
        %2477 = vmatmul.f32.gmra.mxu0 %v2386
        %v2478 = vpop.f32.mrf.mxu0
        %v2479 = vadd.f32 0.0, %v2478
        %2480 = vmatmul.f32.gmra.mxu0 %v2388
        %v2481 = vpop.f32.mrf.mxu0
        %v2482 = vadd.f32 0.0, %v2481
        %2483 = vmatmul.f32.gmra.mxu0 %v2390
        %v2484 = vpop.f32.mrf.mxu0
        %v2485 = vadd.f32 0.0, %v2484
        %2486 = vmatmul.f32.gmra.mxu0 %v2392
        %v2487 = vpop.f32.mrf.mxu0
        %v2488 = vadd.f32 0.0, %v2487
        %2489 = vmatmul.f32.gmra.mxu0 %v2394
        %v2490 = vpop.f32.mrf.mxu0
        %v2491 = vadd.f32 0.0, %v2490
        %2492 = vmatmul.f32.gmra.mxu0 %v2396
        %v2493 = vpop.f32.mrf.mxu0
        %v2494 = vadd.f32 0.0, %v2493
        %2495 = vmatmul.f32.gmra.mxu0 %v2398
        %v2496 = vpop.f32.mrf.mxu0
        %v2497 = vadd.f32 0.0, %v2496
        %2498 = vmatmul.f32.gmra.mxu0 %v2400
        %v2499 = vpop.f32.mrf.mxu0
        %v2500 = vadd.f32 0.0, %v2499
        %2501 = vmatmul.f32.gmra.mxu0 %v2402
        %v2502 = vpop.f32.mrf.mxu0
        %v2503 = vadd.f32 0.0, %v2502
        %2504 = vmatmul.f32.gmra.mxu0 %v2404
        %v2505 = vpop.f32.mrf.mxu0
        %v2506 = vadd.f32 0.0, %v2505
        %2507 = vmatmul.f32.gmra.mxu0 %v2406
        %v2508 = vpop.f32.mrf.mxu0
        %v2509 = vadd.f32 0.0, %v2508
        %2510 = vmatmul.f32.gmra.mxu0 %v2408
        %v2511 = vpop.f32.mrf.mxu0
        %v2512 = vadd.f32 0.0, %v2511
        %2513 = vmatmul.f32.gmra.mxu0 %v2410
        %v2514 = vpop.f32.mrf.mxu0
        %v2515 = vadd.f32 0.0, %v2514
        %2516 = vmatmul.f32.gmra.mxu0 %v2412
        %v2517 = vpop.f32.mrf.mxu0
        %v2518 = vadd.f32 0.0, %v2517
        %2519 = vmatmul.f32.gmra.mxu0 %v2414
        %v2520 = vpop.f32.mrf.mxu0
        %v2521 = vadd.f32 0.0, %v2520
        %2522 = vmatmul.f32.gmra.mxu0 %v2416
        %v2523 = vpop.f32.mrf.mxu0
        %v2524 = vadd.f32 0.0, %v2523
        %2525 = vmatmul.f32.gmra.mxu0 %v2418
        %v2526 = vpop.f32.mrf.mxu0
        %v2527 = vadd.f32 0.0, %v2526
        %2528 = vmatmul.f32.gmra.mxu0 %v2420
        %v2529 = vpop.f32.mrf.mxu0
        %v2530 = vadd.f32 0.0, %v2529
        %2531 = vmatmul.f32.gmra.mxu0 %v2422
        %v2532 = vpop.f32.mrf.mxu0
        %v2533 = vadd.f32 0.0, %v2532
        %2534 = vmatmul.f32.gmra.mxu0 %v2424
        %v2535 = vpop.f32.mrf.mxu0
        %v2536 = vadd.f32 0.0, %v2535
        %2537 = vmatmul.f32.gmra.mxu0 %v2426
        %v2538 = vpop.f32.mrf.mxu0
        %v2539 = vadd.f32 0.0, %v2538
        %2540 = vdwg.mxu0
        %2541 = vmatpush.msra.mxu0 %v2362
        %2542 = vmatpush.msra.mxu0 %v2360
        %2543 = vmatpush.msra.mxu0 %v2358
        %2544 = vmatpush.msra.mxu0 %v2356
        %2545 = vmatpush.msra.mxu0 %v2354
        %2546 = vmatpush.msra.mxu0 %v2352
        %2547 = vmatpush.msra.mxu0 %v2350
        %2548 = vmatpush.msra.mxu0 %v2348
        %2549 = vmatpush.msra.mxu0 %v2346
        %2550 = vmatpush.msra.mxu0 %v2344
        %2551 = vmatpush.msra.mxu0 %v2342
        %2552 = vmatpush.msra.mxu0 %v2340
        %2553 = vmatpush.msra.mxu0 %v2338
        %2554 = vmatpush.msra.mxu0 %v2336
        %2555 = vmatpush.msra.mxu0 %v2334
        %2556 = vmatpush.msra.mxu0 %v2332
        %2557 = vmatmul.f32.gmra.mxu0 %v2365
        %v2558 = vpop.f32.mrf.mxu0
        %v2559 = vadd.f32 %v2446, %v2558
        %2560 = vmatmul.f32.gmra.mxu0 %v2367
        %v2561 = vpop.f32.mrf.mxu0
        %v2562 = vadd.f32 %v2449, %v2561
        %2563 = vmatmul.f32.gmra.mxu0 %v2369
        %v2564 = vpop.f32.mrf.mxu0
        %v2565 = vadd.f32 %v2452, %v2564
        %2566 = vmatmul.f32.gmra.mxu0 %v2371
        %v2567 = vpop.f32.mrf.mxu0
        %v2568 = vadd.f32 %v2455, %v2567
        %2569 = vmatmul.f32.gmra.mxu0 %v2373
        %v2570 = vpop.f32.mrf.mxu0
        %v2571 = vadd.f32 %v2458, %v2570
        %2572 = vmatmul.f32.gmra.mxu0 %v2375
        %v2573 = vpop.f32.mrf.mxu0
        %v2574 = vadd.f32 %v2461, %v2573
        %2575 = vmatmul.f32.gmra.mxu0 %v2377
        %v2576 = vpop.f32.mrf.mxu0
        %v2577 = vadd.f32 %v2464, %v2576
        %2578 = vmatmul.f32.gmra.mxu0 %v2379
        %v2579 = vpop.f32.mrf.mxu0
        %v2580 = vadd.f32 %v2467, %v2579
        %2581 = vmatmul.f32.gmra.mxu0 %v2381
        %v2582 = vpop.f32.mrf.mxu0
        %v2583 = vadd.f32 %v2470, %v2582
        %2584 = vmatmul.f32.gmra.mxu0 %v2383
        %v2585 = vpop.f32.mrf.mxu0
        %v2586 = vadd.f32 %v2473, %v2585
        %2587 = vmatmul.f32.gmra.mxu0 %v2385
        %v2588 = vpop.f32.mrf.mxu0
        %v2589 = vadd.f32 %v2476, %v2588
        %2590 = vmatmul.f32.gmra.mxu0 %v2387
        %v2591 = vpop.f32.mrf.mxu0
        %v2592 = vadd.f32 %v2479, %v2591
        %2593 = vmatmul.f32.gmra.mxu0 %v2389
        %v2594 = vpop.f32.mrf.mxu0
        %v2595 = vadd.f32 %v2482, %v2594
        %2596 = vmatmul.f32.gmra.mxu0 %v2391
        %v2597 = vpop.f32.mrf.mxu0
        %v2598 = vadd.f32 %v2485, %v2597
        %2599 = vmatmul.f32.gmra.mxu0 %v2393
        %v2600 = vpop.f32.mrf.mxu0
        %v2601 = vadd.f32 %v2488, %v2600
        %2602 = vmatmul.f32.gmra.mxu0 %v2395
        %v2603 = vpop.f32.mrf.mxu0
        %v2604 = vadd.f32 %v2491, %v2603
        %2605 = vmatmul.f32.gmra.mxu0 %v2397
        %v2606 = vpop.f32.mrf.mxu0
        %v2607 = vadd.f32 %v2494, %v2606
        %2608 = vmatmul.f32.gmra.mxu0 %v2399
        %v2609 = vpop.f32.mrf.mxu0
        %v2610 = vadd.f32 %v2497, %v2609
        %2611 = vmatmul.f32.gmra.mxu0 %v2401
        %v2612 = vpop.f32.mrf.mxu0
        %v2613 = vadd.f32 %v2500, %v2612
        %2614 = vmatmul.f32.gmra.mxu0 %v2403
        %v2615 = vpop.f32.mrf.mxu0
        %v2616 = vadd.f32 %v2503, %v2615
        %2617 = vmatmul.f32.gmra.mxu0 %v2405
        %v2618 = vpop.f32.mrf.mxu0
        %v2619 = vadd.f32 %v2506, %v2618
        %2620 = vmatmul.f32.gmra.mxu0 %v2407
        %v2621 = vpop.f32.mrf.mxu0
        %v2622 = vadd.f32 %v2509, %v2621
        %2623 = vmatmul.f32.gmra.mxu0 %v2409
        %v2624 = vpop.f32.mrf.mxu0
        %v2625 = vadd.f32 %v2512, %v2624
        %2626 = vmatmul.f32.gmra.mxu0 %v2411
        %v2627 = vpop.f32.mrf.mxu0
        %v2628 = vadd.f32 %v2515, %v2627
        %2629 = vmatmul.f32.gmra.mxu0 %v2413
        %v2630 = vpop.f32.mrf.mxu0
        %v2631 = vadd.f32 %v2518, %v2630
        %2632 = vmatmul.f32.gmra.mxu0 %v2415
        %v2633 = vpop.f32.mrf.mxu0
        %v2634 = vadd.f32 %v2521, %v2633
        %2635 = vmatmul.f32.gmra.mxu0 %v2417
        %v2636 = vpop.f32.mrf.mxu0
        %v2637 = vadd.f32 %v2524, %v2636
        %2638 = vmatmul.f32.gmra.mxu0 %v2419
        %v2639 = vpop.f32.mrf.mxu0
        %v2640 = vadd.f32 %v2527, %v2639
        %2641 = vmatmul.f32.gmra.mxu0 %v2421
        %v2642 = vpop.f32.mrf.mxu0
        %v2643 = vadd.f32 %v2530, %v2642
        %2644 = vmatmul.f32.gmra.mxu0 %v2423
        %v2645 = vpop.f32.mrf.mxu0
        %v2646 = vadd.f32 %v2533, %v2645
        %2647 = vmatmul.f32.gmra.mxu0 %v2425
        %v2648 = vpop.f32.mrf.mxu0
        %v2649 = vadd.f32 %v2536, %v2648
        %2650 = vmatmul.f32.gmra.mxu0 %v2427
        %v2651 = vpop.f32.mrf.mxu0
        %v2652 = vadd.f32 %v2539, %v2651
        %2653 = vdwg.mxu0
        %2654 = vmatpush.msra.mxu0 %v2331
        %2655 = vmatpush.msra.mxu0 %v2329
        %2656 = vmatpush.msra.mxu0 %v2327
        %2657 = vmatpush.msra.mxu0 %v2325
        %2658 = vmatpush.msra.mxu0 %v2323
        %2659 = vmatpush.msra.mxu0 %v2321
        %2660 = vmatpush.msra.mxu0 %v2319
        %2661 = vmatpush.msra.mxu0 %v2317
        %2662 = vmatpush.msra.mxu0 %v2315
        %2663 = vmatpush.msra.mxu0 %v2313
        %2664 = vmatpush.msra.mxu0 %v2311
        %2665 = vmatpush.msra.mxu0 %v2309
        %2666 = vmatpush.msra.mxu0 %v2307
        %2667 = vmatpush.msra.mxu0 %v2305
        %2668 = vmatpush.msra.mxu0 %v2303
        %2669 = vmatpush.msra.mxu0 %v2301
        %2670 = vmatmul.f32.gmra.mxu0 %v2364
        %v2671 = vpop.f32.mrf.mxu0
        %v2672 = vadd.f32 0.0, %v2671
        %2673 = vmatmul.f32.gmra.mxu0 %v2366
        %v2674 = vpop.f32.mrf.mxu0
        %v2675 = vadd.f32 0.0, %v2674
        %2676 = vmatmul.f32.gmra.mxu0 %v2368
        %v2677 = vpop.f32.mrf.mxu0
        %v2678 = vadd.f32 0.0, %v2677
        %2679 = vmatmul.f32.gmra.mxu0 %v2370
        %v2680 = vpop.f32.mrf.mxu0
        %v2681 = vadd.f32 0.0, %v2680
        %2682 = vmatmul.f32.gmra.mxu0 %v2372
        %v2683 = vpop.f32.mrf.mxu0
        %v2684 = vadd.f32 0.0, %v2683
        %2685 = vmatmul.f32.gmra.mxu0 %v2374
        %v2686 = vpop.f32.mrf.mxu0
        %v2687 = vadd.f32 0.0, %v2686
        %2688 = vmatmul.f32.gmra.mxu0 %v2376
        %v2689 = vpop.f32.mrf.mxu0
        %v2690 = vadd.f32 0.0, %v2689
        %2691 = vmatmul.f32.gmra.mxu0 %v2378
        %v2692 = vpop.f32.mrf.mxu0
        %v2693 = vadd.f32 0.0, %v2692
        %2694 = vmatmul.f32.gmra.mxu0 %v2380
        %v2695 = vpop.f32.mrf.mxu0
        %v2696 = vadd.f32 0.0, %v2695
        %2697 = vmatmul.f32.gmra.mxu0 %v2382
        %v2698 = vpop.f32.mrf.mxu0
        %v2699 = vadd.f32 0.0, %v2698
        %2700 = vmatmul.f32.gmra.mxu0 %v2384
        %v2701 = vpop.f32.mrf.mxu0
        %v2702 = vadd.f32 0.0, %v2701
        %2703 = vmatmul.f32.gmra.mxu0 %v2386
        %v2704 = vpop.f32.mrf.mxu0
        %v2705 = vadd.f32 0.0, %v2704
        %2706 = vmatmul.f32.gmra.mxu0 %v2388
        %v2707 = vpop.f32.mrf.mxu0
        %v2708 = vadd.f32 0.0, %v2707
        %2709 = vmatmul.f32.gmra.mxu0 %v2390
        %v2710 = vpop.f32.mrf.mxu0
        %v2711 = vadd.f32 0.0, %v2710
        %2712 = vmatmul.f32.gmra.mxu0 %v2392
        %v2713 = vpop.f32.mrf.mxu0
        %v2714 = vadd.f32 0.0, %v2713
        %2715 = vmatmul.f32.gmra.mxu0 %v2394
        %v2716 = vpop.f32.mrf.mxu0
        %v2717 = vadd.f32 0.0, %v2716
        %2718 = vmatmul.f32.gmra.mxu0 %v2396
        %v2719 = vpop.f32.mrf.mxu0
        %v2720 = vadd.f32 0.0, %v2719
        %2721 = vmatmul.f32.gmra.mxu0 %v2398
        %v2722 = vpop.f32.mrf.mxu0
        %v2723 = vadd.f32 0.0, %v2722
        %2724 = vmatmul.f32.gmra.mxu0 %v2400
        %v2725 = vpop.f32.mrf.mxu0
        %v2726 = vadd.f32 0.0, %v2725
        %2727 = vmatmul.f32.gmra.mxu0 %v2402
        %v2728 = vpop.f32.mrf.mxu0
        %v2729 = vadd.f32 0.0, %v2728
        %2730 = vmatmul.f32.gmra.mxu0 %v2404
        %v2731 = vpop.f32.mrf.mxu0
        %v2732 = vadd.f32 0.0, %v2731
        %2733 = vmatmul.f32.gmra.mxu0 %v2406
        %v2734 = vpop.f32.mrf.mxu0
        %v2735 = vadd.f32 0.0, %v2734
        %2736 = vmatmul.f32.gmra.mxu0 %v2408
        %v2737 = vpop.f32.mrf.mxu0
        %v2738 = vadd.f32 0.0, %v2737
        %2739 = vmatmul.f32.gmra.mxu0 %v2410
        %v2740 = vpop.f32.mrf.mxu0
        %v2741 = vadd.f32 0.0, %v2740
        %2742 = vmatmul.f32.gmra.mxu0 %v2412
        %v2743 = vpop.f32.mrf.mxu0
        %v2744 = vadd.f32 0.0, %v2743
        %2745 = vmatmul.f32.gmra.mxu0 %v2414
        %v2746 = vpop.f32.mrf.mxu0
        %v2747 = vadd.f32 0.0, %v2746
        %2748 = vmatmul.f32.gmra.mxu0 %v2416
        %v2749 = vpop.f32.mrf.mxu0
        %v2750 = vadd.f32 0.0, %v2749
        %2751 = vmatmul.f32.gmra.mxu0 %v2418
        %v2752 = vpop.f32.mrf.mxu0
        %v2753 = vadd.f32 0.0, %v2752
        %2754 = vmatmul.f32.gmra.mxu0 %v2420
        %v2755 = vpop.f32.mrf.mxu0
        %v2756 = vadd.f32 0.0, %v2755
        %2757 = vmatmul.f32.gmra.mxu0 %v2422
        %v2758 = vpop.f32.mrf.mxu0
        %v2759 = vadd.f32 0.0, %v2758
        %2760 = vmatmul.f32.gmra.mxu0 %v2424
        %v2761 = vpop.f32.mrf.mxu0
        %v2762 = vadd.f32 0.0, %v2761
        %2763 = vmatmul.f32.gmra.mxu0 %v2426
        %v2764 = vpop.f32.mrf.mxu0
        %v2765 = vadd.f32 0.0, %v2764
        %2766 = vdwg.mxu0
        %2767 = vmatpush.msra.mxu0 %v2363
        %2768 = vmatpush.msra.mxu0 %v2361
        %2769 = vmatpush.msra.mxu0 %v2359
        %2770 = vmatpush.msra.mxu0 %v2357
        %2771 = vmatpush.msra.mxu0 %v2355
        %2772 = vmatpush.msra.mxu0 %v2353
        %2773 = vmatpush.msra.mxu0 %v2351
        %2774 = vmatpush.msra.mxu0 %v2349
        %2775 = vmatpush.msra.mxu0 %v2347
        %2776 = vmatpush.msra.mxu0 %v2345
        %2777 = vmatpush.msra.mxu0 %v2343
        %2778 = vmatpush.msra.mxu0 %v2341
        %2779 = vmatpush.msra.mxu0 %v2339
        %2780 = vmatpush.msra.mxu0 %v2337
        %2781 = vmatpush.msra.mxu0 %v2335
        %2782 = vmatpush.msra.mxu0 %v2333
        %2783 = vmatmul.f32.gmra.mxu0 %v2365
        %v2784 = vpop.f32.mrf.mxu0
        %v2785 = vadd.f32 %v2672, %v2784
        %2786 = vmatmul.f32.gmra.mxu0 %v2367
        %v2787 = vpop.f32.mrf.mxu0
        %v2788 = vadd.f32 %v2675, %v2787
        %2789 = vmatmul.f32.gmra.mxu0 %v2369
        %v2790 = vpop.f32.mrf.mxu0
        %v2791 = vadd.f32 %v2678, %v2790
        %2792 = vmatmul.f32.gmra.mxu0 %v2371
        %v2793 = vpop.f32.mrf.mxu0
        %v2794 = vadd.f32 %v2681, %v2793
        %2795 = vmatmul.f32.gmra.mxu0 %v2373
        %v2796 = vpop.f32.mrf.mxu0
        %v2797 = vadd.f32 %v2684, %v2796
        %2798 = vmatmul.f32.gmra.mxu0 %v2375
        %v2799 = vpop.f32.mrf.mxu0
        %v2800 = vadd.f32 %v2687, %v2799
        %2801 = vmatmul.f32.gmra.mxu0 %v2377
        %v2802 = vpop.f32.mrf.mxu0
        %v2803 = vadd.f32 %v2690, %v2802
        %2804 = vmatmul.f32.gmra.mxu0 %v2379
        %v2805 = vpop.f32.mrf.mxu0
        %v2806 = vadd.f32 %v2693, %v2805
        %2807 = vmatmul.f32.gmra.mxu0 %v2381
        %v2808 = vpop.f32.mrf.mxu0
        %v2809 = vadd.f32 %v2696, %v2808
        %2810 = vmatmul.f32.gmra.mxu0 %v2383
        %v2811 = vpop.f32.mrf.mxu0
        %v2812 = vadd.f32 %v2699, %v2811
        %2813 = vmatmul.f32.gmra.mxu0 %v2385
        %v2814 = vpop.f32.mrf.mxu0
        %v2815 = vadd.f32 %v2702, %v2814
        %2816 = vmatmul.f32.gmra.mxu0 %v2387
        %v2817 = vpop.f32.mrf.mxu0
        %v2818 = vadd.f32 %v2705, %v2817
        %2819 = vmatmul.f32.gmra.mxu0 %v2389
        %v2820 = vpop.f32.mrf.mxu0
        %v2821 = vadd.f32 %v2708, %v2820
        %2822 = vmatmul.f32.gmra.mxu0 %v2391
        %v2823 = vpop.f32.mrf.mxu0
        %v2824 = vadd.f32 %v2711, %v2823
        %2825 = vmatmul.f32.gmra.mxu0 %v2393
        %v2826 = vpop.f32.mrf.mxu0
        %v2827 = vadd.f32 %v2714, %v2826
        %2828 = vmatmul.f32.gmra.mxu0 %v2395
        %v2829 = vpop.f32.mrf.mxu0
        %v2830 = vadd.f32 %v2717, %v2829
        %2831 = vmatmul.f32.gmra.mxu0 %v2397
        %v2832 = vpop.f32.mrf.mxu0
        %v2833 = vadd.f32 %v2720, %v2832
        %2834 = vmatmul.f32.gmra.mxu0 %v2399
        %v2835 = vpop.f32.mrf.mxu0
        %v2836 = vadd.f32 %v2723, %v2835
        %2837 = vmatmul.f32.gmra.mxu0 %v2401
        %v2838 = vpop.f32.mrf.mxu0
        %v2839 = vadd.f32 %v2726, %v2838
        %2840 = vmatmul.f32.gmra.mxu0 %v2403
        %v2841 = vpop.f32.mrf.mxu0
        %v2842 = vadd.f32 %v2729, %v2841
        %2843 = vmatmul.f32.gmra.mxu0 %v2405
        %v2844 = vpop.f32.mrf.mxu0
        %v2845 = vadd.f32 %v2732, %v2844
        %2846 = vmatmul.f32.gmra.mxu0 %v2407
        %v2847 = vpop.f32.mrf.mxu0
        %v2848 = vadd.f32 %v2735, %v2847
        %2849 = vmatmul.f32.gmra.mxu0 %v2409
        %v2850 = vpop.f32.mrf.mxu0
        %v2851 = vadd.f32 %v2738, %v2850
        %2852 = vmatmul.f32.gmra.mxu0 %v2411
        %v2853 = vpop.f32.mrf.mxu0
        %v2854 = vadd.f32 %v2741, %v2853
        %2855 = vmatmul.f32.gmra.mxu0 %v2413
        %v2856 = vpop.f32.mrf.mxu0
        %v2857 = vadd.f32 %v2744, %v2856
        %2858 = vmatmul.f32.gmra.mxu0 %v2415
        %v2859 = vpop.f32.mrf.mxu0
        %v2860 = vadd.f32 %v2747, %v2859
        %2861 = vmatmul.f32.gmra.mxu0 %v2417
        %v2862 = vpop.f32.mrf.mxu0
        %v2863 = vadd.f32 %v2750, %v2862
        %2864 = vmatmul.f32.gmra.mxu0 %v2419
        %v2865 = vpop.f32.mrf.mxu0
        %v2866 = vadd.f32 %v2753, %v2865
        %2867 = vmatmul.f32.gmra.mxu0 %v2421
        %v2868 = vpop.f32.mrf.mxu0
        %v2869 = vadd.f32 %v2756, %v2868
        %2870 = vmatmul.f32.gmra.mxu0 %v2423
        %v2871 = vpop.f32.mrf.mxu0
        %v2872 = vadd.f32 %v2759, %v2871
        %2873 = vmatmul.f32.gmra.mxu0 %v2425
        %v2874 = vpop.f32.mrf.mxu0
        %v2875 = vadd.f32 %v2762, %v2874
        %2876 = vmatmul.f32.gmra.mxu0 %v2427
        %v2877 = vpop.f32.mrf.mxu0
        %v2878 = vadd.f32 %v2765, %v2877
        %2879 = vdwg.mxu0
        %v2880 = vperm.slane %v2559, 0
        %v2881 = vperm.slane %v2785, 0
        %v2882 = vperm.slane %v2565, 0
        %v2883 = vperm.slane %v2791, 0
        %v2884 = vperm.slane %v2571, 0
        %v2885 = vperm.slane %v2797, 0
        %v2886 = vperm.slane %v2577, 0
        %v2887 = vperm.slane %v2803, 0
        %v2888 = vperm.slane %v2583, 0
        %v2889 = vperm.slane %v2809, 0
        %v2890 = vperm.slane %v2589, 0
        %v2891 = vperm.slane %v2815, 0
        %v2892 = vperm.slane %v2595, 0
        %v2893 = vperm.slane %v2821, 0
        %v2894 = vperm.slane %v2601, 0
        %v2895 = vperm.slane %v2827, 0
        %v2896 = vmul.f32 %v2880, %v2607
        %v2897 = vmul.f32 %v2881, %v2833
        %v2898 = vmul.f32 %v2882, %v2607
        %v2899 = vmul.f32 %v2883, %v2833
        %v2900 = vmul.f32 %v2884, %v2607
        %v2901 = vmul.f32 %v2885, %v2833
        %v2902 = vmul.f32 %v2886, %v2607
        %v2903 = vmul.f32 %v2887, %v2833
        %v2904 = vmul.f32 %v2888, %v2607
        %v2905 = vmul.f32 %v2889, %v2833
        %v2906 = vmul.f32 %v2890, %v2607
        %v2907 = vmul.f32 %v2891, %v2833
        %v2908 = vmul.f32 %v2892, %v2607
        %v2909 = vmul.f32 %v2893, %v2833
        %v2910 = vmul.f32 %v2894, %v2607
        %v2911 = vmul.f32 %v2895, %v2833
        %v2912 = vperm.slane %v2559, 1
        %v2913 = vperm.slane %v2785, 1
        %v2914 = vperm.slane %v2565, 1
        %v2915 = vperm.slane %v2791, 1
        %v2916 = vperm.slane %v2571, 1
        %v2917 = vperm.slane %v2797, 1
        %v2918 = vperm.slane %v2577, 1
        %v2919 = vperm.slane %v2803, 1
        %v2920 = vperm.slane %v2583, 1
        %v2921 = vperm.slane %v2809, 1
        %v2922 = vperm.slane %v2589, 1
        %v2923 = vperm.slane %v2815, 1
        %v2924 = vperm.slane %v2595, 1
        %v2925 = vperm.slane %v2821, 1
        %v2926 = vperm.slane %v2601, 1
        %v2927 = vperm.slane %v2827, 1
        %v2928 = vmul.f32 %v2912, %v2610
        %v2929 = vmul.f32 %v2913, %v2836
        %v2930 = vmul.f32 %v2914, %v2610
        %v2931 = vmul.f32 %v2915, %v2836
        %v2932 = vmul.f32 %v2916, %v2610
        %v2933 = vmul.f32 %v2917, %v2836
        %v2934 = vmul.f32 %v2918, %v2610
        %v2935 = vmul.f32 %v2919, %v2836
        %v2936 = vmul.f32 %v2920, %v2610
        %v2937 = vmul.f32 %v2921, %v2836
        %v2938 = vmul.f32 %v2922, %v2610
        %v2939 = vmul.f32 %v2923, %v2836
        %v2940 = vmul.f32 %v2924, %v2610
        %v2941 = vmul.f32 %v2925, %v2836
        %v2942 = vmul.f32 %v2926, %v2610
        %v2943 = vmul.f32 %v2927, %v2836
        %v2944 = vadd.f32 %v2896, %v2928
        %v2945 = vadd.f32 %v2897, %v2929
        %v2946 = vadd.f32 %v2898, %v2930
        %v2947 = vadd.f32 %v2899, %v2931
        %v2948 = vadd.f32 %v2900, %v2932
        %v2949 = vadd.f32 %v2901, %v2933
        %v2950 = vadd.f32 %v2902, %v2934
        %v2951 = vadd.f32 %v2903, %v2935
        %v2952 = vadd.f32 %v2904, %v2936
        %v2953 = vadd.f32 %v2905, %v2937
        %v2954 = vadd.f32 %v2906, %v2938
        %v2955 = vadd.f32 %v2907, %v2939
        %v2956 = vadd.f32 %v2908, %v2940
        %v2957 = vadd.f32 %v2909, %v2941
        %v2958 = vadd.f32 %v2910, %v2942
        %v2959 = vadd.f32 %v2911, %v2943
        %v2960 = vperm.slane %v2559, 2
        %v2961 = vperm.slane %v2785, 2
        %v2962 = vperm.slane %v2565, 2
        %v2963 = vperm.slane %v2791, 2
        %v2964 = vperm.slane %v2571, 2
        %v2965 = vperm.slane %v2797, 2
        %v2966 = vperm.slane %v2577, 2
        %v2967 = vperm.slane %v2803, 2
        %v2968 = vperm.slane %v2583, 2
        %v2969 = vperm.slane %v2809, 2
        %v2970 = vperm.slane %v2589, 2
        %v2971 = vperm.slane %v2815, 2
        %v2972 = vperm.slane %v2595, 2
        %v2973 = vperm.slane %v2821, 2
        %v2974 = vperm.slane %v2601, 2
        %v2975 = vperm.slane %v2827, 2
        %v2976 = vmul.f32 %v2960, %v2613
        %v2977 = vmul.f32 %v2961, %v2839
        %v2978 = vmul.f32 %v2962, %v2613
        %v2979 = vmul.f32 %v2963, %v2839
        %v2980 = vmul.f32 %v2964, %v2613
        %v2981 = vmul.f32 %v2965, %v2839
        %v2982 = vmul.f32 %v2966, %v2613
        %v2983 = vmul.f32 %v2967, %v2839
        %v2984 = vmul.f32 %v2968, %v2613
        %v2985 = vmul.f32 %v2969, %v2839
        %v2986 = vmul.f32 %v2970, %v2613
        %v2987 = vmul.f32 %v2971, %v2839
        %v2988 = vmul.f32 %v2972, %v2613
        %v2989 = vmul.f32 %v2973, %v2839
        %v2990 = vmul.f32 %v2974, %v2613
        %v2991 = vmul.f32 %v2975, %v2839
        %v2992 = vadd.f32 %v2944, %v2976
        %v2993 = vadd.f32 %v2945, %v2977
        %v2994 = vadd.f32 %v2946, %v2978
        %v2995 = vadd.f32 %v2947, %v2979
        %v2996 = vadd.f32 %v2948, %v2980
        %v2997 = vadd.f32 %v2949, %v2981
        %v2998 = vadd.f32 %v2950, %v2982
        %v2999 = vadd.f32 %v2951, %v2983
        %v3000 = vadd.f32 %v2952, %v2984
        %v3001 = vadd.f32 %v2953, %v2985
        %v3002 = vadd.f32 %v2954, %v2986
        %v3003 = vadd.f32 %v2955, %v2987
        %v3004 = vadd.f32 %v2956, %v2988
        %v3005 = vadd.f32 %v2957, %v2989
        %v3006 = vadd.f32 %v2958, %v2990
        %v3007 = vadd.f32 %v2959, %v2991
        %v3008 = vperm.slane %v2559, 3
        %v3009 = vperm.slane %v2785, 3
        %v3010 = vperm.slane %v2565, 3
        %v3011 = vperm.slane %v2791, 3
        %v3012 = vperm.slane %v2571, 3
        %v3013 = vperm.slane %v2797, 3
        %v3014 = vperm.slane %v2577, 3
        %v3015 = vperm.slane %v2803, 3
        %v3016 = vperm.slane %v2583, 3
        %v3017 = vperm.slane %v2809, 3
        %v3018 = vperm.slane %v2589, 3
        %v3019 = vperm.slane %v2815, 3
        %v3020 = vperm.slane %v2595, 3
        %v3021 = vperm.slane %v2821, 3
        %v3022 = vperm.slane %v2601, 3
        %v3023 = vperm.slane %v2827, 3
        %v3024 = vmul.f32 %v3008, %v2616
        %v3025 = vmul.f32 %v3009, %v2842
        %v3026 = vmul.f32 %v3010, %v2616
        %v3027 = vmul.f32 %v3011, %v2842
        %v3028 = vmul.f32 %v3012, %v2616
        %v3029 = vmul.f32 %v3013, %v2842
        %v3030 = vmul.f32 %v3014, %v2616
        %v3031 = vmul.f32 %v3015, %v2842
        %v3032 = vmul.f32 %v3016, %v2616
        %v3033 = vmul.f32 %v3017, %v2842
        %v3034 = vmul.f32 %v3018, %v2616
        %v3035 = vmul.f32 %v3019, %v2842
        %v3036 = vmul.f32 %v3020, %v2616
        %v3037 = vmul.f32 %v3021, %v2842
        %v3038 = vmul.f32 %v3022, %v2616
        %v3039 = vmul.f32 %v3023, %v2842
        %v3040 = vadd.f32 %v2992, %v3024
        %v3041 = vadd.f32 %v2993, %v3025
        %v3042 = vadd.f32 %v2994, %v3026
        %v3043 = vadd.f32 %v2995, %v3027
        %v3044 = vadd.f32 %v2996, %v3028
        %v3045 = vadd.f32 %v2997, %v3029
        %v3046 = vadd.f32 %v2998, %v3030
        %v3047 = vadd.f32 %v2999, %v3031
        %v3048 = vadd.f32 %v3000, %v3032
        %v3049 = vadd.f32 %v3001, %v3033
        %v3050 = vadd.f32 %v3002, %v3034
        %v3051 = vadd.f32 %v3003, %v3035
        %v3052 = vadd.f32 %v3004, %v3036
        %v3053 = vadd.f32 %v3005, %v3037
        %v3054 = vadd.f32 %v3006, %v3038
        %v3055 = vadd.f32 %v3007, %v3039
        %v3056 = vmul.f32 %v3040, 0.5
        %v3057 = vmul.f32 %v3041, 0.5
        %v3058 = vmul.f32 %v3042, 0.5
        %v3059 = vmul.f32 %v3043, 0.5
        %v3060 = vmul.f32 %v3044, 0.5
        %v3061 = vmul.f32 %v3045, 0.5
        %v3062 = vmul.f32 %v3046, 0.5
        %v3063 = vmul.f32 %v3047, 0.5
        %v3064 = vmul.f32 %v3048, 0.5
        %v3065 = vmul.f32 %v3049, 0.5
        %v3066 = vmul.f32 %v3050, 0.5
        %v3067 = vmul.f32 %v3051, 0.5
        %v3068 = vmul.f32 %v3052, 0.5
        %v3069 = vmul.f32 %v3053, 0.5
        %v3070 = vmul.f32 %v3054, 0.5
        %v3071 = vmul.f32 %v3055, 0.5
        %v3072 = vrot.slane %v3056, 4
        %v3073 = vmax.f32 %v3056, %v3072
        %v3074 = vrot.slane %v3073, 2
        %v3075 = vmax.f32 %v3073, %v3074
        %v3076 = vrot.slane %v3075, 1
        %v3077 = vmax.f32 %v3075, %v3076
        %v3078 = vrot.slane %v3057, 4
        %v3079 = vmax.f32 %v3057, %v3078
        %v3080 = vrot.slane %v3079, 2
        %v3081 = vmax.f32 %v3079, %v3080
        %v3082 = vrot.slane %v3081, 1
        %v3083 = vmax.f32 %v3081, %v3082
        %v3084 = vrot.slane %v3058, 4
        %v3085 = vmax.f32 %v3058, %v3084
        %v3086 = vrot.slane %v3085, 2
        %v3087 = vmax.f32 %v3085, %v3086
        %v3088 = vrot.slane %v3087, 1
        %v3089 = vmax.f32 %v3087, %v3088
        %v3090 = vrot.slane %v3059, 4
        %v3091 = vmax.f32 %v3059, %v3090
        %v3092 = vrot.slane %v3091, 2
        %v3093 = vmax.f32 %v3091, %v3092
        %v3094 = vrot.slane %v3093, 1
        %v3095 = vmax.f32 %v3093, %v3094
        %v3096 = vrot.slane %v3060, 4
        %v3097 = vmax.f32 %v3060, %v3096
        %v3098 = vrot.slane %v3097, 2
        %v3099 = vmax.f32 %v3097, %v3098
        %v3100 = vrot.slane %v3099, 1
        %v3101 = vmax.f32 %v3099, %v3100
        %v3102 = vrot.slane %v3061, 4
        %v3103 = vmax.f32 %v3061, %v3102
        %v3104 = vrot.slane %v3103, 2
        %v3105 = vmax.f32 %v3103, %v3104
        %v3106 = vrot.slane %v3105, 1
        %v3107 = vmax.f32 %v3105, %v3106
        %v3108 = vrot.slane %v3062, 4
        %v3109 = vmax.f32 %v3062, %v3108
        %v3110 = vrot.slane %v3109, 2
        %v3111 = vmax.f32 %v3109, %v3110
        %v3112 = vrot.slane %v3111, 1
        %v3113 = vmax.f32 %v3111, %v3112
        %v3114 = vrot.slane %v3063, 4
        %v3115 = vmax.f32 %v3063, %v3114
        %v3116 = vrot.slane %v3115, 2
        %v3117 = vmax.f32 %v3115, %v3116
        %v3118 = vrot.slane %v3117, 1
        %v3119 = vmax.f32 %v3117, %v3118
        %v3120 = vrot.slane %v3064, 4
        %v3121 = vmax.f32 %v3064, %v3120
        %v3122 = vrot.slane %v3121, 2
        %v3123 = vmax.f32 %v3121, %v3122
        %v3124 = vrot.slane %v3123, 1
        %v3125 = vmax.f32 %v3123, %v3124
        %v3126 = vrot.slane %v3065, 4
        %v3127 = vmax.f32 %v3065, %v3126
        %v3128 = vrot.slane %v3127, 2
        %v3129 = vmax.f32 %v3127, %v3128
        %v3130 = vrot.slane %v3129, 1
        %v3131 = vmax.f32 %v3129, %v3130
        %v3132 = vrot.slane %v3066, 4
        %v3133 = vmax.f32 %v3066, %v3132
        %v3134 = vrot.slane %v3133, 2
        %v3135 = vmax.f32 %v3133, %v3134
        %v3136 = vrot.slane %v3135, 1
        %v3137 = vmax.f32 %v3135, %v3136
        %v3138 = vrot.slane %v3067, 4
        %v3139 = vmax.f32 %v3067, %v3138
        %v3140 = vrot.slane %v3139, 2
        %v3141 = vmax.f32 %v3139, %v3140
        %v3142 = vrot.slane %v3141, 1
        %v3143 = vmax.f32 %v3141, %v3142
        %v3144 = vrot.slane %v3068, 4
        %v3145 = vmax.f32 %v3068, %v3144
        %v3146 = vrot.slane %v3145, 2
        %v3147 = vmax.f32 %v3145, %v3146
        %v3148 = vrot.slane %v3147, 1
        %v3149 = vmax.f32 %v3147, %v3148
        %v3150 = vrot.slane %v3069, 4
        %v3151 = vmax.f32 %v3069, %v3150
        %v3152 = vrot.slane %v3151, 2
        %v3153 = vmax.f32 %v3151, %v3152
        %v3154 = vrot.slane %v3153, 1
        %v3155 = vmax.f32 %v3153, %v3154
        %v3156 = vrot.slane %v3070, 4
        %v3157 = vmax.f32 %v3070, %v3156
        %v3158 = vrot.slane %v3157, 2
        %v3159 = vmax.f32 %v3157, %v3158
        %v3160 = vrot.slane %v3159, 1
        %v3161 = vmax.f32 %v3159, %v3160
        %v3162 = vrot.slane %v3071, 4
        %v3163 = vmax.f32 %v3071, %v3162
        %v3164 = vrot.slane %v3163, 2
        %v3165 = vmax.f32 %v3163, %v3164
        %v3166 = vrot.slane %v3165, 1
        %v3167 = vmax.f32 %v3165, %v3166
        %v3168 = vsub.f32 %v3056, %v3077
        %v3169 = vsub.f32 %v3057, %v3083
        %v3170 = vsub.f32 %v3058, %v3089
        %v3171 = vsub.f32 %v3059, %v3095
        %v3172 = vsub.f32 %v3060, %v3101
        %v3173 = vsub.f32 %v3061, %v3107
        %v3174 = vsub.f32 %v3062, %v3113
        %v3175 = vsub.f32 %v3063, %v3119
        %v3176 = vsub.f32 %v3064, %v3125
        %v3177 = vsub.f32 %v3065, %v3131
        %v3178 = vsub.f32 %v3066, %v3137
        %v3179 = vsub.f32 %v3067, %v3143
        %v3180 = vsub.f32 %v3068, %v3149
        %v3181 = vsub.f32 %v3069, %v3155
        %v3182 = vsub.f32 %v3070, %v3161
        %v3183 = vsub.f32 %v3071, %v3167
        %v3184 = vmul.f32 %v3168, 1.442695
        %v3185 = vpow.pop %v3184
        %v3186 = vmul.f32 %v3169, 1.442695
        %v3187 = vpow.pop %v3186
        %v3188 = vmul.f32 %v3170, 1.442695
        %v3189 = vpow.pop %v3188
        %v3190 = vmul.f32 %v3171, 1.442695
        %v3191 = vpow.pop %v3190
        %v3192 = vmul.f32 %v3172, 1.442695
        %v3193 = vpow.pop %v3192
        %v3194 = vmul.f32 %v3173, 1.442695
        %v3195 = vpow.pop %v3194
        %v3196 = vmul.f32 %v3174, 1.442695
        %v3197 = vpow.pop %v3196
        %v3198 = vmul.f32 %v3175, 1.442695
        %v3199 = vpow.pop %v3198
        %v3200 = vmul.f32 %v3176, 1.442695
        %v3201 = vpow.pop %v3200
        %v3202 = vmul.f32 %v3177, 1.442695
        %v3203 = vpow.pop %v3202
        %v3204 = vmul.f32 %v3178, 1.442695
        %v3205 = vpow.pop %v3204
        %v3206 = vmul.f32 %v3179, 1.442695
        %v3207 = vpow.pop %v3206
        %v3208 = vmul.f32 %v3180, 1.442695
        %v3209 = vpow.pop %v3208
        %v3210 = vmul.f32 %v3181, 1.442695
        %v3211 = vpow.pop %v3210
        %v3212 = vmul.f32 %v3182, 1.442695
        %v3213 = vpow.pop %v3212
        %v3214 = vmul.f32 %v3183, 1.442695
        %v3215 = vpow.pop %v3214
        %v3216 = vrot.slane %v3185, 4
        %v3217 = vadd.f32 %v3185, %v3216
        %v3218 = vrot.slane %v3217, 2
        %v3219 = vadd.f32 %v3217, %v3218
        %v3220 = vrot.slane %v3219, 1
        %v3221 = vadd.f32 %v3219, %v3220
        %v3222 = vrot.slane %v3187, 4
        %v3223 = vadd.f32 %v3187, %v3222
        %v3224 = vrot.slane %v3223, 2
        %v3225 = vadd.f32 %v3223, %v3224
        %v3226 = vrot.slane %v3225, 1
        %v3227 = vadd.f32 %v3225, %v3226
        %v3228 = vrot.slane %v3189, 4
        %v3229 = vadd.f32 %v3189, %v3228
        %v3230 = vrot.slane %v3229, 2
        %v3231 = vadd.f32 %v3229, %v3230
        %v3232 = vrot.slane %v3231, 1
        %v3233 = vadd.f32 %v3231, %v3232
        %v3234 = vrot.slane %v3191, 4
        %v3235 = vadd.f32 %v3191, %v3234
        %v3236 = vrot.slane %v3235, 2
        %v3237 = vadd.f32 %v3235, %v3236
        %v3238 = vrot.slane %v3237, 1
        %v3239 = vadd.f32 %v3237, %v3238
        %v3240 = vrot.slane %v3193, 4
        %v3241 = vadd.f32 %v3193, %v3240
        %v3242 = vrot.slane %v3241, 2
        %v3243 = vadd.f32 %v3241, %v3242
        %v3244 = vrot.slane %v3243, 1
        %v3245 = vadd.f32 %v3243, %v3244
        %v3246 = vrot.slane %v3195, 4
        %v3247 = vadd.f32 %v3195, %v3246
        %v3248 = vrot.slane %v3247, 2
        %v3249 = vadd.f32 %v3247, %v3248
        %v3250 = vrot.slane %v3249, 1
        %v3251 = vadd.f32 %v3249, %v3250
        %v3252 = vrot.slane %v3197, 4
        %v3253 = vadd.f32 %v3197, %v3252
        %v3254 = vrot.slane %v3253, 2
        %v3255 = vadd.f32 %v3253, %v3254
        %v3256 = vrot.slane %v3255, 1
        %v3257 = vadd.f32 %v3255, %v3256
        %v3258 = vrot.slane %v3199, 4
        %v3259 = vadd.f32 %v3199, %v3258
        %v3260 = vrot.slane %v3259, 2
        %v3261 = vadd.f32 %v3259, %v3260
        %v3262 = vrot.slane %v3261, 1
        %v3263 = vadd.f32 %v3261, %v3262
        %v3264 = vrot.slane %v3201, 4
        %v3265 = vadd.f32 %v3201, %v3264
        %v3266 = vrot.slane %v3265, 2
        %v3267 = vadd.f32 %v3265, %v3266
        %v3268 = vrot.slane %v3267, 1
        %v3269 = vadd.f32 %v3267, %v3268
        %v3270 = vrot.slane %v3203, 4
        %v3271 = vadd.f32 %v3203, %v3270
        %v3272 = vrot.slane %v3271, 2
        %v3273 = vadd.f32 %v3271, %v3272
        %v3274 = vrot.slane %v3273, 1
        %v3275 = vadd.f32 %v3273, %v3274
        %v3276 = vrot.slane %v3205, 4
        %v3277 = vadd.f32 %v3205, %v3276
        %v3278 = vrot.slane %v3277, 2
        %v3279 = vadd.f32 %v3277, %v3278
        %v3280 = vrot.slane %v3279, 1
        %v3281 = vadd.f32 %v3279, %v3280
        %v3282 = vrot.slane %v3207, 4
        %v3283 = vadd.f32 %v3207, %v3282
        %v3284 = vrot.slane %v3283, 2
        %v3285 = vadd.f32 %v3283, %v3284
        %v3286 = vrot.slane %v3285, 1
        %v3287 = vadd.f32 %v3285, %v3286
        %v3288 = vrot.slane %v3209, 4
        %v3289 = vadd.f32 %v3209, %v3288
        %v3290 = vrot.slane %v3289, 2
        %v3291 = vadd.f32 %v3289, %v3290
        %v3292 = vrot.slane %v3291, 1
        %v3293 = vadd.f32 %v3291, %v3292
        %v3294 = vrot.slane %v3211, 4
        %v3295 = vadd.f32 %v3211, %v3294
        %v3296 = vrot.slane %v3295, 2
        %v3297 = vadd.f32 %v3295, %v3296
        %v3298 = vrot.slane %v3297, 1
        %v3299 = vadd.f32 %v3297, %v3298
        %v3300 = vrot.slane %v3213, 4
        %v3301 = vadd.f32 %v3213, %v3300
        %v3302 = vrot.slane %v3301, 2
        %v3303 = vadd.f32 %v3301, %v3302
        %v3304 = vrot.slane %v3303, 1
        %v3305 = vadd.f32 %v3303, %v3304
        %v3306 = vrot.slane %v3215, 4
        %v3307 = vadd.f32 %v3215, %v3306
        %v3308 = vrot.slane %v3307, 2
        %v3309 = vadd.f32 %v3307, %v3308
        %v3310 = vrot.slane %v3309, 1
        %v3311 = vadd.f32 %v3309, %v3310
        %v3312 = vrcp.pop %v3221
        %v3313 = vrcp.pop %v3227
        %v3314 = vrcp.pop %v3233
        %v3315 = vrcp.pop %v3239
        %v3316 = vrcp.pop %v3245
        %v3317 = vrcp.pop %v3251
        %v3318 = vrcp.pop %v3257
        %v3319 = vrcp.pop %v3263
        %v3320 = vrcp.pop %v3269
        %v3321 = vrcp.pop %v3275
        %v3322 = vrcp.pop %v3281
        %v3323 = vrcp.pop %v3287
        %v3324 = vrcp.pop %v3293
        %v3325 = vrcp.pop %v3299
        %v3326 = vrcp.pop %v3305
        %v3327 = vrcp.pop %v3311
        %v3328 = vmul.f32 %v3221, %v3312
        %v3329 = vmul.f32 %v3227, %v3313
        %v3330 = vmul.f32 %v3233, %v3314
        %v3331 = vmul.f32 %v3239, %v3315
        %v3332 = vmul.f32 %v3245, %v3316
        %v3333 = vmul.f32 %v3251, %v3317
        %v3334 = vmul.f32 %v3257, %v3318
        %v3335 = vmul.f32 %v3263, %v3319
        %v3336 = vmul.f32 %v3269, %v3320
        %v3337 = vmul.f32 %v3275, %v3321
        %v3338 = vmul.f32 %v3281, %v3322
        %v3339 = vmul.f32 %v3287, %v3323
        %v3340 = vmul.f32 %v3293, %v3324
        %v3341 = vmul.f32 %v3299, %v3325
        %v3342 = vmul.f32 %v3305, %v3326
        %v3343 = vmul.f32 %v3311, %v3327
        %v3344 = vsub.f32 2.0, %v3328
        %v3345 = vsub.f32 2.0, %v3329
        %v3346 = vsub.f32 2.0, %v3330
        %v3347 = vsub.f32 2.0, %v3331
        %v3348 = vsub.f32 2.0, %v3332
        %v3349 = vsub.f32 2.0, %v3333
        %v3350 = vsub.f32 2.0, %v3334
        %v3351 = vsub.f32 2.0, %v3335
        %v3352 = vsub.f32 2.0, %v3336
        %v3353 = vsub.f32 2.0, %v3337
        %v3354 = vsub.f32 2.0, %v3338
        %v3355 = vsub.f32 2.0, %v3339
        %v3356 = vsub.f32 2.0, %v3340
        %v3357 = vsub.f32 2.0, %v3341
        %v3358 = vsub.f32 2.0, %v3342
        %v3359 = vsub.f32 2.0, %v3343
        %v3360 = vmul.f32 %v3312, %v3344
        %v3361 = vmul.f32 %v3313, %v3345
        %v3362 = vmul.f32 %v3314, %v3346
        %v3363 = vmul.f32 %v3315, %v3347
        %v3364 = vmul.f32 %v3316, %v3348
        %v3365 = vmul.f32 %v3317, %v3349
        %v3366 = vmul.f32 %v3318, %v3350
        %v3367 = vmul.f32 %v3319, %v3351
        %v3368 = vmul.f32 %v3320, %v3352
        %v3369 = vmul.f32 %v3321, %v3353
        %v3370 = vmul.f32 %v3322, %v3354
        %v3371 = vmul.f32 %v3323, %v3355
        %v3372 = vmul.f32 %v3324, %v3356
        %v3373 = vmul.f32 %v3325, %v3357
        %v3374 = vmul.f32 %v3326, %v3358
        %v3375 = vmul.f32 %v3327, %v3359
        %v3376 = vmul.f32 %v3185, %v3360
        %v3377 = vmul.f32 %v3187, %v3361
        %v3378 = vmul.f32 %v3189, %v3362
        %v3379 = vmul.f32 %v3191, %v3363
        %v3380 = vmul.f32 %v3193, %v3364
        %v3381 = vmul.f32 %v3195, %v3365
        %v3382 = vmul.f32 %v3197, %v3366
        %v3383 = vmul.f32 %v3199, %v3367
        %v3384 = vmul.f32 %v3201, %v3368
        %v3385 = vmul.f32 %v3203, %v3369
        %v3386 = vmul.f32 %v3205, %v3370
        %v3387 = vmul.f32 %v3207, %v3371
        %v3388 = vmul.f32 %v3209, %v3372
        %v3389 = vmul.f32 %v3211, %v3373
        %v3390 = vmul.f32 %v3213, %v3374
        %v3391 = vmul.f32 %v3215, %v3375
        %v3392 = vperm.slane %v3376, 0
        %v3393 = vperm.slane %v3377, 0
        %v3394 = vperm.slane %v3378, 0
        %v3395 = vperm.slane %v3379, 0
        %v3396 = vperm.slane %v3380, 0
        %v3397 = vperm.slane %v3381, 0
        %v3398 = vperm.slane %v3382, 0
        %v3399 = vperm.slane %v3383, 0
        %v3400 = vperm.slane %v3384, 0
        %v3401 = vperm.slane %v3385, 0
        %v3402 = vperm.slane %v3386, 0
        %v3403 = vperm.slane %v3387, 0
        %v3404 = vperm.slane %v3388, 0
        %v3405 = vperm.slane %v3389, 0
        %v3406 = vperm.slane %v3390, 0
        %v3407 = vperm.slane %v3391, 0
        %v3408 = vmul.f32 %v3392, %v2300
        %v3409 = vmul.f32 %v3393, %v2301
        %v3410 = vmul.f32 %v3394, %v2300
        %v3411 = vmul.f32 %v3395, %v2301
        %v3412 = vmul.f32 %v3396, %v2300
        %v3413 = vmul.f32 %v3397, %v2301
        %v3414 = vmul.f32 %v3398, %v2300
        %v3415 = vmul.f32 %v3399, %v2301
        %v3416 = vmul.f32 %v3400, %v2300
        %v3417 = vmul.f32 %v3401, %v2301
        %v3418 = vmul.f32 %v3402, %v2300
        %v3419 = vmul.f32 %v3403, %v2301
        %v3420 = vmul.f32 %v3404, %v2300
        %v3421 = vmul.f32 %v3405, %v2301
        %v3422 = vmul.f32 %v3406, %v2300
        %v3423 = vmul.f32 %v3407, %v2301
        %v3424 = vperm.slane %v3376, 1
        %v3425 = vperm.slane %v3377, 1
        %v3426 = vperm.slane %v3378, 1
        %v3427 = vperm.slane %v3379, 1
        %v3428 = vperm.slane %v3380, 1
        %v3429 = vperm.slane %v3381, 1
        %v3430 = vperm.slane %v3382, 1
        %v3431 = vperm.slane %v3383, 1
        %v3432 = vperm.slane %v3384, 1
        %v3433 = vperm.slane %v3385, 1
        %v3434 = vperm.slane %v3386, 1
        %v3435 = vperm.slane %v3387, 1
        %v3436 = vperm.slane %v3388, 1
        %v3437 = vperm.slane %v3389, 1
        %v3438 = vperm.slane %v3390, 1
        %v3439 = vperm.slane %v3391, 1
        %v3440 = vmul.f32 %v3424, %v2308
        %v3441 = vmul.f32 %v3425, %v2309
        %v3442 = vmul.f32 %v3426, %v2308
        %v3443 = vmul.f32 %v3427, %v2309
        %v3444 = vmul.f32 %v3428, %v2308
        %v3445 = vmul.f32 %v3429, %v2309
        %v3446 = vmul.f32 %v3430, %v2308
        %v3447 = vmul.f32 %v3431, %v2309
        %v3448 = vmul.f32 %v3432, %v2308
        %v3449 = vmul.f32 %v3433, %v2309
        %v3450 = vmul.f32 %v3434, %v2308
        %v3451 = vmul.f32 %v3435, %v2309
        %v3452 = vmul.f32 %v3436, %v2308
        %v3453 = vmul.f32 %v3437, %v2309
        %v3454 = vmul.f32 %v3438, %v2308
        %v3455 = vmul.f32 %v3439, %v2309
        %v3456 = vadd.f32 %v3408, %v3440
        %v3457 = vadd.f32 %v3409, %v3441
        %v3458 = vadd.f32 %v3410, %v3442
        %v3459 = vadd.f32 %v3411, %v3443
        %v3460 = vadd.f32 %v3412, %v3444
        %v3461 = vadd.f32 %v3413, %v3445
        %v3462 = vadd.f32 %v3414, %v3446
        %v3463 = vadd.f32 %v3415, %v3447
        %v3464 = vadd.f32 %v3416, %v3448
        %v3465 = vadd.f32 %v3417, %v3449
        %v3466 = vadd.f32 %v3418, %v3450
        %v3467 = vadd.f32 %v3419, %v3451
        %v3468 = vadd.f32 %v3420, %v3452
        %v3469 = vadd.f32 %v3421, %v3453
        %v3470 = vadd.f32 %v3422, %v3454
        %v3471 = vadd.f32 %v3423, %v3455
        %v3472 = vperm.slane %v3376, 2
        %v3473 = vperm.slane %v3377, 2
        %v3474 = vperm.slane %v3378, 2
        %v3475 = vperm.slane %v3379, 2
        %v3476 = vperm.slane %v3380, 2
        %v3477 = vperm.slane %v3381, 2
        %v3478 = vperm.slane %v3382, 2
        %v3479 = vperm.slane %v3383, 2
        %v3480 = vperm.slane %v3384, 2
        %v3481 = vperm.slane %v3385, 2
        %v3482 = vperm.slane %v3386, 2
        %v3483 = vperm.slane %v3387, 2
        %v3484 = vperm.slane %v3388, 2
        %v3485 = vperm.slane %v3389, 2
        %v3486 = vperm.slane %v3390, 2
        %v3487 = vperm.slane %v3391, 2
        %v3488 = vmul.f32 %v3472, %v2316
        %v3489 = vmul.f32 %v3473, %v2317
        %v3490 = vmul.f32 %v3474, %v2316
        %v3491 = vmul.f32 %v3475, %v2317
        %v3492 = vmul.f32 %v3476, %v2316
        %v3493 = vmul.f32 %v3477, %v2317
        %v3494 = vmul.f32 %v3478, %v2316
        %v3495 = vmul.f32 %v3479, %v2317
        %v3496 = vmul.f32 %v3480, %v2316
        %v3497 = vmul.f32 %v3481, %v2317
        %v3498 = vmul.f32 %v3482, %v2316
        %v3499 = vmul.f32 %v3483, %v2317
        %v3500 = vmul.f32 %v3484, %v2316
        %v3501 = vmul.f32 %v3485, %v2317
        %v3502 = vmul.f32 %v3486, %v2316
        %v3503 = vmul.f32 %v3487, %v2317
        %v3504 = vadd.f32 %v3456, %v3488
        %v3505 = vadd.f32 %v3457, %v3489
        %v3506 = vadd.f32 %v3458, %v3490
        %v3507 = vadd.f32 %v3459, %v3491
        %v3508 = vadd.f32 %v3460, %v3492
        %v3509 = vadd.f32 %v3461, %v3493
        %v3510 = vadd.f32 %v3462, %v3494
        %v3511 = vadd.f32 %v3463, %v3495
        %v3512 = vadd.f32 %v3464, %v3496
        %v3513 = vadd.f32 %v3465, %v3497
        %v3514 = vadd.f32 %v3466, %v3498
        %v3515 = vadd.f32 %v3467, %v3499
        %v3516 = vadd.f32 %v3468, %v3500
        %v3517 = vadd.f32 %v3469, %v3501
        %v3518 = vadd.f32 %v3470, %v3502
        %v3519 = vadd.f32 %v3471, %v3503
        %v3520 = vperm.slane %v3376, 3
        %v3521 = vperm.slane %v3377, 3
        %v3522 = vperm.slane %v3378, 3
        %v3523 = vperm.slane %v3379, 3
        %v3524 = vperm.slane %v3380, 3
        %v3525 = vperm.slane %v3381, 3
        %v3526 = vperm.slane %v3382, 3
        %v3527 = vperm.slane %v3383, 3
        %v3528 = vperm.slane %v3384, 3
        %v3529 = vperm.slane %v3385, 3
        %v3530 = vperm.slane %v3386, 3
        %v3531 = vperm.slane %v3387, 3
        %v3532 = vperm.slane %v3388, 3
        %v3533 = vperm.slane %v3389, 3
        %v3534 = vperm.slane %v3390, 3
        %v3535 = vperm.slane %v3391, 3
        %v3536 = vmul.f32 %v3520, %v2324
        %v3537 = vmul.f32 %v3521, %v2325
        %v3538 = vmul.f32 %v3522, %v2324
        %v3539 = vmul.f32 %v3523, %v2325
        %v3540 = vmul.f32 %v3524, %v2324
        %v3541 = vmul.f32 %v3525, %v2325
        %v3542 = vmul.f32 %v3526, %v2324
        %v3543 = vmul.f32 %v3527, %v2325
        %v3544 = vmul.f32 %v3528, %v2324
        %v3545 = vmul.f32 %v3529, %v2325
        %v3546 = vmul.f32 %v3530, %v2324
        %v3547 = vmul.f32 %v3531, %v2325
        %v3548 = vmul.f32 %v3532, %v2324
        %v3549 = vmul.f32 %v3533, %v2325
        %v3550 = vmul.f32 %v3534, %v2324
        %v3551 = vmul.f32 %v3535, %v2325
        %v3552 = vadd.f32 %v3504, %v3536
        %v3553 = vadd.f32 %v3505, %v3537
        %v3554 = vadd.f32 %v3506, %v3538
        %v3555 = vadd.f32 %v3507, %v3539
        %v3556 = vadd.f32 %v3508, %v3540
        %v3557 = vadd.f32 %v3509, %v3541
        %v3558 = vadd.f32 %v3510, %v3542
        %v3559 = vadd.f32 %v3511, %v3543
        %v3560 = vadd.f32 %v3512, %v3544
        %v3561 = vadd.f32 %v3513, %v3545
        %v3562 = vadd.f32 %v3514, %v3546
        %v3563 = vadd.f32 %v3515, %v3547
        %v3564 = vadd.f32 %v3516, %v3548
        %v3565 = vadd.f32 %v3517, %v3549
        %v3566 = vadd.f32 %v3518, %v3550
        %v3567 = vadd.f32 %v3519, %v3551
        %v3568 = vperm.slane %v3376, 4
        %v3569 = vperm.slane %v3377, 4
        %v3570 = vperm.slane %v3378, 4
        %v3571 = vperm.slane %v3379, 4
        %v3572 = vperm.slane %v3380, 4
        %v3573 = vperm.slane %v3381, 4
        %v3574 = vperm.slane %v3382, 4
        %v3575 = vperm.slane %v3383, 4
        %v3576 = vperm.slane %v3384, 4
        %v3577 = vperm.slane %v3385, 4
        %v3578 = vperm.slane %v3386, 4
        %v3579 = vperm.slane %v3387, 4
        %v3580 = vperm.slane %v3388, 4
        %v3581 = vperm.slane %v3389, 4
        %v3582 = vperm.slane %v3390, 4
        %v3583 = vperm.slane %v3391, 4
        %v3584 = vmul.f32 %v3568, %v2332
        %v3585 = vmul.f32 %v3569, %v2333
        %v3586 = vmul.f32 %v3570, %v2332
        %v3587 = vmul.f32 %v3571, %v2333
        %v3588 = vmul.f32 %v3572, %v2332
        %v3589 = vmul.f32 %v3573, %v2333
        %v3590 = vmul.f32 %v3574, %v2332
        %v3591 = vmul.f32 %v3575, %v2333
        %v3592 = vmul.f32 %v3576, %v2332
        %v3593 = vmul.f32 %v3577, %v2333
        %v3594 = vmul.f32 %v3578, %v2332
        %v3595 = vmul.f32 %v3579, %v2333
        %v3596 = vmul.f32 %v3580, %v2332
        %v3597 = vmul.f32 %v3581, %v2333
        %v3598 = vmul.f32 %v3582, %v2332
        %v3599 = vmul.f32 %v3583, %v2333
        %v3600 = vadd.f32 %v3552, %v3584
        %v3601 = vadd.f32 %v3553, %v3585
        %v3602 = vadd.f32 %v3554, %v3586
        %v3603 = vadd.f32 %v3555, %v3587
        %v3604 = vadd.f32 %v3556, %v3588
        %v3605 = vadd.f32 %v3557, %v3589
        %v3606 = vadd.f32 %v3558, %v3590
        %v3607 = vadd.f32 %v3559, %v3591
        %v3608 = vadd.f32 %v3560, %v3592
        %v3609 = vadd.f32 %v3561, %v3593
        %v3610 = vadd.f32 %v3562, %v3594
        %v3611 = vadd.f32 %v3563, %v3595
        %v3612 = vadd.f32 %v3564, %v3596
        %v3613 = vadd.f32 %v3565, %v3597
        %v3614 = vadd.f32 %v3566, %v3598
        %v3615 = vadd.f32 %v3567, %v3599
        %v3616 = vperm.slane %v3376, 5
        %v3617 = vperm.slane %v3377, 5
        %v3618 = vperm.slane %v3378, 5
        %v3619 = vperm.slane %v3379, 5
        %v3620 = vperm.slane %v3380, 5
        %v3621 = vperm.slane %v3381, 5
        %v3622 = vperm.slane %v3382, 5
        %v3623 = vperm.slane %v3383, 5
        %v3624 = vperm.slane %v3384, 5
        %v3625 = vperm.slane %v3385, 5
        %v3626 = vperm.slane %v3386, 5
        %v3627 = vperm.slane %v3387, 5
        %v3628 = vperm.slane %v3388, 5
        %v3629 = vperm.slane %v3389, 5
        %v3630 = vperm.slane %v3390, 5
        %v3631 = vperm.slane %v3391, 5
        %v3632 = vmul.f32 %v3616, %v2340
        %v3633 = vmul.f32 %v3617, %v2341
        %v3634 = vmul.f32 %v3618, %v2340
        %v3635 = vmul.f32 %v3619, %v2341
        %v3636 = vmul.f32 %v3620, %v2340
        %v3637 = vmul.f32 %v3621, %v2341
        %v3638 = vmul.f32 %v3622, %v2340
        %v3639 = vmul.f32 %v3623, %v2341
        %v3640 = vmul.f32 %v3624, %v2340
        %v3641 = vmul.f32 %v3625, %v2341
        %v3642 = vmul.f32 %v3626, %v2340
        %v3643 = vmul.f32 %v3627, %v2341
        %v3644 = vmul.f32 %v3628, %v2340
        %v3645 = vmul.f32 %v3629, %v2341
        %v3646 = vmul.f32 %v3630, %v2340
        %v3647 = vmul.f32 %v3631, %v2341
        %v3648 = vadd.f32 %v3600, %v3632
        %v3649 = vadd.f32 %v3601, %v3633
        %v3650 = vadd.f32 %v3602, %v3634
        %v3651 = vadd.f32 %v3603, %v3635
        %v3652 = vadd.f32 %v3604, %v3636
        %v3653 = vadd.f32 %v3605, %v3637
        %v3654 = vadd.f32 %v3606, %v3638
        %v3655 = vadd.f32 %v3607, %v3639
        %v3656 = vadd.f32 %v3608, %v3640
        %v3657 = vadd.f32 %v3609, %v3641
        %v3658 = vadd.f32 %v3610, %v3642
        %v3659 = vadd.f32 %v3611, %v3643
        %v3660 = vadd.f32 %v3612, %v3644
        %v3661 = vadd.f32 %v3613, %v3645
        %v3662 = vadd.f32 %v3614, %v3646
        %v3663 = vadd.f32 %v3615, %v3647
        %v3664 = vperm.slane %v3376, 6
        %v3665 = vperm.slane %v3377, 6
        %v3666 = vperm.slane %v3378, 6
        %v3667 = vperm.slane %v3379, 6
        %v3668 = vperm.slane %v3380, 6
        %v3669 = vperm.slane %v3381, 6
        %v3670 = vperm.slane %v3382, 6
        %v3671 = vperm.slane %v3383, 6
        %v3672 = vperm.slane %v3384, 6
        %v3673 = vperm.slane %v3385, 6
        %v3674 = vperm.slane %v3386, 6
        %v3675 = vperm.slane %v3387, 6
        %v3676 = vperm.slane %v3388, 6
        %v3677 = vperm.slane %v3389, 6
        %v3678 = vperm.slane %v3390, 6
        %v3679 = vperm.slane %v3391, 6
        %v3680 = vmul.f32 %v3664, %v2348
        %v3681 = vmul.f32 %v3665, %v2349
        %v3682 = vmul.f32 %v3666, %v2348
        %v3683 = vmul.f32 %v3667, %v2349
        %v3684 = vmul.f32 %v3668, %v2348
        %v3685 = vmul.f32 %v3669, %v2349
        %v3686 = vmul.f32 %v3670, %v2348
        %v3687 = vmul.f32 %v3671, %v2349
        %v3688 = vmul.f32 %v3672, %v2348
        %v3689 = vmul.f32 %v3673, %v2349
        %v3690 = vmul.f32 %v3674, %v2348
        %v3691 = vmul.f32 %v3675, %v2349
        %v3692 = vmul.f32 %v3676, %v2348
        %v3693 = vmul.f32 %v3677, %v2349
        %v3694 = vmul.f32 %v3678, %v2348
        %v3695 = vmul.f32 %v3679, %v2349
        %v3696 = vadd.f32 %v3648, %v3680
        %v3697 = vadd.f32 %v3649, %v3681
        %v3698 = vadd.f32 %v3650, %v3682
        %v3699 = vadd.f32 %v3651, %v3683
        %v3700 = vadd.f32 %v3652, %v3684
        %v3701 = vadd.f32 %v3653, %v3685
        %v3702 = vadd.f32 %v3654, %v3686
        %v3703 = vadd.f32 %v3655, %v3687
        %v3704 = vadd.f32 %v3656, %v3688
        %v3705 = vadd.f32 %v3657, %v3689
        %v3706 = vadd.f32 %v3658, %v3690
        %v3707 = vadd.f32 %v3659, %v3691
        %v3708 = vadd.f32 %v3660, %v3692
        %v3709 = vadd.f32 %v3661, %v3693
        %v3710 = vadd.f32 %v3662, %v3694
        %v3711 = vadd.f32 %v3663, %v3695
        %v3712 = vperm.slane %v3376, 7
        %v3713 = vperm.slane %v3377, 7
        %v3714 = vperm.slane %v3378, 7
        %v3715 = vperm.slane %v3379, 7
        %v3716 = vperm.slane %v3380, 7
        %v3717 = vperm.slane %v3381, 7
        %v3718 = vperm.slane %v3382, 7
        %v3719 = vperm.slane %v3383, 7
        %v3720 = vperm.slane %v3384, 7
        %v3721 = vperm.slane %v3385, 7
        %v3722 = vperm.slane %v3386, 7
        %v3723 = vperm.slane %v3387, 7
        %v3724 = vperm.slane %v3388, 7
        %v3725 = vperm.slane %v3389, 7
        %v3726 = vperm.slane %v3390, 7
        %v3727 = vperm.slane %v3391, 7
        %v3728 = vmul.f32 %v3712, %v2356
        %v3729 = vmul.f32 %v3713, %v2357
        %v3730 = vmul.f32 %v3714, %v2356
        %v3731 = vmul.f32 %v3715, %v2357
        %v3732 = vmul.f32 %v3716, %v2356
        %v3733 = vmul.f32 %v3717, %v2357
        %v3734 = vmul.f32 %v3718, %v2356
        %v3735 = vmul.f32 %v3719, %v2357
        %v3736 = vmul.f32 %v3720, %v2356
        %v3737 = vmul.f32 %v3721, %v2357
        %v3738 = vmul.f32 %v3722, %v2356
        %v3739 = vmul.f32 %v3723, %v2357
        %v3740 = vmul.f32 %v3724, %v2356
        %v3741 = vmul.f32 %v3725, %v2357
        %v3742 = vmul.f32 %v3726, %v2356
        %v3743 = vmul.f32 %v3727, %v2357
        %v3744 = vadd.f32 %v3696, %v3728
        %v3745 = vadd.f32 %v3697, %v3729
        %v3746 = vadd.f32 %v3698, %v3730
        %v3747 = vadd.f32 %v3699, %v3731
        %v3748 = vadd.f32 %v3700, %v3732
        %v3749 = vadd.f32 %v3701, %v3733
        %v3750 = vadd.f32 %v3702, %v3734
        %v3751 = vadd.f32 %v3703, %v3735
        %v3752 = vadd.f32 %v3704, %v3736
        %v3753 = vadd.f32 %v3705, %v3737
        %v3754 = vadd.f32 %v3706, %v3738
        %v3755 = vadd.f32 %v3707, %v3739
        %v3756 = vadd.f32 %v3708, %v3740
        %v3757 = vadd.f32 %v3709, %v3741
        %v3758 = vadd.f32 %v3710, %v3742
        %v3759 = vadd.f32 %v3711, %v3743
        %v3760 = vperm.slane %v2559, 4
        %v3761 = vperm.slane %v2785, 4
        %v3762 = vperm.slane %v2565, 4
        %v3763 = vperm.slane %v2791, 4
        %v3764 = vperm.slane %v2571, 4
        %v3765 = vperm.slane %v2797, 4
        %v3766 = vperm.slane %v2577, 4
        %v3767 = vperm.slane %v2803, 4
        %v3768 = vperm.slane %v2583, 4
        %v3769 = vperm.slane %v2809, 4
        %v3770 = vperm.slane %v2589, 4
        %v3771 = vperm.slane %v2815, 4
        %v3772 = vperm.slane %v2595, 4
        %v3773 = vperm.slane %v2821, 4
        %v3774 = vperm.slane %v2601, 4
        %v3775 = vperm.slane %v2827, 4
        %v3776 = vmul.f32 %v3760, %v2619
        %v3777 = vmul.f32 %v3761, %v2845
        %v3778 = vmul.f32 %v3762, %v2619
        %v3779 = vmul.f32 %v3763, %v2845
        %v3780 = vmul.f32 %v3764, %v2619
        %v3781 = vmul.f32 %v3765, %v2845
        %v3782 = vmul.f32 %v3766, %v2619
        %v3783 = vmul.f32 %v3767, %v2845
        %v3784 = vmul.f32 %v3768, %v2619
        %v3785 = vmul.f32 %v3769, %v2845
        %v3786 = vmul.f32 %v3770, %v2619
        %v3787 = vmul.f32 %v3771, %v2845
        %v3788 = vmul.f32 %v3772, %v2619
        %v3789 = vmul.f32 %v3773, %v2845
        %v3790 = vmul.f32 %v3774, %v2619
        %v3791 = vmul.f32 %v3775, %v2845
        %v3792 = vperm.slane %v2559, 5
        %v3793 = vperm.slane %v2785, 5
        %v3794 = vperm.slane %v2565, 5
        %v3795 = vperm.slane %v2791, 5
        %v3796 = vperm.slane %v2571, 5
        %v3797 = vperm.slane %v2797, 5
        %v3798 = vperm.slane %v2577, 5
        %v3799 = vperm.slane %v2803, 5
        %v3800 = vperm.slane %v2583, 5
        %v3801 = vperm.slane %v2809, 5
        %v3802 = vperm.slane %v2589, 5
        %v3803 = vperm.slane %v2815, 5
        %v3804 = vperm.slane %v2595, 5
        %v3805 = vperm.slane %v2821, 5
        %v3806 = vperm.slane %v2601, 5
        %v3807 = vperm.slane %v2827, 5
        %v3808 = vmul.f32 %v3792, %v2622
        %v3809 = vmul.f32 %v3793, %v2848
        %v3810 = vmul.f32 %v3794, %v2622
        %v3811 = vmul.f32 %v3795, %v2848
        %v3812 = vmul.f32 %v3796, %v2622
        %v3813 = vmul.f32 %v3797, %v2848
        %v3814 = vmul.f32 %v3798, %v2622
        %v3815 = vmul.f32 %v3799, %v2848
        %v3816 = vmul.f32 %v3800, %v2622
        %v3817 = vmul.f32 %v3801, %v2848
        %v3818 = vmul.f32 %v3802, %v2622
        %v3819 = vmul.f32 %v3803, %v2848
        %v3820 = vmul.f32 %v3804, %v2622
        %v3821 = vmul.f32 %v3805, %v2848
        %v3822 = vmul.f32 %v3806, %v2622
        %v3823 = vmul.f32 %v3807, %v2848
        %v3824 = vadd.f32 %v3776, %v3808
        %v3825 = vadd.f32 %v3777, %v3809
        %v3826 = vadd.f32 %v3778, %v3810
        %v3827 = vadd.f32 %v3779, %v3811
        %v3828 = vadd.f32 %v3780, %v3812
        %v3829 = vadd.f32 %v3781, %v3813
        %v3830 = vadd.f32 %v3782, %v3814
        %v3831 = vadd.f32 %v3783, %v3815
        %v3832 = vadd.f32 %v3784, %v3816
        %v3833 = vadd.f32 %v3785, %v3817
        %v3834 = vadd.f32 %v3786, %v3818
        %v3835 = vadd.f32 %v3787, %v3819
        %v3836 = vadd.f32 %v3788, %v3820
        %v3837 = vadd.f32 %v3789, %v3821
        %v3838 = vadd.f32 %v3790, %v3822
        %v3839 = vadd.f32 %v3791, %v3823
        %v3840 = vperm.slane %v2559, 6
        %v3841 = vperm.slane %v2785, 6
        %v3842 = vperm.slane %v2565, 6
        %v3843 = vperm.slane %v2791, 6
        %v3844 = vperm.slane %v2571, 6
        %v3845 = vperm.slane %v2797, 6
        %v3846 = vperm.slane %v2577, 6
        %v3847 = vperm.slane %v2803, 6
        %v3848 = vperm.slane %v2583, 6
        %v3849 = vperm.slane %v2809, 6
        %v3850 = vperm.slane %v2589, 6
        %v3851 = vperm.slane %v2815, 6
        %v3852 = vperm.slane %v2595, 6
        %v3853 = vperm.slane %v2821, 6
        %v3854 = vperm.slane %v2601, 6
        %v3855 = vperm.slane %v2827, 6
        %v3856 = vmul.f32 %v3840, %v2625
        %v3857 = vmul.f32 %v3841, %v2851
        %v3858 = vmul.f32 %v3842, %v2625
        %v3859 = vmul.f32 %v3843, %v2851
        %v3860 = vmul.f32 %v3844, %v2625
        %v3861 = vmul.f32 %v3845, %v2851
        %v3862 = vmul.f32 %v3846, %v2625
        %v3863 = vmul.f32 %v3847, %v2851
        %v3864 = vmul.f32 %v3848, %v2625
        %v3865 = vmul.f32 %v3849, %v2851
        %v3866 = vmul.f32 %v3850, %v2625
        %v3867 = vmul.f32 %v3851, %v2851
        %v3868 = vmul.f32 %v3852, %v2625
        %v3869 = vmul.f32 %v3853, %v2851
        %v3870 = vmul.f32 %v3854, %v2625
        %v3871 = vmul.f32 %v3855, %v2851
        %v3872 = vadd.f32 %v3824, %v3856
        %v3873 = vadd.f32 %v3825, %v3857
        %v3874 = vadd.f32 %v3826, %v3858
        %v3875 = vadd.f32 %v3827, %v3859
        %v3876 = vadd.f32 %v3828, %v3860
        %v3877 = vadd.f32 %v3829, %v3861
        %v3878 = vadd.f32 %v3830, %v3862
        %v3879 = vadd.f32 %v3831, %v3863
        %v3880 = vadd.f32 %v3832, %v3864
        %v3881 = vadd.f32 %v3833, %v3865
        %v3882 = vadd.f32 %v3834, %v3866
        %v3883 = vadd.f32 %v3835, %v3867
        %v3884 = vadd.f32 %v3836, %v3868
        %v3885 = vadd.f32 %v3837, %v3869
        %v3886 = vadd.f32 %v3838, %v3870
        %v3887 = vadd.f32 %v3839, %v3871
        %v3888 = vperm.slane %v2559, 7
        %v3889 = vperm.slane %v2785, 7
        %v3890 = vperm.slane %v2565, 7
        %v3891 = vperm.slane %v2791, 7
        %v3892 = vperm.slane %v2571, 7
        %v3893 = vperm.slane %v2797, 7
        %v3894 = vperm.slane %v2577, 7
        %v3895 = vperm.slane %v2803, 7
        %v3896 = vperm.slane %v2583, 7
        %v3897 = vperm.slane %v2809, 7
        %v3898 = vperm.slane %v2589, 7
        %v3899 = vperm.slane %v2815, 7
        %v3900 = vperm.slane %v2595, 7
        %v3901 = vperm.slane %v2821, 7
        %v3902 = vperm.slane %v2601, 7
        %v3903 = vperm.slane %v2827, 7
        %v3904 = vmul.f32 %v3888, %v2628
        %v3905 = vmul.f32 %v3889, %v2854
        %v3906 = vmul.f32 %v3890, %v2628
        %v3907 = vmul.f32 %v3891, %v2854
        %v3908 = vmul.f32 %v3892, %v2628
        %v3909 = vmul.f32 %v3893, %v2854
        %v3910 = vmul.f32 %v3894, %v2628
        %v3911 = vmul.f32 %v3895, %v2854
        %v3912 = vmul.f32 %v3896, %v2628
        %v3913 = vmul.f32 %v3897, %v2854
        %v3914 = vmul.f32 %v3898, %v2628
        %v3915 = vmul.f32 %v3899, %v2854
        %v3916 = vmul.f32 %v3900, %v2628
        %v3917 = vmul.f32 %v3901, %v2854
        %v3918 = vmul.f32 %v3902, %v2628
        %v3919 = vmul.f32 %v3903, %v2854
        %v3920 = vadd.f32 %v3872, %v3904
        %v3921 = vadd.f32 %v3873, %v3905
        %v3922 = vadd.f32 %v3874, %v3906
        %v3923 = vadd.f32 %v3875, %v3907
        %v3924 = vadd.f32 %v3876, %v3908
        %v3925 = vadd.f32 %v3877, %v3909
        %v3926 = vadd.f32 %v3878, %v3910
        %v3927 = vadd.f32 %v3879, %v3911
        %v3928 = vadd.f32 %v3880, %v3912
        %v3929 = vadd.f32 %v3881, %v3913
        %v3930 = vadd.f32 %v3882, %v3914
        %v3931 = vadd.f32 %v3883, %v3915
        %v3932 = vadd.f32 %v3884, %v3916
        %v3933 = vadd.f32 %v3885, %v3917
        %v3934 = vadd.f32 %v3886, %v3918
        %v3935 = vadd.f32 %v3887, %v3919
        %v3936 = vmul.f32 %v3920, 0.5
        %v3937 = vmul.f32 %v3921, 0.5
        %v3938 = vmul.f32 %v3922, 0.5
        %v3939 = vmul.f32 %v3923, 0.5
        %v3940 = vmul.f32 %v3924, 0.5
        %v3941 = vmul.f32 %v3925, 0.5
        %v3942 = vmul.f32 %v3926, 0.5
        %v3943 = vmul.f32 %v3927, 0.5
        %v3944 = vmul.f32 %v3928, 0.5
        %v3945 = vmul.f32 %v3929, 0.5
        %v3946 = vmul.f32 %v3930, 0.5
        %v3947 = vmul.f32 %v3931, 0.5
        %v3948 = vmul.f32 %v3932, 0.5
        %v3949 = vmul.f32 %v3933, 0.5
        %v3950 = vmul.f32 %v3934, 0.5
        %v3951 = vmul.f32 %v3935, 0.5
        %v3952 = vrot.slane %v3936, 4
        %v3953 = vmax.f32 %v3936, %v3952
        %v3954 = vrot.slane %v3953, 2
        %v3955 = vmax.f32 %v3953, %v3954
        %v3956 = vrot.slane %v3955, 1
        %v3957 = vmax.f32 %v3955, %v3956
        %v3958 = vrot.slane %v3937, 4
        %v3959 = vmax.f32 %v3937, %v3958
        %v3960 = vrot.slane %v3959, 2
        %v3961 = vmax.f32 %v3959, %v3960
        %v3962 = vrot.slane %v3961, 1
        %v3963 = vmax.f32 %v3961, %v3962
        %v3964 = vrot.slane %v3938, 4
        %v3965 = vmax.f32 %v3938, %v3964
        %v3966 = vrot.slane %v3965, 2
        %v3967 = vmax.f32 %v3965, %v3966
        %v3968 = vrot.slane %v3967, 1
        %v3969 = vmax.f32 %v3967, %v3968
        %v3970 = vrot.slane %v3939, 4
        %v3971 = vmax.f32 %v3939, %v3970
        %v3972 = vrot.slane %v3971, 2
        %v3973 = vmax.f32 %v3971, %v3972
        %v3974 = vrot.slane %v3973, 1
        %v3975 = vmax.f32 %v3973, %v3974
        %v3976 = vrot.slane %v3940, 4
        %v3977 = vmax.f32 %v3940, %v3976
        %v3978 = vrot.slane %v3977, 2
        %v3979 = vmax.f32 %v3977, %v3978
        %v3980 = vrot.slane %v3979, 1
        %v3981 = vmax.f32 %v3979, %v3980
        %v3982 = vrot.slane %v3941, 4
        %v3983 = vmax.f32 %v3941, %v3982
        %v3984 = vrot.slane %v3983, 2
        %v3985 = vmax.f32 %v3983, %v3984
        %v3986 = vrot.slane %v3985, 1
        %v3987 = vmax.f32 %v3985, %v3986
        %v3988 = vrot.slane %v3942, 4
        %v3989 = vmax.f32 %v3942, %v3988
        %v3990 = vrot.slane %v3989, 2
        %v3991 = vmax.f32 %v3989, %v3990
        %v3992 = vrot.slane %v3991, 1
        %v3993 = vmax.f32 %v3991, %v3992
        %v3994 = vrot.slane %v3943, 4
        %v3995 = vmax.f32 %v3943, %v3994
        %v3996 = vrot.slane %v3995, 2
        %v3997 = vmax.f32 %v3995, %v3996
        %v3998 = vrot.slane %v3997, 1
        %v3999 = vmax.f32 %v3997, %v3998
        %v4000 = vrot.slane %v3944, 4
        %v4001 = vmax.f32 %v3944, %v4000
        %v4002 = vrot.slane %v4001, 2
        %v4003 = vmax.f32 %v4001, %v4002
        %v4004 = vrot.slane %v4003, 1
        %v4005 = vmax.f32 %v4003, %v4004
        %v4006 = vrot.slane %v3945, 4
        %v4007 = vmax.f32 %v3945, %v4006
        %v4008 = vrot.slane %v4007, 2
        %v4009 = vmax.f32 %v4007, %v4008
        %v4010 = vrot.slane %v4009, 1
        %v4011 = vmax.f32 %v4009, %v4010
        %v4012 = vrot.slane %v3946, 4
        %v4013 = vmax.f32 %v3946, %v4012
        %v4014 = vrot.slane %v4013, 2
        %v4015 = vmax.f32 %v4013, %v4014
        %v4016 = vrot.slane %v4015, 1
        %v4017 = vmax.f32 %v4015, %v4016
        %v4018 = vrot.slane %v3947, 4
        %v4019 = vmax.f32 %v3947, %v4018
        %v4020 = vrot.slane %v4019, 2
        %v4021 = vmax.f32 %v4019, %v4020
        %v4022 = vrot.slane %v4021, 1
        %v4023 = vmax.f32 %v4021, %v4022
        %v4024 = vrot.slane %v3948, 4
        %v4025 = vmax.f32 %v3948, %v4024
        %v4026 = vrot.slane %v4025, 2
        %v4027 = vmax.f32 %v4025, %v4026
        %v4028 = vrot.slane %v4027, 1
        %v4029 = vmax.f32 %v4027, %v4028
        %v4030 = vrot.slane %v3949, 4
        %v4031 = vmax.f32 %v3949, %v4030
        %v4032 = vrot.slane %v4031, 2
        %v4033 = vmax.f32 %v4031, %v4032
        %v4034 = vrot.slane %v4033, 1
        %v4035 = vmax.f32 %v4033, %v4034
        %v4036 = vrot.slane %v3950, 4
        %v4037 = vmax.f32 %v3950, %v4036
        %v4038 = vrot.slane %v4037, 2
        %v4039 = vmax.f32 %v4037, %v4038
        %v4040 = vrot.slane %v4039, 1
        %v4041 = vmax.f32 %v4039, %v4040
        %v4042 = vrot.slane %v3951, 4
        %v4043 = vmax.f32 %v3951, %v4042
        %v4044 = vrot.slane %v4043, 2
        %v4045 = vmax.f32 %v4043, %v4044
        %v4046 = vrot.slane %v4045, 1
        %v4047 = vmax.f32 %v4045, %v4046
        %v4048 = vsub.f32 %v3936, %v3957
        %v4049 = vsub.f32 %v3937, %v3963
        %v4050 = vsub.f32 %v3938, %v3969
        %v4051 = vsub.f32 %v3939, %v3975
        %v4052 = vsub.f32 %v3940, %v3981
        %v4053 = vsub.f32 %v3941, %v3987
        %v4054 = vsub.f32 %v3942, %v3993
        %v4055 = vsub.f32 %v3943, %v3999
        %v4056 = vsub.f32 %v3944, %v4005
        %v4057 = vsub.f32 %v3945, %v4011
        %v4058 = vsub.f32 %v3946, %v4017
        %v4059 = vsub.f32 %v3947, %v4023
        %v4060 = vsub.f32 %v3948, %v4029
        %v4061 = vsub.f32 %v3949, %v4035
        %v4062 = vsub.f32 %v3950, %v4041
        %v4063 = vsub.f32 %v3951, %v4047
        %v4064 = vmul.f32 %v4048, 1.442695
        %v4065 = vpow.pop %v4064
        %v4066 = vmul.f32 %v4049, 1.442695
        %v4067 = vpow.pop %v4066
        %v4068 = vmul.f32 %v4050, 1.442695
        %v4069 = vpow.pop %v4068
        %v4070 = vmul.f32 %v4051, 1.442695
        %v4071 = vpow.pop %v4070
        %v4072 = vmul.f32 %v4052, 1.442695
        %v4073 = vpow.pop %v4072
        %v4074 = vmul.f32 %v4053, 1.442695
        %v4075 = vpow.pop %v4074
        %v4076 = vmul.f32 %v4054, 1.442695
        %v4077 = vpow.pop %v4076
        %v4078 = vmul.f32 %v4055, 1.442695
        %v4079 = vpow.pop %v4078
        %v4080 = vmul.f32 %v4056, 1.442695
        %v4081 = vpow.pop %v4080
        %v4082 = vmul.f32 %v4057, 1.442695
        %v4083 = vpow.pop %v4082
        %v4084 = vmul.f32 %v4058, 1.442695
        %v4085 = vpow.pop %v4084
        %v4086 = vmul.f32 %v4059, 1.442695
        %v4087 = vpow.pop %v4086
        %v4088 = vmul.f32 %v4060, 1.442695
        %v4089 = vpow.pop %v4088
        %v4090 = vmul.f32 %v4061, 1.442695
        %v4091 = vpow.pop %v4090
        %v4092 = vmul.f32 %v4062, 1.442695
        %v4093 = vpow.pop %v4092
        %v4094 = vmul.f32 %v4063, 1.442695
        %v4095 = vpow.pop %v4094
        %v4096 = vrot.slane %v4065, 4
        %v4097 = vadd.f32 %v4065, %v4096
        %v4098 = vrot.slane %v4097, 2
        %v4099 = vadd.f32 %v4097, %v4098
        %v4100 = vrot.slane %v4099, 1
        %v4101 = vadd.f32 %v4099, %v4100
        %v4102 = vrot.slane %v4067, 4
        %v4103 = vadd.f32 %v4067, %v4102
        %v4104 = vrot.slane %v4103, 2
        %v4105 = vadd.f32 %v4103, %v4104
        %v4106 = vrot.slane %v4105, 1
        %v4107 = vadd.f32 %v4105, %v4106
        %v4108 = vrot.slane %v4069, 4
        %v4109 = vadd.f32 %v4069, %v4108
        %v4110 = vrot.slane %v4109, 2
        %v4111 = vadd.f32 %v4109, %v4110
        %v4112 = vrot.slane %v4111, 1
        %v4113 = vadd.f32 %v4111, %v4112
        %v4114 = vrot.slane %v4071, 4
        %v4115 = vadd.f32 %v4071, %v4114
        %v4116 = vrot.slane %v4115, 2
        %v4117 = vadd.f32 %v4115, %v4116
        %v4118 = vrot.slane %v4117, 1
        %v4119 = vadd.f32 %v4117, %v4118
        %v4120 = vrot.slane %v4073, 4
        %v4121 = vadd.f32 %v4073, %v4120
        %v4122 = vrot.slane %v4121, 2
        %v4123 = vadd.f32 %v4121, %v4122
        %v4124 = vrot.slane %v4123, 1
        %v4125 = vadd.f32 %v4123, %v4124
        %v4126 = vrot.slane %v4075, 4
        %v4127 = vadd.f32 %v4075, %v4126
        %v4128 = vrot.slane %v4127, 2
        %v4129 = vadd.f32 %v4127, %v4128
        %v4130 = vrot.slane %v4129, 1
        %v4131 = vadd.f32 %v4129, %v4130
        %v4132 = vrot.slane %v4077, 4
        %v4133 = vadd.f32 %v4077, %v4132
        %v4134 = vrot.slane %v4133, 2
        %v4135 = vadd.f32 %v4133, %v4134
        %v4136 = vrot.slane %v4135, 1
        %v4137 = vadd.f32 %v4135, %v4136
        %v4138 = vrot.slane %v4079, 4
        %v4139 = vadd.f32 %v4079, %v4138
        %v4140 = vrot.slane %v4139, 2
        %v4141 = vadd.f32 %v4139, %v4140
        %v4142 = vrot.slane %v4141, 1
        %v4143 = vadd.f32 %v4141, %v4142
        %v4144 = vrot.slane %v4081, 4
        %v4145 = vadd.f32 %v4081, %v4144
        %v4146 = vrot.slane %v4145, 2
        %v4147 = vadd.f32 %v4145, %v4146
        %v4148 = vrot.slane %v4147, 1
        %v4149 = vadd.f32 %v4147, %v4148
        %v4150 = vrot.slane %v4083, 4
        %v4151 = vadd.f32 %v4083, %v4150
        %v4152 = vrot.slane %v4151, 2
        %v4153 = vadd.f32 %v4151, %v4152
        %v4154 = vrot.slane %v4153, 1
        %v4155 = vadd.f32 %v4153, %v4154
        %v4156 = vrot.slane %v4085, 4
        %v4157 = vadd.f32 %v4085, %v4156
        %v4158 = vrot.slane %v4157, 2
        %v4159 = vadd.f32 %v4157, %v4158
        %v4160 = vrot.slane %v4159, 1
        %v4161 = vadd.f32 %v4159, %v4160
        %v4162 = vrot.slane %v4087, 4
        %v4163 = vadd.f32 %v4087, %v4162
        %v4164 = vrot.slane %v4163, 2
        %v4165 = vadd.f32 %v4163, %v4164
        %v4166 = vrot.slane %v4165, 1
        %v4167 = vadd.f32 %v4165, %v4166
        %v4168 = vrot.slane %v4089, 4
        %v4169 = vadd.f32 %v4089, %v4168
        %v4170 = vrot.slane %v4169, 2
        %v4171 = vadd.f32 %v4169, %v4170
        %v4172 = vrot.slane %v4171, 1
        %v4173 = vadd.f32 %v4171, %v4172
        %v4174 = vrot.slane %v4091, 4
        %v4175 = vadd.f32 %v4091, %v4174
        %v4176 = vrot.slane %v4175, 2
        %v4177 = vadd.f32 %v4175, %v4176
        %v4178 = vrot.slane %v4177, 1
        %v4179 = vadd.f32 %v4177, %v4178
        %v4180 = vrot.slane %v4093, 4
        %v4181 = vadd.f32 %v4093, %v4180
        %v4182 = vrot.slane %v4181, 2
        %v4183 = vadd.f32 %v4181, %v4182
        %v4184 = vrot.slane %v4183, 1
        %v4185 = vadd.f32 %v4183, %v4184
        %v4186 = vrot.slane %v4095, 4
        %v4187 = vadd.f32 %v4095, %v4186
        %v4188 = vrot.slane %v4187, 2
        %v4189 = vadd.f32 %v4187, %v4188
        %v4190 = vrot.slane %v4189, 1
        %v4191 = vadd.f32 %v4189, %v4190
        %v4192 = vrcp.pop %v4101
        %v4193 = vrcp.pop %v4107
        %v4194 = vrcp.pop %v4113
        %v4195 = vrcp.pop %v4119
        %v4196 = vrcp.pop %v4125
        %v4197 = vrcp.pop %v4131
        %v4198 = vrcp.pop %v4137
        %v4199 = vrcp.pop %v4143
        %v4200 = vrcp.pop %v4149
        %v4201 = vrcp.pop %v4155
        %v4202 = vrcp.pop %v4161
        %v4203 = vrcp.pop %v4167
        %v4204 = vrcp.pop %v4173
        %v4205 = vrcp.pop %v4179
        %v4206 = vrcp.pop %v4185
        %v4207 = vrcp.pop %v4191
        %v4208 = vmul.f32 %v4101, %v4192
        %v4209 = vmul.f32 %v4107, %v4193
        %v4210 = vmul.f32 %v4113, %v4194
        %v4211 = vmul.f32 %v4119, %v4195
        %v4212 = vmul.f32 %v4125, %v4196
        %v4213 = vmul.f32 %v4131, %v4197
        %v4214 = vmul.f32 %v4137, %v4198
        %v4215 = vmul.f32 %v4143, %v4199
        %v4216 = vmul.f32 %v4149, %v4200
        %v4217 = vmul.f32 %v4155, %v4201
        %v4218 = vmul.f32 %v4161, %v4202
        %v4219 = vmul.f32 %v4167, %v4203
        %v4220 = vmul.f32 %v4173, %v4204
        %v4221 = vmul.f32 %v4179, %v4205
        %v4222 = vmul.f32 %v4185, %v4206
        %v4223 = vmul.f32 %v4191, %v4207
        %v4224 = vsub.f32 2.0, %v4208
        %v4225 = vsub.f32 2.0, %v4209
        %v4226 = vsub.f32 2.0, %v4210
        %v4227 = vsub.f32 2.0, %v4211
        %v4228 = vsub.f32 2.0, %v4212
        %v4229 = vsub.f32 2.0, %v4213
        %v4230 = vsub.f32 2.0, %v4214
        %v4231 = vsub.f32 2.0, %v4215
        %v4232 = vsub.f32 2.0, %v4216
        %v4233 = vsub.f32 2.0, %v4217
        %v4234 = vsub.f32 2.0, %v4218
        %v4235 = vsub.f32 2.0, %v4219
        %v4236 = vsub.f32 2.0, %v4220
        %v4237 = vsub.f32 2.0, %v4221
        %v4238 = vsub.f32 2.0, %v4222
        %v4239 = vsub.f32 2.0, %v4223
        %v4240 = vmul.f32 %v4192, %v4224
        %v4241 = vmul.f32 %v4193, %v4225
        %v4242 = vmul.f32 %v4194, %v4226
        %v4243 = vmul.f32 %v4195, %v4227
        %v4244 = vmul.f32 %v4196, %v4228
        %v4245 = vmul.f32 %v4197, %v4229
        %v4246 = vmul.f32 %v4198, %v4230
        %v4247 = vmul.f32 %v4199, %v4231
        %v4248 = vmul.f32 %v4200, %v4232
        %v4249 = vmul.f32 %v4201, %v4233
        %v4250 = vmul.f32 %v4202, %v4234
        %v4251 = vmul.f32 %v4203, %v4235
        %v4252 = vmul.f32 %v4204, %v4236
        %v4253 = vmul.f32 %v4205, %v4237
        %v4254 = vmul.f32 %v4206, %v4238
        %v4255 = vmul.f32 %v4207, %v4239
        %v4256 = vmul.f32 %v4065, %v4240
        %v4257 = vmul.f32 %v4067, %v4241
        %v4258 = vmul.f32 %v4069, %v4242
        %v4259 = vmul.f32 %v4071, %v4243
        %v4260 = vmul.f32 %v4073, %v4244
        %v4261 = vmul.f32 %v4075, %v4245
        %v4262 = vmul.f32 %v4077, %v4246
        %v4263 = vmul.f32 %v4079, %v4247
        %v4264 = vmul.f32 %v4081, %v4248
        %v4265 = vmul.f32 %v4083, %v4249
        %v4266 = vmul.f32 %v4085, %v4250
        %v4267 = vmul.f32 %v4087, %v4251
        %v4268 = vmul.f32 %v4089, %v4252
        %v4269 = vmul.f32 %v4091, %v4253
        %v4270 = vmul.f32 %v4093, %v4254
        %v4271 = vmul.f32 %v4095, %v4255
        %v4272 = vperm.slane %v4256, 0
        %v4273 = vperm.slane %v4257, 0
        %v4274 = vperm.slane %v4258, 0
        %v4275 = vperm.slane %v4259, 0
        %v4276 = vperm.slane %v4260, 0
        %v4277 = vperm.slane %v4261, 0
        %v4278 = vperm.slane %v4262, 0
        %v4279 = vperm.slane %v4263, 0
        %v4280 = vperm.slane %v4264, 0
        %v4281 = vperm.slane %v4265, 0
        %v4282 = vperm.slane %v4266, 0
        %v4283 = vperm.slane %v4267, 0
        %v4284 = vperm.slane %v4268, 0
        %v4285 = vperm.slane %v4269, 0
        %v4286 = vperm.slane %v4270, 0
        %v4287 = vperm.slane %v4271, 0
        %v4288 = vmul.f32 %v4272, %v2302
        %v4289 = vmul.f32 %v4273, %v2303
        %v4290 = vmul.f32 %v4274, %v2302
        %v4291 = vmul.f32 %v4275, %v2303
        %v4292 = vmul.f32 %v4276, %v2302
        %v4293 = vmul.f32 %v4277, %v2303
        %v4294 = vmul.f32 %v4278, %v2302
        %v4295 = vmul.f32 %v4279, %v2303
        %v4296 = vmul.f32 %v4280, %v2302
        %v4297 = vmul.f32 %v4281, %v2303
        %v4298 = vmul.f32 %v4282, %v2302
        %v4299 = vmul.f32 %v4283, %v2303
        %v4300 = vmul.f32 %v4284, %v2302
        %v4301 = vmul.f32 %v4285, %v2303
        %v4302 = vmul.f32 %v4286, %v2302
        %v4303 = vmul.f32 %v4287, %v2303
        %v4304 = vperm.slane %v4256, 1
        %v4305 = vperm.slane %v4257, 1
        %v4306 = vperm.slane %v4258, 1
        %v4307 = vperm.slane %v4259, 1
        %v4308 = vperm.slane %v4260, 1
        %v4309 = vperm.slane %v4261, 1
        %v4310 = vperm.slane %v4262, 1
        %v4311 = vperm.slane %v4263, 1
        %v4312 = vperm.slane %v4264, 1
        %v4313 = vperm.slane %v4265, 1
        %v4314 = vperm.slane %v4266, 1
        %v4315 = vperm.slane %v4267, 1
        %v4316 = vperm.slane %v4268, 1
        %v4317 = vperm.slane %v4269, 1
        %v4318 = vperm.slane %v4270, 1
        %v4319 = vperm.slane %v4271, 1
        %v4320 = vmul.f32 %v4304, %v2310
        %v4321 = vmul.f32 %v4305, %v2311
        %v4322 = vmul.f32 %v4306, %v2310
        %v4323 = vmul.f32 %v4307, %v2311
        %v4324 = vmul.f32 %v4308, %v2310
        %v4325 = vmul.f32 %v4309, %v2311
        %v4326 = vmul.f32 %v4310, %v2310
        %v4327 = vmul.f32 %v4311, %v2311
        %v4328 = vmul.f32 %v4312, %v2310
        %v4329 = vmul.f32 %v4313, %v2311
        %v4330 = vmul.f32 %v4314, %v2310
        %v4331 = vmul.f32 %v4315, %v2311
        %v4332 = vmul.f32 %v4316, %v2310
        %v4333 = vmul.f32 %v4317, %v2311
        %v4334 = vmul.f32 %v4318, %v2310
        %v4335 = vmul.f32 %v4319, %v2311
        %v4336 = vadd.f32 %v4288, %v4320
        %v4337 = vadd.f32 %v4289, %v4321
        %v4338 = vadd.f32 %v4290, %v4322
        %v4339 = vadd.f32 %v4291, %v4323
        %v4340 = vadd.f32 %v4292, %v4324
        %v4341 = vadd.f32 %v4293, %v4325
        %v4342 = vadd.f32 %v4294, %v4326
        %v4343 = vadd.f32 %v4295, %v4327
        %v4344 = vadd.f32 %v4296, %v4328
        %v4345 = vadd.f32 %v4297, %v4329
        %v4346 = vadd.f32 %v4298, %v4330
        %v4347 = vadd.f32 %v4299, %v4331
        %v4348 = vadd.f32 %v4300, %v4332
        %v4349 = vadd.f32 %v4301, %v4333
        %v4350 = vadd.f32 %v4302, %v4334
        %v4351 = vadd.f32 %v4303, %v4335
        %v4352 = vperm.slane %v4256, 2
        %v4353 = vperm.slane %v4257, 2
        %v4354 = vperm.slane %v4258, 2
        %v4355 = vperm.slane %v4259, 2
        %v4356 = vperm.slane %v4260, 2
        %v4357 = vperm.slane %v4261, 2
        %v4358 = vperm.slane %v4262, 2
        %v4359 = vperm.slane %v4263, 2
        %v4360 = vperm.slane %v4264, 2
        %v4361 = vperm.slane %v4265, 2
        %v4362 = vperm.slane %v4266, 2
        %v4363 = vperm.slane %v4267, 2
        %v4364 = vperm.slane %v4268, 2
        %v4365 = vperm.slane %v4269, 2
        %v4366 = vperm.slane %v4270, 2
        %v4367 = vperm.slane %v4271, 2
        %v4368 = vmul.f32 %v4352, %v2318
        %v4369 = vmul.f32 %v4353, %v2319
        %v4370 = vmul.f32 %v4354, %v2318
        %v4371 = vmul.f32 %v4355, %v2319
        %v4372 = vmul.f32 %v4356, %v2318
        %v4373 = vmul.f32 %v4357, %v2319
        %v4374 = vmul.f32 %v4358, %v2318
        %v4375 = vmul.f32 %v4359, %v2319
        %v4376 = vmul.f32 %v4360, %v2318
        %v4377 = vmul.f32 %v4361, %v2319
        %v4378 = vmul.f32 %v4362, %v2318
        %v4379 = vmul.f32 %v4363, %v2319
        %v4380 = vmul.f32 %v4364, %v2318
        %v4381 = vmul.f32 %v4365, %v2319
        %v4382 = vmul.f32 %v4366, %v2318
        %v4383 = vmul.f32 %v4367, %v2319
        %v4384 = vadd.f32 %v4336, %v4368
        %v4385 = vadd.f32 %v4337, %v4369
        %v4386 = vadd.f32 %v4338, %v4370
        %v4387 = vadd.f32 %v4339, %v4371
        %v4388 = vadd.f32 %v4340, %v4372
        %v4389 = vadd.f32 %v4341, %v4373
        %v4390 = vadd.f32 %v4342, %v4374
        %v4391 = vadd.f32 %v4343, %v4375
        %v4392 = vadd.f32 %v4344, %v4376
        %v4393 = vadd.f32 %v4345, %v4377
        %v4394 = vadd.f32 %v4346, %v4378
        %v4395 = vadd.f32 %v4347, %v4379
        %v4396 = vadd.f32 %v4348, %v4380
        %v4397 = vadd.f32 %v4349, %v4381
        %v4398 = vadd.f32 %v4350, %v4382
        %v4399 = vadd.f32 %v4351, %v4383
        %v4400 = vperm.slane %v4256, 3
        %v4401 = vperm.slane %v4257, 3
        %v4402 = vperm.slane %v4258, 3
        %v4403 = vperm.slane %v4259, 3
        %v4404 = vperm.slane %v4260, 3
        %v4405 = vperm.slane %v4261, 3
        %v4406 = vperm.slane %v4262, 3
        %v4407 = vperm.slane %v4263, 3
        %v4408 = vperm.slane %v4264, 3
        %v4409 = vperm.slane %v4265, 3
        %v4410 = vperm.slane %v4266, 3
        %v4411 = vperm.slane %v4267, 3
        %v4412 = vperm.slane %v4268, 3
        %v4413 = vperm.slane %v4269, 3
        %v4414 = vperm.slane %v4270, 3
        %v4415 = vperm.slane %v4271, 3
        %v4416 = vmul.f32 %v4400, %v2326
        %v4417 = vmul.f32 %v4401, %v2327
        %v4418 = vmul.f32 %v4402, %v2326
        %v4419 = vmul.f32 %v4403, %v2327
        %v4420 = vmul.f32 %v4404, %v2326
        %v4421 = vmul.f32 %v4405, %v2327
        %v4422 = vmul.f32 %v4406, %v2326
        %v4423 = vmul.f32 %v4407, %v2327
        %v4424 = vmul.f32 %v4408, %v2326
        %v4425 = vmul.f32 %v4409, %v2327
        %v4426 = vmul.f32 %v4410, %v2326
        %v4427 = vmul.f32 %v4411, %v2327
        %v4428 = vmul.f32 %v4412, %v2326
        %v4429 = vmul.f32 %v4413, %v2327
        %v4430 = vmul.f32 %v4414, %v2326
        %v4431 = vmul.f32 %v4415, %v2327
        %v4432 = vadd.f32 %v4384, %v4416
        %v4433 = vadd.f32 %v4385, %v4417
        %v4434 = vadd.f32 %v4386, %v4418
        %v4435 = vadd.f32 %v4387, %v4419
        %v4436 = vadd.f32 %v4388, %v4420
        %v4437 = vadd.f32 %v4389, %v4421
        %v4438 = vadd.f32 %v4390, %v4422
        %v4439 = vadd.f32 %v4391, %v4423
        %v4440 = vadd.f32 %v4392, %v4424
        %v4441 = vadd.f32 %v4393, %v4425
        %v4442 = vadd.f32 %v4394, %v4426
        %v4443 = vadd.f32 %v4395, %v4427
        %v4444 = vadd.f32 %v4396, %v4428
        %v4445 = vadd.f32 %v4397, %v4429
        %v4446 = vadd.f32 %v4398, %v4430
        %v4447 = vadd.f32 %v4399, %v4431
        %v4448 = vperm.slane %v4256, 4
        %v4449 = vperm.slane %v4257, 4
        %v4450 = vperm.slane %v4258, 4
        %v4451 = vperm.slane %v4259, 4
        %v4452 = vperm.slane %v4260, 4
        %v4453 = vperm.slane %v4261, 4
        %v4454 = vperm.slane %v4262, 4
        %v4455 = vperm.slane %v4263, 4
        %v4456 = vperm.slane %v4264, 4
        %v4457 = vperm.slane %v4265, 4
        %v4458 = vperm.slane %v4266, 4
        %v4459 = vperm.slane %v4267, 4
        %v4460 = vperm.slane %v4268, 4
        %v4461 = vperm.slane %v4269, 4
        %v4462 = vperm.slane %v4270, 4
        %v4463 = vperm.slane %v4271, 4
        %v4464 = vmul.f32 %v4448, %v2334
        %v4465 = vmul.f32 %v4449, %v2335
        %v4466 = vmul.f32 %v4450, %v2334
        %v4467 = vmul.f32 %v4451, %v2335
        %v4468 = vmul.f32 %v4452, %v2334
        %v4469 = vmul.f32 %v4453, %v2335
        %v4470 = vmul.f32 %v4454, %v2334
        %v4471 = vmul.f32 %v4455, %v2335
        %v4472 = vmul.f32 %v4456, %v2334
        %v4473 = vmul.f32 %v4457, %v2335
        %v4474 = vmul.f32 %v4458, %v2334
        %v4475 = vmul.f32 %v4459, %v2335
        %v4476 = vmul.f32 %v4460, %v2334
        %v4477 = vmul.f32 %v4461, %v2335
        %v4478 = vmul.f32 %v4462, %v2334
        %v4479 = vmul.f32 %v4463, %v2335
        %v4480 = vadd.f32 %v4432, %v4464
        %v4481 = vadd.f32 %v4433, %v4465
        %v4482 = vadd.f32 %v4434, %v4466
        %v4483 = vadd.f32 %v4435, %v4467
        %v4484 = vadd.f32 %v4436, %v4468
        %v4485 = vadd.f32 %v4437, %v4469
        %v4486 = vadd.f32 %v4438, %v4470
        %v4487 = vadd.f32 %v4439, %v4471
        %v4488 = vadd.f32 %v4440, %v4472
        %v4489 = vadd.f32 %v4441, %v4473
        %v4490 = vadd.f32 %v4442, %v4474
        %v4491 = vadd.f32 %v4443, %v4475
        %v4492 = vadd.f32 %v4444, %v4476
        %v4493 = vadd.f32 %v4445, %v4477
        %v4494 = vadd.f32 %v4446, %v4478
        %v4495 = vadd.f32 %v4447, %v4479
        %v4496 = vperm.slane %v4256, 5
        %v4497 = vperm.slane %v4257, 5
        %v4498 = vperm.slane %v4258, 5
        %v4499 = vperm.slane %v4259, 5
        %v4500 = vperm.slane %v4260, 5
        %v4501 = vperm.slane %v4261, 5
        %v4502 = vperm.slane %v4262, 5
        %v4503 = vperm.slane %v4263, 5
        %v4504 = vperm.slane %v4264, 5
        %v4505 = vperm.slane %v4265, 5
        %v4506 = vperm.slane %v4266, 5
        %v4507 = vperm.slane %v4267, 5
        %v4508 = vperm.slane %v4268, 5
        %v4509 = vperm.slane %v4269, 5
        %v4510 = vperm.slane %v4270, 5
        %v4511 = vperm.slane %v4271, 5
        %v4512 = vmul.f32 %v4496, %v2342
        %v4513 = vmul.f32 %v4497, %v2343
        %v4514 = vmul.f32 %v4498, %v2342
        %v4515 = vmul.f32 %v4499, %v2343
        %v4516 = vmul.f32 %v4500, %v2342
        %v4517 = vmul.f32 %v4501, %v2343
        %v4518 = vmul.f32 %v4502, %v2342
        %v4519 = vmul.f32 %v4503, %v2343
        %v4520 = vmul.f32 %v4504, %v2342
        %v4521 = vmul.f32 %v4505, %v2343
        %v4522 = vmul.f32 %v4506, %v2342
        %v4523 = vmul.f32 %v4507, %v2343
        %v4524 = vmul.f32 %v4508, %v2342
        %v4525 = vmul.f32 %v4509, %v2343
        %v4526 = vmul.f32 %v4510, %v2342
        %v4527 = vmul.f32 %v4511, %v2343
        %v4528 = vadd.f32 %v4480, %v4512
        %v4529 = vadd.f32 %v4481, %v4513
        %v4530 = vadd.f32 %v4482, %v4514
        %v4531 = vadd.f32 %v4483, %v4515
        %v4532 = vadd.f32 %v4484, %v4516
        %v4533 = vadd.f32 %v4485, %v4517
        %v4534 = vadd.f32 %v4486, %v4518
        %v4535 = vadd.f32 %v4487, %v4519
        %v4536 = vadd.f32 %v4488, %v4520
        %v4537 = vadd.f32 %v4489, %v4521
        %v4538 = vadd.f32 %v4490, %v4522
        %v4539 = vadd.f32 %v4491, %v4523
        %v4540 = vadd.f32 %v4492, %v4524
        %v4541 = vadd.f32 %v4493, %v4525
        %v4542 = vadd.f32 %v4494, %v4526
        %v4543 = vadd.f32 %v4495, %v4527
        %v4544 = vperm.slane %v4256, 6
        %v4545 = vperm.slane %v4257, 6
        %v4546 = vperm.slane %v4258, 6
        %v4547 = vperm.slane %v4259, 6
        %v4548 = vperm.slane %v4260, 6
        %v4549 = vperm.slane %v4261, 6
        %v4550 = vperm.slane %v4262, 6
        %v4551 = vperm.slane %v4263, 6
        %v4552 = vperm.slane %v4264, 6
        %v4553 = vperm.slane %v4265, 6
        %v4554 = vperm.slane %v4266, 6
        %v4555 = vperm.slane %v4267, 6
        %v4556 = vperm.slane %v4268, 6
        %v4557 = vperm.slane %v4269, 6
        %v4558 = vperm.slane %v4270, 6
        %v4559 = vperm.slane %v4271, 6
        %v4560 = vmul.f32 %v4544, %v2350
        %v4561 = vmul.f32 %v4545, %v2351
        %v4562 = vmul.f32 %v4546, %v2350
        %v4563 = vmul.f32 %v4547, %v2351
        %v4564 = vmul.f32 %v4548, %v2350
        %v4565 = vmul.f32 %v4549, %v2351
        %v4566 = vmul.f32 %v4550, %v2350
        %v4567 = vmul.f32 %v4551, %v2351
        %v4568 = vmul.f32 %v4552, %v2350
        %v4569 = vmul.f32 %v4553, %v2351
        %v4570 = vmul.f32 %v4554, %v2350
        %v4571 = vmul.f32 %v4555, %v2351
        %v4572 = vmul.f32 %v4556, %v2350
        %v4573 = vmul.f32 %v4557, %v2351
        %v4574 = vmul.f32 %v4558, %v2350
        %v4575 = vmul.f32 %v4559, %v2351
        %v4576 = vadd.f32 %v4528, %v4560
        %v4577 = vadd.f32 %v4529, %v4561
        %v4578 = vadd.f32 %v4530, %v4562
        %v4579 = vadd.f32 %v4531, %v4563
        %v4580 = vadd.f32 %v4532, %v4564
        %v4581 = vadd.f32 %v4533, %v4565
        %v4582 = vadd.f32 %v4534, %v4566
        %v4583 = vadd.f32 %v4535, %v4567
        %v4584 = vadd.f32 %v4536, %v4568
        %v4585 = vadd.f32 %v4537, %v4569
        %v4586 = vadd.f32 %v4538, %v4570
        %v4587 = vadd.f32 %v4539, %v4571
        %v4588 = vadd.f32 %v4540, %v4572
        %v4589 = vadd.f32 %v4541, %v4573
        %v4590 = vadd.f32 %v4542, %v4574
        %v4591 = vadd.f32 %v4543, %v4575
        %v4592 = vperm.slane %v4256, 7
        %v4593 = vperm.slane %v4257, 7
        %v4594 = vperm.slane %v4258, 7
        %v4595 = vperm.slane %v4259, 7
        %v4596 = vperm.slane %v4260, 7
        %v4597 = vperm.slane %v4261, 7
        %v4598 = vperm.slane %v4262, 7
        %v4599 = vperm.slane %v4263, 7
        %v4600 = vperm.slane %v4264, 7
        %v4601 = vperm.slane %v4265, 7
        %v4602 = vperm.slane %v4266, 7
        %v4603 = vperm.slane %v4267, 7
        %v4604 = vperm.slane %v4268, 7
        %v4605 = vperm.slane %v4269, 7
        %v4606 = vperm.slane %v4270, 7
        %v4607 = vperm.slane %v4271, 7
        %v4608 = vmul.f32 %v4592, %v2358
        %v4609 = vmul.f32 %v4593, %v2359
        %v4610 = vmul.f32 %v4594, %v2358
        %v4611 = vmul.f32 %v4595, %v2359
        %v4612 = vmul.f32 %v4596, %v2358
        %v4613 = vmul.f32 %v4597, %v2359
        %v4614 = vmul.f32 %v4598, %v2358
        %v4615 = vmul.f32 %v4599, %v2359
        %v4616 = vmul.f32 %v4600, %v2358
        %v4617 = vmul.f32 %v4601, %v2359
        %v4618 = vmul.f32 %v4602, %v2358
        %v4619 = vmul.f32 %v4603, %v2359
        %v4620 = vmul.f32 %v4604, %v2358
        %v4621 = vmul.f32 %v4605, %v2359
        %v4622 = vmul.f32 %v4606, %v2358
        %v4623 = vmul.f32 %v4607, %v2359
        %v4624 = vadd.f32 %v4576, %v4608
        %v4625 = vadd.f32 %v4577, %v4609
        %v4626 = vadd.f32 %v4578, %v4610
        %v4627 = vadd.f32 %v4579, %v4611
        %v4628 = vadd.f32 %v4580, %v4612
        %v4629 = vadd.f32 %v4581, %v4613
        %v4630 = vadd.f32 %v4582, %v4614
        %v4631 = vadd.f32 %v4583, %v4615
        %v4632 = vadd.f32 %v4584, %v4616
        %v4633 = vadd.f32 %v4585, %v4617
        %v4634 = vadd.f32 %v4586, %v4618
        %v4635 = vadd.f32 %v4587, %v4619
        %v4636 = vadd.f32 %v4588, %v4620
        %v4637 = vadd.f32 %v4589, %v4621
        %v4638 = vadd.f32 %v4590, %v4622
        %v4639 = vadd.f32 %v4591, %v4623
        %v4640 = vperm.slane %v2562, 0
        %v4641 = vperm.slane %v2788, 0
        %v4642 = vperm.slane %v2568, 0
        %v4643 = vperm.slane %v2794, 0
        %v4644 = vperm.slane %v2574, 0
        %v4645 = vperm.slane %v2800, 0
        %v4646 = vperm.slane %v2580, 0
        %v4647 = vperm.slane %v2806, 0
        %v4648 = vperm.slane %v2586, 0
        %v4649 = vperm.slane %v2812, 0
        %v4650 = vperm.slane %v2592, 0
        %v4651 = vperm.slane %v2818, 0
        %v4652 = vperm.slane %v2598, 0
        %v4653 = vperm.slane %v2824, 0
        %v4654 = vperm.slane %v2604, 0
        %v4655 = vperm.slane %v2830, 0
        %v4656 = vmul.f32 %v4640, %v2631
        %v4657 = vmul.f32 %v4641, %v2857
        %v4658 = vmul.f32 %v4642, %v2631
        %v4659 = vmul.f32 %v4643, %v2857
        %v4660 = vmul.f32 %v4644, %v2631
        %v4661 = vmul.f32 %v4645, %v2857
        %v4662 = vmul.f32 %v4646, %v2631
        %v4663 = vmul.f32 %v4647, %v2857
        %v4664 = vmul.f32 %v4648, %v2631
        %v4665 = vmul.f32 %v4649, %v2857
        %v4666 = vmul.f32 %v4650, %v2631
        %v4667 = vmul.f32 %v4651, %v2857
        %v4668 = vmul.f32 %v4652, %v2631
        %v4669 = vmul.f32 %v4653, %v2857
        %v4670 = vmul.f32 %v4654, %v2631
        %v4671 = vmul.f32 %v4655, %v2857
        %v4672 = vperm.slane %v2562, 1
        %v4673 = vperm.slane %v2788, 1
        %v4674 = vperm.slane %v2568, 1
        %v4675 = vperm.slane %v2794, 1
        %v4676 = vperm.slane %v2574, 1
        %v4677 = vperm.slane %v2800, 1
        %v4678 = vperm.slane %v2580, 1
        %v4679 = vperm.slane %v2806, 1
        %v4680 = vperm.slane %v2586, 1
        %v4681 = vperm.slane %v2812, 1
        %v4682 = vperm.slane %v2592, 1
        %v4683 = vperm.slane %v2818, 1
        %v4684 = vperm.slane %v2598, 1
        %v4685 = vperm.slane %v2824, 1
        %v4686 = vperm.slane %v2604, 1
        %v4687 = vperm.slane %v2830, 1
        %v4688 = vmul.f32 %v4672, %v2634
        %v4689 = vmul.f32 %v4673, %v2860
        %v4690 = vmul.f32 %v4674, %v2634
        %v4691 = vmul.f32 %v4675, %v2860
        %v4692 = vmul.f32 %v4676, %v2634
        %v4693 = vmul.f32 %v4677, %v2860
        %v4694 = vmul.f32 %v4678, %v2634
        %v4695 = vmul.f32 %v4679, %v2860
        %v4696 = vmul.f32 %v4680, %v2634
        %v4697 = vmul.f32 %v4681, %v2860
        %v4698 = vmul.f32 %v4682, %v2634
        %v4699 = vmul.f32 %v4683, %v2860
        %v4700 = vmul.f32 %v4684, %v2634
        %v4701 = vmul.f32 %v4685, %v2860
        %v4702 = vmul.f32 %v4686, %v2634
        %v4703 = vmul.f32 %v4687, %v2860
        %v4704 = vadd.f32 %v4656, %v4688
        %v4705 = vadd.f32 %v4657, %v4689
        %v4706 = vadd.f32 %v4658, %v4690
        %v4707 = vadd.f32 %v4659, %v4691
        %v4708 = vadd.f32 %v4660, %v4692
        %v4709 = vadd.f32 %v4661, %v4693
        %v4710 = vadd.f32 %v4662, %v4694
        %v4711 = vadd.f32 %v4663, %v4695
        %v4712 = vadd.f32 %v4664, %v4696
        %v4713 = vadd.f32 %v4665, %v4697
        %v4714 = vadd.f32 %v4666, %v4698
        %v4715 = vadd.f32 %v4667, %v4699
        %v4716 = vadd.f32 %v4668, %v4700
        %v4717 = vadd.f32 %v4669, %v4701
        %v4718 = vadd.f32 %v4670, %v4702
        %v4719 = vadd.f32 %v4671, %v4703
        %v4720 = vperm.slane %v2562, 2
        %v4721 = vperm.slane %v2788, 2
        %v4722 = vperm.slane %v2568, 2
        %v4723 = vperm.slane %v2794, 2
        %v4724 = vperm.slane %v2574, 2
        %v4725 = vperm.slane %v2800, 2
        %v4726 = vperm.slane %v2580, 2
        %v4727 = vperm.slane %v2806, 2
        %v4728 = vperm.slane %v2586, 2
        %v4729 = vperm.slane %v2812, 2
        %v4730 = vperm.slane %v2592, 2
        %v4731 = vperm.slane %v2818, 2
        %v4732 = vperm.slane %v2598, 2
        %v4733 = vperm.slane %v2824, 2
        %v4734 = vperm.slane %v2604, 2
        %v4735 = vperm.slane %v2830, 2
        %v4736 = vmul.f32 %v4720, %v2637
        %v4737 = vmul.f32 %v4721, %v2863
        %v4738 = vmul.f32 %v4722, %v2637
        %v4739 = vmul.f32 %v4723, %v2863
        %v4740 = vmul.f32 %v4724, %v2637
        %v4741 = vmul.f32 %v4725, %v2863
        %v4742 = vmul.f32 %v4726, %v2637
        %v4743 = vmul.f32 %v4727, %v2863
        %v4744 = vmul.f32 %v4728, %v2637
        %v4745 = vmul.f32 %v4729, %v2863
        %v4746 = vmul.f32 %v4730, %v2637
        %v4747 = vmul.f32 %v4731, %v2863
        %v4748 = vmul.f32 %v4732, %v2637
        %v4749 = vmul.f32 %v4733, %v2863
        %v4750 = vmul.f32 %v4734, %v2637
        %v4751 = vmul.f32 %v4735, %v2863
        %v4752 = vadd.f32 %v4704, %v4736
        %v4753 = vadd.f32 %v4705, %v4737
        %v4754 = vadd.f32 %v4706, %v4738
        %v4755 = vadd.f32 %v4707, %v4739
        %v4756 = vadd.f32 %v4708, %v4740
        %v4757 = vadd.f32 %v4709, %v4741
        %v4758 = vadd.f32 %v4710, %v4742
        %v4759 = vadd.f32 %v4711, %v4743
        %v4760 = vadd.f32 %v4712, %v4744
        %v4761 = vadd.f32 %v4713, %v4745
        %v4762 = vadd.f32 %v4714, %v4746
        %v4763 = vadd.f32 %v4715, %v4747
        %v4764 = vadd.f32 %v4716, %v4748
        %v4765 = vadd.f32 %v4717, %v4749
        %v4766 = vadd.f32 %v4718, %v4750
        %v4767 = vadd.f32 %v4719, %v4751
        %v4768 = vperm.slane %v2562, 3
        %v4769 = vperm.slane %v2788, 3
        %v4770 = vperm.slane %v2568, 3
        %v4771 = vperm.slane %v2794, 3
        %v4772 = vperm.slane %v2574, 3
        %v4773 = vperm.slane %v2800, 3
        %v4774 = vperm.slane %v2580, 3
        %v4775 = vperm.slane %v2806, 3
        %v4776 = vperm.slane %v2586, 3
        %v4777 = vperm.slane %v2812, 3
        %v4778 = vperm.slane %v2592, 3
        %v4779 = vperm.slane %v2818, 3
        %v4780 = vperm.slane %v2598, 3
        %v4781 = vperm.slane %v2824, 3
        %v4782 = vperm.slane %v2604, 3
        %v4783 = vperm.slane %v2830, 3
        %v4784 = vmul.f32 %v4768, %v2640
        %v4785 = vmul.f32 %v4769, %v2866
        %v4786 = vmul.f32 %v4770, %v2640
        %v4787 = vmul.f32 %v4771, %v2866
        %v4788 = vmul.f32 %v4772, %v2640
        %v4789 = vmul.f32 %v4773, %v2866
        %v4790 = vmul.f32 %v4774, %v2640
        %v4791 = vmul.f32 %v4775, %v2866
        %v4792 = vmul.f32 %v4776, %v2640
        %v4793 = vmul.f32 %v4777, %v2866
        %v4794 = vmul.f32 %v4778, %v2640
        %v4795 = vmul.f32 %v4779, %v2866
        %v4796 = vmul.f32 %v4780, %v2640
        %v4797 = vmul.f32 %v4781, %v2866
        %v4798 = vmul.f32 %v4782, %v2640
        %v4799 = vmul.f32 %v4783, %v2866
        %v4800 = vadd.f32 %v4752, %v4784
        %v4801 = vadd.f32 %v4753, %v4785
        %v4802 = vadd.f32 %v4754, %v4786
        %v4803 = vadd.f32 %v4755, %v4787
        %v4804 = vadd.f32 %v4756, %v4788
        %v4805 = vadd.f32 %v4757, %v4789
        %v4806 = vadd.f32 %v4758, %v4790
        %v4807 = vadd.f32 %v4759, %v4791
        %v4808 = vadd.f32 %v4760, %v4792
        %v4809 = vadd.f32 %v4761, %v4793
        %v4810 = vadd.f32 %v4762, %v4794
        %v4811 = vadd.f32 %v4763, %v4795
        %v4812 = vadd.f32 %v4764, %v4796
        %v4813 = vadd.f32 %v4765, %v4797
        %v4814 = vadd.f32 %v4766, %v4798
        %v4815 = vadd.f32 %v4767, %v4799
        %v4816 = vmul.f32 %v4800, 0.5
        %v4817 = vmul.f32 %v4801, 0.5
        %v4818 = vmul.f32 %v4802, 0.5
        %v4819 = vmul.f32 %v4803, 0.5
        %v4820 = vmul.f32 %v4804, 0.5
        %v4821 = vmul.f32 %v4805, 0.5
        %v4822 = vmul.f32 %v4806, 0.5
        %v4823 = vmul.f32 %v4807, 0.5
        %v4824 = vmul.f32 %v4808, 0.5
        %v4825 = vmul.f32 %v4809, 0.5
        %v4826 = vmul.f32 %v4810, 0.5
        %v4827 = vmul.f32 %v4811, 0.5
        %v4828 = vmul.f32 %v4812, 0.5
        %v4829 = vmul.f32 %v4813, 0.5
        %v4830 = vmul.f32 %v4814, 0.5
        %v4831 = vmul.f32 %v4815, 0.5
        %v4832 = vrot.slane %v4816, 4
        %v4833 = vmax.f32 %v4816, %v4832
        %v4834 = vrot.slane %v4833, 2
        %v4835 = vmax.f32 %v4833, %v4834
        %v4836 = vrot.slane %v4835, 1
        %v4837 = vmax.f32 %v4835, %v4836
        %v4838 = vrot.slane %v4817, 4
        %v4839 = vmax.f32 %v4817, %v4838
        %v4840 = vrot.slane %v4839, 2
        %v4841 = vmax.f32 %v4839, %v4840
        %v4842 = vrot.slane %v4841, 1
        %v4843 = vmax.f32 %v4841, %v4842
        %v4844 = vrot.slane %v4818, 4
        %v4845 = vmax.f32 %v4818, %v4844
        %v4846 = vrot.slane %v4845, 2
        %v4847 = vmax.f32 %v4845, %v4846
        %v4848 = vrot.slane %v4847, 1
        %v4849 = vmax.f32 %v4847, %v4848
        %v4850 = vrot.slane %v4819, 4
        %v4851 = vmax.f32 %v4819, %v4850
        %v4852 = vrot.slane %v4851, 2
        %v4853 = vmax.f32 %v4851, %v4852
        %v4854 = vrot.slane %v4853, 1
        %v4855 = vmax.f32 %v4853, %v4854
        %v4856 = vrot.slane %v4820, 4
        %v4857 = vmax.f32 %v4820, %v4856
        %v4858 = vrot.slane %v4857, 2
        %v4859 = vmax.f32 %v4857, %v4858
        %v4860 = vrot.slane %v4859, 1
        %v4861 = vmax.f32 %v4859, %v4860
        %v4862 = vrot.slane %v4821, 4
        %v4863 = vmax.f32 %v4821, %v4862
        %v4864 = vrot.slane %v4863, 2
        %v4865 = vmax.f32 %v4863, %v4864
        %v4866 = vrot.slane %v4865, 1
        %v4867 = vmax.f32 %v4865, %v4866
        %v4868 = vrot.slane %v4822, 4
        %v4869 = vmax.f32 %v4822, %v4868
        %v4870 = vrot.slane %v4869, 2
        %v4871 = vmax.f32 %v4869, %v4870
        %v4872 = vrot.slane %v4871, 1
        %v4873 = vmax.f32 %v4871, %v4872
        %v4874 = vrot.slane %v4823, 4
        %v4875 = vmax.f32 %v4823, %v4874
        %v4876 = vrot.slane %v4875, 2
        %v4877 = vmax.f32 %v4875, %v4876
        %v4878 = vrot.slane %v4877, 1
        %v4879 = vmax.f32 %v4877, %v4878
        %v4880 = vrot.slane %v4824, 4
        %v4881 = vmax.f32 %v4824, %v4880
        %v4882 = vrot.slane %v4881, 2
        %v4883 = vmax.f32 %v4881, %v4882
        %v4884 = vrot.slane %v4883, 1
        %v4885 = vmax.f32 %v4883, %v4884
        %v4886 = vrot.slane %v4825, 4
        %v4887 = vmax.f32 %v4825, %v4886
        %v4888 = vrot.slane %v4887, 2
        %v4889 = vmax.f32 %v4887, %v4888
        %v4890 = vrot.slane %v4889, 1
        %v4891 = vmax.f32 %v4889, %v4890
        %v4892 = vrot.slane %v4826, 4
        %v4893 = vmax.f32 %v4826, %v4892
        %v4894 = vrot.slane %v4893, 2
        %v4895 = vmax.f32 %v4893, %v4894
        %v4896 = vrot.slane %v4895, 1
        %v4897 = vmax.f32 %v4895, %v4896
        %v4898 = vrot.slane %v4827, 4
        %v4899 = vmax.f32 %v4827, %v4898
        %v4900 = vrot.slane %v4899, 2
        %v4901 = vmax.f32 %v4899, %v4900
        %v4902 = vrot.slane %v4901, 1
        %v4903 = vmax.f32 %v4901, %v4902
        %v4904 = vrot.slane %v4828, 4
        %v4905 = vmax.f32 %v4828, %v4904
        %v4906 = vrot.slane %v4905, 2
        %v4907 = vmax.f32 %v4905, %v4906
        %v4908 = vrot.slane %v4907, 1
        %v4909 = vmax.f32 %v4907, %v4908
        %v4910 = vrot.slane %v4829, 4
        %v4911 = vmax.f32 %v4829, %v4910
        %v4912 = vrot.slane %v4911, 2
        %v4913 = vmax.f32 %v4911, %v4912
        %v4914 = vrot.slane %v4913, 1
        %v4915 = vmax.f32 %v4913, %v4914
        %v4916 = vrot.slane %v4830, 4
        %v4917 = vmax.f32 %v4830, %v4916
        %v4918 = vrot.slane %v4917, 2
        %v4919 = vmax.f32 %v4917, %v4918
        %v4920 = vrot.slane %v4919, 1
        %v4921 = vmax.f32 %v4919, %v4920
        %v4922 = vrot.slane %v4831, 4
        %v4923 = vmax.f32 %v4831, %v4922
        %v4924 = vrot.slane %v4923, 2
        %v4925 = vmax.f32 %v4923, %v4924
        %v4926 = vrot.slane %v4925, 1
        %v4927 = vmax.f32 %v4925, %v4926
        %v4928 = vsub.f32 %v4816, %v4837
        %v4929 = vsub.f32 %v4817, %v4843
        %v4930 = vsub.f32 %v4818, %v4849
        %v4931 = vsub.f32 %v4819, %v4855
        %v4932 = vsub.f32 %v4820, %v4861
        %v4933 = vsub.f32 %v4821, %v4867
        %v4934 = vsub.f32 %v4822, %v4873
        %v4935 = vsub.f32 %v4823, %v4879
        %v4936 = vsub.f32 %v4824, %v4885
        %v4937 = vsub.f32 %v4825, %v4891
        %v4938 = vsub.f32 %v4826, %v4897
        %v4939 = vsub.f32 %v4827, %v4903
        %v4940 = vsub.f32 %v4828, %v4909
        %v4941 = vsub.f32 %v4829, %v4915
        %v4942 = vsub.f32 %v4830, %v4921
        %v4943 = vsub.f32 %v4831, %v4927
        %v4944 = vmul.f32 %v4928, 1.442695
        %v4945 = vpow.pop %v4944
        %v4946 = vmul.f32 %v4929, 1.442695
        %v4947 = vpow.pop %v4946
        %v4948 = vmul.f32 %v4930, 1.442695
        %v4949 = vpow.pop %v4948
        %v4950 = vmul.f32 %v4931, 1.442695
        %v4951 = vpow.pop %v4950
        %v4952 = vmul.f32 %v4932, 1.442695
        %v4953 = vpow.pop %v4952
        %v4954 = vmul.f32 %v4933, 1.442695
        %v4955 = vpow.pop %v4954
        %v4956 = vmul.f32 %v4934, 1.442695
        %v4957 = vpow.pop %v4956
        %v4958 = vmul.f32 %v4935, 1.442695
        %v4959 = vpow.pop %v4958
        %v4960 = vmul.f32 %v4936, 1.442695
        %v4961 = vpow.pop %v4960
        %v4962 = vmul.f32 %v4937, 1.442695
        %v4963 = vpow.pop %v4962
        %v4964 = vmul.f32 %v4938, 1.442695
        %v4965 = vpow.pop %v4964
        %v4966 = vmul.f32 %v4939, 1.442695
        %v4967 = vpow.pop %v4966
        %v4968 = vmul.f32 %v4940, 1.442695
        %v4969 = vpow.pop %v4968
        %v4970 = vmul.f32 %v4941, 1.442695
        %v4971 = vpow.pop %v4970
        %v4972 = vmul.f32 %v4942, 1.442695
        %v4973 = vpow.pop %v4972
        %v4974 = vmul.f32 %v4943, 1.442695
        %v4975 = vpow.pop %v4974
        %v4976 = vrot.slane %v4945, 4
        %v4977 = vadd.f32 %v4945, %v4976
        %v4978 = vrot.slane %v4977, 2
        %v4979 = vadd.f32 %v4977, %v4978
        %v4980 = vrot.slane %v4979, 1
        %v4981 = vadd.f32 %v4979, %v4980
        %v4982 = vrot.slane %v4947, 4
        %v4983 = vadd.f32 %v4947, %v4982
        %v4984 = vrot.slane %v4983, 2
        %v4985 = vadd.f32 %v4983, %v4984
        %v4986 = vrot.slane %v4985, 1
        %v4987 = vadd.f32 %v4985, %v4986
        %v4988 = vrot.slane %v4949, 4
        %v4989 = vadd.f32 %v4949, %v4988
        %v4990 = vrot.slane %v4989, 2
        %v4991 = vadd.f32 %v4989, %v4990
        %v4992 = vrot.slane %v4991, 1
        %v4993 = vadd.f32 %v4991, %v4992
        %v4994 = vrot.slane %v4951, 4
        %v4995 = vadd.f32 %v4951, %v4994
        %v4996 = vrot.slane %v4995, 2
        %v4997 = vadd.f32 %v4995, %v4996
        %v4998 = vrot.slane %v4997, 1
        %v4999 = vadd.f32 %v4997, %v4998
        %v5000 = vrot.slane %v4953, 4
        %v5001 = vadd.f32 %v4953, %v5000
        %v5002 = vrot.slane %v5001, 2
        %v5003 = vadd.f32 %v5001, %v5002
        %v5004 = vrot.slane %v5003, 1
        %v5005 = vadd.f32 %v5003, %v5004
        %v5006 = vrot.slane %v4955, 4
        %v5007 = vadd.f32 %v4955, %v5006
        %v5008 = vrot.slane %v5007, 2
        %v5009 = vadd.f32 %v5007, %v5008
        %v5010 = vrot.slane %v5009, 1
        %v5011 = vadd.f32 %v5009, %v5010
        %v5012 = vrot.slane %v4957, 4
        %v5013 = vadd.f32 %v4957, %v5012
        %v5014 = vrot.slane %v5013, 2
        %v5015 = vadd.f32 %v5013, %v5014
        %v5016 = vrot.slane %v5015, 1
        %v5017 = vadd.f32 %v5015, %v5016
        %v5018 = vrot.slane %v4959, 4
        %v5019 = vadd.f32 %v4959, %v5018
        %v5020 = vrot.slane %v5019, 2
        %v5021 = vadd.f32 %v5019, %v5020
        %v5022 = vrot.slane %v5021, 1
        %v5023 = vadd.f32 %v5021, %v5022
        %v5024 = vrot.slane %v4961, 4
        %v5025 = vadd.f32 %v4961, %v5024
        %v5026 = vrot.slane %v5025, 2
        %v5027 = vadd.f32 %v5025, %v5026
        %v5028 = vrot.slane %v5027, 1
        %v5029 = vadd.f32 %v5027, %v5028
        %v5030 = vrot.slane %v4963, 4
        %v5031 = vadd.f32 %v4963, %v5030
        %v5032 = vrot.slane %v5031, 2
        %v5033 = vadd.f32 %v5031, %v5032
        %v5034 = vrot.slane %v5033, 1
        %v5035 = vadd.f32 %v5033, %v5034
        %v5036 = vrot.slane %v4965, 4
        %v5037 = vadd.f32 %v4965, %v5036
        %v5038 = vrot.slane %v5037, 2
        %v5039 = vadd.f32 %v5037, %v5038
        %v5040 = vrot.slane %v5039, 1
        %v5041 = vadd.f32 %v5039, %v5040
        %v5042 = vrot.slane %v4967, 4
        %v5043 = vadd.f32 %v4967, %v5042
        %v5044 = vrot.slane %v5043, 2
        %v5045 = vadd.f32 %v5043, %v5044
        %v5046 = vrot.slane %v5045, 1
        %v5047 = vadd.f32 %v5045, %v5046
        %v5048 = vrot.slane %v4969, 4
        %v5049 = vadd.f32 %v4969, %v5048
        %v5050 = vrot.slane %v5049, 2
        %v5051 = vadd.f32 %v5049, %v5050
        %v5052 = vrot.slane %v5051, 1
        %v5053 = vadd.f32 %v5051, %v5052
        %v5054 = vrot.slane %v4971, 4
        %v5055 = vadd.f32 %v4971, %v5054
        %v5056 = vrot.slane %v5055, 2
        %v5057 = vadd.f32 %v5055, %v5056
        %v5058 = vrot.slane %v5057, 1
        %v5059 = vadd.f32 %v5057, %v5058
        %v5060 = vrot.slane %v4973, 4
        %v5061 = vadd.f32 %v4973, %v5060
        %v5062 = vrot.slane %v5061, 2
        %v5063 = vadd.f32 %v5061, %v5062
        %v5064 = vrot.slane %v5063, 1
        %v5065 = vadd.f32 %v5063, %v5064
        %v5066 = vrot.slane %v4975, 4
        %v5067 = vadd.f32 %v4975, %v5066
        %v5068 = vrot.slane %v5067, 2
        %v5069 = vadd.f32 %v5067, %v5068
        %v5070 = vrot.slane %v5069, 1
        %v5071 = vadd.f32 %v5069, %v5070
        %v5072 = vrcp.pop %v4981
        %v5073 = vrcp.pop %v4987
        %v5074 = vrcp.pop %v4993
        %v5075 = vrcp.pop %v4999
        %v5076 = vrcp.pop %v5005
        %v5077 = vrcp.pop %v5011
        %v5078 = vrcp.pop %v5017
        %v5079 = vrcp.pop %v5023
        %v5080 = vrcp.pop %v5029
        %v5081 = vrcp.pop %v5035
        %v5082 = vrcp.pop %v5041
        %v5083 = vrcp.pop %v5047
        %v5084 = vrcp.pop %v5053
        %v5085 = vrcp.pop %v5059
        %v5086 = vrcp.pop %v5065
        %v5087 = vrcp.pop %v5071
        %v5088 = vmul.f32 %v4981, %v5072
        %v5089 = vmul.f32 %v4987, %v5073
        %v5090 = vmul.f32 %v4993, %v5074
        %v5091 = vmul.f32 %v4999, %v5075
        %v5092 = vmul.f32 %v5005, %v5076
        %v5093 = vmul.f32 %v5011, %v5077
        %v5094 = vmul.f32 %v5017, %v5078
        %v5095 = vmul.f32 %v5023, %v5079
        %v5096 = vmul.f32 %v5029, %v5080
        %v5097 = vmul.f32 %v5035, %v5081
        %v5098 = vmul.f32 %v5041, %v5082
        %v5099 = vmul.f32 %v5047, %v5083
        %v5100 = vmul.f32 %v5053, %v5084
        %v5101 = vmul.f32 %v5059, %v5085
        %v5102 = vmul.f32 %v5065, %v5086
        %v5103 = vmul.f32 %v5071, %v5087
        %v5104 = vsub.f32 2.0, %v5088
        %v5105 = vsub.f32 2.0, %v5089
        %v5106 = vsub.f32 2.0, %v5090
        %v5107 = vsub.f32 2.0, %v5091
        %v5108 = vsub.f32 2.0, %v5092
        %v5109 = vsub.f32 2.0, %v5093
        %v5110 = vsub.f32 2.0, %v5094
        %v5111 = vsub.f32 2.0, %v5095
        %v5112 = vsub.f32 2.0, %v5096
        %v5113 = vsub.f32 2.0, %v5097
        %v5114 = vsub.f32 2.0, %v5098
        %v5115 = vsub.f32 2.0, %v5099
        %v5116 = vsub.f32 2.0, %v5100
        %v5117 = vsub.f32 2.0, %v5101
        %v5118 = vsub.f32 2.0, %v5102
        %v5119 = vsub.f32 2.0, %v5103
        %v5120 = vmul.f32 %v5072, %v5104
        %v5121 = vmul.f32 %v5073, %v5105
        %v5122 = vmul.f32 %v5074, %v5106
        %v5123 = vmul.f32 %v5075, %v5107
        %v5124 = vmul.f32 %v5076, %v5108
        %v5125 = vmul.f32 %v5077, %v5109
        %v5126 = vmul.f32 %v5078, %v5110
        %v5127 = vmul.f32 %v5079, %v5111
        %v5128 = vmul.f32 %v5080, %v5112
        %v5129 = vmul.f32 %v5081, %v5113
        %v5130 = vmul.f32 %v5082, %v5114
        %v5131 = vmul.f32 %v5083, %v5115
        %v5132 = vmul.f32 %v5084, %v5116
        %v5133 = vmul.f32 %v5085, %v5117
        %v5134 = vmul.f32 %v5086, %v5118
        %v5135 = vmul.f32 %v5087, %v5119
        %v5136 = vmul.f32 %v4945, %v5120
        %v5137 = vmul.f32 %v4947, %v5121
        %v5138 = vmul.f32 %v4949, %v5122
        %v5139 = vmul.f32 %v4951, %v5123
        %v5140 = vmul.f32 %v4953, %v5124
        %v5141 = vmul.f32 %v4955, %v5125
        %v5142 = vmul.f32 %v4957, %v5126
        %v5143 = vmul.f32 %v4959, %v5127
        %v5144 = vmul.f32 %v4961, %v5128
        %v5145 = vmul.f32 %v4963, %v5129
        %v5146 = vmul.f32 %v4965, %v5130
        %v5147 = vmul.f32 %v4967, %v5131
        %v5148 = vmul.f32 %v4969, %v5132
        %v5149 = vmul.f32 %v4971, %v5133
        %v5150 = vmul.f32 %v4973, %v5134
        %v5151 = vmul.f32 %v4975, %v5135
        %v5152 = vperm.slane %v5136, 0
        %v5153 = vperm.slane %v5137, 0
        %v5154 = vperm.slane %v5138, 0
        %v5155 = vperm.slane %v5139, 0
        %v5156 = vperm.slane %v5140, 0
        %v5157 = vperm.slane %v5141, 0
        %v5158 = vperm.slane %v5142, 0
        %v5159 = vperm.slane %v5143, 0
        %v5160 = vperm.slane %v5144, 0
        %v5161 = vperm.slane %v5145, 0
        %v5162 = vperm.slane %v5146, 0
        %v5163 = vperm.slane %v5147, 0
        %v5164 = vperm.slane %v5148, 0
        %v5165 = vperm.slane %v5149, 0
        %v5166 = vperm.slane %v5150, 0
        %v5167 = vperm.slane %v5151, 0
        %v5168 = vmul.f32 %v5152, %v2304
        %v5169 = vmul.f32 %v5153, %v2305
        %v5170 = vmul.f32 %v5154, %v2304
        %v5171 = vmul.f32 %v5155, %v2305
        %v5172 = vmul.f32 %v5156, %v2304
        %v5173 = vmul.f32 %v5157, %v2305
        %v5174 = vmul.f32 %v5158, %v2304
        %v5175 = vmul.f32 %v5159, %v2305
        %v5176 = vmul.f32 %v5160, %v2304
        %v5177 = vmul.f32 %v5161, %v2305
        %v5178 = vmul.f32 %v5162, %v2304
        %v5179 = vmul.f32 %v5163, %v2305
        %v5180 = vmul.f32 %v5164, %v2304
        %v5181 = vmul.f32 %v5165, %v2305
        %v5182 = vmul.f32 %v5166, %v2304
        %v5183 = vmul.f32 %v5167, %v2305
        %v5184 = vperm.slane %v5136, 1
        %v5185 = vperm.slane %v5137, 1
        %v5186 = vperm.slane %v5138, 1
        %v5187 = vperm.slane %v5139, 1
        %v5188 = vperm.slane %v5140, 1
        %v5189 = vperm.slane %v5141, 1
        %v5190 = vperm.slane %v5142, 1
        %v5191 = vperm.slane %v5143, 1
        %v5192 = vperm.slane %v5144, 1
        %v5193 = vperm.slane %v5145, 1
        %v5194 = vperm.slane %v5146, 1
        %v5195 = vperm.slane %v5147, 1
        %v5196 = vperm.slane %v5148, 1
        %v5197 = vperm.slane %v5149, 1
        %v5198 = vperm.slane %v5150, 1
        %v5199 = vperm.slane %v5151, 1
        %v5200 = vmul.f32 %v5184, %v2312
        %v5201 = vmul.f32 %v5185, %v2313
        %v5202 = vmul.f32 %v5186, %v2312
        %v5203 = vmul.f32 %v5187, %v2313
        %v5204 = vmul.f32 %v5188, %v2312
        %v5205 = vmul.f32 %v5189, %v2313
        %v5206 = vmul.f32 %v5190, %v2312
        %v5207 = vmul.f32 %v5191, %v2313
        %v5208 = vmul.f32 %v5192, %v2312
        %v5209 = vmul.f32 %v5193, %v2313
        %v5210 = vmul.f32 %v5194, %v2312
        %v5211 = vmul.f32 %v5195, %v2313
        %v5212 = vmul.f32 %v5196, %v2312
        %v5213 = vmul.f32 %v5197, %v2313
        %v5214 = vmul.f32 %v5198, %v2312
        %v5215 = vmul.f32 %v5199, %v2313
        %v5216 = vadd.f32 %v5168, %v5200
        %v5217 = vadd.f32 %v5169, %v5201
        %v5218 = vadd.f32 %v5170, %v5202
        %v5219 = vadd.f32 %v5171, %v5203
        %v5220 = vadd.f32 %v5172, %v5204
        %v5221 = vadd.f32 %v5173, %v5205
        %v5222 = vadd.f32 %v5174, %v5206
        %v5223 = vadd.f32 %v5175, %v5207
        %v5224 = vadd.f32 %v5176, %v5208
        %v5225 = vadd.f32 %v5177, %v5209
        %v5226 = vadd.f32 %v5178, %v5210
        %v5227 = vadd.f32 %v5179, %v5211
        %v5228 = vadd.f32 %v5180, %v5212
        %v5229 = vadd.f32 %v5181, %v5213
        %v5230 = vadd.f32 %v5182, %v5214
        %v5231 = vadd.f32 %v5183, %v5215
        %v5232 = vperm.slane %v5136, 2
        %v5233 = vperm.slane %v5137, 2
        %v5234 = vperm.slane %v5138, 2
        %v5235 = vperm.slane %v5139, 2
        %v5236 = vperm.slane %v5140, 2
        %v5237 = vperm.slane %v5141, 2
        %v5238 = vperm.slane %v5142, 2
        %v5239 = vperm.slane %v5143, 2
        %v5240 = vperm.slane %v5144, 2
        %v5241 = vperm.slane %v5145, 2
        %v5242 = vperm.slane %v5146, 2
        %v5243 = vperm.slane %v5147, 2
        %v5244 = vperm.slane %v5148, 2
        %v5245 = vperm.slane %v5149, 2
        %v5246 = vperm.slane %v5150, 2
        %v5247 = vperm.slane %v5151, 2
        %v5248 = vmul.f32 %v5232, %v2320
        %v5249 = vmul.f32 %v5233, %v2321
        %v5250 = vmul.f32 %v5234, %v2320
        %v5251 = vmul.f32 %v5235, %v2321
        %v5252 = vmul.f32 %v5236, %v2320
        %v5253 = vmul.f32 %v5237, %v2321
        %v5254 = vmul.f32 %v5238, %v2320
        %v5255 = vmul.f32 %v5239, %v2321
        %v5256 = vmul.f32 %v5240, %v2320
        %v5257 = vmul.f32 %v5241, %v2321
        %v5258 = vmul.f32 %v5242, %v2320
        %v5259 = vmul.f32 %v5243, %v2321
        %v5260 = vmul.f32 %v5244, %v2320
        %v5261 = vmul.f32 %v5245, %v2321
        %v5262 = vmul.f32 %v5246, %v2320
        %v5263 = vmul.f32 %v5247, %v2321
        %v5264 = vadd.f32 %v5216, %v5248
        %v5265 = vadd.f32 %v5217, %v5249
        %v5266 = vadd.f32 %v5218, %v5250
        %v5267 = vadd.f32 %v5219, %v5251
        %v5268 = vadd.f32 %v5220, %v5252
        %v5269 = vadd.f32 %v5221, %v5253
        %v5270 = vadd.f32 %v5222, %v5254
        %v5271 = vadd.f32 %v5223, %v5255
        %v5272 = vadd.f32 %v5224, %v5256
        %v5273 = vadd.f32 %v5225, %v5257
        %v5274 = vadd.f32 %v5226, %v5258
        %v5275 = vadd.f32 %v5227, %v5259
        %v5276 = vadd.f32 %v5228, %v5260
        %v5277 = vadd.f32 %v5229, %v5261
        %v5278 = vadd.f32 %v5230, %v5262
        %v5279 = vadd.f32 %v5231, %v5263
        %v5280 = vperm.slane %v5136, 3
        %v5281 = vperm.slane %v5137, 3
        %v5282 = vperm.slane %v5138, 3
        %v5283 = vperm.slane %v5139, 3
        %v5284 = vperm.slane %v5140, 3
        %v5285 = vperm.slane %v5141, 3
        %v5286 = vperm.slane %v5142, 3
        %v5287 = vperm.slane %v5143, 3
        %v5288 = vperm.slane %v5144, 3
        %v5289 = vperm.slane %v5145, 3
        %v5290 = vperm.slane %v5146, 3
        %v5291 = vperm.slane %v5147, 3
        %v5292 = vperm.slane %v5148, 3
        %v5293 = vperm.slane %v5149, 3
        %v5294 = vperm.slane %v5150, 3
        %v5295 = vperm.slane %v5151, 3
        %v5296 = vmul.f32 %v5280, %v2328
        %v5297 = vmul.f32 %v5281, %v2329
        %v5298 = vmul.f32 %v5282, %v2328
        %v5299 = vmul.f32 %v5283, %v2329
        %v5300 = vmul.f32 %v5284, %v2328
        %v5301 = vmul.f32 %v5285, %v2329
        %v5302 = vmul.f32 %v5286, %v2328
        %v5303 = vmul.f32 %v5287, %v2329
        %v5304 = vmul.f32 %v5288, %v2328
        %v5305 = vmul.f32 %v5289, %v2329
        %v5306 = vmul.f32 %v5290, %v2328
        %v5307 = vmul.f32 %v5291, %v2329
        %v5308 = vmul.f32 %v5292, %v2328
        %v5309 = vmul.f32 %v5293, %v2329
        %v5310 = vmul.f32 %v5294, %v2328
        %v5311 = vmul.f32 %v5295, %v2329
        %v5312 = vadd.f32 %v5264, %v5296
        %v5313 = vadd.f32 %v5265, %v5297
        %v5314 = vadd.f32 %v5266, %v5298
        %v5315 = vadd.f32 %v5267, %v5299
        %v5316 = vadd.f32 %v5268, %v5300
        %v5317 = vadd.f32 %v5269, %v5301
        %v5318 = vadd.f32 %v5270, %v5302
        %v5319 = vadd.f32 %v5271, %v5303
        %v5320 = vadd.f32 %v5272, %v5304
        %v5321 = vadd.f32 %v5273, %v5305
        %v5322 = vadd.f32 %v5274, %v5306
        %v5323 = vadd.f32 %v5275, %v5307
        %v5324 = vadd.f32 %v5276, %v5308
        %v5325 = vadd.f32 %v5277, %v5309
        %v5326 = vadd.f32 %v5278, %v5310
        %v5327 = vadd.f32 %v5279, %v5311
        %v5328 = vperm.slane %v5136, 4
        %v5329 = vperm.slane %v5137, 4
        %v5330 = vperm.slane %v5138, 4
        %v5331 = vperm.slane %v5139, 4
        %v5332 = vperm.slane %v5140, 4
        %v5333 = vperm.slane %v5141, 4
        %v5334 = vperm.slane %v5142, 4
        %v5335 = vperm.slane %v5143, 4
        %v5336 = vperm.slane %v5144, 4
        %v5337 = vperm.slane %v5145, 4
        %v5338 = vperm.slane %v5146, 4
        %v5339 = vperm.slane %v5147, 4
        %v5340 = vperm.slane %v5148, 4
        %v5341 = vperm.slane %v5149, 4
        %v5342 = vperm.slane %v5150, 4
        %v5343 = vperm.slane %v5151, 4
        %v5344 = vmul.f32 %v5328, %v2336
        %v5345 = vmul.f32 %v5329, %v2337
        %v5346 = vmul.f32 %v5330, %v2336
        %v5347 = vmul.f32 %v5331, %v2337
        %v5348 = vmul.f32 %v5332, %v2336
        %v5349 = vmul.f32 %v5333, %v2337
        %v5350 = vmul.f32 %v5334, %v2336
        %v5351 = vmul.f32 %v5335, %v2337
        %v5352 = vmul.f32 %v5336, %v2336
        %v5353 = vmul.f32 %v5337, %v2337
        %v5354 = vmul.f32 %v5338, %v2336
        %v5355 = vmul.f32 %v5339, %v2337
        %v5356 = vmul.f32 %v5340, %v2336
        %v5357 = vmul.f32 %v5341, %v2337
        %v5358 = vmul.f32 %v5342, %v2336
        %v5359 = vmul.f32 %v5343, %v2337
        %v5360 = vadd.f32 %v5312, %v5344
        %v5361 = vadd.f32 %v5313, %v5345
        %v5362 = vadd.f32 %v5314, %v5346
        %v5363 = vadd.f32 %v5315, %v5347
        %v5364 = vadd.f32 %v5316, %v5348
        %v5365 = vadd.f32 %v5317, %v5349
        %v5366 = vadd.f32 %v5318, %v5350
        %v5367 = vadd.f32 %v5319, %v5351
        %v5368 = vadd.f32 %v5320, %v5352
        %v5369 = vadd.f32 %v5321, %v5353
        %v5370 = vadd.f32 %v5322, %v5354
        %v5371 = vadd.f32 %v5323, %v5355
        %v5372 = vadd.f32 %v5324, %v5356
        %v5373 = vadd.f32 %v5325, %v5357
        %v5374 = vadd.f32 %v5326, %v5358
        %v5375 = vadd.f32 %v5327, %v5359
        %v5376 = vperm.slane %v5136, 5
        %v5377 = vperm.slane %v5137, 5
        %v5378 = vperm.slane %v5138, 5
        %v5379 = vperm.slane %v5139, 5
        %v5380 = vperm.slane %v5140, 5
        %v5381 = vperm.slane %v5141, 5
        %v5382 = vperm.slane %v5142, 5
        %v5383 = vperm.slane %v5143, 5
        %v5384 = vperm.slane %v5144, 5
        %v5385 = vperm.slane %v5145, 5
        %v5386 = vperm.slane %v5146, 5
        %v5387 = vperm.slane %v5147, 5
        %v5388 = vperm.slane %v5148, 5
        %v5389 = vperm.slane %v5149, 5
        %v5390 = vperm.slane %v5150, 5
        %v5391 = vperm.slane %v5151, 5
        %v5392 = vmul.f32 %v5376, %v2344
        %v5393 = vmul.f32 %v5377, %v2345
        %v5394 = vmul.f32 %v5378, %v2344
        %v5395 = vmul.f32 %v5379, %v2345
        %v5396 = vmul.f32 %v5380, %v2344
        %v5397 = vmul.f32 %v5381, %v2345
        %v5398 = vmul.f32 %v5382, %v2344
        %v5399 = vmul.f32 %v5383, %v2345
        %v5400 = vmul.f32 %v5384, %v2344
        %v5401 = vmul.f32 %v5385, %v2345
        %v5402 = vmul.f32 %v5386, %v2344
        %v5403 = vmul.f32 %v5387, %v2345
        %v5404 = vmul.f32 %v5388, %v2344
        %v5405 = vmul.f32 %v5389, %v2345
        %v5406 = vmul.f32 %v5390, %v2344
        %v5407 = vmul.f32 %v5391, %v2345
        %v5408 = vadd.f32 %v5360, %v5392
        %v5409 = vadd.f32 %v5361, %v5393
        %v5410 = vadd.f32 %v5362, %v5394
        %v5411 = vadd.f32 %v5363, %v5395
        %v5412 = vadd.f32 %v5364, %v5396
        %v5413 = vadd.f32 %v5365, %v5397
        %v5414 = vadd.f32 %v5366, %v5398
        %v5415 = vadd.f32 %v5367, %v5399
        %v5416 = vadd.f32 %v5368, %v5400
        %v5417 = vadd.f32 %v5369, %v5401
        %v5418 = vadd.f32 %v5370, %v5402
        %v5419 = vadd.f32 %v5371, %v5403
        %v5420 = vadd.f32 %v5372, %v5404
        %v5421 = vadd.f32 %v5373, %v5405
        %v5422 = vadd.f32 %v5374, %v5406
        %v5423 = vadd.f32 %v5375, %v5407
        %v5424 = vperm.slane %v5136, 6
        %v5425 = vperm.slane %v5137, 6
        %v5426 = vperm.slane %v5138, 6
        %v5427 = vperm.slane %v5139, 6
        %v5428 = vperm.slane %v5140, 6
        %v5429 = vperm.slane %v5141, 6
        %v5430 = vperm.slane %v5142, 6
        %v5431 = vperm.slane %v5143, 6
        %v5432 = vperm.slane %v5144, 6
        %v5433 = vperm.slane %v5145, 6
        %v5434 = vperm.slane %v5146, 6
        %v5435 = vperm.slane %v5147, 6
        %v5436 = vperm.slane %v5148, 6
        %v5437 = vperm.slane %v5149, 6
        %v5438 = vperm.slane %v5150, 6
        %v5439 = vperm.slane %v5151, 6
        %v5440 = vmul.f32 %v5424, %v2352
        %v5441 = vmul.f32 %v5425, %v2353
        %v5442 = vmul.f32 %v5426, %v2352
        %v5443 = vmul.f32 %v5427, %v2353
        %v5444 = vmul.f32 %v5428, %v2352
        %v5445 = vmul.f32 %v5429, %v2353
        %v5446 = vmul.f32 %v5430, %v2352
        %v5447 = vmul.f32 %v5431, %v2353
        %v5448 = vmul.f32 %v5432, %v2352
        %v5449 = vmul.f32 %v5433, %v2353
        %v5450 = vmul.f32 %v5434, %v2352
        %v5451 = vmul.f32 %v5435, %v2353
        %v5452 = vmul.f32 %v5436, %v2352
        %v5453 = vmul.f32 %v5437, %v2353
        %v5454 = vmul.f32 %v5438, %v2352
        %v5455 = vmul.f32 %v5439, %v2353
        %v5456 = vadd.f32 %v5408, %v5440
        %v5457 = vadd.f32 %v5409, %v5441
        %v5458 = vadd.f32 %v5410, %v5442
        %v5459 = vadd.f32 %v5411, %v5443
        %v5460 = vadd.f32 %v5412, %v5444
        %v5461 = vadd.f32 %v5413, %v5445
        %v5462 = vadd.f32 %v5414, %v5446
        %v5463 = vadd.f32 %v5415, %v5447
        %v5464 = vadd.f32 %v5416, %v5448
        %v5465 = vadd.f32 %v5417, %v5449
        %v5466 = vadd.f32 %v5418, %v5450
        %v5467 = vadd.f32 %v5419, %v5451
        %v5468 = vadd.f32 %v5420, %v5452
        %v5469 = vadd.f32 %v5421, %v5453
        %v5470 = vadd.f32 %v5422, %v5454
        %v5471 = vadd.f32 %v5423, %v5455
        %v5472 = vperm.slane %v5136, 7
        %v5473 = vperm.slane %v5137, 7
        %v5474 = vperm.slane %v5138, 7
        %v5475 = vperm.slane %v5139, 7
        %v5476 = vperm.slane %v5140, 7
        %v5477 = vperm.slane %v5141, 7
        %v5478 = vperm.slane %v5142, 7
        %v5479 = vperm.slane %v5143, 7
        %v5480 = vperm.slane %v5144, 7
        %v5481 = vperm.slane %v5145, 7
        %v5482 = vperm.slane %v5146, 7
        %v5483 = vperm.slane %v5147, 7
        %v5484 = vperm.slane %v5148, 7
        %v5485 = vperm.slane %v5149, 7
        %v5486 = vperm.slane %v5150, 7
        %v5487 = vperm.slane %v5151, 7
        %v5488 = vmul.f32 %v5472, %v2360
        %v5489 = vmul.f32 %v5473, %v2361
        %v5490 = vmul.f32 %v5474, %v2360
        %v5491 = vmul.f32 %v5475, %v2361
        %v5492 = vmul.f32 %v5476, %v2360
        %v5493 = vmul.f32 %v5477, %v2361
        %v5494 = vmul.f32 %v5478, %v2360
        %v5495 = vmul.f32 %v5479, %v2361
        %v5496 = vmul.f32 %v5480, %v2360
        %v5497 = vmul.f32 %v5481, %v2361
        %v5498 = vmul.f32 %v5482, %v2360
        %v5499 = vmul.f32 %v5483, %v2361
        %v5500 = vmul.f32 %v5484, %v2360
        %v5501 = vmul.f32 %v5485, %v2361
        %v5502 = vmul.f32 %v5486, %v2360
        %v5503 = vmul.f32 %v5487, %v2361
        %v5504 = vadd.f32 %v5456, %v5488
        %v5505 = vadd.f32 %v5457, %v5489
        %v5506 = vadd.f32 %v5458, %v5490
        %v5507 = vadd.f32 %v5459, %v5491
        %v5508 = vadd.f32 %v5460, %v5492
        %v5509 = vadd.f32 %v5461, %v5493
        %v5510 = vadd.f32 %v5462, %v5494
        %v5511 = vadd.f32 %v5463, %v5495
        %v5512 = vadd.f32 %v5464, %v5496
        %v5513 = vadd.f32 %v5465, %v5497
        %v5514 = vadd.f32 %v5466, %v5498
        %v5515 = vadd.f32 %v5467, %v5499
        %v5516 = vadd.f32 %v5468, %v5500
        %v5517 = vadd.f32 %v5469, %v5501
        %v5518 = vadd.f32 %v5470, %v5502
        %v5519 = vadd.f32 %v5471, %v5503
        %v5520 = vperm.slane %v2562, 4
        %v5521 = vperm.slane %v2788, 4
        %v5522 = vperm.slane %v2568, 4
        %v5523 = vperm.slane %v2794, 4
        %v5524 = vperm.slane %v2574, 4
        %v5525 = vperm.slane %v2800, 4
        %v5526 = vperm.slane %v2580, 4
        %v5527 = vperm.slane %v2806, 4
        %v5528 = vperm.slane %v2586, 4
        %v5529 = vperm.slane %v2812, 4
        %v5530 = vperm.slane %v2592, 4
        %v5531 = vperm.slane %v2818, 4
        %v5532 = vperm.slane %v2598, 4
        %v5533 = vperm.slane %v2824, 4
        %v5534 = vperm.slane %v2604, 4
        %v5535 = vperm.slane %v2830, 4
        %v5536 = vmul.f32 %v5520, %v2643
        %v5537 = vmul.f32 %v5521, %v2869
        %v5538 = vmul.f32 %v5522, %v2643
        %v5539 = vmul.f32 %v5523, %v2869
        %v5540 = vmul.f32 %v5524, %v2643
        %v5541 = vmul.f32 %v5525, %v2869
        %v5542 = vmul.f32 %v5526, %v2643
        %v5543 = vmul.f32 %v5527, %v2869
        %v5544 = vmul.f32 %v5528, %v2643
        %v5545 = vmul.f32 %v5529, %v2869
        %v5546 = vmul.f32 %v5530, %v2643
        %v5547 = vmul.f32 %v5531, %v2869
        %v5548 = vmul.f32 %v5532, %v2643
        %v5549 = vmul.f32 %v5533, %v2869
        %v5550 = vmul.f32 %v5534, %v2643
        %v5551 = vmul.f32 %v5535, %v2869
        %v5552 = vperm.slane %v2562, 5
        %v5553 = vperm.slane %v2788, 5
        %v5554 = vperm.slane %v2568, 5
        %v5555 = vperm.slane %v2794, 5
        %v5556 = vperm.slane %v2574, 5
        %v5557 = vperm.slane %v2800, 5
        %v5558 = vperm.slane %v2580, 5
        %v5559 = vperm.slane %v2806, 5
        %v5560 = vperm.slane %v2586, 5
        %v5561 = vperm.slane %v2812, 5
        %v5562 = vperm.slane %v2592, 5
        %v5563 = vperm.slane %v2818, 5
        %v5564 = vperm.slane %v2598, 5
        %v5565 = vperm.slane %v2824, 5
        %v5566 = vperm.slane %v2604, 5
        %v5567 = vperm.slane %v2830, 5
        %v5568 = vmul.f32 %v5552, %v2646
        %v5569 = vmul.f32 %v5553, %v2872
        %v5570 = vmul.f32 %v5554, %v2646
        %v5571 = vmul.f32 %v5555, %v2872
        %v5572 = vmul.f32 %v5556, %v2646
        %v5573 = vmul.f32 %v5557, %v2872
        %v5574 = vmul.f32 %v5558, %v2646
        %v5575 = vmul.f32 %v5559, %v2872
        %v5576 = vmul.f32 %v5560, %v2646
        %v5577 = vmul.f32 %v5561, %v2872
        %v5578 = vmul.f32 %v5562, %v2646
        %v5579 = vmul.f32 %v5563, %v2872
        %v5580 = vmul.f32 %v5564, %v2646
        %v5581 = vmul.f32 %v5565, %v2872
        %v5582 = vmul.f32 %v5566, %v2646
        %v5583 = vmul.f32 %v5567, %v2872
        %v5584 = vadd.f32 %v5536, %v5568
        %v5585 = vadd.f32 %v5537, %v5569
        %v5586 = vadd.f32 %v5538, %v5570
        %v5587 = vadd.f32 %v5539, %v5571
        %v5588 = vadd.f32 %v5540, %v5572
        %v5589 = vadd.f32 %v5541, %v5573
        %v5590 = vadd.f32 %v5542, %v5574
        %v5591 = vadd.f32 %v5543, %v5575
        %v5592 = vadd.f32 %v5544, %v5576
        %v5593 = vadd.f32 %v5545, %v5577
        %v5594 = vadd.f32 %v5546, %v5578
        %v5595 = vadd.f32 %v5547, %v5579
        %v5596 = vadd.f32 %v5548, %v5580
        %v5597 = vadd.f32 %v5549, %v5581
        %v5598 = vadd.f32 %v5550, %v5582
        %v5599 = vadd.f32 %v5551, %v5583
        %v5600 = vperm.slane %v2562, 6
        %v5601 = vperm.slane %v2788, 6
        %v5602 = vperm.slane %v2568, 6
        %v5603 = vperm.slane %v2794, 6
        %v5604 = vperm.slane %v2574, 6
        %v5605 = vperm.slane %v2800, 6
        %v5606 = vperm.slane %v2580, 6
        %v5607 = vperm.slane %v2806, 6
        %v5608 = vperm.slane %v2586, 6
        %v5609 = vperm.slane %v2812, 6
        %v5610 = vperm.slane %v2592, 6
        %v5611 = vperm.slane %v2818, 6
        %v5612 = vperm.slane %v2598, 6
        %v5613 = vperm.slane %v2824, 6
        %v5614 = vperm.slane %v2604, 6
        %v5615 = vperm.slane %v2830, 6
        %v5616 = vmul.f32 %v5600, %v2649
        %v5617 = vmul.f32 %v5601, %v2875
        %v5618 = vmul.f32 %v5602, %v2649
        %v5619 = vmul.f32 %v5603, %v2875
        %v5620 = vmul.f32 %v5604, %v2649
        %v5621 = vmul.f32 %v5605, %v2875
        %v5622 = vmul.f32 %v5606, %v2649
        %v5623 = vmul.f32 %v5607, %v2875
        %v5624 = vmul.f32 %v5608, %v2649
        %v5625 = vmul.f32 %v5609, %v2875
        %v5626 = vmul.f32 %v5610, %v2649
        %v5627 = vmul.f32 %v5611, %v2875
        %v5628 = vmul.f32 %v5612, %v2649
        %v5629 = vmul.f32 %v5613, %v2875
        %v5630 = vmul.f32 %v5614, %v2649
        %v5631 = vmul.f32 %v5615, %v2875
        %v5632 = vadd.f32 %v5584, %v5616
        %v5633 = vadd.f32 %v5585, %v5617
        %v5634 = vadd.f32 %v5586, %v5618
        %v5635 = vadd.f32 %v5587, %v5619
        %v5636 = vadd.f32 %v5588, %v5620
        %v5637 = vadd.f32 %v5589, %v5621
        %v5638 = vadd.f32 %v5590, %v5622
        %v5639 = vadd.f32 %v5591, %v5623
        %v5640 = vadd.f32 %v5592, %v5624
        %v5641 = vadd.f32 %v5593, %v5625
        %v5642 = vadd.f32 %v5594, %v5626
        %v5643 = vadd.f32 %v5595, %v5627
        %v5644 = vadd.f32 %v5596, %v5628
        %v5645 = vadd.f32 %v5597, %v5629
        %v5646 = vadd.f32 %v5598, %v5630
        %v5647 = vadd.f32 %v5599, %v5631
        %v5648 = vperm.slane %v2562, 7
        %v5649 = vperm.slane %v2788, 7
        %v5650 = vperm.slane %v2568, 7
        %v5651 = vperm.slane %v2794, 7
        %v5652 = vperm.slane %v2574, 7
        %v5653 = vperm.slane %v2800, 7
        %v5654 = vperm.slane %v2580, 7
        %v5655 = vperm.slane %v2806, 7
        %v5656 = vperm.slane %v2586, 7
        %v5657 = vperm.slane %v2812, 7
        %v5658 = vperm.slane %v2592, 7
        %v5659 = vperm.slane %v2818, 7
        %v5660 = vperm.slane %v2598, 7
        %v5661 = vperm.slane %v2824, 7
        %v5662 = vperm.slane %v2604, 7
        %v5663 = vperm.slane %v2830, 7
        %v5664 = vmul.f32 %v5648, %v2652
        %v5665 = vmul.f32 %v5649, %v2878
        %v5666 = vmul.f32 %v5650, %v2652
        %v5667 = vmul.f32 %v5651, %v2878
        %v5668 = vmul.f32 %v5652, %v2652
        %v5669 = vmul.f32 %v5653, %v2878
        %v5670 = vmul.f32 %v5654, %v2652
        %v5671 = vmul.f32 %v5655, %v2878
        %v5672 = vmul.f32 %v5656, %v2652
        %v5673 = vmul.f32 %v5657, %v2878
        %v5674 = vmul.f32 %v5658, %v2652
        %v5675 = vmul.f32 %v5659, %v2878
        %v5676 = vmul.f32 %v5660, %v2652
        %v5677 = vmul.f32 %v5661, %v2878
        %v5678 = vmul.f32 %v5662, %v2652
        %v5679 = vmul.f32 %v5663, %v2878
        %v5680 = vadd.f32 %v5632, %v5664
        %v5681 = vadd.f32 %v5633, %v5665
        %v5682 = vadd.f32 %v5634, %v5666
        %v5683 = vadd.f32 %v5635, %v5667
        %v5684 = vadd.f32 %v5636, %v5668
        %v5685 = vadd.f32 %v5637, %v5669
        %v5686 = vadd.f32 %v5638, %v5670
        %v5687 = vadd.f32 %v5639, %v5671
        %v5688 = vadd.f32 %v5640, %v5672
        %v5689 = vadd.f32 %v5641, %v5673
        %v5690 = vadd.f32 %v5642, %v5674
        %v5691 = vadd.f32 %v5643, %v5675
        %v5692 = vadd.f32 %v5644, %v5676
        %v5693 = vadd.f32 %v5645, %v5677
        %v5694 = vadd.f32 %v5646, %v5678
        %v5695 = vadd.f32 %v5647, %v5679
        %v5696 = vmul.f32 %v5680, 0.5
        %v5697 = vmul.f32 %v5681, 0.5
        %v5698 = vmul.f32 %v5682, 0.5
        %v5699 = vmul.f32 %v5683, 0.5
        %v5700 = vmul.f32 %v5684, 0.5
        %v5701 = vmul.f32 %v5685, 0.5
        %v5702 = vmul.f32 %v5686, 0.5
        %v5703 = vmul.f32 %v5687, 0.5
        %v5704 = vmul.f32 %v5688, 0.5
        %v5705 = vmul.f32 %v5689, 0.5
        %v5706 = vmul.f32 %v5690, 0.5
        %v5707 = vmul.f32 %v5691, 0.5
        %v5708 = vmul.f32 %v5692, 0.5
        %v5709 = vmul.f32 %v5693, 0.5
        %v5710 = vmul.f32 %v5694, 0.5
        %v5711 = vmul.f32 %v5695, 0.5
        %v5712 = vrot.slane %v5696, 4
        %v5713 = vmax.f32 %v5696, %v5712
        %v5714 = vrot.slane %v5713, 2
        %v5715 = vmax.f32 %v5713, %v5714
        %v5716 = vrot.slane %v5715, 1
        %v5717 = vmax.f32 %v5715, %v5716
        %v5718 = vrot.slane %v5697, 4
        %v5719 = vmax.f32 %v5697, %v5718
        %v5720 = vrot.slane %v5719, 2
        %v5721 = vmax.f32 %v5719, %v5720
        %v5722 = vrot.slane %v5721, 1
        %v5723 = vmax.f32 %v5721, %v5722
        %v5724 = vrot.slane %v5698, 4
        %v5725 = vmax.f32 %v5698, %v5724
        %v5726 = vrot.slane %v5725, 2
        %v5727 = vmax.f32 %v5725, %v5726
        %v5728 = vrot.slane %v5727, 1
        %v5729 = vmax.f32 %v5727, %v5728
        %v5730 = vrot.slane %v5699, 4
        %v5731 = vmax.f32 %v5699, %v5730
        %v5732 = vrot.slane %v5731, 2
        %v5733 = vmax.f32 %v5731, %v5732
        %v5734 = vrot.slane %v5733, 1
        %v5735 = vmax.f32 %v5733, %v5734
        %v5736 = vrot.slane %v5700, 4
        %v5737 = vmax.f32 %v5700, %v5736
        %v5738 = vrot.slane %v5737, 2
        %v5739 = vmax.f32 %v5737, %v5738
        %v5740 = vrot.slane %v5739, 1
        %v5741 = vmax.f32 %v5739, %v5740
        %v5742 = vrot.slane %v5701, 4
        %v5743 = vmax.f32 %v5701, %v5742
        %v5744 = vrot.slane %v5743, 2
        %v5745 = vmax.f32 %v5743, %v5744
        %v5746 = vrot.slane %v5745, 1
        %v5747 = vmax.f32 %v5745, %v5746
        %v5748 = vrot.slane %v5702, 4
        %v5749 = vmax.f32 %v5702, %v5748
        %v5750 = vrot.slane %v5749, 2
        %v5751 = vmax.f32 %v5749, %v5750
        %v5752 = vrot.slane %v5751, 1
        %v5753 = vmax.f32 %v5751, %v5752
        %v5754 = vrot.slane %v5703, 4
        %v5755 = vmax.f32 %v5703, %v5754
        %v5756 = vrot.slane %v5755, 2
        %v5757 = vmax.f32 %v5755, %v5756
        %v5758 = vrot.slane %v5757, 1
        %v5759 = vmax.f32 %v5757, %v5758
        %v5760 = vrot.slane %v5704, 4
        %v5761 = vmax.f32 %v5704, %v5760
        %v5762 = vrot.slane %v5761, 2
        %v5763 = vmax.f32 %v5761, %v5762
        %v5764 = vrot.slane %v5763, 1
        %v5765 = vmax.f32 %v5763, %v5764
        %v5766 = vrot.slane %v5705, 4
        %v5767 = vmax.f32 %v5705, %v5766
        %v5768 = vrot.slane %v5767, 2
        %v5769 = vmax.f32 %v5767, %v5768
        %v5770 = vrot.slane %v5769, 1
        %v5771 = vmax.f32 %v5769, %v5770
        %v5772 = vrot.slane %v5706, 4
        %v5773 = vmax.f32 %v5706, %v5772
        %v5774 = vrot.slane %v5773, 2
        %v5775 = vmax.f32 %v5773, %v5774
        %v5776 = vrot.slane %v5775, 1
        %v5777 = vmax.f32 %v5775, %v5776
        %v5778 = vrot.slane %v5707, 4
        %v5779 = vmax.f32 %v5707, %v5778
        %v5780 = vrot.slane %v5779, 2
        %v5781 = vmax.f32 %v5779, %v5780
        %v5782 = vrot.slane %v5781, 1
        %v5783 = vmax.f32 %v5781, %v5782
        %v5784 = vrot.slane %v5708, 4
        %v5785 = vmax.f32 %v5708, %v5784
        %v5786 = vrot.slane %v5785, 2
        %v5787 = vmax.f32 %v5785, %v5786
        %v5788 = vrot.slane %v5787, 1
        %v5789 = vmax.f32 %v5787, %v5788
        %v5790 = vrot.slane %v5709, 4
        %v5791 = vmax.f32 %v5709, %v5790
        %v5792 = vrot.slane %v5791, 2
        %v5793 = vmax.f32 %v5791, %v5792
        %v5794 = vrot.slane %v5793, 1
        %v5795 = vmax.f32 %v5793, %v5794
        %v5796 = vrot.slane %v5710, 4
        %v5797 = vmax.f32 %v5710, %v5796
        %v5798 = vrot.slane %v5797, 2
        %v5799 = vmax.f32 %v5797, %v5798
        %v5800 = vrot.slane %v5799, 1
        %v5801 = vmax.f32 %v5799, %v5800
        %v5802 = vrot.slane %v5711, 4
        %v5803 = vmax.f32 %v5711, %v5802
        %v5804 = vrot.slane %v5803, 2
        %v5805 = vmax.f32 %v5803, %v5804
        %v5806 = vrot.slane %v5805, 1
        %v5807 = vmax.f32 %v5805, %v5806
        %v5808 = vsub.f32 %v5696, %v5717
        %v5809 = vsub.f32 %v5697, %v5723
        %v5810 = vsub.f32 %v5698, %v5729
        %v5811 = vsub.f32 %v5699, %v5735
        %v5812 = vsub.f32 %v5700, %v5741
        %v5813 = vsub.f32 %v5701, %v5747
        %v5814 = vsub.f32 %v5702, %v5753
        %v5815 = vsub.f32 %v5703, %v5759
        %v5816 = vsub.f32 %v5704, %v5765
        %v5817 = vsub.f32 %v5705, %v5771
        %v5818 = vsub.f32 %v5706, %v5777
        %v5819 = vsub.f32 %v5707, %v5783
        %v5820 = vsub.f32 %v5708, %v5789
        %v5821 = vsub.f32 %v5709, %v5795
        %v5822 = vsub.f32 %v5710, %v5801
        %v5823 = vsub.f32 %v5711, %v5807
        %v5824 = vmul.f32 %v5808, 1.442695
        %v5825 = vpow.pop %v5824
        %v5826 = vmul.f32 %v5809, 1.442695
        %v5827 = vpow.pop %v5826
        %v5828 = vmul.f32 %v5810, 1.442695
        %v5829 = vpow.pop %v5828
        %v5830 = vmul.f32 %v5811, 1.442695
        %v5831 = vpow.pop %v5830
        %v5832 = vmul.f32 %v5812, 1.442695
        %v5833 = vpow.pop %v5832
        %v5834 = vmul.f32 %v5813, 1.442695
        %v5835 = vpow.pop %v5834
        %v5836 = vmul.f32 %v5814, 1.442695
        %v5837 = vpow.pop %v5836
        %v5838 = vmul.f32 %v5815, 1.442695
        %v5839 = vpow.pop %v5838
        %v5840 = vmul.f32 %v5816, 1.442695
        %v5841 = vpow.pop %v5840
        %v5842 = vmul.f32 %v5817, 1.442695
        %v5843 = vpow.pop %v5842
        %v5844 = vmul.f32 %v5818, 1.442695
        %v5845 = vpow.pop %v5844
        %v5846 = vmul.f32 %v5819, 1.442695
        %v5847 = vpow.pop %v5846
        %v5848 = vmul.f32 %v5820, 1.442695
        %v5849 = vpow.pop %v5848
        %v5850 = vmul.f32 %v5821, 1.442695
        %v5851 = vpow.pop %v5850
        %v5852 = vmul.f32 %v5822, 1.442695
        %v5853 = vpow.pop %v5852
        %v5854 = vmul.f32 %v5823, 1.442695
        %v5855 = vpow.pop %v5854
        %v5856 = vrot.slane %v5825, 4
        %v5857 = vadd.f32 %v5825, %v5856
        %v5858 = vrot.slane %v5857, 2
        %v5859 = vadd.f32 %v5857, %v5858
        %v5860 = vrot.slane %v5859, 1
        %v5861 = vadd.f32 %v5859, %v5860
        %v5862 = vrot.slane %v5827, 4
        %v5863 = vadd.f32 %v5827, %v5862
        %v5864 = vrot.slane %v5863, 2
        %v5865 = vadd.f32 %v5863, %v5864
        %v5866 = vrot.slane %v5865, 1
        %v5867 = vadd.f32 %v5865, %v5866
        %v5868 = vrot.slane %v5829, 4
        %v5869 = vadd.f32 %v5829, %v5868
        %v5870 = vrot.slane %v5869, 2
        %v5871 = vadd.f32 %v5869, %v5870
        %v5872 = vrot.slane %v5871, 1
        %v5873 = vadd.f32 %v5871, %v5872
        %v5874 = vrot.slane %v5831, 4
        %v5875 = vadd.f32 %v5831, %v5874
        %v5876 = vrot.slane %v5875, 2
        %v5877 = vadd.f32 %v5875, %v5876
        %v5878 = vrot.slane %v5877, 1
        %v5879 = vadd.f32 %v5877, %v5878
        %v5880 = vrot.slane %v5833, 4
        %v5881 = vadd.f32 %v5833, %v5880
        %v5882 = vrot.slane %v5881, 2
        %v5883 = vadd.f32 %v5881, %v5882
        %v5884 = vrot.slane %v5883, 1
        %v5885 = vadd.f32 %v5883, %v5884
        %v5886 = vrot.slane %v5835, 4
        %v5887 = vadd.f32 %v5835, %v5886
        %v5888 = vrot.slane %v5887, 2
        %v5889 = vadd.f32 %v5887, %v5888
        %v5890 = vrot.slane %v5889, 1
        %v5891 = vadd.f32 %v5889, %v5890
        %v5892 = vrot.slane %v5837, 4
        %v5893 = vadd.f32 %v5837, %v5892
        %v5894 = vrot.slane %v5893, 2
        %v5895 = vadd.f32 %v5893, %v5894
        %v5896 = vrot.slane %v5895, 1
        %v5897 = vadd.f32 %v5895, %v5896
        %v5898 = vrot.slane %v5839, 4
        %v5899 = vadd.f32 %v5839, %v5898
        %v5900 = vrot.slane %v5899, 2
        %v5901 = vadd.f32 %v5899, %v5900
        %v5902 = vrot.slane %v5901, 1
        %v5903 = vadd.f32 %v5901, %v5902
        %v5904 = vrot.slane %v5841, 4
        %v5905 = vadd.f32 %v5841, %v5904
        %v5906 = vrot.slane %v5905, 2
        %v5907 = vadd.f32 %v5905, %v5906
        %v5908 = vrot.slane %v5907, 1
        %v5909 = vadd.f32 %v5907, %v5908
        %v5910 = vrot.slane %v5843, 4
        %v5911 = vadd.f32 %v5843, %v5910
        %v5912 = vrot.slane %v5911, 2
        %v5913 = vadd.f32 %v5911, %v5912
        %v5914 = vrot.slane %v5913, 1
        %v5915 = vadd.f32 %v5913, %v5914
        %v5916 = vrot.slane %v5845, 4
        %v5917 = vadd.f32 %v5845, %v5916
        %v5918 = vrot.slane %v5917, 2
        %v5919 = vadd.f32 %v5917, %v5918
        %v5920 = vrot.slane %v5919, 1
        %v5921 = vadd.f32 %v5919, %v5920
        %v5922 = vrot.slane %v5847, 4
        %v5923 = vadd.f32 %v5847, %v5922
        %v5924 = vrot.slane %v5923, 2
        %v5925 = vadd.f32 %v5923, %v5924
        %v5926 = vrot.slane %v5925, 1
        %v5927 = vadd.f32 %v5925, %v5926
        %v5928 = vrot.slane %v5849, 4
        %v5929 = vadd.f32 %v5849, %v5928
        %v5930 = vrot.slane %v5929, 2
        %v5931 = vadd.f32 %v5929, %v5930
        %v5932 = vrot.slane %v5931, 1
        %v5933 = vadd.f32 %v5931, %v5932
        %v5934 = vrot.slane %v5851, 4
        %v5935 = vadd.f32 %v5851, %v5934
        %v5936 = vrot.slane %v5935, 2
        %v5937 = vadd.f32 %v5935, %v5936
        %v5938 = vrot.slane %v5937, 1
        %v5939 = vadd.f32 %v5937, %v5938
        %v5940 = vrot.slane %v5853, 4
        %v5941 = vadd.f32 %v5853, %v5940
        %v5942 = vrot.slane %v5941, 2
        %v5943 = vadd.f32 %v5941, %v5942
        %v5944 = vrot.slane %v5943, 1
        %v5945 = vadd.f32 %v5943, %v5944
        %v5946 = vrot.slane %v5855, 4
        %v5947 = vadd.f32 %v5855, %v5946
        %v5948 = vrot.slane %v5947, 2
        %v5949 = vadd.f32 %v5947, %v5948
        %v5950 = vrot.slane %v5949, 1
        %v5951 = vadd.f32 %v5949, %v5950
        %v5952 = vrcp.pop %v5861
        %v5953 = vrcp.pop %v5867
        %v5954 = vrcp.pop %v5873
        %v5955 = vrcp.pop %v5879
        %v5956 = vrcp.pop %v5885
        %v5957 = vrcp.pop %v5891
        %v5958 = vrcp.pop %v5897
        %v5959 = vrcp.pop %v5903
        %v5960 = vrcp.pop %v5909
        %v5961 = vrcp.pop %v5915
        %v5962 = vrcp.pop %v5921
        %v5963 = vrcp.pop %v5927
        %v5964 = vrcp.pop %v5933
        %v5965 = vrcp.pop %v5939
        %v5966 = vrcp.pop %v5945
        %v5967 = vrcp.pop %v5951
        %v5968 = vmul.f32 %v5861, %v5952
        %v5969 = vmul.f32 %v5867, %v5953
        %v5970 = vmul.f32 %v5873, %v5954
        %v5971 = vmul.f32 %v5879, %v5955
        %v5972 = vmul.f32 %v5885, %v5956
        %v5973 = vmul.f32 %v5891, %v5957
        %v5974 = vmul.f32 %v5897, %v5958
        %v5975 = vmul.f32 %v5903, %v5959
        %v5976 = vmul.f32 %v5909, %v5960
        %v5977 = vmul.f32 %v5915, %v5961
        %v5978 = vmul.f32 %v5921, %v5962
        %v5979 = vmul.f32 %v5927, %v5963
        %v5980 = vmul.f32 %v5933, %v5964
        %v5981 = vmul.f32 %v5939, %v5965
        %v5982 = vmul.f32 %v5945, %v5966
        %v5983 = vmul.f32 %v5951, %v5967
        %v5984 = vsub.f32 2.0, %v5968
        %v5985 = vsub.f32 2.0, %v5969
        %v5986 = vsub.f32 2.0, %v5970
        %v5987 = vsub.f32 2.0, %v5971
        %v5988 = vsub.f32 2.0, %v5972
        %v5989 = vsub.f32 2.0, %v5973
        %v5990 = vsub.f32 2.0, %v5974
        %v5991 = vsub.f32 2.0, %v5975
        %v5992 = vsub.f32 2.0, %v5976
        %v5993 = vsub.f32 2.0, %v5977
        %v5994 = vsub.f32 2.0, %v5978
        %v5995 = vsub.f32 2.0, %v5979
        %v5996 = vsub.f32 2.0, %v5980
        %v5997 = vsub.f32 2.0, %v5981
        %v5998 = vsub.f32 2.0, %v5982
        %v5999 = vsub.f32 2.0, %v5983
        %v6000 = vmul.f32 %v5952, %v5984
        %v6001 = vmul.f32 %v5953, %v5985
        %v6002 = vmul.f32 %v5954, %v5986
        %v6003 = vmul.f32 %v5955, %v5987
        %v6004 = vmul.f32 %v5956, %v5988
        %v6005 = vmul.f32 %v5957, %v5989
        %v6006 = vmul.f32 %v5958, %v5990
        %v6007 = vmul.f32 %v5959, %v5991
        %v6008 = vmul.f32 %v5960, %v5992
        %v6009 = vmul.f32 %v5961, %v5993
        %v6010 = vmul.f32 %v5962, %v5994
        %v6011 = vmul.f32 %v5963, %v5995
        %v6012 = vmul.f32 %v5964, %v5996
        %v6013 = vmul.f32 %v5965, %v5997
        %v6014 = vmul.f32 %v5966, %v5998
        %v6015 = vmul.f32 %v5967, %v5999
        %v6016 = vmul.f32 %v5825, %v6000
        %v6017 = vmul.f32 %v5827, %v6001
        %v6018 = vmul.f32 %v5829, %v6002
        %v6019 = vmul.f32 %v5831, %v6003
        %v6020 = vmul.f32 %v5833, %v6004
        %v6021 = vmul.f32 %v5835, %v6005
        %v6022 = vmul.f32 %v5837, %v6006
        %v6023 = vmul.f32 %v5839, %v6007
        %v6024 = vmul.f32 %v5841, %v6008
        %v6025 = vmul.f32 %v5843, %v6009
        %v6026 = vmul.f32 %v5845, %v6010
        %v6027 = vmul.f32 %v5847, %v6011
        %v6028 = vmul.f32 %v5849, %v6012
        %v6029 = vmul.f32 %v5851, %v6013
        %v6030 = vmul.f32 %v5853, %v6014
        %v6031 = vmul.f32 %v5855, %v6015
        %v6032 = vperm.slane %v6016, 0
        %v6033 = vperm.slane %v6017, 0
        %v6034 = vperm.slane %v6018, 0
        %v6035 = vperm.slane %v6019, 0
        %v6036 = vperm.slane %v6020, 0
        %v6037 = vperm.slane %v6021, 0
        %v6038 = vperm.slane %v6022, 0
        %v6039 = vperm.slane %v6023, 0
        %v6040 = vperm.slane %v6024, 0
        %v6041 = vperm.slane %v6025, 0
        %v6042 = vperm.slane %v6026, 0
        %v6043 = vperm.slane %v6027, 0
        %v6044 = vperm.slane %v6028, 0
        %v6045 = vperm.slane %v6029, 0
        %v6046 = vperm.slane %v6030, 0
        %v6047 = vperm.slane %v6031, 0
        %v6048 = vmul.f32 %v6032, %v2306
        %v6049 = vmul.f32 %v6033, %v2307
        %v6050 = vmul.f32 %v6034, %v2306
        %v6051 = vmul.f32 %v6035, %v2307
        %v6052 = vmul.f32 %v6036, %v2306
        %v6053 = vmul.f32 %v6037, %v2307
        %v6054 = vmul.f32 %v6038, %v2306
        %v6055 = vmul.f32 %v6039, %v2307
        %v6056 = vmul.f32 %v6040, %v2306
        %v6057 = vmul.f32 %v6041, %v2307
        %v6058 = vmul.f32 %v6042, %v2306
        %v6059 = vmul.f32 %v6043, %v2307
        %v6060 = vmul.f32 %v6044, %v2306
        %v6061 = vmul.f32 %v6045, %v2307
        %v6062 = vmul.f32 %v6046, %v2306
        %v6063 = vmul.f32 %v6047, %v2307
        %v6064 = vperm.slane %v6016, 1
        %v6065 = vperm.slane %v6017, 1
        %v6066 = vperm.slane %v6018, 1
        %v6067 = vperm.slane %v6019, 1
        %v6068 = vperm.slane %v6020, 1
        %v6069 = vperm.slane %v6021, 1
        %v6070 = vperm.slane %v6022, 1
        %v6071 = vperm.slane %v6023, 1
        %v6072 = vperm.slane %v6024, 1
        %v6073 = vperm.slane %v6025, 1
        %v6074 = vperm.slane %v6026, 1
        %v6075 = vperm.slane %v6027, 1
        %v6076 = vperm.slane %v6028, 1
        %v6077 = vperm.slane %v6029, 1
        %v6078 = vperm.slane %v6030, 1
        %v6079 = vperm.slane %v6031, 1
        %v6080 = vmul.f32 %v6064, %v2314
        %v6081 = vmul.f32 %v6065, %v2315
        %v6082 = vmul.f32 %v6066, %v2314
        %v6083 = vmul.f32 %v6067, %v2315
        %v6084 = vmul.f32 %v6068, %v2314
        %v6085 = vmul.f32 %v6069, %v2315
        %v6086 = vmul.f32 %v6070, %v2314
        %v6087 = vmul.f32 %v6071, %v2315
        %v6088 = vmul.f32 %v6072, %v2314
        %v6089 = vmul.f32 %v6073, %v2315
        %v6090 = vmul.f32 %v6074, %v2314
        %v6091 = vmul.f32 %v6075, %v2315
        %v6092 = vmul.f32 %v6076, %v2314
        %v6093 = vmul.f32 %v6077, %v2315
        %v6094 = vmul.f32 %v6078, %v2314
        %v6095 = vmul.f32 %v6079, %v2315
        %v6096 = vadd.f32 %v6048, %v6080
        %v6097 = vadd.f32 %v6049, %v6081
        %v6098 = vadd.f32 %v6050, %v6082
        %v6099 = vadd.f32 %v6051, %v6083
        %v6100 = vadd.f32 %v6052, %v6084
        %v6101 = vadd.f32 %v6053, %v6085
        %v6102 = vadd.f32 %v6054, %v6086
        %v6103 = vadd.f32 %v6055, %v6087
        %v6104 = vadd.f32 %v6056, %v6088
        %v6105 = vadd.f32 %v6057, %v6089
        %v6106 = vadd.f32 %v6058, %v6090
        %v6107 = vadd.f32 %v6059, %v6091
        %v6108 = vadd.f32 %v6060, %v6092
        %v6109 = vadd.f32 %v6061, %v6093
        %v6110 = vadd.f32 %v6062, %v6094
        %v6111 = vadd.f32 %v6063, %v6095
        %v6112 = vperm.slane %v6016, 2
        %v6113 = vperm.slane %v6017, 2
        %v6114 = vperm.slane %v6018, 2
        %v6115 = vperm.slane %v6019, 2
        %v6116 = vperm.slane %v6020, 2
        %v6117 = vperm.slane %v6021, 2
        %v6118 = vperm.slane %v6022, 2
        %v6119 = vperm.slane %v6023, 2
        %v6120 = vperm.slane %v6024, 2
        %v6121 = vperm.slane %v6025, 2
        %v6122 = vperm.slane %v6026, 2
        %v6123 = vperm.slane %v6027, 2
        %v6124 = vperm.slane %v6028, 2
        %v6125 = vperm.slane %v6029, 2
        %v6126 = vperm.slane %v6030, 2
        %v6127 = vperm.slane %v6031, 2
        %v6128 = vmul.f32 %v6112, %v2322
        %v6129 = vmul.f32 %v6113, %v2323
        %v6130 = vmul.f32 %v6114, %v2322
        %v6131 = vmul.f32 %v6115, %v2323
        %v6132 = vmul.f32 %v6116, %v2322
        %v6133 = vmul.f32 %v6117, %v2323
        %v6134 = vmul.f32 %v6118, %v2322
        %v6135 = vmul.f32 %v6119, %v2323
        %v6136 = vmul.f32 %v6120, %v2322
        %v6137 = vmul.f32 %v6121, %v2323
        %v6138 = vmul.f32 %v6122, %v2322
        %v6139 = vmul.f32 %v6123, %v2323
        %v6140 = vmul.f32 %v6124, %v2322
        %v6141 = vmul.f32 %v6125, %v2323
        %v6142 = vmul.f32 %v6126, %v2322
        %v6143 = vmul.f32 %v6127, %v2323
        %v6144 = vadd.f32 %v6096, %v6128
        %v6145 = vadd.f32 %v6097, %v6129
        %v6146 = vadd.f32 %v6098, %v6130
        %v6147 = vadd.f32 %v6099, %v6131
        %v6148 = vadd.f32 %v6100, %v6132
        %v6149 = vadd.f32 %v6101, %v6133
        %v6150 = vadd.f32 %v6102, %v6134
        %v6151 = vadd.f32 %v6103, %v6135
        %v6152 = vadd.f32 %v6104, %v6136
        %v6153 = vadd.f32 %v6105, %v6137
        %v6154 = vadd.f32 %v6106, %v6138
        %v6155 = vadd.f32 %v6107, %v6139
        %v6156 = vadd.f32 %v6108, %v6140
        %v6157 = vadd.f32 %v6109, %v6141
        %v6158 = vadd.f32 %v6110, %v6142
        %v6159 = vadd.f32 %v6111, %v6143
        %v6160 = vperm.slane %v6016, 3
        %v6161 = vperm.slane %v6017, 3
        %v6162 = vperm.slane %v6018, 3
        %v6163 = vperm.slane %v6019, 3
        %v6164 = vperm.slane %v6020, 3
        %v6165 = vperm.slane %v6021, 3
        %v6166 = vperm.slane %v6022, 3
        %v6167 = vperm.slane %v6023, 3
        %v6168 = vperm.slane %v6024, 3
        %v6169 = vperm.slane %v6025, 3
        %v6170 = vperm.slane %v6026, 3
        %v6171 = vperm.slane %v6027, 3
        %v6172 = vperm.slane %v6028, 3
        %v6173 = vperm.slane %v6029, 3
        %v6174 = vperm.slane %v6030, 3
        %v6175 = vperm.slane %v6031, 3
        %v6176 = vmul.f32 %v6160, %v2330
        %v6177 = vmul.f32 %v6161, %v2331
        %v6178 = vmul.f32 %v6162, %v2330
        %v6179 = vmul.f32 %v6163, %v2331
        %v6180 = vmul.f32 %v6164, %v2330
        %v6181 = vmul.f32 %v6165, %v2331
        %v6182 = vmul.f32 %v6166, %v2330
        %v6183 = vmul.f32 %v6167, %v2331
        %v6184 = vmul.f32 %v6168, %v2330
        %v6185 = vmul.f32 %v6169, %v2331
        %v6186 = vmul.f32 %v6170, %v2330
        %v6187 = vmul.f32 %v6171, %v2331
        %v6188 = vmul.f32 %v6172, %v2330
        %v6189 = vmul.f32 %v6173, %v2331
        %v6190 = vmul.f32 %v6174, %v2330
        %v6191 = vmul.f32 %v6175, %v2331
        %v6192 = vadd.f32 %v6144, %v6176
        %v6193 = vadd.f32 %v6145, %v6177
        %v6194 = vadd.f32 %v6146, %v6178
        %v6195 = vadd.f32 %v6147, %v6179
        %v6196 = vadd.f32 %v6148, %v6180
        %v6197 = vadd.f32 %v6149, %v6181
        %v6198 = vadd.f32 %v6150, %v6182
        %v6199 = vadd.f32 %v6151, %v6183
        %v6200 = vadd.f32 %v6152, %v6184
        %v6201 = vadd.f32 %v6153, %v6185
        %v6202 = vadd.f32 %v6154, %v6186
        %v6203 = vadd.f32 %v6155, %v6187
        %v6204 = vadd.f32 %v6156, %v6188
        %v6205 = vadd.f32 %v6157, %v6189
        %v6206 = vadd.f32 %v6158, %v6190
        %v6207 = vadd.f32 %v6159, %v6191
        %v6208 = vperm.slane %v6016, 4
        %v6209 = vperm.slane %v6017, 4
        %v6210 = vperm.slane %v6018, 4
        %v6211 = vperm.slane %v6019, 4
        %v6212 = vperm.slane %v6020, 4
        %v6213 = vperm.slane %v6021, 4
        %v6214 = vperm.slane %v6022, 4
        %v6215 = vperm.slane %v6023, 4
        %v6216 = vperm.slane %v6024, 4
        %v6217 = vperm.slane %v6025, 4
        %v6218 = vperm.slane %v6026, 4
        %v6219 = vperm.slane %v6027, 4
        %v6220 = vperm.slane %v6028, 4
        %v6221 = vperm.slane %v6029, 4
        %v6222 = vperm.slane %v6030, 4
        %v6223 = vperm.slane %v6031, 4
        %v6224 = vmul.f32 %v6208, %v2338
        %v6225 = vmul.f32 %v6209, %v2339
        %v6226 = vmul.f32 %v6210, %v2338
        %v6227 = vmul.f32 %v6211, %v2339
        %v6228 = vmul.f32 %v6212, %v2338
        %v6229 = vmul.f32 %v6213, %v2339
        %v6230 = vmul.f32 %v6214, %v2338
        %v6231 = vmul.f32 %v6215, %v2339
        %v6232 = vmul.f32 %v6216, %v2338
        %v6233 = vmul.f32 %v6217, %v2339
        %v6234 = vmul.f32 %v6218, %v2338
        %v6235 = vmul.f32 %v6219, %v2339
        %v6236 = vmul.f32 %v6220, %v2338
        %v6237 = vmul.f32 %v6221, %v2339
        %v6238 = vmul.f32 %v6222, %v2338
        %v6239 = vmul.f32 %v6223, %v2339
        %v6240 = vadd.f32 %v6192, %v6224
        %v6241 = vadd.f32 %v6193, %v6225
        %v6242 = vadd.f32 %v6194, %v6226
        %v6243 = vadd.f32 %v6195, %v6227
        %v6244 = vadd.f32 %v6196, %v6228
        %v6245 = vadd.f32 %v6197, %v6229
        %v6246 = vadd.f32 %v6198, %v6230
        %v6247 = vadd.f32 %v6199, %v6231
        %v6248 = vadd.f32 %v6200, %v6232
        %v6249 = vadd.f32 %v6201, %v6233
        %v6250 = vadd.f32 %v6202, %v6234
        %v6251 = vadd.f32 %v6203, %v6235
        %v6252 = vadd.f32 %v6204, %v6236
        %v6253 = vadd.f32 %v6205, %v6237
        %v6254 = vadd.f32 %v6206, %v6238
        %v6255 = vadd.f32 %v6207, %v6239
        %v6256 = vperm.slane %v6016, 5
        %v6257 = vperm.slane %v6017, 5
        %v6258 = vperm.slane %v6018, 5
        %v6259 = vperm.slane %v6019, 5
        %v6260 = vperm.slane %v6020, 5
        %v6261 = vperm.slane %v6021, 5
        %v6262 = vperm.slane %v6022, 5
        %v6263 = vperm.slane %v6023, 5
        %v6264 = vperm.slane %v6024, 5
        %v6265 = vperm.slane %v6025, 5
        %v6266 = vperm.slane %v6026, 5
        %v6267 = vperm.slane %v6027, 5
        %v6268 = vperm.slane %v6028, 5
        %v6269 = vperm.slane %v6029, 5
        %v6270 = vperm.slane %v6030, 5
        %v6271 = vperm.slane %v6031, 5
        %v6272 = vmul.f32 %v6256, %v2346
        %v6273 = vmul.f32 %v6257, %v2347
        %v6274 = vmul.f32 %v6258, %v2346
        %v6275 = vmul.f32 %v6259, %v2347
        %v6276 = vmul.f32 %v6260, %v2346
        %v6277 = vmul.f32 %v6261, %v2347
        %v6278 = vmul.f32 %v6262, %v2346
        %v6279 = vmul.f32 %v6263, %v2347
        %v6280 = vmul.f32 %v6264, %v2346
        %v6281 = vmul.f32 %v6265, %v2347
        %v6282 = vmul.f32 %v6266, %v2346
        %v6283 = vmul.f32 %v6267, %v2347
        %v6284 = vmul.f32 %v6268, %v2346
        %v6285 = vmul.f32 %v6269, %v2347
        %v6286 = vmul.f32 %v6270, %v2346
        %v6287 = vmul.f32 %v6271, %v2347
        %v6288 = vadd.f32 %v6240, %v6272
        %v6289 = vadd.f32 %v6241, %v6273
        %v6290 = vadd.f32 %v6242, %v6274
        %v6291 = vadd.f32 %v6243, %v6275
        %v6292 = vadd.f32 %v6244, %v6276
        %v6293 = vadd.f32 %v6245, %v6277
        %v6294 = vadd.f32 %v6246, %v6278
        %v6295 = vadd.f32 %v6247, %v6279
        %v6296 = vadd.f32 %v6248, %v6280
        %v6297 = vadd.f32 %v6249, %v6281
        %v6298 = vadd.f32 %v6250, %v6282
        %v6299 = vadd.f32 %v6251, %v6283
        %v6300 = vadd.f32 %v6252, %v6284
        %v6301 = vadd.f32 %v6253, %v6285
        %v6302 = vadd.f32 %v6254, %v6286
        %v6303 = vadd.f32 %v6255, %v6287
        %v6304 = vperm.slane %v6016, 6
        %v6305 = vperm.slane %v6017, 6
        %v6306 = vperm.slane %v6018, 6
        %v6307 = vperm.slane %v6019, 6
        %v6308 = vperm.slane %v6020, 6
        %v6309 = vperm.slane %v6021, 6
        %v6310 = vperm.slane %v6022, 6
        %v6311 = vperm.slane %v6023, 6
        %v6312 = vperm.slane %v6024, 6
        %v6313 = vperm.slane %v6025, 6
        %v6314 = vperm.slane %v6026, 6
        %v6315 = vperm.slane %v6027, 6
        %v6316 = vperm.slane %v6028, 6
        %v6317 = vperm.slane %v6029, 6
        %v6318 = vperm.slane %v6030, 6
        %v6319 = vperm.slane %v6031, 6
        %v6320 = vmul.f32 %v6304, %v2354
        %v6321 = vmul.f32 %v6305, %v2355
        %v6322 = vmul.f32 %v6306, %v2354
        %v6323 = vmul.f32 %v6307, %v2355
        %v6324 = vmul.f32 %v6308, %v2354
        %v6325 = vmul.f32 %v6309, %v2355
        %v6326 = vmul.f32 %v6310, %v2354
        %v6327 = vmul.f32 %v6311, %v2355
        %v6328 = vmul.f32 %v6312, %v2354
        %v6329 = vmul.f32 %v6313, %v2355
        %v6330 = vmul.f32 %v6314, %v2354
        %v6331 = vmul.f32 %v6315, %v2355
        %v6332 = vmul.f32 %v6316, %v2354
        %v6333 = vmul.f32 %v6317, %v2355
        %v6334 = vmul.f32 %v6318, %v2354
        %v6335 = vmul.f32 %v6319, %v2355
        %v6336 = vadd.f32 %v6288, %v6320
        %v6337 = vadd.f32 %v6289, %v6321
        %v6338 = vadd.f32 %v6290, %v6322
        %v6339 = vadd.f32 %v6291, %v6323
        %v6340 = vadd.f32 %v6292, %v6324
        %v6341 = vadd.f32 %v6293, %v6325
        %v6342 = vadd.f32 %v6294, %v6326
        %v6343 = vadd.f32 %v6295, %v6327
        %v6344 = vadd.f32 %v6296, %v6328
        %v6345 = vadd.f32 %v6297, %v6329
        %v6346 = vadd.f32 %v6298, %v6330
        %v6347 = vadd.f32 %v6299, %v6331
        %v6348 = vadd.f32 %v6300, %v6332
        %v6349 = vadd.f32 %v6301, %v6333
        %v6350 = vadd.f32 %v6302, %v6334
        %v6351 = vadd.f32 %v6303, %v6335
        %v6352 = vperm.slane %v6016, 7
        %v6353 = vperm.slane %v6017, 7
        %v6354 = vperm.slane %v6018, 7
        %v6355 = vperm.slane %v6019, 7
        %v6356 = vperm.slane %v6020, 7
        %v6357 = vperm.slane %v6021, 7
        %v6358 = vperm.slane %v6022, 7
        %v6359 = vperm.slane %v6023, 7
        %v6360 = vperm.slane %v6024, 7
        %v6361 = vperm.slane %v6025, 7
        %v6362 = vperm.slane %v6026, 7
        %v6363 = vperm.slane %v6027, 7
        %v6364 = vperm.slane %v6028, 7
        %v6365 = vperm.slane %v6029, 7
        %v6366 = vperm.slane %v6030, 7
        %v6367 = vperm.slane %v6031, 7
        %v6368 = vmul.f32 %v6352, %v2362
        %v6369 = vmul.f32 %v6353, %v2363
        %v6370 = vmul.f32 %v6354, %v2362
        %v6371 = vmul.f32 %v6355, %v2363
        %v6372 = vmul.f32 %v6356, %v2362
        %v6373 = vmul.f32 %v6357, %v2363
        %v6374 = vmul.f32 %v6358, %v2362
        %v6375 = vmul.f32 %v6359, %v2363
        %v6376 = vmul.f32 %v6360, %v2362
        %v6377 = vmul.f32 %v6361, %v2363
        %v6378 = vmul.f32 %v6362, %v2362
        %v6379 = vmul.f32 %v6363, %v2363
        %v6380 = vmul.f32 %v6364, %v2362
        %v6381 = vmul.f32 %v6365, %v2363
        %v6382 = vmul.f32 %v6366, %v2362
        %v6383 = vmul.f32 %v6367, %v2363
        %v6384 = vadd.f32 %v6336, %v6368
        %v6385 = vadd.f32 %v6337, %v6369
        %v6386 = vadd.f32 %v6338, %v6370
        %v6387 = vadd.f32 %v6339, %v6371
        %v6388 = vadd.f32 %v6340, %v6372
        %v6389 = vadd.f32 %v6341, %v6373
        %v6390 = vadd.f32 %v6342, %v6374
        %v6391 = vadd.f32 %v6343, %v6375
        %v6392 = vadd.f32 %v6344, %v6376
        %v6393 = vadd.f32 %v6345, %v6377
        %v6394 = vadd.f32 %v6346, %v6378
        %v6395 = vadd.f32 %v6347, %v6379
        %v6396 = vadd.f32 %v6348, %v6380
        %v6397 = vadd.f32 %v6349, %v6381
        %v6398 = vadd.f32 %v6350, %v6382
        %v6399 = vadd.f32 %v6351, %v6383
        %v6400 = vadd.f32 %v325, %v3744
        %v6401 = vadd.f32 %v326, %v3745
        %v6402 = vadd.f32 %v327, %v4624
        %v6403 = vadd.f32 %v328, %v4625
        %v6404 = vadd.f32 %v329, %v5504
        %v6405 = vadd.f32 %v330, %v5505
        %v6406 = vadd.f32 %v331, %v6384
        %v6407 = vadd.f32 %v332, %v6385
        %v6408 = vadd.f32 %v333, %v3746
        %v6409 = vadd.f32 %v334, %v3747
        %v6410 = vadd.f32 %v335, %v4626
        %v6411 = vadd.f32 %v336, %v4627
        %v6412 = vadd.f32 %v337, %v5506
        %v6413 = vadd.f32 %v338, %v5507
        %v6414 = vadd.f32 %v339, %v6386
        %v6415 = vadd.f32 %v340, %v6387
        %v6416 = vadd.f32 %v341, %v3748
        %v6417 = vadd.f32 %v342, %v3749
        %v6418 = vadd.f32 %v343, %v4628
        %v6419 = vadd.f32 %v344, %v4629
        %v6420 = vadd.f32 %v345, %v5508
        %v6421 = vadd.f32 %v346, %v5509
        %v6422 = vadd.f32 %v347, %v6388
        %v6423 = vadd.f32 %v348, %v6389
        %v6424 = vadd.f32 %v349, %v3750
        %v6425 = vadd.f32 %v350, %v3751
        %v6426 = vadd.f32 %v351, %v4630
        %v6427 = vadd.f32 %v352, %v4631
        %v6428 = vadd.f32 %v353, %v5510
        %v6429 = vadd.f32 %v354, %v5511
        %v6430 = vadd.f32 %v355, %v6390
        %v6431 = vadd.f32 %v356, %v6391
        %v6432 = vadd.f32 %v357, %v3752
        %v6433 = vadd.f32 %v358, %v3753
        %v6434 = vadd.f32 %v359, %v4632
        %v6435 = vadd.f32 %v360, %v4633
        %v6436 = vadd.f32 %v361, %v5512
        %v6437 = vadd.f32 %v362, %v5513
        %v6438 = vadd.f32 %v363, %v6392
        %v6439 = vadd.f32 %v364, %v6393
        %v6440 = vadd.f32 %v365, %v3754
        %v6441 = vadd.f32 %v366, %v3755
        %v6442 = vadd.f32 %v367, %v4634
        %v6443 = vadd.f32 %v368, %v4635
        %v6444 = vadd.f32 %v369, %v5514
        %v6445 = vadd.f32 %v370, %v5515
        %v6446 = vadd.f32 %v371, %v6394
        %v6447 = vadd.f32 %v372, %v6395
        %v6448 = vadd.f32 %v373, %v3756
        %v6449 = vadd.f32 %v374, %v3757
        %v6450 = vadd.f32 %v375, %v4636
        %v6451 = vadd.f32 %v376, %v4637
        %v6452 = vadd.f32 %v377, %v5516
        %v6453 = vadd.f32 %v378, %v5517
        %v6454 = vadd.f32 %v379, %v6396
        %v6455 = vadd.f32 %v380, %v6397
        %v6456 = vadd.f32 %v381, %v3758
        %v6457 = vadd.f32 %v382, %v3759
        %v6458 = vadd.f32 %v383, %v4638
        %v6459 = vadd.f32 %v384, %v4639
        %v6460 = vadd.f32 %v385, %v5518
        %v6461 = vadd.f32 %v386, %v5519
        %v6462 = vadd.f32 %v387, %v6398
        %v6463 = vadd.f32 %v388, %v6399
        %v6464 = vrot.slane %v6400, 4
        %v6465 = vadd.f32 %v6400, %v6464
        %v6466 = vrot.slane %v6465, 2
        %v6467 = vadd.f32 %v6465, %v6466
        %v6468 = vrot.slane %v6467, 1
        %v6469 = vadd.f32 %v6467, %v6468
        %v6470 = vrot.slane %v6401, 4
        %v6471 = vadd.f32 %v6401, %v6470
        %v6472 = vrot.slane %v6471, 2
        %v6473 = vadd.f32 %v6471, %v6472
        %v6474 = vrot.slane %v6473, 1
        %v6475 = vadd.f32 %v6473, %v6474
        %v6476 = vrot.slane %v6402, 4
        %v6477 = vadd.f32 %v6402, %v6476
        %v6478 = vrot.slane %v6477, 2
        %v6479 = vadd.f32 %v6477, %v6478
        %v6480 = vrot.slane %v6479, 1
        %v6481 = vadd.f32 %v6479, %v6480
        %v6482 = vrot.slane %v6403, 4
        %v6483 = vadd.f32 %v6403, %v6482
        %v6484 = vrot.slane %v6483, 2
        %v6485 = vadd.f32 %v6483, %v6484
        %v6486 = vrot.slane %v6485, 1
        %v6487 = vadd.f32 %v6485, %v6486
        %v6488 = vrot.slane %v6404, 4
        %v6489 = vadd.f32 %v6404, %v6488
        %v6490 = vrot.slane %v6489, 2
        %v6491 = vadd.f32 %v6489, %v6490
        %v6492 = vrot.slane %v6491, 1
        %v6493 = vadd.f32 %v6491, %v6492
        %v6494 = vrot.slane %v6405, 4
        %v6495 = vadd.f32 %v6405, %v6494
        %v6496 = vrot.slane %v6495, 2
        %v6497 = vadd.f32 %v6495, %v6496
        %v6498 = vrot.slane %v6497, 1
        %v6499 = vadd.f32 %v6497, %v6498
        %v6500 = vrot.slane %v6406, 4
        %v6501 = vadd.f32 %v6406, %v6500
        %v6502 = vrot.slane %v6501, 2
        %v6503 = vadd.f32 %v6501, %v6502
        %v6504 = vrot.slane %v6503, 1
        %v6505 = vadd.f32 %v6503, %v6504
        %v6506 = vrot.slane %v6407, 4
        %v6507 = vadd.f32 %v6407, %v6506
        %v6508 = vrot.slane %v6507, 2
        %v6509 = vadd.f32 %v6507, %v6508
        %v6510 = vrot.slane %v6509, 1
        %v6511 = vadd.f32 %v6509, %v6510
        %v6512 = vrot.slane %v6408, 4
        %v6513 = vadd.f32 %v6408, %v6512
        %v6514 = vrot.slane %v6513, 2
        %v6515 = vadd.f32 %v6513, %v6514
        %v6516 = vrot.slane %v6515, 1
        %v6517 = vadd.f32 %v6515, %v6516
        %v6518 = vrot.slane %v6409, 4
        %v6519 = vadd.f32 %v6409, %v6518
        %v6520 = vrot.slane %v6519, 2
        %v6521 = vadd.f32 %v6519, %v6520
        %v6522 = vrot.slane %v6521, 1
        %v6523 = vadd.f32 %v6521, %v6522
        %v6524 = vrot.slane %v6410, 4
        %v6525 = vadd.f32 %v6410, %v6524
        %v6526 = vrot.slane %v6525, 2
        %v6527 = vadd.f32 %v6525, %v6526
        %v6528 = vrot.slane %v6527, 1
        %v6529 = vadd.f32 %v6527, %v6528
        %v6530 = vrot.slane %v6411, 4
        %v6531 = vadd.f32 %v6411, %v6530
        %v6532 = vrot.slane %v6531, 2
        %v6533 = vadd.f32 %v6531, %v6532
        %v6534 = vrot.slane %v6533, 1
        %v6535 = vadd.f32 %v6533, %v6534
        %v6536 = vrot.slane %v6412, 4
        %v6537 = vadd.f32 %v6412, %v6536
        %v6538 = vrot.slane %v6537, 2
        %v6539 = vadd.f32 %v6537, %v6538
        %v6540 = vrot.slane %v6539, 1
        %v6541 = vadd.f32 %v6539, %v6540
        %v6542 = vrot.slane %v6413, 4
        %v6543 = vadd.f32 %v6413, %v6542
        %v6544 = vrot.slane %v6543, 2
        %v6545 = vadd.f32 %v6543, %v6544
        %v6546 = vrot.slane %v6545, 1
        %v6547 = vadd.f32 %v6545, %v6546
        %v6548 = vrot.slane %v6414, 4
        %v6549 = vadd.f32 %v6414, %v6548
        %v6550 = vrot.slane %v6549, 2
        %v6551 = vadd.f32 %v6549, %v6550
        %v6552 = vrot.slane %v6551, 1
        %v6553 = vadd.f32 %v6551, %v6552
        %v6554 = vrot.slane %v6415, 4
        %v6555 = vadd.f32 %v6415, %v6554
        %v6556 = vrot.slane %v6555, 2
        %v6557 = vadd.f32 %v6555, %v6556
        %v6558 = vrot.slane %v6557, 1
        %v6559 = vadd.f32 %v6557, %v6558
        %v6560 = vrot.slane %v6416, 4
        %v6561 = vadd.f32 %v6416, %v6560
        %v6562 = vrot.slane %v6561, 2
        %v6563 = vadd.f32 %v6561, %v6562
        %v6564 = vrot.slane %v6563, 1
        %v6565 = vadd.f32 %v6563, %v6564
        %v6566 = vrot.slane %v6417, 4
        %v6567 = vadd.f32 %v6417, %v6566
        %v6568 = vrot.slane %v6567, 2
        %v6569 = vadd.f32 %v6567, %v6568
        %v6570 = vrot.slane %v6569, 1
        %v6571 = vadd.f32 %v6569, %v6570
        %v6572 = vrot.slane %v6418, 4
        %v6573 = vadd.f32 %v6418, %v6572
        %v6574 = vrot.slane %v6573, 2
        %v6575 = vadd.f32 %v6573, %v6574
        %v6576 = vrot.slane %v6575, 1
        %v6577 = vadd.f32 %v6575, %v6576
        %v6578 = vrot.slane %v6419, 4
        %v6579 = vadd.f32 %v6419, %v6578
        %v6580 = vrot.slane %v6579, 2
        %v6581 = vadd.f32 %v6579, %v6580
        %v6582 = vrot.slane %v6581, 1
        %v6583 = vadd.f32 %v6581, %v6582
        %v6584 = vrot.slane %v6420, 4
        %v6585 = vadd.f32 %v6420, %v6584
        %v6586 = vrot.slane %v6585, 2
        %v6587 = vadd.f32 %v6585, %v6586
        %v6588 = vrot.slane %v6587, 1
        %v6589 = vadd.f32 %v6587, %v6588
        %v6590 = vrot.slane %v6421, 4
        %v6591 = vadd.f32 %v6421, %v6590
        %v6592 = vrot.slane %v6591, 2
        %v6593 = vadd.f32 %v6591, %v6592
        %v6594 = vrot.slane %v6593, 1
        %v6595 = vadd.f32 %v6593, %v6594
        %v6596 = vrot.slane %v6422, 4
        %v6597 = vadd.f32 %v6422, %v6596
        %v6598 = vrot.slane %v6597, 2
        %v6599 = vadd.f32 %v6597, %v6598
        %v6600 = vrot.slane %v6599, 1
        %v6601 = vadd.f32 %v6599, %v6600
        %v6602 = vrot.slane %v6423, 4
        %v6603 = vadd.f32 %v6423, %v6602
        %v6604 = vrot.slane %v6603, 2
        %v6605 = vadd.f32 %v6603, %v6604
        %v6606 = vrot.slane %v6605, 1
        %v6607 = vadd.f32 %v6605, %v6606
        %v6608 = vrot.slane %v6424, 4
        %v6609 = vadd.f32 %v6424, %v6608
        %v6610 = vrot.slane %v6609, 2
        %v6611 = vadd.f32 %v6609, %v6610
        %v6612 = vrot.slane %v6611, 1
        %v6613 = vadd.f32 %v6611, %v6612
        %v6614 = vrot.slane %v6425, 4
        %v6615 = vadd.f32 %v6425, %v6614
        %v6616 = vrot.slane %v6615, 2
        %v6617 = vadd.f32 %v6615, %v6616
        %v6618 = vrot.slane %v6617, 1
        %v6619 = vadd.f32 %v6617, %v6618
        %v6620 = vrot.slane %v6426, 4
        %v6621 = vadd.f32 %v6426, %v6620
        %v6622 = vrot.slane %v6621, 2
        %v6623 = vadd.f32 %v6621, %v6622
        %v6624 = vrot.slane %v6623, 1
        %v6625 = vadd.f32 %v6623, %v6624
        %v6626 = vrot.slane %v6427, 4
        %v6627 = vadd.f32 %v6427, %v6626
        %v6628 = vrot.slane %v6627, 2
        %v6629 = vadd.f32 %v6627, %v6628
        %v6630 = vrot.slane %v6629, 1
        %v6631 = vadd.f32 %v6629, %v6630
        %v6632 = vrot.slane %v6428, 4
        %v6633 = vadd.f32 %v6428, %v6632
        %v6634 = vrot.slane %v6633, 2
        %v6635 = vadd.f32 %v6633, %v6634
        %v6636 = vrot.slane %v6635, 1
        %v6637 = vadd.f32 %v6635, %v6636
        %v6638 = vrot.slane %v6429, 4
        %v6639 = vadd.f32 %v6429, %v6638
        %v6640 = vrot.slane %v6639, 2
        %v6641 = vadd.f32 %v6639, %v6640
        %v6642 = vrot.slane %v6641, 1
        %v6643 = vadd.f32 %v6641, %v6642
        %v6644 = vrot.slane %v6430, 4
        %v6645 = vadd.f32 %v6430, %v6644
        %v6646 = vrot.slane %v6645, 2
        %v6647 = vadd.f32 %v6645, %v6646
        %v6648 = vrot.slane %v6647, 1
        %v6649 = vadd.f32 %v6647, %v6648
        %v6650 = vrot.slane %v6431, 4
        %v6651 = vadd.f32 %v6431, %v6650
        %v6652 = vrot.slane %v6651, 2
        %v6653 = vadd.f32 %v6651, %v6652
        %v6654 = vrot.slane %v6653, 1
        %v6655 = vadd.f32 %v6653, %v6654
        %v6656 = vrot.slane %v6432, 4
        %v6657 = vadd.f32 %v6432, %v6656
        %v6658 = vrot.slane %v6657, 2
        %v6659 = vadd.f32 %v6657, %v6658
        %v6660 = vrot.slane %v6659, 1
        %v6661 = vadd.f32 %v6659, %v6660
        %v6662 = vrot.slane %v6433, 4
        %v6663 = vadd.f32 %v6433, %v6662
        %v6664 = vrot.slane %v6663, 2
        %v6665 = vadd.f32 %v6663, %v6664
        %v6666 = vrot.slane %v6665, 1
        %v6667 = vadd.f32 %v6665, %v6666
        %v6668 = vrot.slane %v6434, 4
        %v6669 = vadd.f32 %v6434, %v6668
        %v6670 = vrot.slane %v6669, 2
        %v6671 = vadd.f32 %v6669, %v6670
        %v6672 = vrot.slane %v6671, 1
        %v6673 = vadd.f32 %v6671, %v6672
        %v6674 = vrot.slane %v6435, 4
        %v6675 = vadd.f32 %v6435, %v6674
        %v6676 = vrot.slane %v6675, 2
        %v6677 = vadd.f32 %v6675, %v6676
        %v6678 = vrot.slane %v6677, 1
        %v6679 = vadd.f32 %v6677, %v6678
        %v6680 = vrot.slane %v6436, 4
        %v6681 = vadd.f32 %v6436, %v6680
        %v6682 = vrot.slane %v6681, 2
        %v6683 = vadd.f32 %v6681, %v6682
        %v6684 = vrot.slane %v6683, 1
        %v6685 = vadd.f32 %v6683, %v6684
        %v6686 = vrot.slane %v6437, 4
        %v6687 = vadd.f32 %v6437, %v6686
        %v6688 = vrot.slane %v6687, 2
        %v6689 = vadd.f32 %v6687, %v6688
        %v6690 = vrot.slane %v6689, 1
        %v6691 = vadd.f32 %v6689, %v6690
        %v6692 = vrot.slane %v6438, 4
        %v6693 = vadd.f32 %v6438, %v6692
        %v6694 = vrot.slane %v6693, 2
        %v6695 = vadd.f32 %v6693, %v6694
        %v6696 = vrot.slane %v6695, 1
        %v6697 = vadd.f32 %v6695, %v6696
        %v6698 = vrot.slane %v6439, 4
        %v6699 = vadd.f32 %v6439, %v6698
        %v6700 = vrot.slane %v6699, 2
        %v6701 = vadd.f32 %v6699, %v6700
        %v6702 = vrot.slane %v6701, 1
        %v6703 = vadd.f32 %v6701, %v6702
        %v6704 = vrot.slane %v6440, 4
        %v6705 = vadd.f32 %v6440, %v6704
        %v6706 = vrot.slane %v6705, 2
        %v6707 = vadd.f32 %v6705, %v6706
        %v6708 = vrot.slane %v6707, 1
        %v6709 = vadd.f32 %v6707, %v6708
        %v6710 = vrot.slane %v6441, 4
        %v6711 = vadd.f32 %v6441, %v6710
        %v6712 = vrot.slane %v6711, 2
        %v6713 = vadd.f32 %v6711, %v6712
        %v6714 = vrot.slane %v6713, 1
        %v6715 = vadd.f32 %v6713, %v6714
        %v6716 = vrot.slane %v6442, 4
        %v6717 = vadd.f32 %v6442, %v6716
        %v6718 = vrot.slane %v6717, 2
        %v6719 = vadd.f32 %v6717, %v6718
        %v6720 = vrot.slane %v6719, 1
        %v6721 = vadd.f32 %v6719, %v6720
        %v6722 = vrot.slane %v6443, 4
        %v6723 = vadd.f32 %v6443, %v6722
        %v6724 = vrot.slane %v6723, 2
        %v6725 = vadd.f32 %v6723, %v6724
        %v6726 = vrot.slane %v6725, 1
        %v6727 = vadd.f32 %v6725, %v6726
        %v6728 = vrot.slane %v6444, 4
        %v6729 = vadd.f32 %v6444, %v6728
        %v6730 = vrot.slane %v6729, 2
        %v6731 = vadd.f32 %v6729, %v6730
        %v6732 = vrot.slane %v6731, 1
        %v6733 = vadd.f32 %v6731, %v6732
        %v6734 = vrot.slane %v6445, 4
        %v6735 = vadd.f32 %v6445, %v6734
        %v6736 = vrot.slane %v6735, 2
        %v6737 = vadd.f32 %v6735, %v6736
        %v6738 = vrot.slane %v6737, 1
        %v6739 = vadd.f32 %v6737, %v6738
        %v6740 = vrot.slane %v6446, 4
        %v6741 = vadd.f32 %v6446, %v6740
        %v6742 = vrot.slane %v6741, 2
        %v6743 = vadd.f32 %v6741, %v6742
        %v6744 = vrot.slane %v6743, 1
        %v6745 = vadd.f32 %v6743, %v6744
        %v6746 = vrot.slane %v6447, 4
        %v6747 = vadd.f32 %v6447, %v6746
        %v6748 = vrot.slane %v6747, 2
        %v6749 = vadd.f32 %v6747, %v6748
        %v6750 = vrot.slane %v6749, 1
        %v6751 = vadd.f32 %v6749, %v6750
        %v6752 = vrot.slane %v6448, 4
        %v6753 = vadd.f32 %v6448, %v6752
        %v6754 = vrot.slane %v6753, 2
        %v6755 = vadd.f32 %v6753, %v6754
        %v6756 = vrot.slane %v6755, 1
        %v6757 = vadd.f32 %v6755, %v6756
        %v6758 = vrot.slane %v6449, 4
        %v6759 = vadd.f32 %v6449, %v6758
        %v6760 = vrot.slane %v6759, 2
        %v6761 = vadd.f32 %v6759, %v6760
        %v6762 = vrot.slane %v6761, 1
        %v6763 = vadd.f32 %v6761, %v6762
        %v6764 = vrot.slane %v6450, 4
        %v6765 = vadd.f32 %v6450, %v6764
        %v6766 = vrot.slane %v6765, 2
        %v6767 = vadd.f32 %v6765, %v6766
        %v6768 = vrot.slane %v6767, 1
        %v6769 = vadd.f32 %v6767, %v6768
        %v6770 = vrot.slane %v6451, 4
        %v6771 = vadd.f32 %v6451, %v6770
        %v6772 = vrot.slane %v6771, 2
        %v6773 = vadd.f32 %v6771, %v6772
        %v6774 = vrot.slane %v6773, 1
        %v6775 = vadd.f32 %v6773, %v6774
        %v6776 = vrot.slane %v6452, 4
        %v6777 = vadd.f32 %v6452, %v6776
        %v6778 = vrot.slane %v6777, 2
        %v6779 = vadd.f32 %v6777, %v6778
        %v6780 = vrot.slane %v6779, 1
        %v6781 = vadd.f32 %v6779, %v6780
        %v6782 = vrot.slane %v6453, 4
        %v6783 = vadd.f32 %v6453, %v6782
        %v6784 = vrot.slane %v6783, 2
        %v6785 = vadd.f32 %v6783, %v6784
        %v6786 = vrot.slane %v6785, 1
        %v6787 = vadd.f32 %v6785, %v6786
        %v6788 = vrot.slane %v6454, 4
        %v6789 = vadd.f32 %v6454, %v6788
        %v6790 = vrot.slane %v6789, 2
        %v6791 = vadd.f32 %v6789, %v6790
        %v6792 = vrot.slane %v6791, 1
        %v6793 = vadd.f32 %v6791, %v6792
        %v6794 = vrot.slane %v6455, 4
        %v6795 = vadd.f32 %v6455, %v6794
        %v6796 = vrot.slane %v6795, 2
        %v6797 = vadd.f32 %v6795, %v6796
        %v6798 = vrot.slane %v6797, 1
        %v6799 = vadd.f32 %v6797, %v6798
        %v6800 = vrot.slane %v6456, 4
        %v6801 = vadd.f32 %v6456, %v6800
        %v6802 = vrot.slane %v6801, 2
        %v6803 = vadd.f32 %v6801, %v6802
        %v6804 = vrot.slane %v6803, 1
        %v6805 = vadd.f32 %v6803, %v6804
        %v6806 = vrot.slane %v6457, 4
        %v6807 = vadd.f32 %v6457, %v6806
        %v6808 = vrot.slane %v6807, 2
        %v6809 = vadd.f32 %v6807, %v6808
        %v6810 = vrot.slane %v6809, 1
        %v6811 = vadd.f32 %v6809, %v6810
        %v6812 = vrot.slane %v6458, 4
        %v6813 = vadd.f32 %v6458, %v6812
        %v6814 = vrot.slane %v6813, 2
        %v6815 = vadd.f32 %v6813, %v6814
        %v6816 = vrot.slane %v6815, 1
        %v6817 = vadd.f32 %v6815, %v6816
        %v6818 = vrot.slane %v6459, 4
        %v6819 = vadd.f32 %v6459, %v6818
        %v6820 = vrot.slane %v6819, 2
        %v6821 = vadd.f32 %v6819, %v6820
        %v6822 = vrot.slane %v6821, 1
        %v6823 = vadd.f32 %v6821, %v6822
        %v6824 = vrot.slane %v6460, 4
        %v6825 = vadd.f32 %v6460, %v6824
        %v6826 = vrot.slane %v6825, 2
        %v6827 = vadd.f32 %v6825, %v6826
        %v6828 = vrot.slane %v6827, 1
        %v6829 = vadd.f32 %v6827, %v6828
        %v6830 = vrot.slane %v6461, 4
        %v6831 = vadd.f32 %v6461, %v6830
        %v6832 = vrot.slane %v6831, 2
        %v6833 = vadd.f32 %v6831, %v6832
        %v6834 = vrot.slane %v6833, 1
        %v6835 = vadd.f32 %v6833, %v6834
        %v6836 = vrot.slane %v6462, 4
        %v6837 = vadd.f32 %v6462, %v6836
        %v6838 = vrot.slane %v6837, 2
        %v6839 = vadd.f32 %v6837, %v6838
        %v6840 = vrot.slane %v6839, 1
        %v6841 = vadd.f32 %v6839, %v6840
        %v6842 = vrot.slane %v6463, 4
        %v6843 = vadd.f32 %v6463, %v6842
        %v6844 = vrot.slane %v6843, 2
        %v6845 = vadd.f32 %v6843, %v6844
        %v6846 = vrot.slane %v6845, 1
        %v6847 = vadd.f32 %v6845, %v6846
        %v6848 = vmul.f32 %v6469, %v779
        %v6849 = vmul.f32 %v6475, %v779
        %v6850 = vmul.f32 %v6481, %v779
        %v6851 = vmul.f32 %v6487, %v779
        %v6852 = vmul.f32 %v6493, %v779
        %v6853 = vmul.f32 %v6499, %v779
        %v6854 = vmul.f32 %v6505, %v779
        %v6855 = vmul.f32 %v6511, %v779
        %v6856 = vmul.f32 %v6517, %v779
        %v6857 = vmul.f32 %v6523, %v779
        %v6858 = vmul.f32 %v6529, %v779
        %v6859 = vmul.f32 %v6535, %v779
        %v6860 = vmul.f32 %v6541, %v779
        %v6861 = vmul.f32 %v6547, %v779
        %v6862 = vmul.f32 %v6553, %v779
        %v6863 = vmul.f32 %v6559, %v779
        %v6864 = vmul.f32 %v6565, %v779
        %v6865 = vmul.f32 %v6571, %v779
        %v6866 = vmul.f32 %v6577, %v779
        %v6867 = vmul.f32 %v6583, %v779
        %v6868 = vmul.f32 %v6589, %v779
        %v6869 = vmul.f32 %v6595, %v779
        %v6870 = vmul.f32 %v6601, %v779
        %v6871 = vmul.f32 %v6607, %v779
        %v6872 = vmul.f32 %v6613, %v779
        %v6873 = vmul.f32 %v6619, %v779
        %v6874 = vmul.f32 %v6625, %v779
        %v6875 = vmul.f32 %v6631, %v779
        %v6876 = vmul.f32 %v6637, %v779
        %v6877 = vmul.f32 %v6643, %v779
        %v6878 = vmul.f32 %v6649, %v779
        %v6879 = vmul.f32 %v6655, %v779
        %v6880 = vmul.f32 %v6661, %v779
        %v6881 = vmul.f32 %v6667, %v779
        %v6882 = vmul.f32 %v6673, %v779
        %v6883 = vmul.f32 %v6679, %v779
        %v6884 = vmul.f32 %v6685, %v779
        %v6885 = vmul.f32 %v6691, %v779
        %v6886 = vmul.f32 %v6697, %v779
        %v6887 = vmul.f32 %v6703, %v779
        %v6888 = vmul.f32 %v6709, %v779
        %v6889 = vmul.f32 %v6715, %v779
        %v6890 = vmul.f32 %v6721, %v779
        %v6891 = vmul.f32 %v6727, %v779
        %v6892 = vmul.f32 %v6733, %v779
        %v6893 = vmul.f32 %v6739, %v779
        %v6894 = vmul.f32 %v6745, %v779
        %v6895 = vmul.f32 %v6751, %v779
        %v6896 = vmul.f32 %v6757, %v779
        %v6897 = vmul.f32 %v6763, %v779
        %v6898 = vmul.f32 %v6769, %v779
        %v6899 = vmul.f32 %v6775, %v779
        %v6900 = vmul.f32 %v6781, %v779
        %v6901 = vmul.f32 %v6787, %v779
        %v6902 = vmul.f32 %v6793, %v779
        %v6903 = vmul.f32 %v6799, %v779
        %v6904 = vmul.f32 %v6805, %v779
        %v6905 = vmul.f32 %v6811, %v779
        %v6906 = vmul.f32 %v6817, %v779
        %v6907 = vmul.f32 %v6823, %v779
        %v6908 = vmul.f32 %v6829, %v779
        %v6909 = vmul.f32 %v6835, %v779
        %v6910 = vmul.f32 %v6841, %v779
        %v6911 = vmul.f32 %v6847, %v779
        %v6912 = vsub.f32 %v6400, %v6848
        %v6913 = vsub.f32 %v6401, %v6849
        %v6914 = vsub.f32 %v6402, %v6850
        %v6915 = vsub.f32 %v6403, %v6851
        %v6916 = vsub.f32 %v6404, %v6852
        %v6917 = vsub.f32 %v6405, %v6853
        %v6918 = vsub.f32 %v6406, %v6854
        %v6919 = vsub.f32 %v6407, %v6855
        %v6920 = vsub.f32 %v6408, %v6856
        %v6921 = vsub.f32 %v6409, %v6857
        %v6922 = vsub.f32 %v6410, %v6858
        %v6923 = vsub.f32 %v6411, %v6859
        %v6924 = vsub.f32 %v6412, %v6860
        %v6925 = vsub.f32 %v6413, %v6861
        %v6926 = vsub.f32 %v6414, %v6862
        %v6927 = vsub.f32 %v6415, %v6863
        %v6928 = vsub.f32 %v6416, %v6864
        %v6929 = vsub.f32 %v6417, %v6865
        %v6930 = vsub.f32 %v6418, %v6866
        %v6931 = vsub.f32 %v6419, %v6867
        %v6932 = vsub.f32 %v6420, %v6868
        %v6933 = vsub.f32 %v6421, %v6869
        %v6934 = vsub.f32 %v6422, %v6870
        %v6935 = vsub.f32 %v6423, %v6871
        %v6936 = vsub.f32 %v6424, %v6872
        %v6937 = vsub.f32 %v6425, %v6873
        %v6938 = vsub.f32 %v6426, %v6874
        %v6939 = vsub.f32 %v6427, %v6875
        %v6940 = vsub.f32 %v6428, %v6876
        %v6941 = vsub.f32 %v6429, %v6877
        %v6942 = vsub.f32 %v6430, %v6878
        %v6943 = vsub.f32 %v6431, %v6879
        %v6944 = vsub.f32 %v6432, %v6880
        %v6945 = vsub.f32 %v6433, %v6881
        %v6946 = vsub.f32 %v6434, %v6882
        %v6947 = vsub.f32 %v6435, %v6883
        %v6948 = vsub.f32 %v6436, %v6884
        %v6949 = vsub.f32 %v6437, %v6885
        %v6950 = vsub.f32 %v6438, %v6886
        %v6951 = vsub.f32 %v6439, %v6887
        %v6952 = vsub.f32 %v6440, %v6888
        %v6953 = vsub.f32 %v6441, %v6889
        %v6954 = vsub.f32 %v6442, %v6890
        %v6955 = vsub.f32 %v6443, %v6891
        %v6956 = vsub.f32 %v6444, %v6892
        %v6957 = vsub.f32 %v6445, %v6893
        %v6958 = vsub.f32 %v6446, %v6894
        %v6959 = vsub.f32 %v6447, %v6895
        %v6960 = vsub.f32 %v6448, %v6896
        %v6961 = vsub.f32 %v6449, %v6897
        %v6962 = vsub.f32 %v6450, %v6898
        %v6963 = vsub.f32 %v6451, %v6899
        %v6964 = vsub.f32 %v6452, %v6900
        %v6965 = vsub.f32 %v6453, %v6901
        %v6966 = vsub.f32 %v6454, %v6902
        %v6967 = vsub.f32 %v6455, %v6903
        %v6968 = vsub.f32 %v6456, %v6904
        %v6969 = vsub.f32 %v6457, %v6905
        %v6970 = vsub.f32 %v6458, %v6906
        %v6971 = vsub.f32 %v6459, %v6907
        %v6972 = vsub.f32 %v6460, %v6908
        %v6973 = vsub.f32 %v6461, %v6909
        %v6974 = vsub.f32 %v6462, %v6910
        %v6975 = vsub.f32 %v6463, %v6911
        %v6976 = vmul.f32 %v6912, %v6912
        %v6977 = vmul.f32 %v6913, %v6913
        %v6978 = vmul.f32 %v6914, %v6914
        %v6979 = vmul.f32 %v6915, %v6915
        %v6980 = vmul.f32 %v6916, %v6916
        %v6981 = vmul.f32 %v6917, %v6917
        %v6982 = vmul.f32 %v6918, %v6918
        %v6983 = vmul.f32 %v6919, %v6919
        %v6984 = vmul.f32 %v6920, %v6920
        %v6985 = vmul.f32 %v6921, %v6921
        %v6986 = vmul.f32 %v6922, %v6922
        %v6987 = vmul.f32 %v6923, %v6923
        %v6988 = vmul.f32 %v6924, %v6924
        %v6989 = vmul.f32 %v6925, %v6925
        %v6990 = vmul.f32 %v6926, %v6926
        %v6991 = vmul.f32 %v6927, %v6927
        %v6992 = vmul.f32 %v6928, %v6928
        %v6993 = vmul.f32 %v6929, %v6929
        %v6994 = vmul.f32 %v6930, %v6930
        %v6995 = vmul.f32 %v6931, %v6931
        %v6996 = vmul.f32 %v6932, %v6932
        %v6997 = vmul.f32 %v6933, %v6933
        %v6998 = vmul.f32 %v6934, %v6934
        %v6999 = vmul.f32 %v6935, %v6935
        %v7000 = vmul.f32 %v6936, %v6936
        %v7001 = vmul.f32 %v6937, %v6937
        %v7002 = vmul.f32 %v6938, %v6938
        %v7003 = vmul.f32 %v6939, %v6939
        %v7004 = vmul.f32 %v6940, %v6940
        %v7005 = vmul.f32 %v6941, %v6941
        %v7006 = vmul.f32 %v6942, %v6942
        %v7007 = vmul.f32 %v6943, %v6943
        %v7008 = vmul.f32 %v6944, %v6944
        %v7009 = vmul.f32 %v6945, %v6945
        %v7010 = vmul.f32 %v6946, %v6946
        %v7011 = vmul.f32 %v6947, %v6947
        %v7012 = vmul.f32 %v6948, %v6948
        %v7013 = vmul.f32 %v6949, %v6949
        %v7014 = vmul.f32 %v6950, %v6950
        %v7015 = vmul.f32 %v6951, %v6951
        %v7016 = vmul.f32 %v6952, %v6952
        %v7017 = vmul.f32 %v6953, %v6953
        %v7018 = vmul.f32 %v6954, %v6954
        %v7019 = vmul.f32 %v6955, %v6955
        %v7020 = vmul.f32 %v6956, %v6956
        %v7021 = vmul.f32 %v6957, %v6957
        %v7022 = vmul.f32 %v6958, %v6958
        %v7023 = vmul.f32 %v6959, %v6959
        %v7024 = vmul.f32 %v6960, %v6960
        %v7025 = vmul.f32 %v6961, %v6961
        %v7026 = vmul.f32 %v6962, %v6962
        %v7027 = vmul.f32 %v6963, %v6963
        %v7028 = vmul.f32 %v6964, %v6964
        %v7029 = vmul.f32 %v6965, %v6965
        %v7030 = vmul.f32 %v6966, %v6966
        %v7031 = vmul.f32 %v6967, %v6967
        %v7032 = vmul.f32 %v6968, %v6968
        %v7033 = vmul.f32 %v6969, %v6969
        %v7034 = vmul.f32 %v6970, %v6970
        %v7035 = vmul.f32 %v6971, %v6971
        %v7036 = vmul.f32 %v6972, %v6972
        %v7037 = vmul.f32 %v6973, %v6973
        %v7038 = vmul.f32 %v6974, %v6974
        %v7039 = vmul.f32 %v6975, %v6975
        %v7040 = vrot.slane %v6976, 4
        %v7041 = vadd.f32 %v6976, %v7040
        %v7042 = vrot.slane %v7041, 2
        %v7043 = vadd.f32 %v7041, %v7042
        %v7044 = vrot.slane %v7043, 1
        %v7045 = vadd.f32 %v7043, %v7044
        %v7046 = vrot.slane %v6977, 4
        %v7047 = vadd.f32 %v6977, %v7046
        %v7048 = vrot.slane %v7047, 2
        %v7049 = vadd.f32 %v7047, %v7048
        %v7050 = vrot.slane %v7049, 1
        %v7051 = vadd.f32 %v7049, %v7050
        %v7052 = vrot.slane %v6978, 4
        %v7053 = vadd.f32 %v6978, %v7052
        %v7054 = vrot.slane %v7053, 2
        %v7055 = vadd.f32 %v7053, %v7054
        %v7056 = vrot.slane %v7055, 1
        %v7057 = vadd.f32 %v7055, %v7056
        %v7058 = vrot.slane %v6979, 4
        %v7059 = vadd.f32 %v6979, %v7058
        %v7060 = vrot.slane %v7059, 2
        %v7061 = vadd.f32 %v7059, %v7060
        %v7062 = vrot.slane %v7061, 1
        %v7063 = vadd.f32 %v7061, %v7062
        %v7064 = vrot.slane %v6980, 4
        %v7065 = vadd.f32 %v6980, %v7064
        %v7066 = vrot.slane %v7065, 2
        %v7067 = vadd.f32 %v7065, %v7066
        %v7068 = vrot.slane %v7067, 1
        %v7069 = vadd.f32 %v7067, %v7068
        %v7070 = vrot.slane %v6981, 4
        %v7071 = vadd.f32 %v6981, %v7070
        %v7072 = vrot.slane %v7071, 2
        %v7073 = vadd.f32 %v7071, %v7072
        %v7074 = vrot.slane %v7073, 1
        %v7075 = vadd.f32 %v7073, %v7074
        %v7076 = vrot.slane %v6982, 4
        %v7077 = vadd.f32 %v6982, %v7076
        %v7078 = vrot.slane %v7077, 2
        %v7079 = vadd.f32 %v7077, %v7078
        %v7080 = vrot.slane %v7079, 1
        %v7081 = vadd.f32 %v7079, %v7080
        %v7082 = vrot.slane %v6983, 4
        %v7083 = vadd.f32 %v6983, %v7082
        %v7084 = vrot.slane %v7083, 2
        %v7085 = vadd.f32 %v7083, %v7084
        %v7086 = vrot.slane %v7085, 1
        %v7087 = vadd.f32 %v7085, %v7086
        %v7088 = vrot.slane %v6984, 4
        %v7089 = vadd.f32 %v6984, %v7088
        %v7090 = vrot.slane %v7089, 2
        %v7091 = vadd.f32 %v7089, %v7090
        %v7092 = vrot.slane %v7091, 1
        %v7093 = vadd.f32 %v7091, %v7092
        %v7094 = vrot.slane %v6985, 4
        %v7095 = vadd.f32 %v6985, %v7094
        %v7096 = vrot.slane %v7095, 2
        %v7097 = vadd.f32 %v7095, %v7096
        %v7098 = vrot.slane %v7097, 1
        %v7099 = vadd.f32 %v7097, %v7098
        %v7100 = vrot.slane %v6986, 4
        %v7101 = vadd.f32 %v6986, %v7100
        %v7102 = vrot.slane %v7101, 2
        %v7103 = vadd.f32 %v7101, %v7102
        %v7104 = vrot.slane %v7103, 1
        %v7105 = vadd.f32 %v7103, %v7104
        %v7106 = vrot.slane %v6987, 4
        %v7107 = vadd.f32 %v6987, %v7106
        %v7108 = vrot.slane %v7107, 2
        %v7109 = vadd.f32 %v7107, %v7108
        %v7110 = vrot.slane %v7109, 1
        %v7111 = vadd.f32 %v7109, %v7110
        %v7112 = vrot.slane %v6988, 4
        %v7113 = vadd.f32 %v6988, %v7112
        %v7114 = vrot.slane %v7113, 2
        %v7115 = vadd.f32 %v7113, %v7114
        %v7116 = vrot.slane %v7115, 1
        %v7117 = vadd.f32 %v7115, %v7116
        %v7118 = vrot.slane %v6989, 4
        %v7119 = vadd.f32 %v6989, %v7118
        %v7120 = vrot.slane %v7119, 2
        %v7121 = vadd.f32 %v7119, %v7120
        %v7122 = vrot.slane %v7121, 1
        %v7123 = vadd.f32 %v7121, %v7122
        %v7124 = vrot.slane %v6990, 4
        %v7125 = vadd.f32 %v6990, %v7124
        %v7126 = vrot.slane %v7125, 2
        %v7127 = vadd.f32 %v7125, %v7126
        %v7128 = vrot.slane %v7127, 1
        %v7129 = vadd.f32 %v7127, %v7128
        %v7130 = vrot.slane %v6991, 4
        %v7131 = vadd.f32 %v6991, %v7130
        %v7132 = vrot.slane %v7131, 2
        %v7133 = vadd.f32 %v7131, %v7132
        %v7134 = vrot.slane %v7133, 1
        %v7135 = vadd.f32 %v7133, %v7134
        %v7136 = vrot.slane %v6992, 4
        %v7137 = vadd.f32 %v6992, %v7136
        %v7138 = vrot.slane %v7137, 2
        %v7139 = vadd.f32 %v7137, %v7138
        %v7140 = vrot.slane %v7139, 1
        %v7141 = vadd.f32 %v7139, %v7140
        %v7142 = vrot.slane %v6993, 4
        %v7143 = vadd.f32 %v6993, %v7142
        %v7144 = vrot.slane %v7143, 2
        %v7145 = vadd.f32 %v7143, %v7144
        %v7146 = vrot.slane %v7145, 1
        %v7147 = vadd.f32 %v7145, %v7146
        %v7148 = vrot.slane %v6994, 4
        %v7149 = vadd.f32 %v6994, %v7148
        %v7150 = vrot.slane %v7149, 2
        %v7151 = vadd.f32 %v7149, %v7150
        %v7152 = vrot.slane %v7151, 1
        %v7153 = vadd.f32 %v7151, %v7152
        %v7154 = vrot.slane %v6995, 4
        %v7155 = vadd.f32 %v6995, %v7154
        %v7156 = vrot.slane %v7155, 2
        %v7157 = vadd.f32 %v7155, %v7156
        %v7158 = vrot.slane %v7157, 1
        %v7159 = vadd.f32 %v7157, %v7158
        %v7160 = vrot.slane %v6996, 4
        %v7161 = vadd.f32 %v6996, %v7160
        %v7162 = vrot.slane %v7161, 2
        %v7163 = vadd.f32 %v7161, %v7162
        %v7164 = vrot.slane %v7163, 1
        %v7165 = vadd.f32 %v7163, %v7164
        %v7166 = vrot.slane %v6997, 4
        %v7167 = vadd.f32 %v6997, %v7166
        %v7168 = vrot.slane %v7167, 2
        %v7169 = vadd.f32 %v7167, %v7168
        %v7170 = vrot.slane %v7169, 1
        %v7171 = vadd.f32 %v7169, %v7170
        %v7172 = vrot.slane %v6998, 4
        %v7173 = vadd.f32 %v6998, %v7172
        %v7174 = vrot.slane %v7173, 2
        %v7175 = vadd.f32 %v7173, %v7174
        %v7176 = vrot.slane %v7175, 1
        %v7177 = vadd.f32 %v7175, %v7176
        %v7178 = vrot.slane %v6999, 4
        %v7179 = vadd.f32 %v6999, %v7178
        %v7180 = vrot.slane %v7179, 2
        %v7181 = vadd.f32 %v7179, %v7180
        %v7182 = vrot.slane %v7181, 1
        %v7183 = vadd.f32 %v7181, %v7182
        %v7184 = vrot.slane %v7000, 4
        %v7185 = vadd.f32 %v7000, %v7184
        %v7186 = vrot.slane %v7185, 2
        %v7187 = vadd.f32 %v7185, %v7186
        %v7188 = vrot.slane %v7187, 1
        %v7189 = vadd.f32 %v7187, %v7188
        %v7190 = vrot.slane %v7001, 4
        %v7191 = vadd.f32 %v7001, %v7190
        %v7192 = vrot.slane %v7191, 2
        %v7193 = vadd.f32 %v7191, %v7192
        %v7194 = vrot.slane %v7193, 1
        %v7195 = vadd.f32 %v7193, %v7194
        %v7196 = vrot.slane %v7002, 4
        %v7197 = vadd.f32 %v7002, %v7196
        %v7198 = vrot.slane %v7197, 2
        %v7199 = vadd.f32 %v7197, %v7198
        %v7200 = vrot.slane %v7199, 1
        %v7201 = vadd.f32 %v7199, %v7200
        %v7202 = vrot.slane %v7003, 4
        %v7203 = vadd.f32 %v7003, %v7202
        %v7204 = vrot.slane %v7203, 2
        %v7205 = vadd.f32 %v7203, %v7204
        %v7206 = vrot.slane %v7205, 1
        %v7207 = vadd.f32 %v7205, %v7206
        %v7208 = vrot.slane %v7004, 4
        %v7209 = vadd.f32 %v7004, %v7208
        %v7210 = vrot.slane %v7209, 2
        %v7211 = vadd.f32 %v7209, %v7210
        %v7212 = vrot.slane %v7211, 1
        %v7213 = vadd.f32 %v7211, %v7212
        %v7214 = vrot.slane %v7005, 4
        %v7215 = vadd.f32 %v7005, %v7214
        %v7216 = vrot.slane %v7215, 2
        %v7217 = vadd.f32 %v7215, %v7216
        %v7218 = vrot.slane %v7217, 1
        %v7219 = vadd.f32 %v7217, %v7218
        %v7220 = vrot.slane %v7006, 4
        %v7221 = vadd.f32 %v7006, %v7220
        %v7222 = vrot.slane %v7221, 2
        %v7223 = vadd.f32 %v7221, %v7222
        %v7224 = vrot.slane %v7223, 1
        %v7225 = vadd.f32 %v7223, %v7224
        %v7226 = vrot.slane %v7007, 4
        %v7227 = vadd.f32 %v7007, %v7226
        %v7228 = vrot.slane %v7227, 2
        %v7229 = vadd.f32 %v7227, %v7228
        %v7230 = vrot.slane %v7229, 1
        %v7231 = vadd.f32 %v7229, %v7230
        %v7232 = vrot.slane %v7008, 4
        %v7233 = vadd.f32 %v7008, %v7232
        %v7234 = vrot.slane %v7233, 2
        %v7235 = vadd.f32 %v7233, %v7234
        %v7236 = vrot.slane %v7235, 1
        %v7237 = vadd.f32 %v7235, %v7236
        %v7238 = vrot.slane %v7009, 4
        %v7239 = vadd.f32 %v7009, %v7238
        %v7240 = vrot.slane %v7239, 2
        %v7241 = vadd.f32 %v7239, %v7240
        %v7242 = vrot.slane %v7241, 1
        %v7243 = vadd.f32 %v7241, %v7242
        %v7244 = vrot.slane %v7010, 4
        %v7245 = vadd.f32 %v7010, %v7244
        %v7246 = vrot.slane %v7245, 2
        %v7247 = vadd.f32 %v7245, %v7246
        %v7248 = vrot.slane %v7247, 1
        %v7249 = vadd.f32 %v7247, %v7248
        %v7250 = vrot.slane %v7011, 4
        %v7251 = vadd.f32 %v7011, %v7250
        %v7252 = vrot.slane %v7251, 2
        %v7253 = vadd.f32 %v7251, %v7252
        %v7254 = vrot.slane %v7253, 1
        %v7255 = vadd.f32 %v7253, %v7254
        %v7256 = vrot.slane %v7012, 4
        %v7257 = vadd.f32 %v7012, %v7256
        %v7258 = vrot.slane %v7257, 2
        %v7259 = vadd.f32 %v7257, %v7258
        %v7260 = vrot.slane %v7259, 1
        %v7261 = vadd.f32 %v7259, %v7260
        %v7262 = vrot.slane %v7013, 4
        %v7263 = vadd.f32 %v7013, %v7262
        %v7264 = vrot.slane %v7263, 2
        %v7265 = vadd.f32 %v7263, %v7264
        %v7266 = vrot.slane %v7265, 1
        %v7267 = vadd.f32 %v7265, %v7266
        %v7268 = vrot.slane %v7014, 4
        %v7269 = vadd.f32 %v7014, %v7268
        %v7270 = vrot.slane %v7269, 2
        %v7271 = vadd.f32 %v7269, %v7270
        %v7272 = vrot.slane %v7271, 1
        %v7273 = vadd.f32 %v7271, %v7272
        %v7274 = vrot.slane %v7015, 4
        %v7275 = vadd.f32 %v7015, %v7274
        %v7276 = vrot.slane %v7275, 2
        %v7277 = vadd.f32 %v7275, %v7276
        %v7278 = vrot.slane %v7277, 1
        %v7279 = vadd.f32 %v7277, %v7278
        %v7280 = vrot.slane %v7016, 4
        %v7281 = vadd.f32 %v7016, %v7280
        %v7282 = vrot.slane %v7281, 2
        %v7283 = vadd.f32 %v7281, %v7282
        %v7284 = vrot.slane %v7283, 1
        %v7285 = vadd.f32 %v7283, %v7284
        %v7286 = vrot.slane %v7017, 4
        %v7287 = vadd.f32 %v7017, %v7286
        %v7288 = vrot.slane %v7287, 2
        %v7289 = vadd.f32 %v7287, %v7288
        %v7290 = vrot.slane %v7289, 1
        %v7291 = vadd.f32 %v7289, %v7290
        %v7292 = vrot.slane %v7018, 4
        %v7293 = vadd.f32 %v7018, %v7292
        %v7294 = vrot.slane %v7293, 2
        %v7295 = vadd.f32 %v7293, %v7294
        %v7296 = vrot.slane %v7295, 1
        %v7297 = vadd.f32 %v7295, %v7296
        %v7298 = vrot.slane %v7019, 4
        %v7299 = vadd.f32 %v7019, %v7298
        %v7300 = vrot.slane %v7299, 2
        %v7301 = vadd.f32 %v7299, %v7300
        %v7302 = vrot.slane %v7301, 1
        %v7303 = vadd.f32 %v7301, %v7302
        %v7304 = vrot.slane %v7020, 4
        %v7305 = vadd.f32 %v7020, %v7304
        %v7306 = vrot.slane %v7305, 2
        %v7307 = vadd.f32 %v7305, %v7306
        %v7308 = vrot.slane %v7307, 1
        %v7309 = vadd.f32 %v7307, %v7308
        %v7310 = vrot.slane %v7021, 4
        %v7311 = vadd.f32 %v7021, %v7310
        %v7312 = vrot.slane %v7311, 2
        %v7313 = vadd.f32 %v7311, %v7312
        %v7314 = vrot.slane %v7313, 1
        %v7315 = vadd.f32 %v7313, %v7314
        %v7316 = vrot.slane %v7022, 4
        %v7317 = vadd.f32 %v7022, %v7316
        %v7318 = vrot.slane %v7317, 2
        %v7319 = vadd.f32 %v7317, %v7318
        %v7320 = vrot.slane %v7319, 1
        %v7321 = vadd.f32 %v7319, %v7320
        %v7322 = vrot.slane %v7023, 4
        %v7323 = vadd.f32 %v7023, %v7322
        %v7324 = vrot.slane %v7323, 2
        %v7325 = vadd.f32 %v7323, %v7324
        %v7326 = vrot.slane %v7325, 1
        %v7327 = vadd.f32 %v7325, %v7326
        %v7328 = vrot.slane %v7024, 4
        %v7329 = vadd.f32 %v7024, %v7328
        %v7330 = vrot.slane %v7329, 2
        %v7331 = vadd.f32 %v7329, %v7330
        %v7332 = vrot.slane %v7331, 1
        %v7333 = vadd.f32 %v7331, %v7332
        %v7334 = vrot.slane %v7025, 4
        %v7335 = vadd.f32 %v7025, %v7334
        %v7336 = vrot.slane %v7335, 2
        %v7337 = vadd.f32 %v7335, %v7336
        %v7338 = vrot.slane %v7337, 1
        %v7339 = vadd.f32 %v7337, %v7338
        %v7340 = vrot.slane %v7026, 4
        %v7341 = vadd.f32 %v7026, %v7340
        %v7342 = vrot.slane %v7341, 2
        %v7343 = vadd.f32 %v7341, %v7342
        %v7344 = vrot.slane %v7343, 1
        %v7345 = vadd.f32 %v7343, %v7344
        %v7346 = vrot.slane %v7027, 4
        %v7347 = vadd.f32 %v7027, %v7346
        %v7348 = vrot.slane %v7347, 2
        %v7349 = vadd.f32 %v7347, %v7348
        %v7350 = vrot.slane %v7349, 1
        %v7351 = vadd.f32 %v7349, %v7350
        %v7352 = vrot.slane %v7028, 4
        %v7353 = vadd.f32 %v7028, %v7352
        %v7354 = vrot.slane %v7353, 2
        %v7355 = vadd.f32 %v7353, %v7354
        %v7356 = vrot.slane %v7355, 1
        %v7357 = vadd.f32 %v7355, %v7356
        %v7358 = vrot.slane %v7029, 4
        %v7359 = vadd.f32 %v7029, %v7358
        %v7360 = vrot.slane %v7359, 2
        %v7361 = vadd.f32 %v7359, %v7360
        %v7362 = vrot.slane %v7361, 1
        %v7363 = vadd.f32 %v7361, %v7362
        %v7364 = vrot.slane %v7030, 4
        %v7365 = vadd.f32 %v7030, %v7364
        %v7366 = vrot.slane %v7365, 2
        %v7367 = vadd.f32 %v7365, %v7366
        %v7368 = vrot.slane %v7367, 1
        %v7369 = vadd.f32 %v7367, %v7368
        %v7370 = vrot.slane %v7031, 4
        %v7371 = vadd.f32 %v7031, %v7370
        %v7372 = vrot.slane %v7371, 2
        %v7373 = vadd.f32 %v7371, %v7372
        %v7374 = vrot.slane %v7373, 1
        %v7375 = vadd.f32 %v7373, %v7374
        %v7376 = vrot.slane %v7032, 4
        %v7377 = vadd.f32 %v7032, %v7376
        %v7378 = vrot.slane %v7377, 2
        %v7379 = vadd.f32 %v7377, %v7378
        %v7380 = vrot.slane %v7379, 1
        %v7381 = vadd.f32 %v7379, %v7380
        %v7382 = vrot.slane %v7033, 4
        %v7383 = vadd.f32 %v7033, %v7382
        %v7384 = vrot.slane %v7383, 2
        %v7385 = vadd.f32 %v7383, %v7384
        %v7386 = vrot.slane %v7385, 1
        %v7387 = vadd.f32 %v7385, %v7386
        %v7388 = vrot.slane %v7034, 4
        %v7389 = vadd.f32 %v7034, %v7388
        %v7390 = vrot.slane %v7389, 2
        %v7391 = vadd.f32 %v7389, %v7390
        %v7392 = vrot.slane %v7391, 1
        %v7393 = vadd.f32 %v7391, %v7392
        %v7394 = vrot.slane %v7035, 4
        %v7395 = vadd.f32 %v7035, %v7394
        %v7396 = vrot.slane %v7395, 2
        %v7397 = vadd.f32 %v7395, %v7396
        %v7398 = vrot.slane %v7397, 1
        %v7399 = vadd.f32 %v7397, %v7398
        %v7400 = vrot.slane %v7036, 4
        %v7401 = vadd.f32 %v7036, %v7400
        %v7402 = vrot.slane %v7401, 2
        %v7403 = vadd.f32 %v7401, %v7402
        %v7404 = vrot.slane %v7403, 1
        %v7405 = vadd.f32 %v7403, %v7404
        %v7406 = vrot.slane %v7037, 4
        %v7407 = vadd.f32 %v7037, %v7406
        %v7408 = vrot.slane %v7407, 2
        %v7409 = vadd.f32 %v7407, %v7408
        %v7410 = vrot.slane %v7409, 1
        %v7411 = vadd.f32 %v7409, %v7410
        %v7412 = vrot.slane %v7038, 4
        %v7413 = vadd.f32 %v7038, %v7412
        %v7414 = vrot.slane %v7413, 2
        %v7415 = vadd.f32 %v7413, %v7414
        %v7416 = vrot.slane %v7415, 1
        %v7417 = vadd.f32 %v7415, %v7416
        %v7418 = vrot.slane %v7039, 4
        %v7419 = vadd.f32 %v7039, %v7418
        %v7420 = vrot.slane %v7419, 2
        %v7421 = vadd.f32 %v7419, %v7420
        %v7422 = vrot.slane %v7421, 1
        %v7423 = vadd.f32 %v7421, %v7422
        %v7424 = vmul.f32 %v7045, %v779
        %v7425 = vmul.f32 %v7051, %v779
        %v7426 = vmul.f32 %v7057, %v779
        %v7427 = vmul.f32 %v7063, %v779
        %v7428 = vmul.f32 %v7069, %v779
        %v7429 = vmul.f32 %v7075, %v779
        %v7430 = vmul.f32 %v7081, %v779
        %v7431 = vmul.f32 %v7087, %v779
        %v7432 = vmul.f32 %v7093, %v779
        %v7433 = vmul.f32 %v7099, %v779
        %v7434 = vmul.f32 %v7105, %v779
        %v7435 = vmul.f32 %v7111, %v779
        %v7436 = vmul.f32 %v7117, %v779
        %v7437 = vmul.f32 %v7123, %v779
        %v7438 = vmul.f32 %v7129, %v779
        %v7439 = vmul.f32 %v7135, %v779
        %v7440 = vmul.f32 %v7141, %v779
        %v7441 = vmul.f32 %v7147, %v779
        %v7442 = vmul.f32 %v7153, %v779
        %v7443 = vmul.f32 %v7159, %v779
        %v7444 = vmul.f32 %v7165, %v779
        %v7445 = vmul.f32 %v7171, %v779
        %v7446 = vmul.f32 %v7177, %v779
        %v7447 = vmul.f32 %v7183, %v779
        %v7448 = vmul.f32 %v7189, %v779
        %v7449 = vmul.f32 %v7195, %v779
        %v7450 = vmul.f32 %v7201, %v779
        %v7451 = vmul.f32 %v7207, %v779
        %v7452 = vmul.f32 %v7213, %v779
        %v7453 = vmul.f32 %v7219, %v779
        %v7454 = vmul.f32 %v7225, %v779
        %v7455 = vmul.f32 %v7231, %v779
        %v7456 = vmul.f32 %v7237, %v779
        %v7457 = vmul.f32 %v7243, %v779
        %v7458 = vmul.f32 %v7249, %v779
        %v7459 = vmul.f32 %v7255, %v779
        %v7460 = vmul.f32 %v7261, %v779
        %v7461 = vmul.f32 %v7267, %v779
        %v7462 = vmul.f32 %v7273, %v779
        %v7463 = vmul.f32 %v7279, %v779
        %v7464 = vmul.f32 %v7285, %v779
        %v7465 = vmul.f32 %v7291, %v779
        %v7466 = vmul.f32 %v7297, %v779
        %v7467 = vmul.f32 %v7303, %v779
        %v7468 = vmul.f32 %v7309, %v779
        %v7469 = vmul.f32 %v7315, %v779
        %v7470 = vmul.f32 %v7321, %v779
        %v7471 = vmul.f32 %v7327, %v779
        %v7472 = vmul.f32 %v7333, %v779
        %v7473 = vmul.f32 %v7339, %v779
        %v7474 = vmul.f32 %v7345, %v779
        %v7475 = vmul.f32 %v7351, %v779
        %v7476 = vmul.f32 %v7357, %v779
        %v7477 = vmul.f32 %v7363, %v779
        %v7478 = vmul.f32 %v7369, %v779
        %v7479 = vmul.f32 %v7375, %v779
        %v7480 = vmul.f32 %v7381, %v779
        %v7481 = vmul.f32 %v7387, %v779
        %v7482 = vmul.f32 %v7393, %v779
        %v7483 = vmul.f32 %v7399, %v779
        %v7484 = vmul.f32 %v7405, %v779
        %v7485 = vmul.f32 %v7411, %v779
        %v7486 = vmul.f32 %v7417, %v779
        %v7487 = vmul.f32 %v7423, %v779
        %v7488 = vadd.f32 %v7424, 1e-05
        %v7489 = vadd.f32 %v7425, 1e-05
        %v7490 = vadd.f32 %v7426, 1e-05
        %v7491 = vadd.f32 %v7427, 1e-05
        %v7492 = vadd.f32 %v7428, 1e-05
        %v7493 = vadd.f32 %v7429, 1e-05
        %v7494 = vadd.f32 %v7430, 1e-05
        %v7495 = vadd.f32 %v7431, 1e-05
        %v7496 = vadd.f32 %v7432, 1e-05
        %v7497 = vadd.f32 %v7433, 1e-05
        %v7498 = vadd.f32 %v7434, 1e-05
        %v7499 = vadd.f32 %v7435, 1e-05
        %v7500 = vadd.f32 %v7436, 1e-05
        %v7501 = vadd.f32 %v7437, 1e-05
        %v7502 = vadd.f32 %v7438, 1e-05
        %v7503 = vadd.f32 %v7439, 1e-05
        %v7504 = vadd.f32 %v7440, 1e-05
        %v7505 = vadd.f32 %v7441, 1e-05
        %v7506 = vadd.f32 %v7442, 1e-05
        %v7507 = vadd.f32 %v7443, 1e-05
        %v7508 = vadd.f32 %v7444, 1e-05
        %v7509 = vadd.f32 %v7445, 1e-05
        %v7510 = vadd.f32 %v7446, 1e-05
        %v7511 = vadd.f32 %v7447, 1e-05
        %v7512 = vadd.f32 %v7448, 1e-05
        %v7513 = vadd.f32 %v7449, 1e-05
        %v7514 = vadd.f32 %v7450, 1e-05
        %v7515 = vadd.f32 %v7451, 1e-05
        %v7516 = vadd.f32 %v7452, 1e-05
        %v7517 = vadd.f32 %v7453, 1e-05
        %v7518 = vadd.f32 %v7454, 1e-05
        %v7519 = vadd.f32 %v7455, 1e-05
        %v7520 = vadd.f32 %v7456, 1e-05
        %v7521 = vadd.f32 %v7457, 1e-05
        %v7522 = vadd.f32 %v7458, 1e-05
        %v7523 = vadd.f32 %v7459, 1e-05
        %v7524 = vadd.f32 %v7460, 1e-05
        %v7525 = vadd.f32 %v7461, 1e-05
        %v7526 = vadd.f32 %v7462, 1e-05
        %v7527 = vadd.f32 %v7463, 1e-05
        %v7528 = vadd.f32 %v7464, 1e-05
        %v7529 = vadd.f32 %v7465, 1e-05
        %v7530 = vadd.f32 %v7466, 1e-05
        %v7531 = vadd.f32 %v7467, 1e-05
        %v7532 = vadd.f32 %v7468, 1e-05
        %v7533 = vadd.f32 %v7469, 1e-05
        %v7534 = vadd.f32 %v7470, 1e-05
        %v7535 = vadd.f32 %v7471, 1e-05
        %v7536 = vadd.f32 %v7472, 1e-05
        %v7537 = vadd.f32 %v7473, 1e-05
        %v7538 = vadd.f32 %v7474, 1e-05
        %v7539 = vadd.f32 %v7475, 1e-05
        %v7540 = vadd.f32 %v7476, 1e-05
        %v7541 = vadd.f32 %v7477, 1e-05
        %v7542 = vadd.f32 %v7478, 1e-05
        %v7543 = vadd.f32 %v7479, 1e-05
        %v7544 = vadd.f32 %v7480, 1e-05
        %v7545 = vadd.f32 %v7481, 1e-05
        %v7546 = vadd.f32 %v7482, 1e-05
        %v7547 = vadd.f32 %v7483, 1e-05
        %v7548 = vadd.f32 %v7484, 1e-05
        %v7549 = vadd.f32 %v7485, 1e-05
        %v7550 = vadd.f32 %v7486, 1e-05
        %v7551 = vadd.f32 %v7487, 1e-05
        %v7552 = vrsqrt.pop %v7488
        %v7553 = vmul.f32 %v7552, %v7488
        %v7554 = vmul.f32 %v7553, %v7552
        %v7555 = vmul.f32 0.5, %v7554
        %v7556 = vsub.f32 1.5, %v7555
        %v7557 = vmul.f32 %v7552, %v7556
        %vm7558 = vweird.f32 %v7488
        %vm7559 = vweird.f32 %v7552
        %vm7560 = vmor %vm7558, %vm7559
        %v7561 = vsel %vm7560, %v7552, %v7557
        %v7562 = vrsqrt.pop %v7489
        %v7563 = vmul.f32 %v7562, %v7489
        %v7564 = vmul.f32 %v7563, %v7562
        %v7565 = vmul.f32 0.5, %v7564
        %v7566 = vsub.f32 1.5, %v7565
        %v7567 = vmul.f32 %v7562, %v7566
        %vm7568 = vweird.f32 %v7489
        %vm7569 = vweird.f32 %v7562
        %vm7570 = vmor %vm7568, %vm7569
        %v7571 = vsel %vm7570, %v7562, %v7567
        %v7572 = vrsqrt.pop %v7490
        %v7573 = vmul.f32 %v7572, %v7490
        %v7574 = vmul.f32 %v7573, %v7572
        %v7575 = vmul.f32 0.5, %v7574
        %v7576 = vsub.f32 1.5, %v7575
        %v7577 = vmul.f32 %v7572, %v7576
        %vm7578 = vweird.f32 %v7490
        %vm7579 = vweird.f32 %v7572
        %vm7580 = vmor %vm7578, %vm7579
        %v7581 = vsel %vm7580, %v7572, %v7577
        %v7582 = vrsqrt.pop %v7491
        %v7583 = vmul.f32 %v7582, %v7491
        %v7584 = vmul.f32 %v7583, %v7582
        %v7585 = vmul.f32 0.5, %v7584
        %v7586 = vsub.f32 1.5, %v7585
        %v7587 = vmul.f32 %v7582, %v7586
        %vm7588 = vweird.f32 %v7491
        %vm7589 = vweird.f32 %v7582
        %vm7590 = vmor %vm7588, %vm7589
        %v7591 = vsel %vm7590, %v7582, %v7587
        %v7592 = vrsqrt.pop %v7492
        %v7593 = vmul.f32 %v7592, %v7492
        %v7594 = vmul.f32 %v7593, %v7592
        %v7595 = vmul.f32 0.5, %v7594
        %v7596 = vsub.f32 1.5, %v7595
        %v7597 = vmul.f32 %v7592, %v7596
        %vm7598 = vweird.f32 %v7492
        %vm7599 = vweird.f32 %v7592
        %vm7600 = vmor %vm7598, %vm7599
        %v7601 = vsel %vm7600, %v7592, %v7597
        %v7602 = vrsqrt.pop %v7493
        %v7603 = vmul.f32 %v7602, %v7493
        %v7604 = vmul.f32 %v7603, %v7602
        %v7605 = vmul.f32 0.5, %v7604
        %v7606 = vsub.f32 1.5, %v7605
        %v7607 = vmul.f32 %v7602, %v7606
        %vm7608 = vweird.f32 %v7493
        %vm7609 = vweird.f32 %v7602
        %vm7610 = vmor %vm7608, %vm7609
        %v7611 = vsel %vm7610, %v7602, %v7607
        %v7612 = vrsqrt.pop %v7494
        %v7613 = vmul.f32 %v7612, %v7494
        %v7614 = vmul.f32 %v7613, %v7612
        %v7615 = vmul.f32 0.5, %v7614
        %v7616 = vsub.f32 1.5, %v7615
        %v7617 = vmul.f32 %v7612, %v7616
        %vm7618 = vweird.f32 %v7494
        %vm7619 = vweird.f32 %v7612
        %vm7620 = vmor %vm7618, %vm7619
        %v7621 = vsel %vm7620, %v7612, %v7617
        %v7622 = vrsqrt.pop %v7495
        %v7623 = vmul.f32 %v7622, %v7495
        %v7624 = vmul.f32 %v7623, %v7622
        %v7625 = vmul.f32 0.5, %v7624
        %v7626 = vsub.f32 1.5, %v7625
        %v7627 = vmul.f32 %v7622, %v7626
        %vm7628 = vweird.f32 %v7495
        %vm7629 = vweird.f32 %v7622
        %vm7630 = vmor %vm7628, %vm7629
        %v7631 = vsel %vm7630, %v7622, %v7627
        %v7632 = vrsqrt.pop %v7496
        %v7633 = vmul.f32 %v7632, %v7496
        %v7634 = vmul.f32 %v7633, %v7632
        %v7635 = vmul.f32 0.5, %v7634
        %v7636 = vsub.f32 1.5, %v7635
        %v7637 = vmul.f32 %v7632, %v7636
        %vm7638 = vweird.f32 %v7496
        %vm7639 = vweird.f32 %v7632
        %vm7640 = vmor %vm7638, %vm7639
        %v7641 = vsel %vm7640, %v7632, %v7637
        %v7642 = vrsqrt.pop %v7497
        %v7643 = vmul.f32 %v7642, %v7497
        %v7644 = vmul.f32 %v7643, %v7642
        %v7645 = vmul.f32 0.5, %v7644
        %v7646 = vsub.f32 1.5, %v7645
        %v7647 = vmul.f32 %v7642, %v7646
        %vm7648 = vweird.f32 %v7497
        %vm7649 = vweird.f32 %v7642
        %vm7650 = vmor %vm7648, %vm7649
        %v7651 = vsel %vm7650, %v7642, %v7647
        %v7652 = vrsqrt.pop %v7498
        %v7653 = vmul.f32 %v7652, %v7498
        %v7654 = vmul.f32 %v7653, %v7652
        %v7655 = vmul.f32 0.5, %v7654
        %v7656 = vsub.f32 1.5, %v7655
        %v7657 = vmul.f32 %v7652, %v7656
        %vm7658 = vweird.f32 %v7498
        %vm7659 = vweird.f32 %v7652
        %vm7660 = vmor %vm7658, %vm7659
        %v7661 = vsel %vm7660, %v7652, %v7657
        %v7662 = vrsqrt.pop %v7499
        %v7663 = vmul.f32 %v7662, %v7499
        %v7664 = vmul.f32 %v7663, %v7662
        %v7665 = vmul.f32 0.5, %v7664
        %v7666 = vsub.f32 1.5, %v7665
        %v7667 = vmul.f32 %v7662, %v7666
        %vm7668 = vweird.f32 %v7499
        %vm7669 = vweird.f32 %v7662
        %vm7670 = vmor %vm7668, %vm7669
        %v7671 = vsel %vm7670, %v7662, %v7667
        %v7672 = vrsqrt.pop %v7500
        %v7673 = vmul.f32 %v7672, %v7500
        %v7674 = vmul.f32 %v7673, %v7672
        %v7675 = vmul.f32 0.5, %v7674
        %v7676 = vsub.f32 1.5, %v7675
        %v7677 = vmul.f32 %v7672, %v7676
        %vm7678 = vweird.f32 %v7500
        %vm7679 = vweird.f32 %v7672
        %vm7680 = vmor %vm7678, %vm7679
        %v7681 = vsel %vm7680, %v7672, %v7677
        %v7682 = vrsqrt.pop %v7501
        %v7683 = vmul.f32 %v7682, %v7501
        %v7684 = vmul.f32 %v7683, %v7682
        %v7685 = vmul.f32 0.5, %v7684
        %v7686 = vsub.f32 1.5, %v7685
        %v7687 = vmul.f32 %v7682, %v7686
        %vm7688 = vweird.f32 %v7501
        %vm7689 = vweird.f32 %v7682
        %vm7690 = vmor %vm7688, %vm7689
        %v7691 = vsel %vm7690, %v7682, %v7687
        %v7692 = vrsqrt.pop %v7502
        %v7693 = vmul.f32 %v7692, %v7502
        %v7694 = vmul.f32 %v7693, %v7692
        %v7695 = vmul.f32 0.5, %v7694
        %v7696 = vsub.f32 1.5, %v7695
        %v7697 = vmul.f32 %v7692, %v7696
        %vm7698 = vweird.f32 %v7502
        %vm7699 = vweird.f32 %v7692
        %vm7700 = vmor %vm7698, %vm7699
        %v7701 = vsel %vm7700, %v7692, %v7697
        %v7702 = vrsqrt.pop %v7503
        %v7703 = vmul.f32 %v7702, %v7503
        %v7704 = vmul.f32 %v7703, %v7702
        %v7705 = vmul.f32 0.5, %v7704
        %v7706 = vsub.f32 1.5, %v7705
        %v7707 = vmul.f32 %v7702, %v7706
        %vm7708 = vweird.f32 %v7503
        %vm7709 = vweird.f32 %v7702
        %vm7710 = vmor %vm7708, %vm7709
        %v7711 = vsel %vm7710, %v7702, %v7707
        %v7712 = vrsqrt.pop %v7504
        %v7713 = vmul.f32 %v7712, %v7504
        %v7714 = vmul.f32 %v7713, %v7712
        %v7715 = vmul.f32 0.5, %v7714
        %v7716 = vsub.f32 1.5, %v7715
        %v7717 = vmul.f32 %v7712, %v7716
        %vm7718 = vweird.f32 %v7504
        %vm7719 = vweird.f32 %v7712
        %vm7720 = vmor %vm7718, %vm7719
        %v7721 = vsel %vm7720, %v7712, %v7717
        %v7722 = vrsqrt.pop %v7505
        %v7723 = vmul.f32 %v7722, %v7505
        %v7724 = vmul.f32 %v7723, %v7722
        %v7725 = vmul.f32 0.5, %v7724
        %v7726 = vsub.f32 1.5, %v7725
        %v7727 = vmul.f32 %v7722, %v7726
        %vm7728 = vweird.f32 %v7505
        %vm7729 = vweird.f32 %v7722
        %vm7730 = vmor %vm7728, %vm7729
        %v7731 = vsel %vm7730, %v7722, %v7727
        %v7732 = vrsqrt.pop %v7506
        %v7733 = vmul.f32 %v7732, %v7506
        %v7734 = vmul.f32 %v7733, %v7732
        %v7735 = vmul.f32 0.5, %v7734
        %v7736 = vsub.f32 1.5, %v7735
        %v7737 = vmul.f32 %v7732, %v7736
        %vm7738 = vweird.f32 %v7506
        %vm7739 = vweird.f32 %v7732
        %vm7740 = vmor %vm7738, %vm7739
        %v7741 = vsel %vm7740, %v7732, %v7737
        %v7742 = vrsqrt.pop %v7507
        %v7743 = vmul.f32 %v7742, %v7507
        %v7744 = vmul.f32 %v7743, %v7742
        %v7745 = vmul.f32 0.5, %v7744
        %v7746 = vsub.f32 1.5, %v7745
        %v7747 = vmul.f32 %v7742, %v7746
        %vm7748 = vweird.f32 %v7507
        %vm7749 = vweird.f32 %v7742
        %vm7750 = vmor %vm7748, %vm7749
        %v7751 = vsel %vm7750, %v7742, %v7747
        %v7752 = vrsqrt.pop %v7508
        %v7753 = vmul.f32 %v7752, %v7508
        %v7754 = vmul.f32 %v7753, %v7752
        %v7755 = vmul.f32 0.5, %v7754
        %v7756 = vsub.f32 1.5, %v7755
        %v7757 = vmul.f32 %v7752, %v7756
        %vm7758 = vweird.f32 %v7508
        %vm7759 = vweird.f32 %v7752
        %vm7760 = vmor %vm7758, %vm7759
        %v7761 = vsel %vm7760, %v7752, %v7757
        %v7762 = vrsqrt.pop %v7509
        %v7763 = vmul.f32 %v7762, %v7509
        %v7764 = vmul.f32 %v7763, %v7762
        %v7765 = vmul.f32 0.5, %v7764
        %v7766 = vsub.f32 1.5, %v7765
        %v7767 = vmul.f32 %v7762, %v7766
        %vm7768 = vweird.f32 %v7509
        %vm7769 = vweird.f32 %v7762
        %vm7770 = vmor %vm7768, %vm7769
        %v7771 = vsel %vm7770, %v7762, %v7767
        %v7772 = vrsqrt.pop %v7510
        %v7773 = vmul.f32 %v7772, %v7510
        %v7774 = vmul.f32 %v7773, %v7772
        %v7775 = vmul.f32 0.5, %v7774
        %v7776 = vsub.f32 1.5, %v7775
        %v7777 = vmul.f32 %v7772, %v7776
        %vm7778 = vweird.f32 %v7510
        %vm7779 = vweird.f32 %v7772
        %vm7780 = vmor %vm7778, %vm7779
        %v7781 = vsel %vm7780, %v7772, %v7777
        %v7782 = vrsqrt.pop %v7511
        %v7783 = vmul.f32 %v7782, %v7511
        %v7784 = vmul.f32 %v7783, %v7782
        %v7785 = vmul.f32 0.5, %v7784
        %v7786 = vsub.f32 1.5, %v7785
        %v7787 = vmul.f32 %v7782, %v7786
        %vm7788 = vweird.f32 %v7511
        %vm7789 = vweird.f32 %v7782
        %vm7790 = vmor %vm7788, %vm7789
        %v7791 = vsel %vm7790, %v7782, %v7787
        %v7792 = vrsqrt.pop %v7512
        %v7793 = vmul.f32 %v7792, %v7512
        %v7794 = vmul.f32 %v7793, %v7792
        %v7795 = vmul.f32 0.5, %v7794
        %v7796 = vsub.f32 1.5, %v7795
        %v7797 = vmul.f32 %v7792, %v7796
        %vm7798 = vweird.f32 %v7512
        %vm7799 = vweird.f32 %v7792
        %vm7800 = vmor %vm7798, %vm7799
        %v7801 = vsel %vm7800, %v7792, %v7797
        %v7802 = vrsqrt.pop %v7513
        %v7803 = vmul.f32 %v7802, %v7513
        %v7804 = vmul.f32 %v7803, %v7802
        %v7805 = vmul.f32 0.5, %v7804
        %v7806 = vsub.f32 1.5, %v7805
        %v7807 = vmul.f32 %v7802, %v7806
        %vm7808 = vweird.f32 %v7513
        %vm7809 = vweird.f32 %v7802
        %vm7810 = vmor %vm7808, %vm7809
        %v7811 = vsel %vm7810, %v7802, %v7807
        %v7812 = vrsqrt.pop %v7514
        %v7813 = vmul.f32 %v7812, %v7514
        %v7814 = vmul.f32 %v7813, %v7812
        %v7815 = vmul.f32 0.5, %v7814
        %v7816 = vsub.f32 1.5, %v7815
        %v7817 = vmul.f32 %v7812, %v7816
        %vm7818 = vweird.f32 %v7514
        %vm7819 = vweird.f32 %v7812
        %vm7820 = vmor %vm7818, %vm7819
        %v7821 = vsel %vm7820, %v7812, %v7817
        %v7822 = vrsqrt.pop %v7515
        %v7823 = vmul.f32 %v7822, %v7515
        %v7824 = vmul.f32 %v7823, %v7822
        %v7825 = vmul.f32 0.5, %v7824
        %v7826 = vsub.f32 1.5, %v7825
        %v7827 = vmul.f32 %v7822, %v7826
        %vm7828 = vweird.f32 %v7515
        %vm7829 = vweird.f32 %v7822
        %vm7830 = vmor %vm7828, %vm7829
        %v7831 = vsel %vm7830, %v7822, %v7827
        %v7832 = vrsqrt.pop %v7516
        %v7833 = vmul.f32 %v7832, %v7516
        %v7834 = vmul.f32 %v7833, %v7832
        %v7835 = vmul.f32 0.5, %v7834
        %v7836 = vsub.f32 1.5, %v7835
        %v7837 = vmul.f32 %v7832, %v7836
        %vm7838 = vweird.f32 %v7516
        %vm7839 = vweird.f32 %v7832
        %vm7840 = vmor %vm7838, %vm7839
        %v7841 = vsel %vm7840, %v7832, %v7837
        %v7842 = vrsqrt.pop %v7517
        %v7843 = vmul.f32 %v7842, %v7517
        %v7844 = vmul.f32 %v7843, %v7842
        %v7845 = vmul.f32 0.5, %v7844
        %v7846 = vsub.f32 1.5, %v7845
        %v7847 = vmul.f32 %v7842, %v7846
        %vm7848 = vweird.f32 %v7517
        %vm7849 = vweird.f32 %v7842
        %vm7850 = vmor %vm7848, %vm7849
        %v7851 = vsel %vm7850, %v7842, %v7847
        %v7852 = vrsqrt.pop %v7518
        %v7853 = vmul.f32 %v7852, %v7518
        %v7854 = vmul.f32 %v7853, %v7852
        %v7855 = vmul.f32 0.5, %v7854
        %v7856 = vsub.f32 1.5, %v7855
        %v7857 = vmul.f32 %v7852, %v7856
        %vm7858 = vweird.f32 %v7518
        %vm7859 = vweird.f32 %v7852
        %vm7860 = vmor %vm7858, %vm7859
        %v7861 = vsel %vm7860, %v7852, %v7857
        %v7862 = vrsqrt.pop %v7519
        %v7863 = vmul.f32 %v7862, %v7519
        %v7864 = vmul.f32 %v7863, %v7862
        %v7865 = vmul.f32 0.5, %v7864
        %v7866 = vsub.f32 1.5, %v7865
        %v7867 = vmul.f32 %v7862, %v7866
        %vm7868 = vweird.f32 %v7519
        %vm7869 = vweird.f32 %v7862
        %vm7870 = vmor %vm7868, %vm7869
        %v7871 = vsel %vm7870, %v7862, %v7867
        %v7872 = vrsqrt.pop %v7520
        %v7873 = vmul.f32 %v7872, %v7520
        %v7874 = vmul.f32 %v7873, %v7872
        %v7875 = vmul.f32 0.5, %v7874
        %v7876 = vsub.f32 1.5, %v7875
        %v7877 = vmul.f32 %v7872, %v7876
        %vm7878 = vweird.f32 %v7520
        %vm7879 = vweird.f32 %v7872
        %vm7880 = vmor %vm7878, %vm7879
        %v7881 = vsel %vm7880, %v7872, %v7877
        %v7882 = vrsqrt.pop %v7521
        %v7883 = vmul.f32 %v7882, %v7521
        %v7884 = vmul.f32 %v7883, %v7882
        %v7885 = vmul.f32 0.5, %v7884
        %v7886 = vsub.f32 1.5, %v7885
        %v7887 = vmul.f32 %v7882, %v7886
        %vm7888 = vweird.f32 %v7521
        %vm7889 = vweird.f32 %v7882
        %vm7890 = vmor %vm7888, %vm7889
        %v7891 = vsel %vm7890, %v7882, %v7887
        %v7892 = vrsqrt.pop %v7522
        %v7893 = vmul.f32 %v7892, %v7522
        %v7894 = vmul.f32 %v7893, %v7892
        %v7895 = vmul.f32 0.5, %v7894
        %v7896 = vsub.f32 1.5, %v7895
        %v7897 = vmul.f32 %v7892, %v7896
        %vm7898 = vweird.f32 %v7522
        %vm7899 = vweird.f32 %v7892
        %vm7900 = vmor %vm7898, %vm7899
        %v7901 = vsel %vm7900, %v7892, %v7897
        %v7902 = vrsqrt.pop %v7523
        %v7903 = vmul.f32 %v7902, %v7523
        %v7904 = vmul.f32 %v7903, %v7902
        %v7905 = vmul.f32 0.5, %v7904
        %v7906 = vsub.f32 1.5, %v7905
        %v7907 = vmul.f32 %v7902, %v7906
        %vm7908 = vweird.f32 %v7523
        %vm7909 = vweird.f32 %v7902
        %vm7910 = vmor %vm7908, %vm7909
        %v7911 = vsel %vm7910, %v7902, %v7907
        %v7912 = vrsqrt.pop %v7524
        %v7913 = vmul.f32 %v7912, %v7524
        %v7914 = vmul.f32 %v7913, %v7912
        %v7915 = vmul.f32 0.5, %v7914
        %v7916 = vsub.f32 1.5, %v7915
        %v7917 = vmul.f32 %v7912, %v7916
        %vm7918 = vweird.f32 %v7524
        %vm7919 = vweird.f32 %v7912
        %vm7920 = vmor %vm7918, %vm7919
        %v7921 = vsel %vm7920, %v7912, %v7917
        %v7922 = vrsqrt.pop %v7525
        %v7923 = vmul.f32 %v7922, %v7525
        %v7924 = vmul.f32 %v7923, %v7922
        %v7925 = vmul.f32 0.5, %v7924
        %v7926 = vsub.f32 1.5, %v7925
        %v7927 = vmul.f32 %v7922, %v7926
        %vm7928 = vweird.f32 %v7525
        %vm7929 = vweird.f32 %v7922
        %vm7930 = vmor %vm7928, %vm7929
        %v7931 = vsel %vm7930, %v7922, %v7927
        %v7932 = vrsqrt.pop %v7526
        %v7933 = vmul.f32 %v7932, %v7526
        %v7934 = vmul.f32 %v7933, %v7932
        %v7935 = vmul.f32 0.5, %v7934
        %v7936 = vsub.f32 1.5, %v7935
        %v7937 = vmul.f32 %v7932, %v7936
        %vm7938 = vweird.f32 %v7526
        %vm7939 = vweird.f32 %v7932
        %vm7940 = vmor %vm7938, %vm7939
        %v7941 = vsel %vm7940, %v7932, %v7937
        %v7942 = vrsqrt.pop %v7527
        %v7943 = vmul.f32 %v7942, %v7527
        %v7944 = vmul.f32 %v7943, %v7942
        %v7945 = vmul.f32 0.5, %v7944
        %v7946 = vsub.f32 1.5, %v7945
        %v7947 = vmul.f32 %v7942, %v7946
        %vm7948 = vweird.f32 %v7527
        %vm7949 = vweird.f32 %v7942
        %vm7950 = vmor %vm7948, %vm7949
        %v7951 = vsel %vm7950, %v7942, %v7947
        %v7952 = vrsqrt.pop %v7528
        %v7953 = vmul.f32 %v7952, %v7528
        %v7954 = vmul.f32 %v7953, %v7952
        %v7955 = vmul.f32 0.5, %v7954
        %v7956 = vsub.f32 1.5, %v7955
        %v7957 = vmul.f32 %v7952, %v7956
        %vm7958 = vweird.f32 %v7528
        %vm7959 = vweird.f32 %v7952
        %vm7960 = vmor %vm7958, %vm7959
        %v7961 = vsel %vm7960, %v7952, %v7957
        %v7962 = vrsqrt.pop %v7529
        %v7963 = vmul.f32 %v7962, %v7529
        %v7964 = vmul.f32 %v7963, %v7962
        %v7965 = vmul.f32 0.5, %v7964
        %v7966 = vsub.f32 1.5, %v7965
        %v7967 = vmul.f32 %v7962, %v7966
        %vm7968 = vweird.f32 %v7529
        %vm7969 = vweird.f32 %v7962
        %vm7970 = vmor %vm7968, %vm7969
        %v7971 = vsel %vm7970, %v7962, %v7967
        %v7972 = vrsqrt.pop %v7530
        %v7973 = vmul.f32 %v7972, %v7530
        %v7974 = vmul.f32 %v7973, %v7972
        %v7975 = vmul.f32 0.5, %v7974
        %v7976 = vsub.f32 1.5, %v7975
        %v7977 = vmul.f32 %v7972, %v7976
        %vm7978 = vweird.f32 %v7530
        %vm7979 = vweird.f32 %v7972
        %vm7980 = vmor %vm7978, %vm7979
        %v7981 = vsel %vm7980, %v7972, %v7977
        %v7982 = vrsqrt.pop %v7531
        %v7983 = vmul.f32 %v7982, %v7531
        %v7984 = vmul.f32 %v7983, %v7982
        %v7985 = vmul.f32 0.5, %v7984
        %v7986 = vsub.f32 1.5, %v7985
        %v7987 = vmul.f32 %v7982, %v7986
        %vm7988 = vweird.f32 %v7531
        %vm7989 = vweird.f32 %v7982
        %vm7990 = vmor %vm7988, %vm7989
        %v7991 = vsel %vm7990, %v7982, %v7987
        %v7992 = vrsqrt.pop %v7532
        %v7993 = vmul.f32 %v7992, %v7532
        %v7994 = vmul.f32 %v7993, %v7992
        %v7995 = vmul.f32 0.5, %v7994
        %v7996 = vsub.f32 1.5, %v7995
        %v7997 = vmul.f32 %v7992, %v7996
        %vm7998 = vweird.f32 %v7532
        %vm7999 = vweird.f32 %v7992
        %vm8000 = vmor %vm7998, %vm7999
        %v8001 = vsel %vm8000, %v7992, %v7997
        %v8002 = vrsqrt.pop %v7533
        %v8003 = vmul.f32 %v8002, %v7533
        %v8004 = vmul.f32 %v8003, %v8002
        %v8005 = vmul.f32 0.5, %v8004
        %v8006 = vsub.f32 1.5, %v8005
        %v8007 = vmul.f32 %v8002, %v8006
        %vm8008 = vweird.f32 %v7533
        %vm8009 = vweird.f32 %v8002
        %vm8010 = vmor %vm8008, %vm8009
        %v8011 = vsel %vm8010, %v8002, %v8007
        %v8012 = vrsqrt.pop %v7534
        %v8013 = vmul.f32 %v8012, %v7534
        %v8014 = vmul.f32 %v8013, %v8012
        %v8015 = vmul.f32 0.5, %v8014
        %v8016 = vsub.f32 1.5, %v8015
        %v8017 = vmul.f32 %v8012, %v8016
        %vm8018 = vweird.f32 %v7534
        %vm8019 = vweird.f32 %v8012
        %vm8020 = vmor %vm8018, %vm8019
        %v8021 = vsel %vm8020, %v8012, %v8017
        %v8022 = vrsqrt.pop %v7535
        %v8023 = vmul.f32 %v8022, %v7535
        %v8024 = vmul.f32 %v8023, %v8022
        %v8025 = vmul.f32 0.5, %v8024
        %v8026 = vsub.f32 1.5, %v8025
        %v8027 = vmul.f32 %v8022, %v8026
        %vm8028 = vweird.f32 %v7535
        %vm8029 = vweird.f32 %v8022
        %vm8030 = vmor %vm8028, %vm8029
        %v8031 = vsel %vm8030, %v8022, %v8027
        %v8032 = vrsqrt.pop %v7536
        %v8033 = vmul.f32 %v8032, %v7536
        %v8034 = vmul.f32 %v8033, %v8032
        %v8035 = vmul.f32 0.5, %v8034
        %v8036 = vsub.f32 1.5, %v8035
        %v8037 = vmul.f32 %v8032, %v8036
        %vm8038 = vweird.f32 %v7536
        %vm8039 = vweird.f32 %v8032
        %vm8040 = vmor %vm8038, %vm8039
        %v8041 = vsel %vm8040, %v8032, %v8037
        %v8042 = vrsqrt.pop %v7537
        %v8043 = vmul.f32 %v8042, %v7537
        %v8044 = vmul.f32 %v8043, %v8042
        %v8045 = vmul.f32 0.5, %v8044
        %v8046 = vsub.f32 1.5, %v8045
        %v8047 = vmul.f32 %v8042, %v8046
        %vm8048 = vweird.f32 %v7537
        %vm8049 = vweird.f32 %v8042
        %vm8050 = vmor %vm8048, %vm8049
        %v8051 = vsel %vm8050, %v8042, %v8047
        %v8052 = vrsqrt.pop %v7538
        %v8053 = vmul.f32 %v8052, %v7538
        %v8054 = vmul.f32 %v8053, %v8052
        %v8055 = vmul.f32 0.5, %v8054
        %v8056 = vsub.f32 1.5, %v8055
        %v8057 = vmul.f32 %v8052, %v8056
        %vm8058 = vweird.f32 %v7538
        %vm8059 = vweird.f32 %v8052
        %vm8060 = vmor %vm8058, %vm8059
        %v8061 = vsel %vm8060, %v8052, %v8057
        %v8062 = vrsqrt.pop %v7539
        %v8063 = vmul.f32 %v8062, %v7539
        %v8064 = vmul.f32 %v8063, %v8062
        %v8065 = vmul.f32 0.5, %v8064
        %v8066 = vsub.f32 1.5, %v8065
        %v8067 = vmul.f32 %v8062, %v8066
        %vm8068 = vweird.f32 %v7539
        %vm8069 = vweird.f32 %v8062
        %vm8070 = vmor %vm8068, %vm8069
        %v8071 = vsel %vm8070, %v8062, %v8067
        %v8072 = vrsqrt.pop %v7540
        %v8073 = vmul.f32 %v8072, %v7540
        %v8074 = vmul.f32 %v8073, %v8072
        %v8075 = vmul.f32 0.5, %v8074
        %v8076 = vsub.f32 1.5, %v8075
        %v8077 = vmul.f32 %v8072, %v8076
        %vm8078 = vweird.f32 %v7540
        %vm8079 = vweird.f32 %v8072
        %vm8080 = vmor %vm8078, %vm8079
        %v8081 = vsel %vm8080, %v8072, %v8077
        %v8082 = vrsqrt.pop %v7541
        %v8083 = vmul.f32 %v8082, %v7541
        %v8084 = vmul.f32 %v8083, %v8082
        %v8085 = vmul.f32 0.5, %v8084
        %v8086 = vsub.f32 1.5, %v8085
        %v8087 = vmul.f32 %v8082, %v8086
        %vm8088 = vweird.f32 %v7541
        %vm8089 = vweird.f32 %v8082
        %vm8090 = vmor %vm8088, %vm8089
        %v8091 = vsel %vm8090, %v8082, %v8087
        %v8092 = vrsqrt.pop %v7542
        %v8093 = vmul.f32 %v8092, %v7542
        %v8094 = vmul.f32 %v8093, %v8092
        %v8095 = vmul.f32 0.5, %v8094
        %v8096 = vsub.f32 1.5, %v8095
        %v8097 = vmul.f32 %v8092, %v8096
        %vm8098 = vweird.f32 %v7542
        %vm8099 = vweird.f32 %v8092
        %vm8100 = vmor %vm8098, %vm8099
        %v8101 = vsel %vm8100, %v8092, %v8097
        %v8102 = vrsqrt.pop %v7543
        %v8103 = vmul.f32 %v8102, %v7543
        %v8104 = vmul.f32 %v8103, %v8102
        %v8105 = vmul.f32 0.5, %v8104
        %v8106 = vsub.f32 1.5, %v8105
        %v8107 = vmul.f32 %v8102, %v8106
        %vm8108 = vweird.f32 %v7543
        %vm8109 = vweird.f32 %v8102
        %vm8110 = vmor %vm8108, %vm8109
        %v8111 = vsel %vm8110, %v8102, %v8107
        %v8112 = vrsqrt.pop %v7544
        %v8113 = vmul.f32 %v8112, %v7544
        %v8114 = vmul.f32 %v8113, %v8112
        %v8115 = vmul.f32 0.5, %v8114
        %v8116 = vsub.f32 1.5, %v8115
        %v8117 = vmul.f32 %v8112, %v8116
        %vm8118 = vweird.f32 %v7544
        %vm8119 = vweird.f32 %v8112
        %vm8120 = vmor %vm8118, %vm8119
        %v8121 = vsel %vm8120, %v8112, %v8117
        %v8122 = vrsqrt.pop %v7545
        %v8123 = vmul.f32 %v8122, %v7545
        %v8124 = vmul.f32 %v8123, %v8122
        %v8125 = vmul.f32 0.5, %v8124
        %v8126 = vsub.f32 1.5, %v8125
        %v8127 = vmul.f32 %v8122, %v8126
        %vm8128 = vweird.f32 %v7545
        %vm8129 = vweird.f32 %v8122
        %vm8130 = vmor %vm8128, %vm8129
        %v8131 = vsel %vm8130, %v8122, %v8127
        %v8132 = vrsqrt.pop %v7546
        %v8133 = vmul.f32 %v8132, %v7546
        %v8134 = vmul.f32 %v8133, %v8132
        %v8135 = vmul.f32 0.5, %v8134
        %v8136 = vsub.f32 1.5, %v8135
        %v8137 = vmul.f32 %v8132, %v8136
        %vm8138 = vweird.f32 %v7546
        %vm8139 = vweird.f32 %v8132
        %vm8140 = vmor %vm8138, %vm8139
        %v8141 = vsel %vm8140, %v8132, %v8137
        %v8142 = vrsqrt.pop %v7547
        %v8143 = vmul.f32 %v8142, %v7547
        %v8144 = vmul.f32 %v8143, %v8142
        %v8145 = vmul.f32 0.5, %v8144
        %v8146 = vsub.f32 1.5, %v8145
        %v8147 = vmul.f32 %v8142, %v8146
        %vm8148 = vweird.f32 %v7547
        %vm8149 = vweird.f32 %v8142
        %vm8150 = vmor %vm8148, %vm8149
        %v8151 = vsel %vm8150, %v8142, %v8147
        %v8152 = vrsqrt.pop %v7548
        %v8153 = vmul.f32 %v8152, %v7548
        %v8154 = vmul.f32 %v8153, %v8152
        %v8155 = vmul.f32 0.5, %v8154
        %v8156 = vsub.f32 1.5, %v8155
        %v8157 = vmul.f32 %v8152, %v8156
        %vm8158 = vweird.f32 %v7548
        %vm8159 = vweird.f32 %v8152
        %vm8160 = vmor %vm8158, %vm8159
        %v8161 = vsel %vm8160, %v8152, %v8157
        %v8162 = vrsqrt.pop %v7549
        %v8163 = vmul.f32 %v8162, %v7549
        %v8164 = vmul.f32 %v8163, %v8162
        %v8165 = vmul.f32 0.5, %v8164
        %v8166 = vsub.f32 1.5, %v8165
        %v8167 = vmul.f32 %v8162, %v8166
        %vm8168 = vweird.f32 %v7549
        %vm8169 = vweird.f32 %v8162
        %vm8170 = vmor %vm8168, %vm8169
        %v8171 = vsel %vm8170, %v8162, %v8167
        %v8172 = vrsqrt.pop %v7550
        %v8173 = vmul.f32 %v8172, %v7550
        %v8174 = vmul.f32 %v8173, %v8172
        %v8175 = vmul.f32 0.5, %v8174
        %v8176 = vsub.f32 1.5, %v8175
        %v8177 = vmul.f32 %v8172, %v8176
        %vm8178 = vweird.f32 %v7550
        %vm8179 = vweird.f32 %v8172
        %vm8180 = vmor %vm8178, %vm8179
        %v8181 = vsel %vm8180, %v8172, %v8177
        %v8182 = vrsqrt.pop %v7551
        %v8183 = vmul.f32 %v8182, %v7551
        %v8184 = vmul.f32 %v8183, %v8182
        %v8185 = vmul.f32 0.5, %v8184
        %v8186 = vsub.f32 1.5, %v8185
        %v8187 = vmul.f32 %v8182, %v8186
        %vm8188 = vweird.f32 %v7551
        %vm8189 = vweird.f32 %v8182
        %vm8190 = vmor %vm8188, %vm8189
        %v8191 = vsel %vm8190, %v8182, %v8187
        %v8192 = vmul.f32 %v6912, %v7561
        %v8193 = vmul.f32 %v6913, %v7571
        %v8194 = vmul.f32 %v6914, %v7581
        %v8195 = vmul.f32 %v6915, %v7591
        %v8196 = vmul.f32 %v6916, %v7601
        %v8197 = vmul.f32 %v6917, %v7611
        %v8198 = vmul.f32 %v6918, %v7621
        %v8199 = vmul.f32 %v6919, %v7631
        %v8200 = vmul.f32 %v6920, %v7641
        %v8201 = vmul.f32 %v6921, %v7651
        %v8202 = vmul.f32 %v6922, %v7661
        %v8203 = vmul.f32 %v6923, %v7671
        %v8204 = vmul.f32 %v6924, %v7681
        %v8205 = vmul.f32 %v6925, %v7691
        %v8206 = vmul.f32 %v6926, %v7701
        %v8207 = vmul.f32 %v6927, %v7711
        %v8208 = vmul.f32 %v6928, %v7721
        %v8209 = vmul.f32 %v6929, %v7731
        %v8210 = vmul.f32 %v6930, %v7741
        %v8211 = vmul.f32 %v6931, %v7751
        %v8212 = vmul.f32 %v6932, %v7761
        %v8213 = vmul.f32 %v6933, %v7771
        %v8214 = vmul.f32 %v6934, %v7781
        %v8215 = vmul.f32 %v6935, %v7791
        %v8216 = vmul.f32 %v6936, %v7801
        %v8217 = vmul.f32 %v6937, %v7811
        %v8218 = vmul.f32 %v6938, %v7821
        %v8219 = vmul.f32 %v6939, %v7831
        %v8220 = vmul.f32 %v6940, %v7841
        %v8221 = vmul.f32 %v6941, %v7851
        %v8222 = vmul.f32 %v6942, %v7861
        %v8223 = vmul.f32 %v6943, %v7871
        %v8224 = vmul.f32 %v6944, %v7881
        %v8225 = vmul.f32 %v6945, %v7891
        %v8226 = vmul.f32 %v6946, %v7901
        %v8227 = vmul.f32 %v6947, %v7911
        %v8228 = vmul.f32 %v6948, %v7921
        %v8229 = vmul.f32 %v6949, %v7931
        %v8230 = vmul.f32 %v6950, %v7941
        %v8231 = vmul.f32 %v6951, %v7951
        %v8232 = vmul.f32 %v6952, %v7961
        %v8233 = vmul.f32 %v6953, %v7971
        %v8234 = vmul.f32 %v6954, %v7981
        %v8235 = vmul.f32 %v6955, %v7991
        %v8236 = vmul.f32 %v6956, %v8001
        %v8237 = vmul.f32 %v6957, %v8011
        %v8238 = vmul.f32 %v6958, %v8021
        %v8239 = vmul.f32 %v6959, %v8031
        %v8240 = vmul.f32 %v6960, %v8041
        %v8241 = vmul.f32 %v6961, %v8051
        %v8242 = vmul.f32 %v6962, %v8061
        %v8243 = vmul.f32 %v6963, %v8071
        %v8244 = vmul.f32 %v6964, %v8081
        %v8245 = vmul.f32 %v6965, %v8091
        %v8246 = vmul.f32 %v6966, %v8101
        %v8247 = vmul.f32 %v6967, %v8111
        %v8248 = vmul.f32 %v6968, %v8121
        %v8249 = vmul.f32 %v6969, %v8131
        %v8250 = vmul.f32 %v6970, %v8141
        %v8251 = vmul.f32 %v6971, %v8151
        %v8252 = vmul.f32 %v6972, %v8161
        %v8253 = vmul.f32 %v6973, %v8171
        %v8254 = vmul.f32 %v6974, %v8181
        %v8255 = vmul.f32 %v6975, %v8191
        %v8256 = vld [vmem:[#allocation7] sm:$0xff]
        %v8257 = vld [vmem:[#allocation7 + $0x8] sm:$0xff]
        %v8258 = vld [vmem:[#allocation7 + $0x10] sm:$0xff]
        %v8259 = vld [vmem:[#allocation7 + $0x18] sm:$0xff]
        %v8260 = vld [vmem:[#allocation7 + $0x20] sm:$0xff]
        %v8261 = vld [vmem:[#allocation7 + $0x28] sm:$0xff]
        %v8262 = vld [vmem:[#allocation7 + $0x30] sm:$0xff]
        %v8263 = vld [vmem:[#allocation7 + $0x38] sm:$0xff]
        %v8264 = vld [vmem:[#allocation7 + $0x40] sm:$0xff]
        %v8265 = vld [vmem:[#allocation7 + $0x48] sm:$0xff]
        %v8266 = vld [vmem:[#allocation7 + $0x50] sm:$0xff]
        %v8267 = vld [vmem:[#allocation7 + $0x58] sm:$0xff]
        %v8268 = vld [vmem:[#allocation7 + $0x60] sm:$0xff]
        %v8269 = vld [vmem:[#allocation7 + $0x68] sm:$0xff]
        %v8270 = vld [vmem:[#allocation7 + $0x70] sm:$0xff]
        %v8271 = vld [vmem:[#allocation7 + $0x78] sm:$0xff]
        %v8272 = vld [vmem:[#allocation7 + $0x80] sm:$0xff]
        %v8273 = vld [vmem:[#allocation7 + $0x88] sm:$0xff]
        %v8274 = vld [vmem:[#allocation7 + $0x90] sm:$0xff]
        %v8275 = vld [vmem:[#allocation7 + $0x98] sm:$0xff]
        %v8276 = vld [vmem:[#allocation7 + $0xa0] sm:$0xff]
        %v8277 = vld [vmem:[#allocation7 + $0xa8] sm:$0xff]
        %v8278 = vld [vmem:[#allocation7 + $0xb0] sm:$0xff]
        %v8279 = vld [vmem:[#allocation7 + $0xb8] sm:$0xff]
        %v8280 = vld [vmem:[#allocation7 + $0xc0] sm:$0xff]
        %v8281 = vld [vmem:[#allocation7 + $0xc8] sm:$0xff]
        %v8282 = vld [vmem:[#allocation7 + $0xd0] sm:$0xff]
        %v8283 = vld [vmem:[#allocation7 + $0xd8] sm:$0xff]
        %v8284 = vld [vmem:[#allocation7 + $0xe0] sm:$0xff]
        %v8285 = vld [vmem:[#allocation7 + $0xe8] sm:$0xff]
        %v8286 = vld [vmem:[#allocation7 + $0xf0] sm:$0xff]
        %v8287 = vld [vmem:[#allocation7 + $0xf8] sm:$0xff]
        %v8288 = vld [vmem:[#allocation7 + $0x100] sm:$0xff]
        %v8289 = vld [vmem:[#allocation7 + $0x108] sm:$0xff]
        %v8290 = vld [vmem:[#allocation7 + $0x110] sm:$0xff]
        %v8291 = vld [vmem:[#allocation7 + $0x118] sm:$0xff]
        %v8292 = vld [vmem:[#allocation7 + $0x120] sm:$0xff]
        %v8293 = vld [vmem:[#allocation7 + $0x128] sm:$0xff]
        %v8294 = vld [vmem:[#allocation7 + $0x130] sm:$0xff]
        %v8295 = vld [vmem:[#allocation7 + $0x138] sm:$0xff]
        %v8296 = vld [vmem:[#allocation7 + $0x140] sm:$0xff]
        %v8297 = vld [vmem:[#allocation7 + $0x148] sm:$0xff]
        %v8298 = vld [vmem:[#allocation7 + $0x150] sm:$0xff]
        %v8299 = vld [vmem:[#allocation7 + $0x158] sm:$0xff]
        %v8300 = vld [vmem:[#allocation7 + $0x160] sm:$0xff]
        %v8301 = vld [vmem:[#allocation7 + $0x168] sm:$0xff]
        %v8302 = vld [vmem:[#allocation7 + $0x170] sm:$0xff]
        %v8303 = vld [vmem:[#allocation7 + $0x178] sm:$0xff]
        %v8304 = vld [vmem:[#allocation7 + $0x180] sm:$0xff]
        %v8305 = vld [vmem:[#allocation7 + $0x188] sm:$0xff]
        %v8306 = vld [vmem:[#allocation7 + $0x190] sm:$0xff]
        %v8307 = vld [vmem:[#allocation7 + $0x198] sm:$0xff]
        %v8308 = vld [vmem:[#allocation7 + $0x1a0] sm:$0xff]
        %v8309 = vld [vmem:[#allocation7 + $0x1a8] sm:$0xff]
        %v8310 = vld [vmem:[#allocation7 + $0x1b0] sm:$0xff]
        %v8311 = vld [vmem:[#allocation7 + $0x1b8] sm:$0xff]
        %v8312 = vld [vmem:[#allocation7 + $0x1c0] sm:$0xff]
        %v8313 = vld [vmem:[#allocation7 + $0x1c8] sm:$0xff]
        %v8314 = vld [vmem:[#allocation7 + $0x1d0] sm:$0xff]
        %v8315 = vld [vmem:[#allocation7 + $0x1d8] sm:$0xff]
        %v8316 = vld [vmem:[#allocation7 + $0x1e0] sm:$0xff]
        %v8317 = vld [vmem:[#allocation7 + $0x1e8] sm:$0xff]
        %v8318 = vld [vmem:[#allocation7 + $0x1f0] sm:$0xff]
        %v8319 = vld [vmem:[#allocation7 + $0x1f8] sm:$0xff]
        %v8320 = vld [vmem:[%s5] sm:$0xff]
        %v8321 = vld [vmem:[%s5 + $0x8] sm:$0xff]
        %v8322 = vld [vmem:[%s5 + $0x10] sm:$0xff]
        %v8323 = vld [vmem:[%s5 + $0x18] sm:$0xff]
        %v8324 = vld [vmem:[%s5 + $0x20] sm:$0xff]
        %v8325 = vld [vmem:[%s5 + $0x28] sm:$0xff]
        %v8326 = vld [vmem:[%s5 + $0x30] sm:$0xff]
        %v8327 = vld [vmem:[%s5 + $0x38] sm:$0xff]
        %v8328 = vld [vmem:[%s5 + $0x40] sm:$0xff]
        %v8329 = vld [vmem:[%s5 + $0x48] sm:$0xff]
        %v8330 = vld [vmem:[%s5 + $0x50] sm:$0xff]
        %v8331 = vld [vmem:[%s5 + $0x58] sm:$0xff]
        %v8332 = vld [vmem:[%s5 + $0x60] sm:$0xff]
        %v8333 = vld [vmem:[%s5 + $0x68] sm:$0xff]
        %v8334 = vld [vmem:[%s5 + $0x70] sm:$0xff]
        %v8335 = vld [vmem:[%s5 + $0x78] sm:$0xff]
        %v8336 = vld [vmem:[%s5 + $0x80] sm:$0xff]
        %v8337 = vld [vmem:[%s5 + $0x88] sm:$0xff]
        %v8338 = vld [vmem:[%s5 + $0x90] sm:$0xff]
        %v8339 = vld [vmem:[%s5 + $0x98] sm:$0xff]
        %v8340 = vld [vmem:[%s5 + $0xa0] sm:$0xff]
        %v8341 = vld [vmem:[%s5 + $0xa8] sm:$0xff]
        %v8342 = vld [vmem:[%s5 + $0xb0] sm:$0xff]
        %v8343 = vld [vmem:[%s5 + $0xb8] sm:$0xff]
        %v8344 = vld [vmem:[%s5 + $0xc0] sm:$0xff]
        %v8345 = vld [vmem:[%s5 + $0xc8] sm:$0xff]
        %v8346 = vld [vmem:[%s5 + $0xd0] sm:$0xff]
        %v8347 = vld [vmem:[%s5 + $0xd8] sm:$0xff]
        %v8348 = vld [vmem:[%s5 + $0xe0] sm:$0xff]
        %v8349 = vld [vmem:[%s5 + $0xe8] sm:$0xff]
        %v8350 = vld [vmem:[%s5 + $0xf0] sm:$0xff]
        %v8351 = vld [vmem:[%s5 + $0xf8] sm:$0xff]
        %8353 = vset.pattern.permute.xlu0 0
        %8354 = vperm.xlu0 %8353, %v8320
        %v8355 = vpop.permute.xlu0 %8354
        %8358 = vset.pattern.permute.xlu0 0
        %8359 = vperm.xlu0 %8358, %v8321
        %v8360 = vpop.permute.xlu0 %8359
        %8363 = vset.pattern.permute.xlu0 0
        %8364 = vperm.xlu0 %8363, %v8322
        %v8365 = vpop.permute.xlu0 %8364
        %8368 = vset.pattern.permute.xlu0 0
        %8369 = vperm.xlu0 %8368, %v8323
        %v8370 = vpop.permute.xlu0 %8369
        %8373 = vset.pattern.permute.xlu0 0
        %8374 = vperm.xlu0 %8373, %v8324
        %v8375 = vpop.permute.xlu0 %8374
        %8378 = vset.pattern.permute.xlu0 0
        %8379 = vperm.xlu0 %8378, %v8325
        %v8380 = vpop.permute.xlu0 %8379
        %8383 = vset.pattern.permute.xlu0 0
        %8384 = vperm.xlu0 %8383, %v8326
        %v8385 = vpop.permute.xlu0 %8384
        %8388 = vset.pattern.permute.xlu0 0
        %8389 = vperm.xlu0 %8388, %v8327
        %v8390 = vpop.permute.xlu0 %8389
        %8393 = vset.pattern.permute.xlu0 0
        %8394 = vperm.xlu0 %8393, %v8328
        %v8395 = vpop.permute.xlu0 %8394
        %8398 = vset.pattern.permute.xlu0 0
        %8399 = vperm.xlu0 %8398, %v8329
        %v8400 = vpop.permute.xlu0 %8399
        %8403 = vset.pattern.permute.xlu0 0
        %8404 = vperm.xlu0 %8403, %v8330
        %v8405 = vpop.permute.xlu0 %8404
        %8408 = vset.pattern.permute.xlu0 0
        %8409 = vperm.xlu0 %8408, %v8331
        %v8410 = vpop.permute.xlu0 %8409
        %8413 = vset.pattern.permute.xlu0 0
        %8414 = vperm.xlu0 %8413, %v8332
        %v8415 = vpop.permute.xlu0 %8414
        %8418 = vset.pattern.permute.xlu0 0
        %8419 = vperm.xlu0 %8418, %v8333
        %v8420 = vpop.permute.xlu0 %8419
        %8423 = vset.pattern.permute.xlu0 0
        %8424 = vperm.xlu0 %8423, %v8334
        %v8425 = vpop.permute.xlu0 %8424
        %8428 = vset.pattern.permute.xlu0 0
        %8429 = vperm.xlu0 %8428, %v8335
        %v8430 = vpop.permute.xlu0 %8429
        %8433 = vset.pattern.permute.xlu0 0
        %8434 = vperm.xlu0 %8433, %v8336
        %v8435 = vpop.permute.xlu0 %8434
        %8438 = vset.pattern.permute.xlu0 0
        %8439 = vperm.xlu0 %8438, %v8337
        %v8440 = vpop.permute.xlu0 %8439
        %8443 = vset.pattern.permute.xlu0 0
        %8444 = vperm.xlu0 %8443, %v8338
        %v8445 = vpop.permute.xlu0 %8444
        %8448 = vset.pattern.permute.xlu0 0
        %8449 = vperm.xlu0 %8448, %v8339
        %v8450 = vpop.permute.xlu0 %8449
        %8453 = vset.pattern.permute.xlu0 0
        %8454 = vperm.xlu0 %8453, %v8340
        %v8455 = vpop.permute.xlu0 %8454
        %8458 = vset.pattern.permute.xlu0 0
        %8459 = vperm.xlu0 %8458, %v8341
        %v8460 = vpop.permute.xlu0 %8459
        %8463 = vset.pattern.permute.xlu0 0
        %8464 = vperm.xlu0 %8463, %v8342
        %v8465 = vpop.permute.xlu0 %8464
        %8468 = vset.pattern.permute.xlu0 0
        %8469 = vperm.xlu0 %8468, %v8343
        %v8470 = vpop.permute.xlu0 %8469
        %8473 = vset.pattern.permute.xlu0 0
        %8474 = vperm.xlu0 %8473, %v8344
        %v8475 = vpop.permute.xlu0 %8474
        %8478 = vset.pattern.permute.xlu0 0
        %8479 = vperm.xlu0 %8478, %v8345
        %v8480 = vpop.permute.xlu0 %8479
        %8483 = vset.pattern.permute.xlu0 0
        %8484 = vperm.xlu0 %8483, %v8346
        %v8485 = vpop.permute.xlu0 %8484
        %8488 = vset.pattern.permute.xlu0 0
        %8489 = vperm.xlu0 %8488, %v8347
        %v8490 = vpop.permute.xlu0 %8489
        %8493 = vset.pattern.permute.xlu0 0
        %8494 = vperm.xlu0 %8493, %v8348
        %v8495 = vpop.permute.xlu0 %8494
        %8498 = vset.pattern.permute.xlu0 0
        %8499 = vperm.xlu0 %8498, %v8349
        %v8500 = vpop.permute.xlu0 %8499
        %8503 = vset.pattern.permute.xlu0 0
        %8504 = vperm.xlu0 %8503, %v8350
        %v8505 = vpop.permute.xlu0 %8504
        %8508 = vset.pattern.permute.xlu0 0
        %8509 = vperm.xlu0 %8508, %v8351
        %v8510 = vpop.permute.xlu0 %8509
        %8512 = vmatpush.msra.mxu0 %v8222
        %8513 = vmatpush.msra.mxu0 %v8220
        %8514 = vmatpush.msra.mxu0 %v8218
        %8515 = vmatpush.msra.mxu0 %v8216
        %8516 = vmatpush.msra.mxu0 %v8214
        %8517 = vmatpush.msra.mxu0 %v8212
        %8518 = vmatpush.msra.mxu0 %v8210
        %8519 = vmatpush.msra.mxu0 %v8208
        %8520 = vmatpush.msra.mxu0 %v8206
        %8521 = vmatpush.msra.mxu0 %v8204
        %8522 = vmatpush.msra.mxu0 %v8202
        %8523 = vmatpush.msra.mxu0 %v8200
        %8524 = vmatpush.msra.mxu0 %v8198
        %8525 = vmatpush.msra.mxu0 %v8196
        %8526 = vmatpush.msra.mxu0 %v8194
        %8527 = vmatpush.msra.mxu0 %v8192
        %8528 = vmatmul.f32.gmra.mxu0 %v8256
        %v8529 = vpop.f32.mrf.mxu0
        %v8530 = vadd.f32 %v8355, %v8529
        %8531 = vmatmul.f32.gmra.mxu0 %v8258
        %v8532 = vpop.f32.mrf.mxu0
        %v8533 = vadd.f32 %v8360, %v8532
        %8534 = vmatmul.f32.gmra.mxu0 %v8260
        %v8535 = vpop.f32.mrf.mxu0
        %v8536 = vadd.f32 %v8365, %v8535
        %8537 = vmatmul.f32.gmra.mxu0 %v8262
        %v8538 = vpop.f32.mrf.mxu0
        %v8539 = vadd.f32 %v8370, %v8538
        %8540 = vmatmul.f32.gmra.mxu0 %v8264
        %v8541 = vpop.f32.mrf.mxu0
        %v8542 = vadd.f32 %v8375, %v8541
        %8543 = vmatmul.f32.gmra.mxu0 %v8266
        %v8544 = vpop.f32.mrf.mxu0
        %v8545 = vadd.f32 %v8380, %v8544
        %8546 = vmatmul.f32.gmra.mxu0 %v8268
        %v8547 = vpop.f32.mrf.mxu0
        %v8548 = vadd.f32 %v8385, %v8547
        %8549 = vmatmul.f32.gmra.mxu0 %v8270
        %v8550 = vpop.f32.mrf.mxu0
        %v8551 = vadd.f32 %v8390, %v8550
        %8552 = vmatmul.f32.gmra.mxu0 %v8272
        %v8553 = vpop.f32.mrf.mxu0
        %v8554 = vadd.f32 %v8395, %v8553
        %8555 = vmatmul.f32.gmra.mxu0 %v8274
        %v8556 = vpop.f32.mrf.mxu0
        %v8557 = vadd.f32 %v8400, %v8556
        %8558 = vmatmul.f32.gmra.mxu0 %v8276
        %v8559 = vpop.f32.mrf.mxu0
        %v8560 = vadd.f32 %v8405, %v8559
        %8561 = vmatmul.f32.gmra.mxu0 %v8278
        %v8562 = vpop.f32.mrf.mxu0
        %v8563 = vadd.f32 %v8410, %v8562
        %8564 = vmatmul.f32.gmra.mxu0 %v8280
        %v8565 = vpop.f32.mrf.mxu0
        %v8566 = vadd.f32 %v8415, %v8565
        %8567 = vmatmul.f32.gmra.mxu0 %v8282
        %v8568 = vpop.f32.mrf.mxu0
        %v8569 = vadd.f32 %v8420, %v8568
        %8570 = vmatmul.f32.gmra.mxu0 %v8284
        %v8571 = vpop.f32.mrf.mxu0
        %v8572 = vadd.f32 %v8425, %v8571
        %8573 = vmatmul.f32.gmra.mxu0 %v8286
        %v8574 = vpop.f32.mrf.mxu0
        %v8575 = vadd.f32 %v8430, %v8574
        %8576 = vmatmul.f32.gmra.mxu0 %v8288
        %v8577 = vpop.f32.mrf.mxu0
        %v8578 = vadd.f32 %v8435, %v8577
        %8579 = vmatmul.f32.gmra.mxu0 %v8290
        %v8580 = vpop.f32.mrf.mxu0
        %v8581 = vadd.f32 %v8440, %v8580
        %8582 = vmatmul.f32.gmra.mxu0 %v8292
        %v8583 = vpop.f32.mrf.mxu0
        %v8584 = vadd.f32 %v8445, %v8583
        %8585 = vmatmul.f32.gmra.mxu0 %v8294
        %v8586 = vpop.f32.mrf.mxu0
        %v8587 = vadd.f32 %v8450, %v8586
        %8588 = vmatmul.f32.gmra.mxu0 %v8296
        %v8589 = vpop.f32.mrf.mxu0
        %v8590 = vadd.f32 %v8455, %v8589
        %8591 = vmatmul.f32.gmra.mxu0 %v8298
        %v8592 = vpop.f32.mrf.mxu0
        %v8593 = vadd.f32 %v8460, %v8592
        %8594 = vmatmul.f32.gmra.mxu0 %v8300
        %v8595 = vpop.f32.mrf.mxu0
        %v8596 = vadd.f32 %v8465, %v8595
        %8597 = vmatmul.f32.gmra.mxu0 %v8302
        %v8598 = vpop.f32.mrf.mxu0
        %v8599 = vadd.f32 %v8470, %v8598
        %8600 = vmatmul.f32.gmra.mxu0 %v8304
        %v8601 = vpop.f32.mrf.mxu0
        %v8602 = vadd.f32 %v8475, %v8601
        %8603 = vmatmul.f32.gmra.mxu0 %v8306
        %v8604 = vpop.f32.mrf.mxu0
        %v8605 = vadd.f32 %v8480, %v8604
        %8606 = vmatmul.f32.gmra.mxu0 %v8308
        %v8607 = vpop.f32.mrf.mxu0
        %v8608 = vadd.f32 %v8485, %v8607
        %8609 = vmatmul.f32.gmra.mxu0 %v8310
        %v8610 = vpop.f32.mrf.mxu0
        %v8611 = vadd.f32 %v8490, %v8610
        %8612 = vmatmul.f32.gmra.mxu0 %v8312
        %v8613 = vpop.f32.mrf.mxu0
        %v8614 = vadd.f32 %v8495, %v8613
        %8615 = vmatmul.f32.gmra.mxu0 %v8314
        %v8616 = vpop.f32.mrf.mxu0
        %v8617 = vadd.f32 %v8500, %v8616
        %8618 = vmatmul.f32.gmra.mxu0 %v8316
        %v8619 = vpop.f32.mrf.mxu0
        %v8620 = vadd.f32 %v8505, %v8619
        %8621 = vmatmul.f32.gmra.mxu0 %v8318
        %v8622 = vpop.f32.mrf.mxu0
        %v8623 = vadd.f32 %v8510, %v8622
        %8624 = vdwg.mxu0
        %8625 = vmatpush.msra.mxu0 %v8254
        %8626 = vmatpush.msra.mxu0 %v8252
        %8627 = vmatpush.msra.mxu0 %v8250
        %8628 = vmatpush.msra.mxu0 %v8248
        %8629 = vmatpush.msra.mxu0 %v8246
        %8630 = vmatpush.msra.mxu0 %v8244
        %8631 = vmatpush.msra.mxu0 %v8242
        %8632 = vmatpush.msra.mxu0 %v8240
        %8633 = vmatpush.msra.mxu0 %v8238
        %8634 = vmatpush.msra.mxu0 %v8236
        %8635 = vmatpush.msra.mxu0 %v8234
        %8636 = vmatpush.msra.mxu0 %v8232
        %8637 = vmatpush.msra.mxu0 %v8230
        %8638 = vmatpush.msra.mxu0 %v8228
        %8639 = vmatpush.msra.mxu0 %v8226
        %8640 = vmatpush.msra.mxu0 %v8224
        %8641 = vmatmul.f32.gmra.mxu0 %v8257
        %v8642 = vpop.f32.mrf.mxu0
        %v8643 = vadd.f32 %v8530, %v8642
        %8644 = vmatmul.f32.gmra.mxu0 %v8259
        %v8645 = vpop.f32.mrf.mxu0
        %v8646 = vadd.f32 %v8533, %v8645
        %8647 = vmatmul.f32.gmra.mxu0 %v8261
        %v8648 = vpop.f32.mrf.mxu0
        %v8649 = vadd.f32 %v8536, %v8648
        %8650 = vmatmul.f32.gmra.mxu0 %v8263
        %v8651 = vpop.f32.mrf.mxu0
        %v8652 = vadd.f32 %v8539, %v8651
        %8653 = vmatmul.f32.gmra.mxu0 %v8265
        %v8654 = vpop.f32.mrf.mxu0
        %v8655 = vadd.f32 %v8542, %v8654
        %8656 = vmatmul.f32.gmra.mxu0 %v8267
        %v8657 = vpop.f32.mrf.mxu0
        %v8658 = vadd.f32 %v8545, %v8657
        %8659 = vmatmul.f32.gmra.mxu0 %v8269
        %v8660 = vpop.f32.mrf.mxu0
        %v8661 = vadd.f32 %v8548, %v8660
        %8662 = vmatmul.f32.gmra.mxu0 %v8271
        %v8663 = vpop.f32.mrf.mxu0
        %v8664 = vadd.f32 %v8551, %v8663
        %8665 = vmatmul.f32.gmra.mxu0 %v8273
        %v8666 = vpop.f32.mrf.mxu0
        %v8667 = vadd.f32 %v8554, %v8666
        %8668 = vmatmul.f32.gmra.mxu0 %v8275
        %v8669 = vpop.f32.mrf.mxu0
        %v8670 = vadd.f32 %v8557, %v8669
        %8671 = vmatmul.f32.gmra.mxu0 %v8277
        %v8672 = vpop.f32.mrf.mxu0
        %v8673 = vadd.f32 %v8560, %v8672
        %8674 = vmatmul.f32.gmra.mxu0 %v8279
        %v8675 = vpop.f32.mrf.mxu0
        %v8676 = vadd.f32 %v8563, %v8675
        %8677 = vmatmul.f32.gmra.mxu0 %v8281
        %v8678 = vpop.f32.mrf.mxu0
        %v8679 = vadd.f32 %v8566, %v8678
        %8680 = vmatmul.f32.gmra.mxu0 %v8283
        %v8681 = vpop.f32.mrf.mxu0
        %v8682 = vadd.f32 %v8569, %v8681
        %8683 = vmatmul.f32.gmra.mxu0 %v8285
        %v8684 = vpop.f32.mrf.mxu0
        %v8685 = vadd.f32 %v8572, %v8684
        %8686 = vmatmul.f32.gmra.mxu0 %v8287
        %v8687 = vpop.f32.mrf.mxu0
        %v8688 = vadd.f32 %v8575, %v8687
        %8689 = vmatmul.f32.gmra.mxu0 %v8289
        %v8690 = vpop.f32.mrf.mxu0
        %v8691 = vadd.f32 %v8578, %v8690
        %8692 = vmatmul.f32.gmra.mxu0 %v8291
        %v8693 = vpop.f32.mrf.mxu0
        %v8694 = vadd.f32 %v8581, %v8693
        %8695 = vmatmul.f32.gmra.mxu0 %v8293
        %v8696 = vpop.f32.mrf.mxu0
        %v8697 = vadd.f32 %v8584, %v8696
        %8698 = vmatmul.f32.gmra.mxu0 %v8295
        %v8699 = vpop.f32.mrf.mxu0
        %v8700 = vadd.f32 %v8587, %v8699
        %8701 = vmatmul.f32.gmra.mxu0 %v8297
        %v8702 = vpop.f32.mrf.mxu0
        %v8703 = vadd.f32 %v8590, %v8702
        %8704 = vmatmul.f32.gmra.mxu0 %v8299
        %v8705 = vpop.f32.mrf.mxu0
        %v8706 = vadd.f32 %v8593, %v8705
        %8707 = vmatmul.f32.gmra.mxu0 %v8301
        %v8708 = vpop.f32.mrf.mxu0
        %v8709 = vadd.f32 %v8596, %v8708
        %8710 = vmatmul.f32.gmra.mxu0 %v8303
        %v8711 = vpop.f32.mrf.mxu0
        %v8712 = vadd.f32 %v8599, %v8711
        %8713 = vmatmul.f32.gmra.mxu0 %v8305
        %v8714 = vpop.f32.mrf.mxu0
        %v8715 = vadd.f32 %v8602, %v8714
        %8716 = vmatmul.f32.gmra.mxu0 %v8307
        %v8717 = vpop.f32.mrf.mxu0
        %v8718 = vadd.f32 %v8605, %v8717
        %8719 = vmatmul.f32.gmra.mxu0 %v8309
        %v8720 = vpop.f32.mrf.mxu0
        %v8721 = vadd.f32 %v8608, %v8720
        %8722 = vmatmul.f32.gmra.mxu0 %v8311
        %v8723 = vpop.f32.mrf.mxu0
        %v8724 = vadd.f32 %v8611, %v8723
        %8725 = vmatmul.f32.gmra.mxu0 %v8313
        %v8726 = vpop.f32.mrf.mxu0
        %v8727 = vadd.f32 %v8614, %v8726
        %8728 = vmatmul.f32.gmra.mxu0 %v8315
        %v8729 = vpop.f32.mrf.mxu0
        %v8730 = vadd.f32 %v8617, %v8729
        %8731 = vmatmul.f32.gmra.mxu0 %v8317
        %v8732 = vpop.f32.mrf.mxu0
        %v8733 = vadd.f32 %v8620, %v8732
        %8734 = vmatmul.f32.gmra.mxu0 %v8319
        %v8735 = vpop.f32.mrf.mxu0
        %v8736 = vadd.f32 %v8623, %v8735
        %8737 = vdwg.mxu0
        %8738 = vmatpush.msra.mxu0 %v8223
        %8739 = vmatpush.msra.mxu0 %v8221
        %8740 = vmatpush.msra.mxu0 %v8219
        %8741 = vmatpush.msra.mxu0 %v8217
        %8742 = vmatpush.msra.mxu0 %v8215
        %8743 = vmatpush.msra.mxu0 %v8213
        %8744 = vmatpush.msra.mxu0 %v8211
        %8745 = vmatpush.msra.mxu0 %v8209
        %8746 = vmatpush.msra.mxu0 %v8207
        %8747 = vmatpush.msra.mxu0 %v8205
        %8748 = vmatpush.msra.mxu0 %v8203
        %8749 = vmatpush.msra.mxu0 %v8201
        %8750 = vmatpush.msra.mxu0 %v8199
        %8751 = vmatpush.msra.mxu0 %v8197
        %8752 = vmatpush.msra.mxu0 %v8195
        %8753 = vmatpush.msra.mxu0 %v8193
        %8754 = vmatmul.f32.gmra.mxu0 %v8256
        %v8755 = vpop.f32.mrf.mxu0
        %v8756 = vadd.f32 %v8355, %v8755
        %8757 = vmatmul.f32.gmra.mxu0 %v8258
        %v8758 = vpop.f32.mrf.mxu0
        %v8759 = vadd.f32 %v8360, %v8758
        %8760 = vmatmul.f32.gmra.mxu0 %v8260
        %v8761 = vpop.f32.mrf.mxu0
        %v8762 = vadd.f32 %v8365, %v8761
        %8763 = vmatmul.f32.gmra.mxu0 %v8262
        %v8764 = vpop.f32.mrf.mxu0
        %v8765 = vadd.f32 %v8370, %v8764
        %8766 = vmatmul.f32.gmra.mxu0 %v8264
        %v8767 = vpop.f32.mrf.mxu0
        %v8768 = vadd.f32 %v8375, %v8767
        %8769 = vmatmul.f32.gmra.mxu0 %v8266
        %v8770 = vpop.f32.mrf.mxu0
        %v8771 = vadd.f32 %v8380, %v8770
        %8772 = vmatmul.f32.gmra.mxu0 %v8268
        %v8773 = vpop.f32.mrf.mxu0
        %v8774 = vadd.f32 %v8385, %v8773
        %8775 = vmatmul.f32.gmra.mxu0 %v8270
        %v8776 = vpop.f32.mrf.mxu0
        %v8777 = vadd.f32 %v8390, %v8776
        %8778 = vmatmul.f32.gmra.mxu0 %v8272
        %v8779 = vpop.f32.mrf.mxu0
        %v8780 = vadd.f32 %v8395, %v8779
        %8781 = vmatmul.f32.gmra.mxu0 %v8274
        %v8782 = vpop.f32.mrf.mxu0
        %v8783 = vadd.f32 %v8400, %v8782
        %8784 = vmatmul.f32.gmra.mxu0 %v8276
        %v8785 = vpop.f32.mrf.mxu0
        %v8786 = vadd.f32 %v8405, %v8785
        %8787 = vmatmul.f32.gmra.mxu0 %v8278
        %v8788 = vpop.f32.mrf.mxu0
        %v8789 = vadd.f32 %v8410, %v8788
        %8790 = vmatmul.f32.gmra.mxu0 %v8280
        %v8791 = vpop.f32.mrf.mxu0
        %v8792 = vadd.f32 %v8415, %v8791
        %8793 = vmatmul.f32.gmra.mxu0 %v8282
        %v8794 = vpop.f32.mrf.mxu0
        %v8795 = vadd.f32 %v8420, %v8794
        %8796 = vmatmul.f32.gmra.mxu0 %v8284
        %v8797 = vpop.f32.mrf.mxu0
        %v8798 = vadd.f32 %v8425, %v8797
        %8799 = vmatmul.f32.gmra.mxu0 %v8286
        %v8800 = vpop.f32.mrf.mxu0
        %v8801 = vadd.f32 %v8430, %v8800
        %8802 = vmatmul.f32.gmra.mxu0 %v8288
        %v8803 = vpop.f32.mrf.mxu0
        %v8804 = vadd.f32 %v8435, %v8803
        %8805 = vmatmul.f32.gmra.mxu0 %v8290
        %v8806 = vpop.f32.mrf.mxu0
        %v8807 = vadd.f32 %v8440, %v8806
        %8808 = vmatmul.f32.gmra.mxu0 %v8292
        %v8809 = vpop.f32.mrf.mxu0
        %v8810 = vadd.f32 %v8445, %v8809
        %8811 = vmatmul.f32.gmra.mxu0 %v8294
        %v8812 = vpop.f32.mrf.mxu0
        %v8813 = vadd.f32 %v8450, %v8812
        %8814 = vmatmul.f32.gmra.mxu0 %v8296
        %v8815 = vpop.f32.mrf.mxu0
        %v8816 = vadd.f32 %v8455, %v8815
        %8817 = vmatmul.f32.gmra.mxu0 %v8298
        %v8818 = vpop.f32.mrf.mxu0
        %v8819 = vadd.f32 %v8460, %v8818
        %8820 = vmatmul.f32.gmra.mxu0 %v8300
        %v8821 = vpop.f32.mrf.mxu0
        %v8822 = vadd.f32 %v8465, %v8821
        %8823 = vmatmul.f32.gmra.mxu0 %v8302
        %v8824 = vpop.f32.mrf.mxu0
        %v8825 = vadd.f32 %v8470, %v8824
        %8826 = vmatmul.f32.gmra.mxu0 %v8304
        %v8827 = vpop.f32.mrf.mxu0
        %v8828 = vadd.f32 %v8475, %v8827
        %8829 = vmatmul.f32.gmra.mxu0 %v8306
        %v8830 = vpop.f32.mrf.mxu0
        %v8831 = vadd.f32 %v8480, %v8830
        %8832 = vmatmul.f32.gmra.mxu0 %v8308
        %v8833 = vpop.f32.mrf.mxu0
        %v8834 = vadd.f32 %v8485, %v8833
        %8835 = vmatmul.f32.gmra.mxu0 %v8310
        %v8836 = vpop.f32.mrf.mxu0
        %v8837 = vadd.f32 %v8490, %v8836
        %8838 = vmatmul.f32.gmra.mxu0 %v8312
        %v8839 = vpop.f32.mrf.mxu0
        %v8840 = vadd.f32 %v8495, %v8839
        %8841 = vmatmul.f32.gmra.mxu0 %v8314
        %v8842 = vpop.f32.mrf.mxu0
        %v8843 = vadd.f32 %v8500, %v8842
        %8844 = vmatmul.f32.gmra.mxu0 %v8316
        %v8845 = vpop.f32.mrf.mxu0
        %v8846 = vadd.f32 %v8505, %v8845
        %8847 = vmatmul.f32.gmra.mxu0 %v8318
        %v8848 = vpop.f32.mrf.mxu0
        %v8849 = vadd.f32 %v8510, %v8848
        %8850 = vdwg.mxu0
        %8851 = vmatpush.msra.mxu0 %v8255
        %8852 = vmatpush.msra.mxu0 %v8253
        %8853 = vmatpush.msra.mxu0 %v8251
        %8854 = vmatpush.msra.mxu0 %v8249
        %8855 = vmatpush.msra.mxu0 %v8247
        %8856 = vmatpush.msra.mxu0 %v8245
        %8857 = vmatpush.msra.mxu0 %v8243
        %8858 = vmatpush.msra.mxu0 %v8241
        %8859 = vmatpush.msra.mxu0 %v8239
        %8860 = vmatpush.msra.mxu0 %v8237
        %8861 = vmatpush.msra.mxu0 %v8235
        %8862 = vmatpush.msra.mxu0 %v8233
        %8863 = vmatpush.msra.mxu0 %v8231
        %8864 = vmatpush.msra.mxu0 %v8229
        %8865 = vmatpush.msra.mxu0 %v8227
        %8866 = vmatpush.msra.mxu0 %v8225
        %8867 = vmatmul.f32.gmra.mxu0 %v8257
        %v8868 = vpop.f32.mrf.mxu0
        %v8869 = vadd.f32 %v8756, %v8868
        %8870 = vmatmul.f32.gmra.mxu0 %v8259
        %v8871 = vpop.f32.mrf.mxu0
        %v8872 = vadd.f32 %v8759, %v8871
        %8873 = vmatmul.f32.gmra.mxu0 %v8261
        %v8874 = vpop.f32.mrf.mxu0
        %v8875 = vadd.f32 %v8762, %v8874
        %8876 = vmatmul.f32.gmra.mxu0 %v8263
        %v8877 = vpop.f32.mrf.mxu0
        %v8878 = vadd.f32 %v8765, %v8877
        %8879 = vmatmul.f32.gmra.mxu0 %v8265
        %v8880 = vpop.f32.mrf.mxu0
        %v8881 = vadd.f32 %v8768, %v8880
        %8882 = vmatmul.f32.gmra.mxu0 %v8267
        %v8883 = vpop.f32.mrf.mxu0
        %v8884 = vadd.f32 %v8771, %v8883
        %8885 = vmatmul.f32.gmra.mxu0 %v8269
        %v8886 = vpop.f32.mrf.mxu0
        %v8887 = vadd.f32 %v8774, %v8886
        %8888 = vmatmul.f32.gmra.mxu0 %v8271
        %v8889 = vpop.f32.mrf.mxu0
        %v8890 = vadd.f32 %v8777, %v8889
        %8891 = vmatmul.f32.gmra.mxu0 %v8273
        %v8892 = vpop.f32.mrf.mxu0
        %v8893 = vadd.f32 %v8780, %v8892
        %8894 = vmatmul.f32.gmra.mxu0 %v8275
        %v8895 = vpop.f32.mrf.mxu0
        %v8896 = vadd.f32 %v8783, %v8895
        %8897 = vmatmul.f32.gmra.mxu0 %v8277
        %v8898 = vpop.f32.mrf.mxu0
        %v8899 = vadd.f32 %v8786, %v8898
        %8900 = vmatmul.f32.gmra.mxu0 %v8279
        %v8901 = vpop.f32.mrf.mxu0
        %v8902 = vadd.f32 %v8789, %v8901
        %8903 = vmatmul.f32.gmra.mxu0 %v8281
        %v8904 = vpop.f32.mrf.mxu0
        %v8905 = vadd.f32 %v8792, %v8904
        %8906 = vmatmul.f32.gmra.mxu0 %v8283
        %v8907 = vpop.f32.mrf.mxu0
        %v8908 = vadd.f32 %v8795, %v8907
        %8909 = vmatmul.f32.gmra.mxu0 %v8285
        %v8910 = vpop.f32.mrf.mxu0
        %v8911 = vadd.f32 %v8798, %v8910
        %8912 = vmatmul.f32.gmra.mxu0 %v8287
        %v8913 = vpop.f32.mrf.mxu0
        %v8914 = vadd.f32 %v8801, %v8913
        %8915 = vmatmul.f32.gmra.mxu0 %v8289
        %v8916 = vpop.f32.mrf.mxu0
        %v8917 = vadd.f32 %v8804, %v8916
        %8918 = vmatmul.f32.gmra.mxu0 %v8291
        %v8919 = vpop.f32.mrf.mxu0
        %v8920 = vadd.f32 %v8807, %v8919
        %8921 = vmatmul.f32.gmra.mxu0 %v8293
        %v8922 = vpop.f32.mrf.mxu0
        %v8923 = vadd.f32 %v8810, %v8922
        %8924 = vmatmul.f32.gmra.mxu0 %v8295
        %v8925 = vpop.f32.mrf.mxu0
        %v8926 = vadd.f32 %v8813, %v8925
        %8927 = vmatmul.f32.gmra.mxu0 %v8297
        %v8928 = vpop.f32.mrf.mxu0
        %v8929 = vadd.f32 %v8816, %v8928
        %8930 = vmatmul.f32.gmra.mxu0 %v8299
        %v8931 = vpop.f32.mrf.mxu0
        %v8932 = vadd.f32 %v8819, %v8931
        %8933 = vmatmul.f32.gmra.mxu0 %v8301
        %v8934 = vpop.f32.mrf.mxu0
        %v8935 = vadd.f32 %v8822, %v8934
        %8936 = vmatmul.f32.gmra.mxu0 %v8303
        %v8937 = vpop.f32.mrf.mxu0
        %v8938 = vadd.f32 %v8825, %v8937
        %8939 = vmatmul.f32.gmra.mxu0 %v8305
        %v8940 = vpop.f32.mrf.mxu0
        %v8941 = vadd.f32 %v8828, %v8940
        %8942 = vmatmul.f32.gmra.mxu0 %v8307
        %v8943 = vpop.f32.mrf.mxu0
        %v8944 = vadd.f32 %v8831, %v8943
        %8945 = vmatmul.f32.gmra.mxu0 %v8309
        %v8946 = vpop.f32.mrf.mxu0
        %v8947 = vadd.f32 %v8834, %v8946
        %8948 = vmatmul.f32.gmra.mxu0 %v8311
        %v8949 = vpop.f32.mrf.mxu0
        %v8950 = vadd.f32 %v8837, %v8949
        %8951 = vmatmul.f32.gmra.mxu0 %v8313
        %v8952 = vpop.f32.mrf.mxu0
        %v8953 = vadd.f32 %v8840, %v8952
        %8954 = vmatmul.f32.gmra.mxu0 %v8315
        %v8955 = vpop.f32.mrf.mxu0
        %v8956 = vadd.f32 %v8843, %v8955
        %8957 = vmatmul.f32.gmra.mxu0 %v8317
        %v8958 = vpop.f32.mrf.mxu0
        %v8959 = vadd.f32 %v8846, %v8958
        %8960 = vmatmul.f32.gmra.mxu0 %v8319
        %v8961 = vpop.f32.mrf.mxu0
        %v8962 = vadd.f32 %v8849, %v8961
        %8963 = vdwg.mxu0
        %v8964 = vmax.f32 %v8643, 0.0
        %v8965 = vmax.f32 %v8869, 0.0
        %v8966 = vmax.f32 %v8646, 0.0
        %v8967 = vmax.f32 %v8872, 0.0
        %v8968 = vmax.f32 %v8649, 0.0
        %v8969 = vmax.f32 %v8875, 0.0
        %v8970 = vmax.f32 %v8652, 0.0
        %v8971 = vmax.f32 %v8878, 0.0
        %v8972 = vmax.f32 %v8655, 0.0
        %v8973 = vmax.f32 %v8881, 0.0
        %v8974 = vmax.f32 %v8658, 0.0
        %v8975 = vmax.f32 %v8884, 0.0
        %v8976 = vmax.f32 %v8661, 0.0
        %v8977 = vmax.f32 %v8887, 0.0
        %v8978 = vmax.f32 %v8664, 0.0
        %v8979 = vmax.f32 %v8890, 0.0
        %v8980 = vmax.f32 %v8667, 0.0
        %v8981 = vmax.f32 %v8893, 0.0
        %v8982 = vmax.f32 %v8670, 0.0
        %v8983 = vmax.f32 %v8896, 0.0
        %v8984 = vmax.f32 %v8673, 0.0
        %v8985 = vmax.f32 %v8899, 0.0
        %v8986 = vmax.f32 %v8676, 0.0
        %v8987 = vmax.f32 %v8902, 0.0
        %v8988 = vmax.f32 %v8679, 0.0
        %v8989 = vmax.f32 %v8905, 0.0
        %v8990 = vmax.f32 %v8682, 0.0
        %v8991 = vmax.f32 %v8908, 0.0
        %v8992 = vmax.f32 %v8685, 0.0
        %v8993 = vmax.f32 %v8911, 0.0
        %v8994 = vmax.f32 %v8688, 0.0
        %v8995 = vmax.f32 %v8914, 0.0
        %v8996 = vmax.f32 %v8691, 0.0
        %v8997 = vmax.f32 %v8917, 0.0
        %v8998 = vmax.f32 %v8694, 0.0
        %v8999 = vmax.f32 %v8920, 0.0
        %v9000 = vmax.f32 %v8697, 0.0
        %v9001 = vmax.f32 %v8923, 0.0
        %v9002 = vmax.f32 %v8700, 0.0
        %v9003 = vmax.f32 %v8926, 0.0
        %v9004 = vmax.f32 %v8703, 0.0
        %v9005 = vmax.f32 %v8929, 0.0
        %v9006 = vmax.f32 %v8706, 0.0
        %v9007 = vmax.f32 %v8932, 0.0
        %v9008 = vmax.f32 %v8709, 0.0
        %v9009 = vmax.f32 %v8935, 0.0
        %v9010 = vmax.f32 %v8712, 0.0
        %v9011 = vmax.f32 %v8938, 0.0
        %v9012 = vmax.f32 %v8715, 0.0
        %v9013 = vmax.f32 %v8941, 0.0
        %v9014 = vmax.f32 %v8718, 0.0
        %v9015 = vmax.f32 %v8944, 0.0
        %v9016 = vmax.f32 %v8721, 0.0
        %v9017 = vmax.f32 %v8947, 0.0
        %v9018 = vmax.f32 %v8724, 0.0
        %v9019 = vmax.f32 %v8950, 0.0
        %v9020 = vmax.f32 %v8727, 0.0
        %v9021 = vmax.f32 %v8953, 0.0
        %v9022 = vmax.f32 %v8730, 0.0
        %v9023 = vmax.f32 %v8956, 0.0
        %v9024 = vmax.f32 %v8733, 0.0
        %v9025 = vmax.f32 %v8959, 0.0
        %v9026 = vmax.f32 %v8736, 0.0
        %v9027 = vmax.f32 %v8962, 0.0
        %v9028 = vadd.f32 %v6400, %v8964
        %v9029 = vadd.f32 %v6401, %v8965
        %v9030 = vadd.f32 %v6402, %v8966
        %v9031 = vadd.f32 %v6403, %v8967
        %v9032 = vadd.f32 %v6404, %v8968
        %v9033 = vadd.f32 %v6405, %v8969
        %v9034 = vadd.f32 %v6406, %v8970
        %v9035 = vadd.f32 %v6407, %v8971
        %v9036 = vadd.f32 %v6408, %v8972
        %v9037 = vadd.f32 %v6409, %v8973
        %v9038 = vadd.f32 %v6410, %v8974
        %v9039 = vadd.f32 %v6411, %v8975
        %v9040 = vadd.f32 %v6412, %v8976
        %v9041 = vadd.f32 %v6413, %v8977
        %v9042 = vadd.f32 %v6414, %v8978
        %v9043 = vadd.f32 %v6415, %v8979
        %v9044 = vadd.f32 %v6416, %v8980
        %v9045 = vadd.f32 %v6417, %v8981
        %v9046 = vadd.f32 %v6418, %v8982
        %v9047 = vadd.f32 %v6419, %v8983
        %v9048 = vadd.f32 %v6420, %v8984
        %v9049 = vadd.f32 %v6421, %v8985
        %v9050 = vadd.f32 %v6422, %v8986
        %v9051 = vadd.f32 %v6423, %v8987
        %v9052 = vadd.f32 %v6424, %v8988
        %v9053 = vadd.f32 %v6425, %v8989
        %v9054 = vadd.f32 %v6426, %v8990
        %v9055 = vadd.f32 %v6427, %v8991
        %v9056 = vadd.f32 %v6428, %v8992
        %v9057 = vadd.f32 %v6429, %v8993
        %v9058 = vadd.f32 %v6430, %v8994
        %v9059 = vadd.f32 %v6431, %v8995
        %v9060 = vadd.f32 %v6432, %v8996
        %v9061 = vadd.f32 %v6433, %v8997
        %v9062 = vadd.f32 %v6434, %v8998
        %v9063 = vadd.f32 %v6435, %v8999
        %v9064 = vadd.f32 %v6436, %v9000
        %v9065 = vadd.f32 %v6437, %v9001
        %v9066 = vadd.f32 %v6438, %v9002
        %v9067 = vadd.f32 %v6439, %v9003
        %v9068 = vadd.f32 %v6440, %v9004
        %v9069 = vadd.f32 %v6441, %v9005
        %v9070 = vadd.f32 %v6442, %v9006
        %v9071 = vadd.f32 %v6443, %v9007
        %v9072 = vadd.f32 %v6444, %v9008
        %v9073 = vadd.f32 %v6445, %v9009
        %v9074 = vadd.f32 %v6446, %v9010
        %v9075 = vadd.f32 %v6447, %v9011
        %v9076 = vadd.f32 %v6448, %v9012
        %v9077 = vadd.f32 %v6449, %v9013
        %v9078 = vadd.f32 %v6450, %v9014
        %v9079 = vadd.f32 %v6451, %v9015
        %v9080 = vadd.f32 %v6452, %v9016
        %v9081 = vadd.f32 %v6453, %v9017
        %v9082 = vadd.f32 %v6454, %v9018
        %v9083 = vadd.f32 %v6455, %v9019
        %v9084 = vadd.f32 %v6456, %v9020
        %v9085 = vadd.f32 %v6457, %v9021
        %v9086 = vadd.f32 %v6458, %v9022
        %v9087 = vadd.f32 %v6459, %v9023
        %v9088 = vadd.f32 %v6460, %v9024
        %v9089 = vadd.f32 %v6461, %v9025
        %v9090 = vadd.f32 %v6462, %v9026
        %v9091 = vadd.f32 %v6463, %v9027
        %9092 = vst [vmem:[%s322] sm:$0xff] %v9028
        %9093 = vst [vmem:[%s322 + $0x8] sm:$0xff] %v9029
        %9094 = vst [vmem:[%s322 + $0x10] sm:$0xff] %v9030
        %9095 = vst [vmem:[%s322 + $0x18] sm:$0xff] %v9031
        %9096 = vst [vmem:[%s322 + $0x20] sm:$0xff] %v9032
        %9097 = vst [vmem:[%s322 + $0x28] sm:$0xff] %v9033
        %9098 = vst [vmem:[%s322 + $0x30] sm:$0xff] %v9034
        %9099 = vst [vmem:[%s322 + $0x38] sm:$0xff] %v9035
        %9100 = vst [vmem:[%s322 + $0x40] sm:$0xff] %v9036
        %9101 = vst [vmem:[%s322 + $0x48] sm:$0xff] %v9037
        %9102 = vst [vmem:[%s322 + $0x50] sm:$0xff] %v9038
        %9103 = vst [vmem:[%s322 + $0x58] sm:$0xff] %v9039
        %9104 = vst [vmem:[%s322 + $0x60] sm:$0xff] %v9040
        %9105 = vst [vmem:[%s322 + $0x68] sm:$0xff] %v9041
        %9106 = vst [vmem:[%s322 + $0x70] sm:$0xff] %v9042
        %9107 = vst [vmem:[%s322 + $0x78] sm:$0xff] %v9043
        %9108 = vst [vmem:[%s322 + $0x80] sm:$0xff] %v9044
        %9109 = vst [vmem:[%s322 + $0x88] sm:$0xff] %v9045
        %9110 = vst [vmem:[%s322 + $0x90] sm:$0xff] %v9046
        %9111 = vst [vmem:[%s322 + $0x98] sm:$0xff] %v9047
        %9112 = vst [vmem:[%s322 + $0xa0] sm:$0xff] %v9048
        %9113 = vst [vmem:[%s322 + $0xa8] sm:$0xff] %v9049
        %9114 = vst [vmem:[%s322 + $0xb0] sm:$0xff] %v9050
        %9115 = vst [vmem:[%s322 + $0xb8] sm:$0xff] %v9051
        %9116 = vst [vmem:[%s322 + $0xc0] sm:$0xff] %v9052
        %9117 = vst [vmem:[%s322 + $0xc8] sm:$0xff] %v9053
        %9118 = vst [vmem:[%s322 + $0xd0] sm:$0xff] %v9054
        %9119 = vst [vmem:[%s322 + $0xd8] sm:$0xff] %v9055
        %9120 = vst [vmem:[%s322 + $0xe0] sm:$0xff] %v9056
        %9121 = vst [vmem:[%s322 + $0xe8] sm:$0xff] %v9057
        %9122 = vst [vmem:[%s322 + $0xf0] sm:$0xff] %v9058
        %9123 = vst [vmem:[%s322 + $0xf8] sm:$0xff] %v9059
        %9124 = vst [vmem:[%s322 + $0x100] sm:$0xff] %v9060
        %9125 = vst [vmem:[%s322 + $0x108] sm:$0xff] %v9061
        %9126 = vst [vmem:[%s322 + $0x110] sm:$0xff] %v9062
        %9127 = vst [vmem:[%s322 + $0x118] sm:$0xff] %v9063
        %9128 = vst [vmem:[%s322 + $0x120] sm:$0xff] %v9064
        %9129 = vst [vmem:[%s322 + $0x128] sm:$0xff] %v9065
        %9130 = vst [vmem:[%s322 + $0x130] sm:$0xff] %v9066
        %9131 = vst [vmem:[%s322 + $0x138] sm:$0xff] %v9067
        %9132 = vst [vmem:[%s322 + $0x140] sm:$0xff] %v9068
        %9133 = vst [vmem:[%s322 + $0x148] sm:$0xff] %v9069
        %9134 = vst [vmem:[%s322 + $0x150] sm:$0xff] %v9070
        %9135 = vst [vmem:[%s322 + $0x158] sm:$0xff] %v9071
        %9136 = vst [vmem:[%s322 + $0x160] sm:$0xff] %v9072
        %9137 = vst [vmem:[%s322 + $0x168] sm:$0xff] %v9073
        %9138 = vst [vmem:[%s322 + $0x170] sm:$0xff] %v9074
        %9139 = vst [vmem:[%s322 + $0x178] sm:$0xff] %v9075
        %9140 = vst [vmem:[%s322 + $0x180] sm:$0xff] %v9076
        %9141 = vst [vmem:[%s322 + $0x188] sm:$0xff] %v9077
        %9142 = vst [vmem:[%s322 + $0x190] sm:$0xff] %v9078
        %9143 = vst [vmem:[%s322 + $0x198] sm:$0xff] %v9079
        %9144 = vst [vmem:[%s322 + $0x1a0] sm:$0xff] %v9080
        %9145 = vst [vmem:[%s322 + $0x1a8] sm:$0xff] %v9081
        %9146 = vst [vmem:[%s322 + $0x1b0] sm:$0xff] %v9082
        %9147 = vst [vmem:[%s322 + $0x1b8] sm:$0xff] %v9083
        %9148 = vst [vmem:[%s322 + $0x1c0] sm:$0xff] %v9084
        %9149 = vst [vmem:[%s322 + $0x1c8] sm:$0xff] %v9085
        %9150 = vst [vmem:[%s322 + $0x1d0] sm:$0xff] %v9086
        %9151 = vst [vmem:[%s322 + $0x1d8] sm:$0xff] %v9087
        %9152 = vst [vmem:[%s322 + $0x1e0] sm:$0xff] %v9088
        %9153 = vst [vmem:[%s322 + $0x1e8] sm:$0xff] %v9089
        %9154 = vst [vmem:[%s322 + $0x1f0] sm:$0xff] %v9090
        %9155 = vst [vmem:[%s322 + $0x1f8] sm:$0xff] %v9091
        %s9156 = sand.u32 %s179, 1
        %s9157 = scalar_lea.sflag [#allocation4], %s9156
        %s9158 = sand.u32 %s179, 1
        %s9159 = smul.addr %s9158, 512
        %s9160 = scalar_lea.vmem [#allocation8], %s9159
        // Predicated region
        $region57: #{tpu_custom_call.1} parent=43 // pred_check
          %p9161 = pneg %p189
        $region58: #{tpu_custom_call.1} parent=43 // pred_check_branch
          %9163 = sbr.rel (%p9161) target = $region60
        $region59: #{tpu_custom_call.1} parent=43 // pred_region
          %s9164 = smul.u32 2, %s29
          %9166 = vsyncadd %s9157, 0
          %s9167 = smul.addr %s28, 64
          %s9168 = sadd.s32 %s9164, %s9167
          %s9169 = smul.addr %s9168, 8
          %s9170 = scalar_lea.hbm %s6, %s9169
          %s9171 = sshll.u32 %s9160, 4
          %s9172 = int_to_ptr.vmem [resolvable:$true] %s9171
          %s9173 = sshll.u32 %s9170, 4
          %s9174 = int_to_ptr.hbm [resolvable:$true] %s9173
          %9179 = dma.vmem_to_hbm [thread:$0]  %s9172, 8192, %s9174, %s9157, 256, 256, 16
        $region60: #{tpu_custom_call.1} parent=43 // pred_fallthru
          _
      $region44: #{tpu_custom_call.1} parent=5 // pred_fallthru
        _
      %p9180 = scmp.le.s32.totalorder 2, %s19
      // Predicated region
      $region61: #{tpu_custom_call.1} parent=5 // pred_check
        %p9181 = pneg %p9180
      $region62: #{tpu_custom_call.1} parent=5 // pred_check_branch
        %9183 = sbr.rel (%p9181) target = $region64
      $region63: #{tpu_custom_call.1} parent=5 // pred_region
        %s9184 = ssub.s32 %s19, 2
        // Predicated region
        $region65: #{tpu_custom_call.1} parent=63 // pred_check
          %p9185 = pneg %p195
        $region66: #{tpu_custom_call.1} parent=63 // pred_check_branch
          %9187 = sbr.rel (%p9185) target = $region68
        $region67: #{tpu_custom_call.1} parent=63 // pred_region
          %s9188 = sand.u32 %s180, 1
          %s9189 = scalar_lea.sflag [#allocation4], %s9188
          %s9190 = sand.u32 %s180, 1
          %s9191 = smul.addr %s9190, 512
          %s9192 = scalar_lea.vmem [#allocation8], %s9191
          %9194 = dma.done %s9189, 8192
        $region68: #{tpu_custom_call.1} parent=63 // pred_fallthru
          _
      $region64: #{tpu_custom_call.1} parent=5 // pred_fallthru
        _
    $region6: #{tpu_custom_call.1} parent=1 // loop_footer
      %s23 = sadd.s32 1, %s19
    $region7: #{tpu_custom_call.1} parent=1 // loop_footer_branch
      %18 = sbr.rel target = $region3
    $region8: #{tpu_custom_call.1} parent=1 // loop_exit
      _
    %9195 = vsyncpa [#allocation3], 1
    %s9196 = scalar_lea.sflag [#allocation3], 1
    %9197 = vsyncpa %s9196, 1
    %9198 = vsyncpa [#allocation6], 1
    %9199 = vsyncpa [#allocation4], 1
    %s9200 = scalar_lea.sflag [#allocation4], 1
    %9201 = vsyncpa %s9200, 1

</llo_original>
